<compile_context>
chip_gen: v5e
topology: v5e:2x2
jax: 0.10.0
libtpu: 0.0.40
codegen_flags: <defaults>
</compile_context>

<pallas_src>
from typing import Optional

import numpy as np
import jax
import jax.numpy as jnp
from jax.experimental import pallas as pl
from jax.experimental.pallas import tpu as pltpu


_WBLK = 128   # windows per grid step (lane width of the vectorized recurrence)
_LANE = 128   # feature dims are padded up to a multiple of this (lane-dense stores)
_SUB = 8      # sublane quantum used to keep the small mask transpose tile-aligned


def _round_up(x: int, m: int) -> int:
    return ((x + m - 1) // m) * m


# ----------------------------------------------------------------------------
# Pallas kernel (one block of _WBLK windows per grid step)
# ----------------------------------------------------------------------------
def _make_kernel(n_frames: int, one_frame_time: float,
                 dets_latency: float, pose_latency: float):
    one_ft = np.float32(one_frame_time)
    d_lat = np.float32(dets_latency)
    p_lat = np.float32(pose_latency)
    max_ft = np.float32(n_frames - 1) * one_ft
    n_pad = _round_up(max(n_frames, _SUB), _SUB)

    def kernel(win_ref, dets_iv_ref, pose_iv_ref, dets_ref, pose_ref,
               dets_out_ref, pose_out_ref, mask_out_ref):
        # win_ref      : (2, WBLK) f32   row 0 = dets initial end, row 1 = pose
        # dets_iv_ref  : (N, WBLK) f32   per-frame detection intervals (frame-major)
        # pose_iv_ref  : (N, WBLK) f32
        # dets_ref     : (WBLK, N, Dd)   feature block (windows on sublanes)
        # pose_ref     : (WBLK, N, Dp)
        # mask_out_ref : (2, N, WBLK) int32  keep masks, lane-dense
        n = dets_ref.shape[1]
        wblk = dets_ref.shape[0]

        d_end = win_ref[0:1, :]                       # (1, WBLK) f32 carries
        p_end = win_ref[1:2, :]

        zero_row = jnp.zeros((1, wblk), jnp.float32)
        d_rows = []
        p_rows = []

        # Serial recurrence over frames, vectorized across WBLK windows on lanes.
        for idx in range(n):
            ft_i = np.float32(idx) * one_ft           # trace-time f32 constants
            next_t = np.float32(ft_i + one_ft)

            d_trig = next_t > d_end                   # (1, WBLK) bool
            p_trig = next_t > p_end

            # Latency gate is a trace-time constant per frame.
            d_rows.append(d_trig.astype(jnp.float32)
                          if bool(np.float32(ft_i + d_lat) <= max_ft) else zero_row)
            p_rows.append(p_trig.astype(jnp.float32)
                          if bool(np.float32(ft_i + p_lat) <= max_ft) else zero_row)

            d_iv = dets_iv_ref[idx:idx + 1, :]        # (1, WBLK)
            p_iv = pose_iv_ref[idx:idx + 1, :]

            # Processing-end update (same op order as the reference implementation).
            d_end = jnp.where(d_trig, jnp.maximum(d_end, ft_i) + d_iv, d_end)
            p_end = jnp.where(p_trig, jnp.maximum(p_end, ft_i) + p_iv, p_end)

        # Pad frame rows to a sublane multiple so the small transpose is aligned.
        for _ in range(n_pad - n):
            d_rows.append(zero_row)
            p_rows.append(zero_row)

        d_keep = jnp.concatenate(d_rows, axis=0)      # (n_pad, WBLK) f32 0/1
        p_keep = jnp.concatenate(p_rows, axis=0)

        # Lane-dense mask output (frame on sublanes, window block on lanes).
        mask_out_ref[0] = d_keep[:n].astype(jnp.int32)
        mask_out_ref[1] = p_keep[:n].astype(jnp.int32)

        # Window-major gate for the feature tiles: one tiny in-VMEM transpose.
        d_gate = jnp.transpose(d_keep)[:, :n]         # (WBLK, N)
        p_gate = jnp.transpose(p_keep)[:, :n]

        dets_out_ref[...] = jnp.where(d_gate[:, :, None] > 0.5, dets_ref[...],
                                      jnp.zeros((), dets_out_ref.dtype))
        pose_out_ref[...] = jnp.where(p_gate[:, :, None] > 0.5, pose_ref[...],
                                      jnp.zeros((), pose_out_ref.dtype))

    return kernel


def _apply_dropout(dets, poses, dets_iv, pose_iv, dets_init, pose_init,
                   one_frame_time, dets_latency, pose_latency):
    """dets/poses: (B, N, D*); intervals: (B, N) f32; initial ends: (B,) f32."""
    B, n, d_det = dets.shape
    d_pose = poses.shape[2]

    wblk = _WBLK
    b_pad = _round_up(B, wblk)
    dd_pad = _round_up(d_det, _LANE)
    dp_pad = _round_up(d_pose, _LANE)

    def pad_to(x, axis, size):
        if x.shape[axis] == size:
            return x
        cfg = [(0, 0)] * x.ndim
        cfg[axis] = (0, size - x.shape[axis])
        return jnp.pad(x, cfg)

    # Callers should supply lane-aligned feature dims / window counts to avoid
    # these (cheap, XLA-side) pads entirely.
    dets_p = pad_to(pad_to(dets, 0, b_pad), 2, dd_pad)       # (b_pad, N, Dd_pad)
    poses_p = pad_to(pad_to(poses, 0, b_pad), 2, dp_pad)     # (b_pad, N, Dp_pad)
    win = pad_to(jnp.stack([dets_init, pose_init], axis=0).astype(jnp.float32),
                 1, b_pad)                                    # (2, b_pad)
    d_iv_t = pad_to(dets_iv.astype(jnp.float32).T, 1, b_pad)  # (N, b_pad)
    p_iv_t = pad_to(pose_iv.astype(jnp.float32).T, 1, b_pad)  # (N, b_pad)

    kernel = _make_kernel(n, one_frame_time, dets_latency, pose_latency)
    num_blocks = b_pad // wblk

    dets_out, pose_out, masks = pl.pallas_call(
        kernel,
        out_shape=(
            jax.ShapeDtypeStruct((b_pad, n, dd_pad), dets.dtype),
            jax.ShapeDtypeStruct((b_pad, n, dp_pad), poses.dtype),
            jax.ShapeDtypeStruct((2, n, b_pad), jnp.int32),
        ),
        grid=(num_blocks,),
        in_specs=[
            pl.BlockSpec((2, wblk), lambda i: (0, i)),            # initial ends
            pl.BlockSpec((n, wblk), lambda i: (0, i)),            # dets intervals
            pl.BlockSpec((n, wblk), lambda i: (0, i)),            # pose intervals
            pl.BlockSpec((wblk, n, dd_pad), lambda i: (i, 0, 0)),  # dets features
            pl.BlockSpec((wblk, n, dp_pad), lambda i: (i, 0, 0)),  # pose features
        ],
        out_specs=(
            pl.BlockSpec((wblk, n, dd_pad), lambda i: (i, 0, 0)),
            pl.BlockSpec((wblk, n, dp_pad), lambda i: (i, 0, 0)),
            pl.BlockSpec((2, n, wblk), lambda i: (0, 0, i)),
        ),
        # Pure pass-through on the features: allow buffer reuse when donated.
        input_output_aliases={3: 0, 4: 1},
        compiler_params=pltpu.CompilerParams(
            dimension_semantics=("parallel",),      # window blocks are independent
            vmem_limit_bytes=32 * 1024 * 1024),
    )(win, d_iv_t, p_iv_t, dets_p, poses_p)

    if b_pad != B or dd_pad != d_det:
        dets_out = dets_out[:B, :, :d_det]
    if b_pad != B or dp_pad != d_pose:
        pose_out = pose_out[:B, :, :d_pose]
    dets_mask = masks[0, :, :B].T != 0                          # (B, N) bool
    pose_mask = masks[1, :, :B].T != 0
    return dets_out, pose_out, dets_mask, pose_mask


# ----------------------------------------------------------------------------
# Module wrapper (schedule sampling / parameter packing) — batched over windows
# ----------------------------------------------------------------------------
class DropoutFrameDataTransform:
    def __init__(self, frame_rate: float, dets_throughput_mean: float,
                 pose_throughput_mean: float, dets_latency: Optional[float] = None,
                 pose_latency: Optional[float] = None,
                 dets_throughput_std: float = 0.0, pose_throughput_std: float = 0.0,
                 fixed_pattern: bool = False):
        self.frame_rate = frame_rate
        self.dets_throughput_mean = dets_throughput_mean
        self.pose_throughput_mean = pose_throughput_mean
        self.dets_throughput_std = dets_throughput_std
        self.pose_throughput_std = pose_throughput_std
        self.dets_latency = (dets_latency if dets_latency is not None
                             else 1.0 / dets_throughput_mean)
        self.pose_latency = (pose_latency if pose_latency is not None
                             else 1.0 / pose_throughput_mean)
        self.fixed_pattern = fixed_pattern

    def sample_schedule(self, batch: int, n_frames: int, key=None):
        """torch.normal / torch.rand replaced with device-side jax.random."""
        if self.fixed_pattern:
            dets_interval = jnp.full((batch, n_frames),
                                     1.0 / self.dets_throughput_mean, jnp.float32)
            pose_interval = jnp.full((batch, n_frames),
                                     1.0 / self.pose_throughput_mean, jnp.float32)
            dets_init = 0.5 * dets_interval[:, 0]
            pose_init = 0.5 * pose_interval[:, 0]
        else:
            assert key is not None
            k1, k2, k3, k4 = jax.random.split(key, 4)
            d_thr = (self.dets_throughput_mean
                     + self.dets_throughput_std
                     * jax.random.normal(k1, (batch, n_frames), jnp.float32))
            p_thr = (self.pose_throughput_mean
                     + self.pose_throughput_std
                     * jax.random.normal(k2, (batch, n_frames), jnp.float32))
            # Guard against non-positive sampled throughput (degenerate intervals).
            d_thr = jnp.maximum(d_thr, 1e-6)
            p_thr = jnp.maximum(p_thr, 1e-6)
            dets_interval = (1.0 / d_thr).astype(jnp.float32)
            pose_interval = (1.0 / p_thr).astype(jnp.float32)
            dets_init = (jax.random.uniform(k3, (batch,), jnp.float32)
                         * dets_interval[:, 0])
            pose_init = (jax.random.uniform(k4, (batch,), jnp.float32)
                         * pose_interval[:, 0])
        return dets_interval, pose_interval, dets_init, pose_init

    def __call__(self, dets: jnp.ndarray, poses: jnp.ndarray, key=None):
        """dets: (B, N, D_det), poses: (B, N, D_pose) — dtype preserved."""
        B, n, _ = dets.shape
        d_iv, p_iv, d0, p0 = self.sample_schedule(B, n, key)
        outs = _apply_dropout(dets, poses, d_iv, p_iv, d0, p0,
                              1.0 / self.frame_rate,
                              self.dets_latency, self.pose_latency)
        return outs, (d_iv, p_iv, d0, p0)


# ----------------------------------------------------------------------------
# NumPy reference of the original forward-pass mask logic (for verification)
# ----------------------------------------------------------------------------
def _reference_masks(n, one_ft, d_iv, p_iv, d0, p0, d_lat, p_lat):
    one_ft = np.float32(one_ft)
    d_lat = np.float32(d_lat)
    p_lat = np.float32(p_lat)
    max_ft = np.float32(n - 1) * one_ft
    d_iv = np.asarray(d_iv, np.float32)
    p_iv = np.asarray(p_iv, np.float32)
    d_end, p_end = np.float32(d0), np.float32(p0)
    dmask = np.zeros(n, bool)
    pmask = np.zeros(n, bool)
    for i in range(n):
        ft_i = np.float32(i) * one_ft
        nxt = np.float32(ft_i + one_ft)
        if nxt > d_end:
            dmask[i] = (ft_i + d_lat) <= max_ft
            base = d_end if d_end >= ft_i else ft_i
            d_end = np.float32(base + d_iv[i])
        if nxt > p_end:
            pmask[i] = (ft_i + p_lat) <= max_ft
            base = p_end if p_end >= ft_i else ft_i
            p_end = np.float32(base + p_iv[i])
    return dmask, pmask


def _verify(outs, sched, dets_np, poses_np, tfm):
    dets_out, pose_out, dmask, pmask = [np.asarray(o) for o in outs]
    d_iv = np.asarray(sched[0]); p_iv = np.asarray(sched[1])
    d0 = np.asarray(sched[2]); p0 = np.asarray(sched[3])
    B, n, _ = dets_np.shape
    assert dets_out.shape == dets_np.shape and pose_out.shape == poses_np.shape
    assert dets_out.dtype == dets_np.dtype and pose_out.dtype == poses_np.dtype
    for b in range(B):
        ref_d, ref_p = _reference_masks(
            n, 1.0 / tfm.frame_rate, d_iv[b], p_iv[b], d0[b], p0[b],
            tfm.dets_latency, tfm.pose_latency)
        assert np.array_equal(dmask[b], ref_d), (b, dmask[b], ref_d)
        assert np.array_equal(pmask[b], ref_p), (b, pmask[b], ref_p)
        np.testing.assert_array_equal(
            dets_out[b], np.where(ref_d[:, None], dets_np[b], np.float32(0)))
        np.testing.assert_array_equal(
            pose_out[b], np.where(ref_p[:, None], poses_np[b], np.float32(0)))


if __name__ == "__main__":
    key = jax.random.PRNGKey(0)
    k_sched, k_dets, k_pose = jax.random.split(key, 3)

    B, N_FRAMES, D_DET, D_POSE = 160, 16, 128, 64
    dets = jax.random.normal(k_dets, (B, N_FRAMES, D_DET), jnp.float32)
    poses = jax.random.normal(k_pose, (B, N_FRAMES, D_POSE), jnp.float32)
    dets_np = np.asarray(dets)
    poses_np = np.asarray(poses)

    # Random-schedule path (grid of 2 window-blocks, window + feature padding).
    tfm = DropoutFrameDataTransform(
        frame_rate=15.0,
        dets_throughput_mean=10.0,
        pose_throughput_mean=5.0,
        dets_throughput_std=0.5,
        pose_throughput_std=0.2,
        fixed_pattern=False,
    )
    outs, sched = tfm(dets, poses, key=k_sched)
    jax.block_until_ready(outs)
    _verify(outs, sched, dets_np, poses_np, tfm)

    # Fixed-pattern path (validation / test mode) on a smaller batch.
    B2 = 24
    tfm_fixed = DropoutFrameDataTransform(
        frame_rate=15.0, dets_throughput_mean=10.0, pose_throughput_mean=5.0,
        fixed_pattern=True)
    outs_f, sched_f = tfm_fixed(dets[:B2], poses[:B2])
    jax.block_until_ready(outs_f)
    _verify(outs_f, sched_f, dets_np[:B2], poses_np[:B2], tfm_fixed)

    print("KERNEL_OK")
</pallas_src>

<mosaic_0001>
module attributes {stable_mosaic.version = 11 : i64} {
  func.func @kernel(%arg0: i32, %arg1: memref<2x128xf32, #tpu.memory_space<vmem>>, %arg2: memref<16x128xf32, #tpu.memory_space<vmem>>, %arg3: memref<16x128xf32, #tpu.memory_space<vmem>>, %arg4: memref<128x16x128xf32, #tpu.memory_space<vmem>>, %arg5: memref<128x16x128xf32, #tpu.memory_space<vmem>>, %arg6: memref<128x16x128xf32, #tpu.memory_space<vmem>>, %arg7: memref<128x16x128xf32, #tpu.memory_space<vmem>>, %arg8: memref<2x16x128xi32, #tpu.memory_space<vmem>>) attributes {dimension_semantics = [#tpu.dimension_semantics<parallel>], iteration_bounds = array<i64: 2>, scalar_prefetch = 0 : i64, scratch_operands = 0 : i64, tpu.core_type = #tpu.core_type<tc>, window_params = [{transform_indices = @transform_0, window_bounds = array<i64: 2, 128>}, {transform_indices = @transform_1, window_bounds = array<i64: 16, 128>}, {transform_indices = @transform_2, window_bounds = array<i64: 16, 128>}, {transform_indices = @transform_3, window_bounds = array<i64: 128, 16, 128>}, {transform_indices = @transform_4, window_bounds = array<i64: 128, 16, 128>}, {transform_indices = @transform_5, window_bounds = array<i64: 128, 16, 128>}, {transform_indices = @transform_6, window_bounds = array<i64: 128, 16, 128>}, {transform_indices = @transform_7, window_bounds = array<i64: 2, 16, 128>}]} {
    %c0 = arith.constant 0 : index
    %c0_0 = arith.constant 0 : index
    %0 = vector.load %arg1[%c0, %c0_0] : memref<2x128xf32, #tpu.memory_space<vmem>>, vector<1x128xf32>
    %c1 = arith.constant 1 : index
    %c0_1 = arith.constant 0 : index
    %1 = vector.load %arg1[%c1, %c0_1] : memref<2x128xf32, #tpu.memory_space<vmem>>, vector<1x128xf32>
    %cst = arith.constant 0.000000e+00 : f32
    %2 = vector.broadcast %cst : f32 to vector<1x128xf32>
    %cst_2 = arith.constant 0.0666666701 : f32
    %3 = vector.broadcast %cst_2 : f32 to vector<1x128xf32>
    %4 = arith.cmpf olt, %0, %3 : vector<1x128xf32>
    %cst_3 = arith.constant 0.0666666701 : f32
    %5 = vector.broadcast %cst_3 : f32 to vector<1x128xf32>
    %6 = arith.cmpf olt, %1, %5 : vector<1x128xf32>
    %7 = arith.extui %4 : vector<1x128xi1> to vector<1x128xi32>
    %8 = arith.sitofp %7 : vector<1x128xi32> to vector<1x128xf32>
    %9 = arith.extui %6 : vector<1x128xi1> to vector<1x128xi32>
    %10 = arith.sitofp %9 : vector<1x128xi32> to vector<1x128xf32>
    %c0_4 = arith.constant 0 : index
    %c0_5 = arith.constant 0 : index
    %11 = vector.load %arg2[%c0_4, %c0_5] : memref<16x128xf32, #tpu.memory_space<vmem>>, vector<1x128xf32>
    %c0_6 = arith.constant 0 : index
    %c0_7 = arith.constant 0 : index
    %12 = vector.load %arg3[%c0_6, %c0_7] : memref<16x128xf32, #tpu.memory_space<vmem>>, vector<1x128xf32>
    %cst_8 = arith.constant 0.000000e+00 : f32
    %13 = vector.broadcast %cst_8 : f32 to vector<1x128xf32>
    %14 = arith.maximumf %0, %13 : vector<1x128xf32>
    %15 = arith.addf %14, %11 : vector<1x128xf32>
    %16 = arith.select %4, %15, %0 : vector<1x128xi1>, vector<1x128xf32>
    %cst_9 = arith.constant 0.000000e+00 : f32
    %17 = vector.broadcast %cst_9 : f32 to vector<1x128xf32>
    %18 = arith.maximumf %1, %17 : vector<1x128xf32>
    %19 = arith.addf %18, %12 : vector<1x128xf32>
    %20 = arith.select %6, %19, %1 : vector<1x128xi1>, vector<1x128xf32>
    %cst_10 = arith.constant 0.13333334 : f32
    %21 = vector.broadcast %cst_10 : f32 to vector<1x128xf32>
    %22 = arith.cmpf olt, %16, %21 : vector<1x128xf32>
    %cst_11 = arith.constant 0.13333334 : f32
    %23 = vector.broadcast %cst_11 : f32 to vector<1x128xf32>
    %24 = arith.cmpf olt, %20, %23 : vector<1x128xf32>
    %25 = arith.extui %22 : vector<1x128xi1> to vector<1x128xi32>
    %26 = arith.sitofp %25 : vector<1x128xi32> to vector<1x128xf32>
    %27 = arith.extui %24 : vector<1x128xi1> to vector<1x128xi32>
    %28 = arith.sitofp %27 : vector<1x128xi32> to vector<1x128xf32>
    %c1_12 = arith.constant 1 : index
    %c0_13 = arith.constant 0 : index
    %29 = vector.load %arg2[%c1_12, %c0_13] : memref<16x128xf32, #tpu.memory_space<vmem>>, vector<1x128xf32>
    %c1_14 = arith.constant 1 : index
    %c0_15 = arith.constant 0 : index
    %30 = vector.load %arg3[%c1_14, %c0_15] : memref<16x128xf32, #tpu.memory_space<vmem>>, vector<1x128xf32>
    %cst_16 = arith.constant 0.0666666701 : f32
    %31 = vector.broadcast %cst_16 : f32 to vector<1x128xf32>
    %32 = arith.maximumf %16, %31 : vector<1x128xf32>
    %33 = arith.addf %32, %29 : vector<1x128xf32>
    %34 = arith.select %22, %33, %16 : vector<1x128xi1>, vector<1x128xf32>
    %cst_17 = arith.constant 0.0666666701 : f32
    %35 = vector.broadcast %cst_17 : f32 to vector<1x128xf32>
    %36 = arith.maximumf %20, %35 : vector<1x128xf32>
    %37 = arith.addf %36, %30 : vector<1x128xf32>
    %38 = arith.select %24, %37, %20 : vector<1x128xi1>, vector<1x128xf32>
    %cst_18 = arith.constant 0.200000018 : f32
    %39 = vector.broadcast %cst_18 : f32 to vector<1x128xf32>
    %40 = arith.cmpf olt, %34, %39 : vector<1x128xf32>
    %cst_19 = arith.constant 0.200000018 : f32
    %41 = vector.broadcast %cst_19 : f32 to vector<1x128xf32>
    %42 = arith.cmpf olt, %38, %41 : vector<1x128xf32>
    %43 = arith.extui %40 : vector<1x128xi1> to vector<1x128xi32>
    %44 = arith.sitofp %43 : vector<1x128xi32> to vector<1x128xf32>
    %45 = arith.extui %42 : vector<1x128xi1> to vector<1x128xi32>
    %46 = arith.sitofp %45 : vector<1x128xi32> to vector<1x128xf32>
    %c2 = arith.constant 2 : index
    %c0_20 = arith.constant 0 : index
    %47 = vector.load %arg2[%c2, %c0_20] : memref<16x128xf32, #tpu.memory_space<vmem>>, vector<1x128xf32>
    %c2_21 = arith.constant 2 : index
    %c0_22 = arith.constant 0 : index
    %48 = vector.load %arg3[%c2_21, %c0_22] : memref<16x128xf32, #tpu.memory_space<vmem>>, vector<1x128xf32>
    %cst_23 = arith.constant 0.13333334 : f32
    %49 = vector.broadcast %cst_23 : f32 to vector<1x128xf32>
    %50 = arith.maximumf %34, %49 : vector<1x128xf32>
    %51 = arith.addf %50, %47 : vector<1x128xf32>
    %52 = arith.select %40, %51, %34 : vector<1x128xi1>, vector<1x128xf32>
    %cst_24 = arith.constant 0.13333334 : f32
    %53 = vector.broadcast %cst_24 : f32 to vector<1x128xf32>
    %54 = arith.maximumf %38, %53 : vector<1x128xf32>
    %55 = arith.addf %54, %48 : vector<1x128xf32>
    %56 = arith.select %42, %55, %38 : vector<1x128xi1>, vector<1x128xf32>
    %cst_25 = arith.constant 0.266666681 : f32
    %57 = vector.broadcast %cst_25 : f32 to vector<1x128xf32>
    %58 = arith.cmpf olt, %52, %57 : vector<1x128xf32>
    %cst_26 = arith.constant 0.266666681 : f32
    %59 = vector.broadcast %cst_26 : f32 to vector<1x128xf32>
    %60 = arith.cmpf olt, %56, %59 : vector<1x128xf32>
    %61 = arith.extui %58 : vector<1x128xi1> to vector<1x128xi32>
    %62 = arith.sitofp %61 : vector<1x128xi32> to vector<1x128xf32>
    %63 = arith.extui %60 : vector<1x128xi1> to vector<1x128xi32>
    %64 = arith.sitofp %63 : vector<1x128xi32> to vector<1x128xf32>
    %c3 = arith.constant 3 : index
    %c0_27 = arith.constant 0 : index
    %65 = vector.load %arg2[%c3, %c0_27] : memref<16x128xf32, #tpu.memory_space<vmem>>, vector<1x128xf32>
    %c3_28 = arith.constant 3 : index
    %c0_29 = arith.constant 0 : index
    %66 = vector.load %arg3[%c3_28, %c0_29] : memref<16x128xf32, #tpu.memory_space<vmem>>, vector<1x128xf32>
    %cst_30 = arith.constant 0.200000018 : f32
    %67 = vector.broadcast %cst_30 : f32 to vector<1x128xf32>
    %68 = arith.maximumf %52, %67 : vector<1x128xf32>
    %69 = arith.addf %68, %65 : vector<1x128xf32>
    %70 = arith.select %58, %69, %52 : vector<1x128xi1>, vector<1x128xf32>
    %cst_31 = arith.constant 0.200000018 : f32
    %71 = vector.broadcast %cst_31 : f32 to vector<1x128xf32>
    %72 = arith.maximumf %56, %71 : vector<1x128xf32>
    %73 = arith.addf %72, %66 : vector<1x128xf32>
    %74 = arith.select %60, %73, %56 : vector<1x128xi1>, vector<1x128xf32>
    %cst_32 = arith.constant 0.333333343 : f32
    %75 = vector.broadcast %cst_32 : f32 to vector<1x128xf32>
    %76 = arith.cmpf olt, %70, %75 : vector<1x128xf32>
    %cst_33 = arith.constant 0.333333343 : f32
    %77 = vector.broadcast %cst_33 : f32 to vector<1x128xf32>
    %78 = arith.cmpf olt, %74, %77 : vector<1x128xf32>
    %79 = arith.extui %76 : vector<1x128xi1> to vector<1x128xi32>
    %80 = arith.sitofp %79 : vector<1x128xi32> to vector<1x128xf32>
    %81 = arith.extui %78 : vector<1x128xi1> to vector<1x128xi32>
    %82 = arith.sitofp %81 : vector<1x128xi32> to vector<1x128xf32>
    %c4 = arith.constant 4 : index
    %c0_34 = arith.constant 0 : index
    %83 = vector.load %arg2[%c4, %c0_34] : memref<16x128xf32, #tpu.memory_space<vmem>>, vector<1x128xf32>
    %c4_35 = arith.constant 4 : index
    %c0_36 = arith.constant 0 : index
    %84 = vector.load %arg3[%c4_35, %c0_36] : memref<16x128xf32, #tpu.memory_space<vmem>>, vector<1x128xf32>
    %cst_37 = arith.constant 0.266666681 : f32
    %85 = vector.broadcast %cst_37 : f32 to vector<1x128xf32>
    %86 = arith.maximumf %70, %85 : vector<1x128xf32>
    %87 = arith.addf %86, %83 : vector<1x128xf32>
    %88 = arith.select %76, %87, %70 : vector<1x128xi1>, vector<1x128xf32>
    %cst_38 = arith.constant 0.266666681 : f32
    %89 = vector.broadcast %cst_38 : f32 to vector<1x128xf32>
    %90 = arith.maximumf %74, %89 : vector<1x128xf32>
    %91 = arith.addf %90, %84 : vector<1x128xf32>
    %92 = arith.select %78, %91, %74 : vector<1x128xi1>, vector<1x128xf32>
    %cst_39 = arith.constant 4.000000e-01 : f32
    %93 = vector.broadcast %cst_39 : f32 to vector<1x128xf32>
    %94 = arith.cmpf olt, %88, %93 : vector<1x128xf32>
    %cst_40 = arith.constant 4.000000e-01 : f32
    %95 = vector.broadcast %cst_40 : f32 to vector<1x128xf32>
    %96 = arith.cmpf olt, %92, %95 : vector<1x128xf32>
    %97 = arith.extui %94 : vector<1x128xi1> to vector<1x128xi32>
    %98 = arith.sitofp %97 : vector<1x128xi32> to vector<1x128xf32>
    %99 = arith.extui %96 : vector<1x128xi1> to vector<1x128xi32>
    %100 = arith.sitofp %99 : vector<1x128xi32> to vector<1x128xf32>
    %c5 = arith.constant 5 : index
    %c0_41 = arith.constant 0 : index
    %101 = vector.load %arg2[%c5, %c0_41] : memref<16x128xf32, #tpu.memory_space<vmem>>, vector<1x128xf32>
    %c5_42 = arith.constant 5 : index
    %c0_43 = arith.constant 0 : index
    %102 = vector.load %arg3[%c5_42, %c0_43] : memref<16x128xf32, #tpu.memory_space<vmem>>, vector<1x128xf32>
    %cst_44 = arith.constant 0.333333343 : f32
    %103 = vector.broadcast %cst_44 : f32 to vector<1x128xf32>
    %104 = arith.maximumf %88, %103 : vector<1x128xf32>
    %105 = arith.addf %104, %101 : vector<1x128xf32>
    %106 = arith.select %94, %105, %88 : vector<1x128xi1>, vector<1x128xf32>
    %cst_45 = arith.constant 0.333333343 : f32
    %107 = vector.broadcast %cst_45 : f32 to vector<1x128xf32>
    %108 = arith.maximumf %92, %107 : vector<1x128xf32>
    %109 = arith.addf %108, %102 : vector<1x128xf32>
    %110 = arith.select %96, %109, %92 : vector<1x128xi1>, vector<1x128xf32>
    %cst_46 = arith.constant 0.466666698 : f32
    %111 = vector.broadcast %cst_46 : f32 to vector<1x128xf32>
    %112 = arith.cmpf olt, %106, %111 : vector<1x128xf32>
    %cst_47 = arith.constant 0.466666698 : f32
    %113 = vector.broadcast %cst_47 : f32 to vector<1x128xf32>
    %114 = arith.cmpf olt, %110, %113 : vector<1x128xf32>
    %115 = arith.extui %112 : vector<1x128xi1> to vector<1x128xi32>
    %116 = arith.sitofp %115 : vector<1x128xi32> to vector<1x128xf32>
    %117 = arith.extui %114 : vector<1x128xi1> to vector<1x128xi32>
    %118 = arith.sitofp %117 : vector<1x128xi32> to vector<1x128xf32>
    %c6 = arith.constant 6 : index
    %c0_48 = arith.constant 0 : index
    %119 = vector.load %arg2[%c6, %c0_48] : memref<16x128xf32, #tpu.memory_space<vmem>>, vector<1x128xf32>
    %c6_49 = arith.constant 6 : index
    %c0_50 = arith.constant 0 : index
    %120 = vector.load %arg3[%c6_49, %c0_50] : memref<16x128xf32, #tpu.memory_space<vmem>>, vector<1x128xf32>
    %cst_51 = arith.constant 0.400000036 : f32
    %121 = vector.broadcast %cst_51 : f32 to vector<1x128xf32>
    %122 = arith.maximumf %106, %121 : vector<1x128xf32>
    %123 = arith.addf %122, %119 : vector<1x128xf32>
    %124 = arith.select %112, %123, %106 : vector<1x128xi1>, vector<1x128xf32>
    %cst_52 = arith.constant 0.400000036 : f32
    %125 = vector.broadcast %cst_52 : f32 to vector<1x128xf32>
    %126 = arith.maximumf %110, %125 : vector<1x128xf32>
    %127 = arith.addf %126, %120 : vector<1x128xf32>
    %128 = arith.select %114, %127, %110 : vector<1x128xi1>, vector<1x128xf32>
    %cst_53 = arith.constant 0.533333361 : f32
    %129 = vector.broadcast %cst_53 : f32 to vector<1x128xf32>
    %130 = arith.cmpf olt, %124, %129 : vector<1x128xf32>
    %cst_54 = arith.constant 0.533333361 : f32
    %131 = vector.broadcast %cst_54 : f32 to vector<1x128xf32>
    %132 = arith.cmpf olt, %128, %131 : vector<1x128xf32>
    %133 = arith.extui %130 : vector<1x128xi1> to vector<1x128xi32>
    %134 = arith.sitofp %133 : vector<1x128xi32> to vector<1x128xf32>
    %135 = arith.extui %132 : vector<1x128xi1> to vector<1x128xi32>
    %136 = arith.sitofp %135 : vector<1x128xi32> to vector<1x128xf32>
    %c7 = arith.constant 7 : index
    %c0_55 = arith.constant 0 : index
    %137 = vector.load %arg2[%c7, %c0_55] : memref<16x128xf32, #tpu.memory_space<vmem>>, vector<1x128xf32>
    %c7_56 = arith.constant 7 : index
    %c0_57 = arith.constant 0 : index
    %138 = vector.load %arg3[%c7_56, %c0_57] : memref<16x128xf32, #tpu.memory_space<vmem>>, vector<1x128xf32>
    %cst_58 = arith.constant 0.466666698 : f32
    %139 = vector.broadcast %cst_58 : f32 to vector<1x128xf32>
    %140 = arith.maximumf %124, %139 : vector<1x128xf32>
    %141 = arith.addf %140, %137 : vector<1x128xf32>
    %142 = arith.select %130, %141, %124 : vector<1x128xi1>, vector<1x128xf32>
    %cst_59 = arith.constant 0.466666698 : f32
    %143 = vector.broadcast %cst_59 : f32 to vector<1x128xf32>
    %144 = arith.maximumf %128, %143 : vector<1x128xf32>
    %145 = arith.addf %144, %138 : vector<1x128xf32>
    %146 = arith.select %132, %145, %128 : vector<1x128xi1>, vector<1x128xf32>
    %cst_60 = arith.constant 6.000000e-01 : f32
    %147 = vector.broadcast %cst_60 : f32 to vector<1x128xf32>
    %148 = arith.cmpf olt, %142, %147 : vector<1x128xf32>
    %cst_61 = arith.constant 6.000000e-01 : f32
    %149 = vector.broadcast %cst_61 : f32 to vector<1x128xf32>
    %150 = arith.cmpf olt, %146, %149 : vector<1x128xf32>
    %151 = arith.extui %148 : vector<1x128xi1> to vector<1x128xi32>
    %152 = arith.sitofp %151 : vector<1x128xi32> to vector<1x128xf32>
    %153 = arith.extui %150 : vector<1x128xi1> to vector<1x128xi32>
    %154 = arith.sitofp %153 : vector<1x128xi32> to vector<1x128xf32>
    %c8 = arith.constant 8 : index
    %c0_62 = arith.constant 0 : index
    %155 = vector.load %arg2[%c8, %c0_62] : memref<16x128xf32, #tpu.memory_space<vmem>>, vector<1x128xf32>
    %c8_63 = arith.constant 8 : index
    %c0_64 = arith.constant 0 : index
    %156 = vector.load %arg3[%c8_63, %c0_64] : memref<16x128xf32, #tpu.memory_space<vmem>>, vector<1x128xf32>
    %cst_65 = arith.constant 0.533333361 : f32
    %157 = vector.broadcast %cst_65 : f32 to vector<1x128xf32>
    %158 = arith.maximumf %142, %157 : vector<1x128xf32>
    %159 = arith.addf %158, %155 : vector<1x128xf32>
    %160 = arith.select %148, %159, %142 : vector<1x128xi1>, vector<1x128xf32>
    %cst_66 = arith.constant 0.533333361 : f32
    %161 = vector.broadcast %cst_66 : f32 to vector<1x128xf32>
    %162 = arith.maximumf %146, %161 : vector<1x128xf32>
    %163 = arith.addf %162, %156 : vector<1x128xf32>
    %164 = arith.select %150, %163, %146 : vector<1x128xi1>, vector<1x128xf32>
    %cst_67 = arith.constant 0.666666686 : f32
    %165 = vector.broadcast %cst_67 : f32 to vector<1x128xf32>
    %166 = arith.cmpf olt, %160, %165 : vector<1x128xf32>
    %cst_68 = arith.constant 0.666666686 : f32
    %167 = vector.broadcast %cst_68 : f32 to vector<1x128xf32>
    %168 = arith.cmpf olt, %164, %167 : vector<1x128xf32>
    %169 = arith.extui %166 : vector<1x128xi1> to vector<1x128xi32>
    %170 = arith.sitofp %169 : vector<1x128xi32> to vector<1x128xf32>
    %171 = arith.extui %168 : vector<1x128xi1> to vector<1x128xi32>
    %172 = arith.sitofp %171 : vector<1x128xi32> to vector<1x128xf32>
    %c9 = arith.constant 9 : index
    %c0_69 = arith.constant 0 : index
    %173 = vector.load %arg2[%c9, %c0_69] : memref<16x128xf32, #tpu.memory_space<vmem>>, vector<1x128xf32>
    %c9_70 = arith.constant 9 : index
    %c0_71 = arith.constant 0 : index
    %174 = vector.load %arg3[%c9_70, %c0_71] : memref<16x128xf32, #tpu.memory_space<vmem>>, vector<1x128xf32>
    %cst_72 = arith.constant 6.000000e-01 : f32
    %175 = vector.broadcast %cst_72 : f32 to vector<1x128xf32>
    %176 = arith.maximumf %160, %175 : vector<1x128xf32>
    %177 = arith.addf %176, %173 : vector<1x128xf32>
    %178 = arith.select %166, %177, %160 : vector<1x128xi1>, vector<1x128xf32>
    %cst_73 = arith.constant 6.000000e-01 : f32
    %179 = vector.broadcast %cst_73 : f32 to vector<1x128xf32>
    %180 = arith.maximumf %164, %179 : vector<1x128xf32>
    %181 = arith.addf %180, %174 : vector<1x128xf32>
    %182 = arith.select %168, %181, %164 : vector<1x128xi1>, vector<1x128xf32>
    %cst_74 = arith.constant 0.733333349 : f32
    %183 = vector.broadcast %cst_74 : f32 to vector<1x128xf32>
    %184 = arith.cmpf olt, %178, %183 : vector<1x128xf32>
    %cst_75 = arith.constant 0.733333349 : f32
    %185 = vector.broadcast %cst_75 : f32 to vector<1x128xf32>
    %186 = arith.cmpf olt, %182, %185 : vector<1x128xf32>
    %187 = arith.extui %184 : vector<1x128xi1> to vector<1x128xi32>
    %188 = arith.sitofp %187 : vector<1x128xi32> to vector<1x128xf32>
    %189 = arith.extui %186 : vector<1x128xi1> to vector<1x128xi32>
    %190 = arith.sitofp %189 : vector<1x128xi32> to vector<1x128xf32>
    %c10 = arith.constant 10 : index
    %c0_76 = arith.constant 0 : index
    %191 = vector.load %arg2[%c10, %c0_76] : memref<16x128xf32, #tpu.memory_space<vmem>>, vector<1x128xf32>
    %c10_77 = arith.constant 10 : index
    %c0_78 = arith.constant 0 : index
    %192 = vector.load %arg3[%c10_77, %c0_78] : memref<16x128xf32, #tpu.memory_space<vmem>>, vector<1x128xf32>
    %cst_79 = arith.constant 0.666666686 : f32
    %193 = vector.broadcast %cst_79 : f32 to vector<1x128xf32>
    %194 = arith.maximumf %178, %193 : vector<1x128xf32>
    %195 = arith.addf %194, %191 : vector<1x128xf32>
    %196 = arith.select %184, %195, %178 : vector<1x128xi1>, vector<1x128xf32>
    %cst_80 = arith.constant 0.666666686 : f32
    %197 = vector.broadcast %cst_80 : f32 to vector<1x128xf32>
    %198 = arith.maximumf %182, %197 : vector<1x128xf32>
    %199 = arith.addf %198, %192 : vector<1x128xf32>
    %200 = arith.select %186, %199, %182 : vector<1x128xi1>, vector<1x128xf32>
    %cst_81 = arith.constant 8.000000e-01 : f32
    %201 = vector.broadcast %cst_81 : f32 to vector<1x128xf32>
    %202 = arith.cmpf olt, %196, %201 : vector<1x128xf32>
    %cst_82 = arith.constant 8.000000e-01 : f32
    %203 = vector.broadcast %cst_82 : f32 to vector<1x128xf32>
    %204 = arith.cmpf olt, %200, %203 : vector<1x128xf32>
    %205 = arith.extui %202 : vector<1x128xi1> to vector<1x128xi32>
    %206 = arith.sitofp %205 : vector<1x128xi32> to vector<1x128xf32>
    %207 = arith.extui %204 : vector<1x128xi1> to vector<1x128xi32>
    %208 = arith.sitofp %207 : vector<1x128xi32> to vector<1x128xf32>
    %c11 = arith.constant 11 : index
    %c0_83 = arith.constant 0 : index
    %209 = vector.load %arg2[%c11, %c0_83] : memref<16x128xf32, #tpu.memory_space<vmem>>, vector<1x128xf32>
    %cst_84 = arith.constant 0.733333349 : f32
    %210 = vector.broadcast %cst_84 : f32 to vector<1x128xf32>
    %211 = arith.maximumf %196, %210 : vector<1x128xf32>
    %212 = arith.addf %211, %209 : vector<1x128xf32>
    %213 = arith.select %202, %212, %196 : vector<1x128xi1>, vector<1x128xf32>
    %cst_85 = arith.constant 0.866666734 : f32
    %214 = vector.broadcast %cst_85 : f32 to vector<1x128xf32>
    %215 = arith.cmpf olt, %213, %214 : vector<1x128xf32>
    %216 = arith.extui %215 : vector<1x128xi1> to vector<1x128xi32>
    %217 = arith.sitofp %216 : vector<1x128xi32> to vector<1x128xf32>
    %c12 = arith.constant 12 : index
    %c0_86 = arith.constant 0 : index
    %218 = vector.load %arg2[%c12, %c0_86] : memref<16x128xf32, #tpu.memory_space<vmem>>, vector<1x128xf32>
    %cst_87 = arith.constant 0.800000071 : f32
    %219 = vector.broadcast %cst_87 : f32 to vector<1x128xf32>
    %220 = arith.maximumf %213, %219 : vector<1x128xf32>
    %221 = arith.addf %220, %218 : vector<1x128xf32>
    %222 = arith.select %215, %221, %213 : vector<1x128xi1>, vector<1x128xf32>
    %cst_88 = arith.constant 0.933333396 : f32
    %223 = vector.broadcast %cst_88 : f32 to vector<1x128xf32>
    %224 = arith.cmpf olt, %222, %223 : vector<1x128xf32>
    %225 = arith.extui %224 : vector<1x128xi1> to vector<1x128xi32>
    %226 = arith.sitofp %225 : vector<1x128xi32> to vector<1x128xf32>
    %227 = tpu.concatenate %8, %26, %44, %62, %80, %98, %116, %134, %152, %170, %188, %206, %217, %226, %2, %2 in 0 : vector<1x128xf32>, vector<1x128xf32>, vector<1x128xf32>, vector<1x128xf32>, vector<1x128xf32>, vector<1x128xf32>, vector<1x128xf32>, vector<1x128xf32>, vector<1x128xf32>, vector<1x128xf32>, vector<1x128xf32>, vector<1x128xf32>, vector<1x128xf32>, vector<1x128xf32>, vector<1x128xf32>, vector<1x128xf32> -> vector<16x128xf32>
    %228 = tpu.concatenate %10, %28, %46, %64, %82, %100, %118, %136, %154, %172, %190, %208, %2, %2, %2, %2 in 0 : vector<1x128xf32>, vector<1x128xf32>, vector<1x128xf32>, vector<1x128xf32>, vector<1x128xf32>, vector<1x128xf32>, vector<1x128xf32>, vector<1x128xf32>, vector<1x128xf32>, vector<1x128xf32>, vector<1x128xf32>, vector<1x128xf32>, vector<1x128xf32>, vector<1x128xf32>, vector<1x128xf32>, vector<1x128xf32> -> vector<16x128xf32>
    %229 = arith.fptosi %227 : vector<16x128xf32> to vector<16x128xi32>
    %c0_89 = arith.constant 0 : index
    %c0_90 = arith.constant 0 : index
    %c0_91 = arith.constant 0 : index
    %230 = vector.load %arg8[%c0_89, %c0_90, %c0_91] : memref<2x16x128xi32, #tpu.memory_space<vmem>>, vector<1x16x128xi32>
    %231 = vector.shape_cast %230 : vector<1x16x128xi32> to vector<16x128xi32>
    %232 = vector.shape_cast %229 : vector<16x128xi32> to vector<1x16x128xi32>
    tpu.vector_store %arg8[%c0_89, %c0_90, %c0_91], %232 {strides = array<i32>} : memref<2x16x128xi32, #tpu.memory_space<vmem>>, vector<1x16x128xi32>,
    %233 = arith.fptosi %228 : vector<16x128xf32> to vector<16x128xi32>
    %c1_92 = arith.constant 1 : index
    %c0_93 = arith.constant 0 : index
    %c0_94 = arith.constant 0 : index
    %234 = vector.load %arg8[%c1_92, %c0_93, %c0_94] : memref<2x16x128xi32, #tpu.memory_space<vmem>>, vector<1x16x128xi32>
    %235 = vector.shape_cast %234 : vector<1x16x128xi32> to vector<16x128xi32>
    %236 = vector.shape_cast %233 : vector<16x128xi32> to vector<1x16x128xi32>
    tpu.vector_store %arg8[%c1_92, %c0_93, %c0_94], %236 {strides = array<i32>} : memref<2x16x128xi32, #tpu.memory_space<vmem>>, vector<1x16x128xi32>,
    %237 = tpu.transpose %227, [1, 0] : vector<16x128xf32> -> vector<128x16xf32>
    %238 = tpu.transpose %228, [1, 0] : vector<16x128xf32> -> vector<128x16xf32>
    %239 = vector.shape_cast %237 : vector<128x16xf32> to vector<128x16x1xf32>
    %cst_95 = arith.constant 5.000000e-01 : f32
    %240 = vector.broadcast %cst_95 : f32 to vector<128x16x1xf32>
    %241 = arith.cmpf ogt, %239, %240 : vector<128x16x1xf32>
    %c0_96 = arith.constant 0 : index
    %c0_97 = arith.constant 0 : index
    %c0_98 = arith.constant 0 : index
    %242 = vector.load %arg4[%c0_96, %c0_97, %c0_98] : memref<128x16x128xf32, #tpu.memory_space<vmem>>, vector<128x16x128xf32>
    %cst_99 = arith.constant 0.000000e+00 : f32
    %243 = vector.shape_cast %241 : vector<128x16x1xi1> to vector<128x16x1xi1>
    %244 = vector.broadcast %243 : vector<128x16x1xi1> to vector<128x16x128xi1>
    %245 = vector.broadcast %cst_99 : f32 to vector<128x16x128xf32>
    %246 = arith.select %244, %242, %245 : vector<128x16x128xi1>, vector<128x16x128xf32>
    %c0_100 = arith.constant 0 : index
    %c0_101 = arith.constant 0 : index
    %c0_102 = arith.constant 0 : index
    %247 = vector.load %arg6[%c0_100, %c0_101, %c0_102] : memref<128x16x128xf32, #tpu.memory_space<vmem>>, vector<128x16x128xf32>
    tpu.vector_store %arg6[%c0_100, %c0_101, %c0_102], %246 {strides = array<i32>} : memref<128x16x128xf32, #tpu.memory_space<vmem>>, vector<128x16x128xf32>,
    %248 = vector.shape_cast %238 : vector<128x16xf32> to vector<128x16x1xf32>
    %cst_103 = arith.constant 5.000000e-01 : f32
    %249 = vector.broadcast %cst_103 : f32 to vector<128x16x1xf32>
    %250 = arith.cmpf ogt, %248, %249 : vector<128x16x1xf32>
    %c0_104 = arith.constant 0 : index
    %c0_105 = arith.constant 0 : index
    %c0_106 = arith.constant 0 : index
    %251 = vector.load %arg5[%c0_104, %c0_105, %c0_106] : memref<128x16x128xf32, #tpu.memory_space<vmem>>, vector<128x16x128xf32>
    %cst_107 = arith.constant 0.000000e+00 : f32
    %252 = vector.shape_cast %250 : vector<128x16x1xi1> to vector<128x16x1xi1>
    %253 = vector.broadcast %252 : vector<128x16x1xi1> to vector<128x16x128xi1>
    %254 = vector.broadcast %cst_107 : f32 to vector<128x16x128xf32>
    %255 = arith.select %253, %251, %254 : vector<128x16x128xi1>, vector<128x16x128xf32>
    %c0_108 = arith.constant 0 : index
    %c0_109 = arith.constant 0 : index
    %c0_110 = arith.constant 0 : index
    %256 = vector.load %arg7[%c0_108, %c0_109, %c0_110] : memref<128x16x128xf32, #tpu.memory_space<vmem>>, vector<128x16x128xf32>
    tpu.vector_store %arg7[%c0_108, %c0_109, %c0_110], %255 {strides = array<i32>} : memref<128x16x128xf32, #tpu.memory_space<vmem>>, vector<128x16x128xf32>,
    return
  }
  func.func @transform_0(%arg0: i32) -> (i32, i32) {
    %c0_i32 = arith.constant 0 : i32
    %c0_i32_0 = arith.constant 0 : i32
    return %c0_i32, %arg0 : i32, i32
  }
  func.func @transform_1(%arg0: i32) -> (i32, i32) {
    %c0_i32 = arith.constant 0 : i32
    %c0_i32_0 = arith.constant 0 : i32
    return %c0_i32, %arg0 : i32, i32
  }
  func.func @transform_2(%arg0: i32) -> (i32, i32) {
    %c0_i32 = arith.constant 0 : i32
    %c0_i32_0 = arith.constant 0 : i32
    return %c0_i32, %arg0 : i32, i32
  }
  func.func @transform_3(%arg0: i32) -> (i32, i32, i32) {
    %c0_i32 = arith.constant 0 : i32
    %c0_i32_0 = arith.constant 0 : i32
    %c0_i32_1 = arith.constant 0 : i32
    return %arg0, %c0_i32, %c0_i32_0 : i32, i32, i32
  }
  func.func @transform_4(%arg0: i32) -> (i32, i32, i32) {
    %c0_i32 = arith.constant 0 : i32
    %c0_i32_0 = arith.constant 0 : i32
    %c0_i32_1 = arith.constant 0 : i32
    return %arg0, %c0_i32, %c0_i32_0 : i32, i32, i32
  }
  func.func @transform_5(%arg0: i32) -> (i32, i32, i32) {
    %c0_i32 = arith.constant 0 : i32
    %c0_i32_0 = arith.constant 0 : i32
    %c0_i32_1 = arith.constant 0 : i32
    return %arg0, %c0_i32, %c0_i32_0 : i32, i32, i32
  }
  func.func @transform_6(%arg0: i32) -> (i32, i32, i32) {
    %c0_i32 = arith.constant 0 : i32
    %c0_i32_0 = arith.constant 0 : i32
    %c0_i32_1 = arith.constant 0 : i32
    return %arg0, %c0_i32, %c0_i32_0 : i32, i32, i32
  }
  func.func @transform_7(%arg0: i32) -> (i32, i32, i32) {
    %c0_i32 = arith.constant 0 : i32
    %c0_i32_0 = arith.constant 0 : i32
    %c0_i32_1 = arith.constant 0 : i32
    return %c0_i32, %c0_i32_0, %arg0 : i32, i32, i32
  }
}

</mosaic_0001>

<llo_original>
// kernel: tpu_custom_call.1
$region0: #{tpu_custom_call.1}
  #allocation0 [shape = 'u32[]', space=smem, size = 0x4, offset = 0x4, fixed_abs, tag = 'smem constant byte address 0x4 - core index']
  #allocation1 [shape = 'u32[72,128]{1,0:T(1,128)}', space=vmem, size = 0x9000, scoped, tag = 'internal scratch']
  %s0 = inlined_call_operand.vmem [shape: f32[2,256], index: 0, kind: input, shape index: {}]
  %s1 = inlined_call_operand.vmem [shape: f32[16,256], index: 1, kind: input, shape index: {}]
  %s2 = inlined_call_operand.vmem [shape: f32[16,256], index: 2, kind: input, shape index: {}]
  %s3 = inlined_call_operand.hbm [shape: f32[256,16,128], index: 3, kind: input, shape index: {}, may-alias: {3,5}]
  %s4 = inlined_call_operand.hbm [shape: f32[256,16,128], index: 4, kind: input, shape index: {}, may-alias: {4,6}]
  %s5 = inlined_call_operand.hbm [shape: f32[256,16,128], index: 5, kind: output, shape index: {0}, may-alias: {3,5}]
  %s6 = inlined_call_operand.hbm [shape: f32[256,16,128], index: 6, kind: output, shape index: {1}, may-alias: {4,6}]
  %s7 = inlined_call_operand.hbm [shape: s32[2,16,256], index: 7, kind: output, shape index: {2}]
  %8 = xla_tuple %s5, %s6, %s7
  %s9 = sld [smem:[#allocation0]]
  $region153: #{tpu_custom_call.1} parent=0
    _
  %s11 = ssub.s32 1, %s9
  %s12 = scalar_select 0, %s11, %s9
  $region1: #{tpu_custom_call.1} parent=0
    #allocation2 [shape = 'u8[16384]{0}', space=vmem, size = 0x4000, scoped, tag = 'input window, operand 1']
    #allocation3 [shape = 'u8[16384]{0}', space=vmem, size = 0x4000, scoped, tag = 'input window, operand 2']
    #allocation4 [shape = 'u8[2097152]{0}', space=vmem, size = 0x200000, scoped, tag = 'input window, operand 3']
    #allocation5 [shape = 's32[2]{0}', space=sflag, size = 0x8, scoped, tag = 'scoped memory for tpu_custom_call.1']
    #allocation6 [shape = 's32[2]{0}', space=sflag, size = 0x8, scoped, tag = 'scoped memory for tpu_custom_call.1']
    #allocation7 [shape = 'u8[2097152]{0}', space=vmem, size = 0x200000, scoped, tag = 'input window, operand 4']
    #allocation8 [shape = 's32[2]{0}', space=sflag, size = 0x8, scoped, tag = 'scoped memory for tpu_custom_call.1']
    #allocation9 [shape = 'u8[2097152]{0}', space=vmem, size = 0x200000, scoped, tag = 'output window, operand 0']
    #allocation10 [shape = 'u8[2097152]{0}', space=vmem, size = 0x200000, scoped, tag = 'output window, operand 1']
    #allocation11 [shape = 's32[2]{0}', space=sflag, size = 0x8, scoped, tag = 'scoped memory for tpu_custom_call.1']
    #allocation12 [shape = 'u8[32768]{0}', space=vmem, size = 0x8000, scoped, tag = 'output window, operand 2']
    %13 = vsyncpa [#allocation5], 0
    %s14 = scalar_lea.sflag [#allocation5], 1
    %15 = vsyncpa %s14, 0
    %16 = vsyncpa [#allocation8], 0
    %s17 = scalar_lea.sflag [#allocation8], 1
    %18 = vsyncpa %s17, 0
    %19 = vsyncpa [#allocation6], 0
    %s20 = scalar_lea.sflag [#allocation6], 1
    %21 = vsyncpa %s20, 0
    %22 = vsyncpa [#allocation11], 0
    %s23 = scalar_lea.sflag [#allocation11], 1
    %24 = vsyncpa %s23, 0
    loop: start=0, step=1, limit=4
    $region2: #{tpu_custom_call.1} parent=1 // loop_pre_header
      _
    $region3: #{tpu_custom_call.1} parent=1 // loop_header
      %s26 = sphi 0, %s30
      %p27 = scmp.ge.s32.totalorder %s26, 4
      %s36 = sphi 0, %s38
      %s39 = sphi 0, %s36
      %s40 = sphi 0, %s39
      %s56 = sphi 0, %s40
      %s62 = sphi 0, %s64
      %s65 = sphi 0, %s62
      %s66 = sphi 0, %s65
      %s82 = sphi 0, %s66
      %s88 = sphi 0, %s90
      %s91 = sphi 0, %s88
      %s92 = sphi 0, %s91
      %s108 = sphi 0, %s92
      %s114 = sphi 0, %s116
      %s117 = sphi 0, %s114
      %s118 = sphi 0, %s117
      %s134 = sphi 0, %s118
      %s140 = sphi 0, %s142
      %s143 = sphi 0, %s140
      %s144 = sphi 0, %s143
      %s160 = sphi 0, %s144
      %s166 = sphi 0, %s168
      %s169 = sphi 0, %s166
      %s170 = sphi 0, %s169
      %s186 = sphi 0, %s170
      %s192 = sphi 0, %s194
      %s195 = sphi 0, %s192
      %s196 = sphi 0, %s195
      %s212 = sphi 0, %s196
      %s218 = sphi 0, %s220
      %s221 = sphi 0, %s218
      %s222 = sphi 0, %s221
      %s238 = sphi 0, %s222
    $region4: #{tpu_custom_call.1} parent=1 // loop_header_branch
      %29 = sbr.rel (%p27) target = $region8
    $region5: #{tpu_custom_call.1} parent=1 // loop_body
      %s31 = ssub.s32 %s26, 1
      %s32 = ssub.s32 %s26, 2
      %s33 = sadd.s32 %s26, 1
      %s34 = ssub.s32 %s26, %s33
      %p35 = scmp.eq.s32.totalorder %s34, 0
      %s37 = sadd.s32 %s36, 1
      %s38 = scalar_select %p35, %s36, %s37
      %p41 = pneg %p35
      %p42 = scmp.eq.s32.totalorder %s26, 1
      %p43 = por %p41, %p42
      %p44 = scmp.ne.s32.totalorder %s36, %s39
      %p45 = scmp.eq.s32.totalorder %s26, 0
      %p46 = por %p44, %p45
      %p47 = scmp.ne.s32.totalorder %s36, %s39
      %p48 = scmp.eq.s32.totalorder %s31, 1
      %p49 = por %p47, %p48
      %p50 = scmp.ne.s32.totalorder %s39, %s40
      %p51 = scmp.eq.s32.totalorder %s31, 0
      %p52 = por %p50, %p51
      %p53 = scmp.ne.s32.totalorder %s39, %s40
      %p54 = scmp.eq.s32.totalorder %s32, 1
      %p55 = por %p53, %p54
      %p57 = scmp.ne.s32.totalorder %s40, %s56
      %p58 = scmp.eq.s32.totalorder %s32, 0
      %p59 = por %p57, %p58
      %s60 = ssub.s32 %s26, %s33
      %p61 = scmp.eq.s32.totalorder %s60, 0
      %s63 = sadd.s32 %s62, 1
      %s64 = scalar_select %p61, %s62, %s63
      %p67 = pneg %p61
      %p68 = scmp.eq.s32.totalorder %s26, 1
      %p69 = por %p67, %p68
      %p70 = scmp.ne.s32.totalorder %s62, %s65
      %p71 = scmp.eq.s32.totalorder %s26, 0
      %p72 = por %p70, %p71
      %p73 = scmp.ne.s32.totalorder %s62, %s65
      %p74 = scmp.eq.s32.totalorder %s31, 1
      %p75 = por %p73, %p74
      %p76 = scmp.ne.s32.totalorder %s65, %s66
      %p77 = scmp.eq.s32.totalorder %s31, 0
      %p78 = por %p76, %p77
      %p79 = scmp.ne.s32.totalorder %s65, %s66
      %p80 = scmp.eq.s32.totalorder %s32, 1
      %p81 = por %p79, %p80
      %p83 = scmp.ne.s32.totalorder %s66, %s82
      %p84 = scmp.eq.s32.totalorder %s32, 0
      %p85 = por %p83, %p84
      %s86 = ssub.s32 %s26, %s33
      %p87 = scmp.eq.s32.totalorder %s86, 0
      %s89 = sadd.s32 %s88, 1
      %s90 = scalar_select %p87, %s88, %s89
      %p93 = pneg %p87
      %p94 = scmp.eq.s32.totalorder %s26, 1
      %p95 = por %p93, %p94
      %p96 = scmp.ne.s32.totalorder %s88, %s91
      %p97 = scmp.eq.s32.totalorder %s26, 0
      %p98 = por %p96, %p97
      %p99 = scmp.ne.s32.totalorder %s88, %s91
      %p100 = scmp.eq.s32.totalorder %s31, 1
      %p101 = por %p99, %p100
      %p102 = scmp.ne.s32.totalorder %s91, %s92
      %p103 = scmp.eq.s32.totalorder %s31, 0
      %p104 = por %p102, %p103
      %p105 = scmp.ne.s32.totalorder %s91, %s92
      %p106 = scmp.eq.s32.totalorder %s32, 1
      %p107 = por %p105, %p106
      %p109 = scmp.ne.s32.totalorder %s92, %s108
      %p110 = scmp.eq.s32.totalorder %s32, 0
      %p111 = por %p109, %p110
      %s112 = ssub.s32 %s26, %s33
      %p113 = scmp.eq.s32.totalorder %s112, 0
      %s115 = sadd.s32 %s114, 1
      %s116 = scalar_select %p113, %s114, %s115
      %p119 = pneg %p113
      %p120 = scmp.eq.s32.totalorder %s26, 1
      %p121 = por %p119, %p120
      %p122 = scmp.ne.s32.totalorder %s114, %s117
      %p123 = scmp.eq.s32.totalorder %s26, 0
      %p124 = por %p122, %p123
      %p125 = scmp.ne.s32.totalorder %s114, %s117
      %p126 = scmp.eq.s32.totalorder %s31, 1
      %p127 = por %p125, %p126
      %p128 = scmp.ne.s32.totalorder %s117, %s118
      %p129 = scmp.eq.s32.totalorder %s31, 0
      %p130 = por %p128, %p129
      %p131 = scmp.ne.s32.totalorder %s117, %s118
      %p132 = scmp.eq.s32.totalorder %s32, 1
      %p133 = por %p131, %p132
      %p135 = scmp.ne.s32.totalorder %s118, %s134
      %p136 = scmp.eq.s32.totalorder %s32, 0
      %p137 = por %p135, %p136
      %s138 = ssub.s32 %s26, %s33
      %p139 = scmp.eq.s32.totalorder %s138, 0
      %s141 = sadd.s32 %s140, 1
      %s142 = scalar_select %p139, %s140, %s141
      %p145 = pneg %p139
      %p146 = scmp.eq.s32.totalorder %s26, 1
      %p147 = por %p145, %p146
      %p148 = scmp.ne.s32.totalorder %s140, %s143
      %p149 = scmp.eq.s32.totalorder %s26, 0
      %p150 = por %p148, %p149
      %p151 = scmp.ne.s32.totalorder %s140, %s143
      %p152 = scmp.eq.s32.totalorder %s31, 1
      %p153 = por %p151, %p152
      %p154 = scmp.ne.s32.totalorder %s143, %s144
      %p155 = scmp.eq.s32.totalorder %s31, 0
      %p156 = por %p154, %p155
      %p157 = scmp.ne.s32.totalorder %s143, %s144
      %p158 = scmp.eq.s32.totalorder %s32, 1
      %p159 = por %p157, %p158
      %p161 = scmp.ne.s32.totalorder %s144, %s160
      %p162 = scmp.eq.s32.totalorder %s32, 0
      %p163 = por %p161, %p162
      %s164 = ssub.s32 %s26, %s33
      %p165 = scmp.eq.s32.totalorder %s164, 0
      %s167 = sadd.s32 %s166, 1
      %s168 = scalar_select %p165, %s166, %s167
      %p171 = pneg %p165
      %p172 = scmp.eq.s32.totalorder %s26, 1
      %p173 = por %p171, %p172
      %p174 = scmp.ne.s32.totalorder %s166, %s169
      %p175 = scmp.eq.s32.totalorder %s26, 0
      %p176 = por %p174, %p175
      %p177 = scmp.ne.s32.totalorder %s166, %s169
      %p178 = scmp.eq.s32.totalorder %s31, 1
      %p179 = por %p177, %p178
      %p180 = scmp.ne.s32.totalorder %s169, %s170
      %p181 = scmp.eq.s32.totalorder %s31, 0
      %p182 = por %p180, %p181
      %p183 = scmp.ne.s32.totalorder %s169, %s170
      %p184 = scmp.eq.s32.totalorder %s32, 1
      %p185 = por %p183, %p184
      %p187 = scmp.ne.s32.totalorder %s170, %s186
      %p188 = scmp.eq.s32.totalorder %s32, 0
      %p189 = por %p187, %p188
      %s190 = ssub.s32 %s26, %s33
      %p191 = scmp.eq.s32.totalorder %s190, 0
      %s193 = sadd.s32 %s192, 1
      %s194 = scalar_select %p191, %s192, %s193
      %p197 = pneg %p191
      %p198 = scmp.eq.s32.totalorder %s26, 1
      %p199 = por %p197, %p198
      %p200 = scmp.ne.s32.totalorder %s192, %s195
      %p201 = scmp.eq.s32.totalorder %s26, 0
      %p202 = por %p200, %p201
      %p203 = scmp.ne.s32.totalorder %s192, %s195
      %p204 = scmp.eq.s32.totalorder %s31, 1
      %p205 = por %p203, %p204
      %p206 = scmp.ne.s32.totalorder %s195, %s196
      %p207 = scmp.eq.s32.totalorder %s31, 0
      %p208 = por %p206, %p207
      %p209 = scmp.ne.s32.totalorder %s195, %s196
      %p210 = scmp.eq.s32.totalorder %s32, 1
      %p211 = por %p209, %p210
      %p213 = scmp.ne.s32.totalorder %s196, %s212
      %p214 = scmp.eq.s32.totalorder %s32, 0
      %p215 = por %p213, %p214
      %s216 = ssub.s32 %s26, %s33
      %p217 = scmp.eq.s32.totalorder %s216, 0
      %s219 = sadd.s32 %s218, 1
      %s220 = scalar_select %p217, %s218, %s219
      %p223 = pneg %p217
      %p224 = scmp.eq.s32.totalorder %s26, 1
      %p225 = por %p223, %p224
      %p226 = scmp.ne.s32.totalorder %s218, %s221
      %p227 = scmp.eq.s32.totalorder %s26, 0
      %p228 = por %p226, %p227
      %p229 = scmp.ne.s32.totalorder %s218, %s221
      %p230 = scmp.eq.s32.totalorder %s31, 1
      %p231 = por %p229, %p230
      %p232 = scmp.ne.s32.totalorder %s221, %s222
      %p233 = scmp.eq.s32.totalorder %s31, 0
      %p234 = por %p232, %p233
      %p235 = scmp.ne.s32.totalorder %s221, %s222
      %p236 = scmp.eq.s32.totalorder %s32, 1
      %p237 = por %p235, %p236
      %p239 = scmp.ne.s32.totalorder %s222, %s238
      %p240 = scmp.eq.s32.totalorder %s32, 0
      %p241 = por %p239, %p240
      %p242 = scmp.le.s32.totalorder 1, %s26
      %p243 = scmp.lt.s32.totalorder %s26, 3
      %p244 = pnand %p242, %p243
      %p245 = pneg %p244
      // Predicated region
      $region9: #{tpu_custom_call.1} parent=5 // pred_check
        _
      $region10: #{tpu_custom_call.1} parent=5 // pred_check_branch
        %247 = sbr.rel (%p244) target = $region12
      $region11: #{tpu_custom_call.1} parent=5 // pred_region
        %s248 = ssub.s32 %s26, 1
      $region12: #{tpu_custom_call.1} parent=5 // pred_fallthru
        _
      %p249 = scmp.lt.s32.totalorder %s26, 2
      // Predicated region
      $region13: #{tpu_custom_call.1} parent=5 // pred_check
        %p250 = pneg %p249
      $region14: #{tpu_custom_call.1} parent=5 // pred_check_branch
        %252 = sbr.rel (%p250) target = $region16
      $region15: #{tpu_custom_call.1} parent=5 // pred_region
        // Predicated region
        $region17: #{tpu_custom_call.1} parent=15 // pred_check
          %p253 = pneg %p46
        $region18: #{tpu_custom_call.1} parent=15 // pred_check_branch
          %255 = sbr.rel (%p253) target = $region20
        $region19: #{tpu_custom_call.1} parent=15 // pred_region
          %p256 = scmp.lt.s32.totalorder %s26, 1
          %s257 = scalar_select %p256, %s26, 1
          %s258 = smul.addr %s257, 2
          %s259 = scalar_lea.vmem %s0, %s258
        $region20: #{tpu_custom_call.1} parent=15 // pred_fallthru
          _
        // Predicated region
        $region21: #{tpu_custom_call.1} parent=15 // pred_check
          %p260 = pneg %p72
        $region22: #{tpu_custom_call.1} parent=15 // pred_check_branch
          %262 = sbr.rel (%p260) target = $region24
        $region23: #{tpu_custom_call.1} parent=15 // pred_region
          %s263 = sand.u32 %s62, 1
          %s264 = sand.u32 %s62, 1
          %s265 = smul.addr %s264, 16
          %s266 = scalar_lea.vmem [#allocation2], %s265
          %s267 = smul.addr %s26, 8
          %s268 = scalar_lea.vmem %s1, %s267
          // Predicated region
          $region25: #{tpu_custom_call.1} parent=23 // pred_check
            _
          $region26: #{tpu_custom_call.1} parent=23 // pred_check_branch
            %270 = sbr.rel (0) target = $region28
          $region27: #{tpu_custom_call.1} parent=23 // pred_region
            // Predicated region
            $region29: #{tpu_custom_call.1} parent=27 // pred_check
              _
            $region30: #{tpu_custom_call.1} parent=27 // pred_check_branch
              %272 = sbr.rel (0) target = $region32
            $region31: #{tpu_custom_call.1} parent=27 // pred_region
              // Predicated region
              $region44: #{tpu_custom_call.1} parent=31 // pred_check
                _
              $region45: #{tpu_custom_call.1} parent=31 // pred_check_branch
                %290 = sbr.rel (0) target = $region47
              $region46: #{tpu_custom_call.1} parent=31 // pred_region
                loop: start=0, step=1, limit=1
                $region48: #{tpu_custom_call.1} parent=46 // loop_pre_header
                  _
                $region49: #{tpu_custom_call.1} parent=46 // loop_header
                  %s292 = sphi 0, %s296
                  %p293 = scmp.ge.s32.totalorder %s292, 1
                  %s297 = sphi %s268, %s268
                  %s298 = sphi %s266, %s266
                $region50: #{tpu_custom_call.1} parent=46 // loop_header_branch
                  %295 = sbr.rel (%p293) target = $region54
                $region51: #{tpu_custom_call.1} parent=46 // loop_body
                  %v299 = vld [vmem:[%s297] sm:$0xff]
                  %300 = vst [vmem:[%s298] sm:$0xff] %v299
                  %v301 = vld [vmem:[%s297 + $0x10] sm:$0xff]
                  %302 = vst [vmem:[%s298 + $0x8] sm:$0xff] %v301
                $region52: #{tpu_custom_call.1} parent=46 // loop_footer
                  %s296 = sadd.s32 1, %s292
                $region53: #{tpu_custom_call.1} parent=46 // loop_footer_branch
                  %291 = sbr.rel target = $region49
                $region54: #{tpu_custom_call.1} parent=46 // loop_exit
                  _
              $region47: #{tpu_custom_call.1} parent=31 // pred_fallthru
                _
              // Predicated region
              $region55: #{tpu_custom_call.1} parent=31 // pred_check
                _
              $region56: #{tpu_custom_call.1} parent=31 // pred_check_branch
                %304 = sbr.rel target = $region58
              $region57: #{tpu_custom_call.1} parent=31 // pred_region
                _
              $region58: #{tpu_custom_call.1} parent=31 // pred_fallthru
                _
            $region32: #{tpu_custom_call.1} parent=27 // pred_fallthru
              _
            // Predicated region
            $region33: #{tpu_custom_call.1} parent=27 // pred_check
              _
            $region34: #{tpu_custom_call.1} parent=27 // pred_check_branch
              %274 = sbr.rel target = $region36
            $region35: #{tpu_custom_call.1} parent=27 // pred_region
              %s276 = ssub.s32 256, 1
              loop: start=0, step=1, limit=1
              $region37: #{tpu_custom_call.1} parent=35 // loop_pre_header
                _
              $region38: #{tpu_custom_call.1} parent=35 // loop_header
                %s278 = sphi 0, %s282
                %p279 = scmp.ge.s32.totalorder %s278, 1
                %s283 = sphi %s268, %s268
                %s284 = sphi %s266, %s266
              $region39: #{tpu_custom_call.1} parent=35 // loop_header_branch
                %281 = sbr.rel (%p279) target = $region43
              $region40: #{tpu_custom_call.1} parent=35 // loop_body
                %v285 = vld [vmem:[%s283] sm:%s276]
                %286 = vst [vmem:[%s284] sm:%s276] %v285
                %v287 = vld [vmem:[%s283 + $0x10] sm:%s276]
                %288 = vst [vmem:[%s284 + $0x8] sm:%s276] %v287
              $region41: #{tpu_custom_call.1} parent=35 // loop_footer
                %s282 = sadd.s32 1, %s278
              $region42: #{tpu_custom_call.1} parent=35 // loop_footer_branch
                %277 = sbr.rel target = $region38
              $region43: #{tpu_custom_call.1} parent=35 // loop_exit
                _
            $region36: #{tpu_custom_call.1} parent=27 // pred_fallthru
              _
          $region28: #{tpu_custom_call.1} parent=23 // pred_fallthru
            _
          %305 = vnop
        $region24: #{tpu_custom_call.1} parent=15 // pred_fallthru
          _
        // Predicated region
        $region59: #{tpu_custom_call.1} parent=15 // pred_check
          %p306 = pneg %p98
        $region60: #{tpu_custom_call.1} parent=15 // pred_check_branch
          %308 = sbr.rel (%p306) target = $region62
        $region61: #{tpu_custom_call.1} parent=15 // pred_region
          %s309 = sand.u32 %s88, 1
          %s310 = sand.u32 %s88, 1
          %s311 = smul.addr %s310, 16
          %s312 = scalar_lea.vmem [#allocation3], %s311
          %s313 = smul.addr %s26, 8
          %s314 = scalar_lea.vmem %s2, %s313
          // Predicated region
          $region63: #{tpu_custom_call.1} parent=61 // pred_check
            _
          $region64: #{tpu_custom_call.1} parent=61 // pred_check_branch
            %316 = sbr.rel (0) target = $region66
          $region65: #{tpu_custom_call.1} parent=61 // pred_region
            // Predicated region
            $region67: #{tpu_custom_call.1} parent=65 // pred_check
              _
            $region68: #{tpu_custom_call.1} parent=65 // pred_check_branch
              %318 = sbr.rel (0) target = $region70
            $region69: #{tpu_custom_call.1} parent=65 // pred_region
              // Predicated region
              $region82: #{tpu_custom_call.1} parent=69 // pred_check
                _
              $region83: #{tpu_custom_call.1} parent=69 // pred_check_branch
                %336 = sbr.rel (0) target = $region85
              $region84: #{tpu_custom_call.1} parent=69 // pred_region
                loop: start=0, step=1, limit=1
                $region86: #{tpu_custom_call.1} parent=84 // loop_pre_header
                  _
                $region87: #{tpu_custom_call.1} parent=84 // loop_header
                  %s338 = sphi 0, %s342
                  %p339 = scmp.ge.s32.totalorder %s338, 1
                  %s343 = sphi %s314, %s314
                  %s344 = sphi %s312, %s312
                $region88: #{tpu_custom_call.1} parent=84 // loop_header_branch
                  %341 = sbr.rel (%p339) target = $region92
                $region89: #{tpu_custom_call.1} parent=84 // loop_body
                  %v345 = vld [vmem:[%s343] sm:$0xff]
                  %346 = vst [vmem:[%s344] sm:$0xff] %v345
                  %v347 = vld [vmem:[%s343 + $0x10] sm:$0xff]
                  %348 = vst [vmem:[%s344 + $0x8] sm:$0xff] %v347
                $region90: #{tpu_custom_call.1} parent=84 // loop_footer
                  %s342 = sadd.s32 1, %s338
                $region91: #{tpu_custom_call.1} parent=84 // loop_footer_branch
                  %337 = sbr.rel target = $region87
                $region92: #{tpu_custom_call.1} parent=84 // loop_exit
                  _
              $region85: #{tpu_custom_call.1} parent=69 // pred_fallthru
                _
              // Predicated region
              $region93: #{tpu_custom_call.1} parent=69 // pred_check
                _
              $region94: #{tpu_custom_call.1} parent=69 // pred_check_branch
                %350 = sbr.rel target = $region96
              $region95: #{tpu_custom_call.1} parent=69 // pred_region
                _
              $region96: #{tpu_custom_call.1} parent=69 // pred_fallthru
                _
            $region70: #{tpu_custom_call.1} parent=65 // pred_fallthru
              _
            // Predicated region
            $region71: #{tpu_custom_call.1} parent=65 // pred_check
              _
            $region72: #{tpu_custom_call.1} parent=65 // pred_check_branch
              %320 = sbr.rel target = $region74
            $region73: #{tpu_custom_call.1} parent=65 // pred_region
              %s322 = ssub.s32 256, 1
              loop: start=0, step=1, limit=1
              $region75: #{tpu_custom_call.1} parent=73 // loop_pre_header
                _
              $region76: #{tpu_custom_call.1} parent=73 // loop_header
                %s324 = sphi 0, %s328
                %p325 = scmp.ge.s32.totalorder %s324, 1
                %s329 = sphi %s314, %s314
                %s330 = sphi %s312, %s312
              $region77: #{tpu_custom_call.1} parent=73 // loop_header_branch
                %327 = sbr.rel (%p325) target = $region81
              $region78: #{tpu_custom_call.1} parent=73 // loop_body
                %v331 = vld [vmem:[%s329] sm:%s322]
                %332 = vst [vmem:[%s330] sm:%s322] %v331
                %v333 = vld [vmem:[%s329 + $0x10] sm:%s322]
                %334 = vst [vmem:[%s330 + $0x8] sm:%s322] %v333
              $region79: #{tpu_custom_call.1} parent=73 // loop_footer
                %s328 = sadd.s32 1, %s324
              $region80: #{tpu_custom_call.1} parent=73 // loop_footer_branch
                %323 = sbr.rel target = $region76
              $region81: #{tpu_custom_call.1} parent=73 // loop_exit
                _
            $region74: #{tpu_custom_call.1} parent=65 // pred_fallthru
              _
          $region66: #{tpu_custom_call.1} parent=61 // pred_fallthru
            _
          %351 = vnop
        $region62: #{tpu_custom_call.1} parent=15 // pred_fallthru
          _
        // Predicated region
        $region97: #{tpu_custom_call.1} parent=15 // pred_check
          %p352 = pneg %p124
        $region98: #{tpu_custom_call.1} parent=15 // pred_check_branch
          %354 = sbr.rel (%p352) target = $region100
        $region99: #{tpu_custom_call.1} parent=15 // pred_region
          %s355 = sand.u32 %s114, 1
          %s356 = scalar_lea.sflag [#allocation5], %s355
          %s357 = sand.u32 %s114, 1
          %s358 = smul.addr %s357, 2048
          %s359 = scalar_lea.vmem [#allocation4], %s358
          %s360 = smul.u32 128, %s26
          %362 = vsyncadd %s356, 0
          %s363 = smul.addr %s360, 2
          %s364 = smul.addr %s363, 8
          %s365 = scalar_lea.hbm %s3, %s364
          %s366 = sshll.u32 %s365, 4
          %s367 = int_to_ptr.hbm [resolvable:$true] %s366
          %s368 = sshll.u32 %s359, 4
          %s369 = int_to_ptr.vmem [resolvable:$true] %s368
          %374 = dma.hbm_to_vmem [thread:$0]  %s367, 32768, %s369, %s356, 128, 128, 8
        $region100: #{tpu_custom_call.1} parent=15 // pred_fallthru
          _
        // Predicated region
        $region101: #{tpu_custom_call.1} parent=15 // pred_check
          %p375 = pneg %p150
        $region102: #{tpu_custom_call.1} parent=15 // pred_check_branch
          %377 = sbr.rel (%p375) target = $region104
        $region103: #{tpu_custom_call.1} parent=15 // pred_region
          %s378 = sand.u32 %s140, 1
          %s379 = scalar_lea.sflag [#allocation8], %s378
          %s380 = sand.u32 %s140, 1
          %s381 = smul.addr %s380, 2048
          %s382 = scalar_lea.vmem [#allocation7], %s381
          %s383 = smul.u32 128, %s26
          %385 = vsyncadd %s379, 0
          %s386 = smul.addr %s383, 2
          %s387 = smul.addr %s386, 8
          %s388 = scalar_lea.hbm %s4, %s387
          %s389 = sshll.u32 %s388, 4
          %s390 = int_to_ptr.hbm [resolvable:$true] %s389
          %s391 = sshll.u32 %s382, 4
          %s392 = int_to_ptr.vmem [resolvable:$true] %s391
          %397 = dma.hbm_to_vmem [thread:$0]  %s390, 32768, %s392, %s379, 128, 128, 8
        $region104: #{tpu_custom_call.1} parent=15 // pred_fallthru
          _
      $region16: #{tpu_custom_call.1} parent=5 // pred_fallthru
        _
      %p398 = scmp.le.s32.totalorder 1, %s26
      %p399 = scmp.lt.s32.totalorder %s26, 3
      %p400 = pnand %p398, %p399
      %p401 = pneg %p400
      // Predicated region
      $region105: #{tpu_custom_call.1} parent=5 // pred_check
        _
      $region106: #{tpu_custom_call.1} parent=5 // pred_check_branch
        %403 = sbr.rel (%p400) target = $region108
      $region107: #{tpu_custom_call.1} parent=5 // pred_region
        %s404 = ssub.s32 %s26, 1
        %s405 = sand.u32 %s65, 1
        %s406 = sand.u32 %s65, 1
        %s407 = smul.addr %s406, 16
        %s408 = scalar_lea.vmem [#allocation2], %s407
        // Predicated region
        $region109: #{tpu_custom_call.1} parent=107 // pred_check
          %p409 = pneg %p78
        $region110: #{tpu_custom_call.1} parent=107 // pred_check_branch
          %411 = sbr.rel (%p409) target = $region112
        $region111: #{tpu_custom_call.1} parent=107 // pred_region
          _
        $region112: #{tpu_custom_call.1} parent=107 // pred_fallthru
          _
        %s412 = sand.u32 %s91, 1
        %s413 = sand.u32 %s91, 1
        %s414 = smul.addr %s413, 16
        %s415 = scalar_lea.vmem [#allocation3], %s414
        // Predicated region
        $region113: #{tpu_custom_call.1} parent=107 // pred_check
          %p416 = pneg %p104
        $region114: #{tpu_custom_call.1} parent=107 // pred_check_branch
          %418 = sbr.rel (%p416) target = $region116
        $region115: #{tpu_custom_call.1} parent=107 // pred_region
          _
        $region116: #{tpu_custom_call.1} parent=107 // pred_fallthru
          _
        %s419 = sand.u32 %s117, 1
        %s420 = scalar_lea.sflag [#allocation5], %s419
        %s421 = sand.u32 %s117, 1
        %s422 = smul.addr %s421, 2048
        %s423 = scalar_lea.vmem [#allocation4], %s422
        // Predicated region
        $region117: #{tpu_custom_call.1} parent=107 // pred_check
          %p424 = pneg %p130
        $region118: #{tpu_custom_call.1} parent=107 // pred_check_branch
          %426 = sbr.rel (%p424) target = $region120
        $region119: #{tpu_custom_call.1} parent=107 // pred_region
          %428 = dma.done %s420, 32768
        $region120: #{tpu_custom_call.1} parent=107 // pred_fallthru
          _
        %s429 = sand.u32 %s143, 1
        %s430 = scalar_lea.sflag [#allocation8], %s429
        %s431 = sand.u32 %s143, 1
        %s432 = smul.addr %s431, 2048
        %s433 = scalar_lea.vmem [#allocation7], %s432
        // Predicated region
        $region121: #{tpu_custom_call.1} parent=107 // pred_check
          %p434 = pneg %p156
        $region122: #{tpu_custom_call.1} parent=107 // pred_check_branch
          %436 = sbr.rel (%p434) target = $region124
        $region123: #{tpu_custom_call.1} parent=107 // pred_region
          %438 = dma.done %s430, 32768
        $region124: #{tpu_custom_call.1} parent=107 // pred_fallthru
          _
        %p439 = scmp.lt.s32.totalorder %s31, 1
        %s440 = scalar_select %p439, %s31, 1
        %s441 = smul.addr %s440, 2
        %s442 = scalar_lea.vmem %s0, %s441
        %p443 = pneg %p52
        %p444 = pneg %p49
        %s445 = sand.u32 %s65, 1
        %s446 = sand.u32 %s65, 1
        %s447 = smul.addr %s446, 16
        %s448 = scalar_lea.vmem [#allocation2], %s447
        %p449 = pneg %p78
        %p450 = pneg %p75
        %s451 = sand.u32 %s91, 1
        %s452 = sand.u32 %s91, 1
        %s453 = smul.addr %s452, 16
        %s454 = scalar_lea.vmem [#allocation3], %s453
        %p455 = pneg %p104
        %p456 = pneg %p101
        %s457 = sand.u32 %s117, 1
        %s458 = scalar_lea.sflag [#allocation5], %s457
        %s459 = sand.u32 %s117, 1
        %s460 = smul.addr %s459, 2048
        %s461 = scalar_lea.vmem [#allocation4], %s460
        %p462 = pneg %p130
        %p463 = pneg %p127
        %s464 = sand.u32 %s143, 1
        %s465 = scalar_lea.sflag [#allocation8], %s464
        %s466 = sand.u32 %s143, 1
        %s467 = smul.addr %s466, 2048
        %s468 = scalar_lea.vmem [#allocation7], %s467
        %p469 = pneg %p156
        %p470 = pneg %p153
        %p471 = pneg %p182
        %p472 = pneg %p179
        %s473 = sand.u32 %s169, 1
        %s474 = scalar_lea.sflag [#allocation6], %s473
        %s475 = sand.u32 %s169, 1
        %s476 = smul.addr %s475, 2048
        %s477 = scalar_lea.vmem [#allocation9], %s476
        %p478 = pneg %p208
        %p479 = pneg %p205
        %s480 = sand.u32 %s31, 1
        %s481 = scalar_lea.sflag [#allocation11], %s480
        %s482 = sand.u32 %s195, 1
        %s483 = smul.addr %s482, 2048
        %s484 = scalar_lea.vmem [#allocation10], %s483
        %p485 = pneg %p234
        %p486 = pneg %p231
        %s487 = sand.u32 %s31, 1
        %s488 = scalar_lea.sflag [#allocation11], %s487
        %s489 = sand.u32 %s221, 1
        %s490 = smul.addr %s489, 32
        %s491 = scalar_lea.vmem [#allocation12], %s490
        %p492 = scmp.lt.s32.totalorder %s31, 1
        %s493 = scalar_select %p492, %s31, 1
        %s494 = smul.addr %s493, 2
        %s495 = scalar_lea.vmem %s0, %s494
        %s496 = smul.u32 128, %s31
        %s497 = smul.u32 128, %s31
        %s498 = smul.u32 128, %s31
        %s499 = smul.u32 128, %s31
        %v500 = vld [vmem:[%s495] sm:$0x1]
        %v501 = vld [vmem:[%s495 + $0x1] sm:$0x1]
        %vm502 = vcmp.lt.f32.partialorder %v500, 0.06666667
        %vm503 = vcmp.lt.f32.partialorder %v501, 0.06666667
        %v504 = vsel %vm502, 1, 0
        %v505 = vcvt.s32.f32 %v504
        %v506 = vsel %vm503, 1, 0
        %v507 = vcvt.s32.f32 %v506
        %v508 = vld [vmem:[%s408] sm:$0x1]
        %v509 = vld [vmem:[%s415] sm:$0x1]
        %v510 = vmax.f32 %v500, 0.0
        %v511 = vadd.f32 %v510, %v508
        %v512 = vsel %vm502, %v511, %v500
        %v513 = vmax.f32 %v501, 0.0
        %v514 = vadd.f32 %v513, %v509
        %v515 = vsel %vm503, %v514, %v501
        %vm516 = vcmp.lt.f32.partialorder %v512, 0.13333334
        %vm517 = vcmp.lt.f32.partialorder %v515, 0.13333334
        %v518 = vsel %vm516, 1, 0
        %v519 = vcvt.s32.f32 %v518
        %v520 = vsel %vm517, 1, 0
        %v521 = vcvt.s32.f32 %v520
        %v522 = vld [vmem:[%s408 + $0x1] sm:$0x1]
        %v523 = vld [vmem:[%s415 + $0x1] sm:$0x1]
        %v524 = vmax.f32 %v512, 0.06666667
        %v525 = vadd.f32 %v524, %v522
        %v526 = vsel %vm516, %v525, %v512
        %v527 = vmax.f32 %v515, 0.06666667
        %v528 = vadd.f32 %v527, %v523
        %v529 = vsel %vm517, %v528, %v515
        %vm530 = vcmp.lt.f32.partialorder %v526, 0.20000002
        %vm531 = vcmp.lt.f32.partialorder %v529, 0.20000002
        %v532 = vsel %vm530, 1, 0
        %v533 = vcvt.s32.f32 %v532
        %v534 = vsel %vm531, 1, 0
        %v535 = vcvt.s32.f32 %v534
        %v536 = vld [vmem:[%s408 + $0x2] sm:$0x1]
        %v537 = vld [vmem:[%s415 + $0x2] sm:$0x1]
        %v538 = vmax.f32 %v526, 0.13333334
        %v539 = vadd.f32 %v538, %v536
        %v540 = vsel %vm530, %v539, %v526
        %v541 = vmax.f32 %v529, 0.13333334
        %v542 = vadd.f32 %v541, %v537
        %v543 = vsel %vm531, %v542, %v529
        %vm544 = vcmp.lt.f32.partialorder %v540, 0.26666668
        %vm545 = vcmp.lt.f32.partialorder %v543, 0.26666668
        %v546 = vsel %vm544, 1, 0
        %v547 = vcvt.s32.f32 %v546
        %v548 = vsel %vm545, 1, 0
        %v549 = vcvt.s32.f32 %v548
        %v550 = vld [vmem:[%s408 + $0x3] sm:$0x1]
        %v551 = vld [vmem:[%s415 + $0x3] sm:$0x1]
        %v552 = vmax.f32 %v540, 0.20000002
        %v553 = vadd.f32 %v552, %v550
        %v554 = vsel %vm544, %v553, %v540
        %v555 = vmax.f32 %v543, 0.20000002
        %v556 = vadd.f32 %v555, %v551
        %v557 = vsel %vm545, %v556, %v543
        %vm558 = vcmp.lt.f32.partialorder %v554, 0.33333334
        %vm559 = vcmp.lt.f32.partialorder %v557, 0.33333334
        %v560 = vsel %vm558, 1, 0
        %v561 = vcvt.s32.f32 %v560
        %v562 = vsel %vm559, 1, 0
        %v563 = vcvt.s32.f32 %v562
        %v564 = vld [vmem:[%s408 + $0x4] sm:$0x1]
        %v565 = vld [vmem:[%s415 + $0x4] sm:$0x1]
        %v566 = vmax.f32 %v554, 0.26666668
        %v567 = vadd.f32 %v566, %v564
        %v568 = vsel %vm558, %v567, %v554
        %v569 = vmax.f32 %v557, 0.26666668
        %v570 = vadd.f32 %v569, %v565
        %v571 = vsel %vm559, %v570, %v557
        %vm572 = vcmp.lt.f32.partialorder %v568, 0.4
        %vm573 = vcmp.lt.f32.partialorder %v571, 0.4
        %v574 = vsel %vm572, 1, 0
        %v575 = vcvt.s32.f32 %v574
        %v576 = vsel %vm573, 1, 0
        %v577 = vcvt.s32.f32 %v576
        %v578 = vld [vmem:[%s408 + $0x5] sm:$0x1]
        %v579 = vld [vmem:[%s415 + $0x5] sm:$0x1]
        %v580 = vmax.f32 %v568, 0.33333334
        %v581 = vadd.f32 %v580, %v578
        %v582 = vsel %vm572, %v581, %v568
        %v583 = vmax.f32 %v571, 0.33333334
        %v584 = vadd.f32 %v583, %v579
        %v585 = vsel %vm573, %v584, %v571
        %vm586 = vcmp.lt.f32.partialorder %v582, 0.4666667
        %vm587 = vcmp.lt.f32.partialorder %v585, 0.4666667
        %v588 = vsel %vm586, 1, 0
        %v589 = vcvt.s32.f32 %v588
        %v590 = vsel %vm587, 1, 0
        %v591 = vcvt.s32.f32 %v590
        %v592 = vld [vmem:[%s408 + $0x6] sm:$0x1]
        %v593 = vld [vmem:[%s415 + $0x6] sm:$0x1]
        %v594 = vmax.f32 %v582, 0.40000004
        %v595 = vadd.f32 %v594, %v592
        %v596 = vsel %vm586, %v595, %v582
        %v597 = vmax.f32 %v585, 0.40000004
        %v598 = vadd.f32 %v597, %v593
        %v599 = vsel %vm587, %v598, %v585
        %vm600 = vcmp.lt.f32.partialorder %v596, 0.53333336
        %vm601 = vcmp.lt.f32.partialorder %v599, 0.53333336
        %v602 = vsel %vm600, 1, 0
        %v603 = vcvt.s32.f32 %v602
        %v604 = vsel %vm601, 1, 0
        %v605 = vcvt.s32.f32 %v604
        %v606 = vld [vmem:[%s408 + $0x7] sm:$0x1]
        %v607 = vld [vmem:[%s415 + $0x7] sm:$0x1]
        %v608 = vmax.f32 %v596, 0.4666667
        %v609 = vadd.f32 %v608, %v606
        %v610 = vsel %vm600, %v609, %v596
        %v611 = vmax.f32 %v599, 0.4666667
        %v612 = vadd.f32 %v611, %v607
        %v613 = vsel %vm601, %v612, %v599
        %vm614 = vcmp.lt.f32.partialorder %v610, 0.6
        %vm615 = vcmp.lt.f32.partialorder %v613, 0.6
        %v616 = vsel %vm614, 1, 0
        %v617 = vcvt.s32.f32 %v616
        %v618 = vsel %vm615, 1, 0
        %v619 = vcvt.s32.f32 %v618
        %v620 = vld [vmem:[%s408 + $0x8] sm:$0x1]
        %v621 = vld [vmem:[%s415 + $0x8] sm:$0x1]
        %v622 = vmax.f32 %v610, 0.53333336
        %v623 = vadd.f32 %v622, %v620
        %v624 = vsel %vm614, %v623, %v610
        %v625 = vmax.f32 %v613, 0.53333336
        %v626 = vadd.f32 %v625, %v621
        %v627 = vsel %vm615, %v626, %v613
        %vm628 = vcmp.lt.f32.partialorder %v624, 0.6666667
        %vm629 = vcmp.lt.f32.partialorder %v627, 0.6666667
        %v630 = vsel %vm628, 1, 0
        %v631 = vcvt.s32.f32 %v630
        %v632 = vsel %vm629, 1, 0
        %v633 = vcvt.s32.f32 %v632
        %v634 = vld [vmem:[%s408 + $0x9] sm:$0x1]
        %v635 = vld [vmem:[%s415 + $0x9] sm:$0x1]
        %v636 = vmax.f32 %v624, 0.6
        %v637 = vadd.f32 %v636, %v634
        %v638 = vsel %vm628, %v637, %v624
        %v639 = vmax.f32 %v627, 0.6
        %v640 = vadd.f32 %v639, %v635
        %v641 = vsel %vm629, %v640, %v627
        %vm642 = vcmp.lt.f32.partialorder %v638, 0.73333335
        %vm643 = vcmp.lt.f32.partialorder %v641, 0.73333335
        %v644 = vsel %vm642, 1, 0
        %v645 = vcvt.s32.f32 %v644
        %v646 = vsel %vm643, 1, 0
        %v647 = vcvt.s32.f32 %v646
        %v648 = vld [vmem:[%s408 + $0xa] sm:$0x1]
        %v649 = vld [vmem:[%s415 + $0xa] sm:$0x1]
        %v650 = vmax.f32 %v638, 0.6666667
        %v651 = vadd.f32 %v650, %v648
        %v652 = vsel %vm642, %v651, %v638
        %v653 = vmax.f32 %v641, 0.6666667
        %v654 = vadd.f32 %v653, %v649
        %v655 = vsel %vm643, %v654, %v641
        %vm656 = vcmp.lt.f32.partialorder %v652, 0.8
        %vm657 = vcmp.lt.f32.partialorder %v655, 0.8
        %v658 = vsel %vm656, 1, 0
        %v659 = vcvt.s32.f32 %v658
        %v660 = vsel %vm657, 1, 0
        %v661 = vcvt.s32.f32 %v660
        %v662 = vld [vmem:[%s408 + $0xb] sm:$0x1]
        %v663 = vmax.f32 %v652, 0.73333335
        %v664 = vadd.f32 %v663, %v662
        %v665 = vsel %vm656, %v664, %v652
        %vm666 = vcmp.lt.f32.partialorder %v665, 0.86666673
        %v667 = vsel %vm666, 1, 0
        %v668 = vcvt.s32.f32 %v667
        %v669 = vld [vmem:[%s408 + $0xc] sm:$0x1]
        %v670 = vmax.f32 %v665, 0.8000001
        %v671 = vadd.f32 %v670, %v669
        %v672 = vsel %vm666, %v671, %v665
        %vm673 = vcmp.lt.f32.partialorder %v672, 0.9333334
        %v674 = vsel %vm673, 1, 0
        %v675 = vcvt.s32.f32 %v674
        %v677 = vrot.slane %v519, 7
        %v680 = vrot.slane %v533, 6
        %v683 = vrot.slane %v547, 5
        %v686 = vrot.slane %v561, 4
        %v689 = vrot.slane %v575, 3
        %v692 = vrot.slane %v589, 2
        %v695 = vrot.slane %v603, 1
        %v698 = vrot.slane %v631, 7
        %v701 = vrot.slane %v645, 6
        %v704 = vrot.slane %v659, 5
        %v707 = vrot.slane %v668, 4
        %v710 = vrot.slane %v675, 3
        %vm712 = vcmask 1040384
        %v713 = vsel %vm712, %v505, %v677
        %vm714 = vcmask 1041408
        %v715 = vsel %vm714, %v713, %v680
        %vm716 = vcmask 1042432
        %v717 = vsel %vm716, %v715, %v683
        %vm718 = vcmask 1043456
        %v719 = vsel %vm718, %v717, %v686
        %vm720 = vcmask 1044480
        %v721 = vsel %vm720, %v719, %v689
        %vm722 = vcmask 1045504
        %v723 = vsel %vm722, %v721, %v692
        %vm724 = vcmask 1046528
        %v725 = vsel %vm724, %v723, %v695
        %v726 = vsel %vm712, %v617, %v698
        %v727 = vsel %vm714, %v726, %v701
        %v728 = vsel %vm716, %v727, %v704
        %v729 = vsel %vm718, %v728, %v707
        %v730 = vsel %vm720, %v729, %v710
        %v731 = vsel %vm722, %v730, 0.0
        %v732 = vsel %vm724, %v731, 0.0
        %v734 = vrot.slane %v521, 7
        %v737 = vrot.slane %v535, 6
        %v740 = vrot.slane %v549, 5
        %v743 = vrot.slane %v563, 4
        %v746 = vrot.slane %v577, 3
        %v749 = vrot.slane %v591, 2
        %v752 = vrot.slane %v605, 1
        %v755 = vrot.slane %v633, 7
        %v758 = vrot.slane %v647, 6
        %v761 = vrot.slane %v661, 5
        %v763 = vsel %vm712, %v507, %v734
        %v764 = vsel %vm714, %v763, %v737
        %v765 = vsel %vm716, %v764, %v740
        %v766 = vsel %vm718, %v765, %v743
        %v767 = vsel %vm720, %v766, %v746
        %v768 = vsel %vm722, %v767, %v749
        %v769 = vsel %vm724, %v768, %v752
        %v770 = vsel %vm712, %v619, %v755
        %v771 = vsel %vm714, %v770, %v758
        %v772 = vsel %vm716, %v771, %v761
        %v773 = vsel %vm718, %v772, 0.0
        %v774 = vsel %vm720, %v773, 0.0
        %v775 = vsel %vm722, %v774, 0.0
        %v776 = vsel %vm724, %v775, 0.0
        %v777 = vcvt.f32.s32.to.zero.pseudo %v725
        %v778 = vcvt.f32.s32.to.zero.pseudo %v732
        %779 = vst [vmem:[%s491] sm:$0xff] %v777
        %780 = vst [vmem:[%s491 + $0x8] sm:$0xff] %v778
        %v781 = vcvt.f32.s32.to.zero.pseudo %v769
        %v782 = vcvt.f32.s32.to.zero.pseudo %v776
        %s783 = scalar_lea.vmem %s491, 16 [#allocation12]
        %784 = vst [vmem:[%s783] sm:$0xff] %v781
        %785 = vst [vmem:[%s783 + $0x8] sm:$0xff] %v782
        %786 = vxpose.xlu0.b32.start [1/16] %v725, 128
        %787 = vxpose.xlu0.b32.cont [2/16] %v732, 128
        %788 = vxpose.xlu0.b32.cont [3/16] 0.0, 128
        %789 = vxpose.xlu0.b32.cont [4/16] 0.0, 128
        %790 = vxpose.xlu0.b32.cont [5/16] 0.0, 128
        %791 = vxpose.xlu0.b32.cont [6/16] 0.0, 128
        %792 = vxpose.xlu0.b32.cont [7/16] 0.0, 128
        %793 = vxpose.xlu0.b32.cont [8/16] 0.0, 128
        %794 = vxpose.xlu0.b32.cont [9/16] 0.0, 128
        %795 = vxpose.xlu0.b32.cont [10/16] 0.0, 128
        %796 = vxpose.xlu0.b32.cont [11/16] 0.0, 128
        %797 = vxpose.xlu0.b32.cont [12/16] 0.0, 128
        %798 = vxpose.xlu0.b32.cont [13/16] 0.0, 128
        %799 = vxpose.xlu0.b32.cont [14/16] 0.0, 128
        %800 = vxpose.xlu0.b32.cont [15/16] 0.0, 128
        %801 = vxpose.xlu0.b32.end [16/16] 0.0, 128
        %v802 = vpop.trf.xlu0
        %v803 = vpop.trf.xlu0
        %v804 = vpop.trf.xlu0
        %v805 = vpop.trf.xlu0
        %v806 = vpop.trf.xlu0
        %v807 = vpop.trf.xlu0
        %v808 = vpop.trf.xlu0
        %v809 = vpop.trf.xlu0
        %v810 = vpop.trf.xlu0
        %v811 = vpop.trf.xlu0
        %v812 = vpop.trf.xlu0
        %v813 = vpop.trf.xlu0
        %v814 = vpop.trf.xlu0
        %v815 = vpop.trf.xlu0
        %v816 = vpop.trf.xlu0
        %v817 = vpop.trf.xlu0
        %818 = vxpose.xlu0.b32.start [1/16] %v769, 128
        %819 = vxpose.xlu0.b32.cont [2/16] %v776, 128
        %820 = vxpose.xlu0.b32.cont [3/16] 0.0, 128
        %821 = vxpose.xlu0.b32.cont [4/16] 0.0, 128
        %822 = vxpose.xlu0.b32.cont [5/16] 0.0, 128
        %823 = vxpose.xlu0.b32.cont [6/16] 0.0, 128
        %824 = vxpose.xlu0.b32.cont [7/16] 0.0, 128
        %825 = vxpose.xlu0.b32.cont [8/16] 0.0, 128
        %826 = vxpose.xlu0.b32.cont [9/16] 0.0, 128
        %827 = vxpose.xlu0.b32.cont [10/16] 0.0, 128
        %828 = vxpose.xlu0.b32.cont [11/16] 0.0, 128
        %829 = vxpose.xlu0.b32.cont [12/16] 0.0, 128
        %830 = vxpose.xlu0.b32.cont [13/16] 0.0, 128
        %831 = vxpose.xlu0.b32.cont [14/16] 0.0, 128
        %832 = vxpose.xlu0.b32.cont [15/16] 0.0, 128
        %833 = vxpose.xlu0.b32.end [16/16] 0.0, 128
        %v834 = vpop.trf.xlu0
        %v835 = vpop.trf.xlu0
        %v836 = vpop.trf.xlu0
        %v837 = vpop.trf.xlu0
        %v838 = vpop.trf.xlu0
        %v839 = vpop.trf.xlu0
        %v840 = vpop.trf.xlu0
        %v841 = vpop.trf.xlu0
        %v842 = vpop.trf.xlu0
        %v843 = vpop.trf.xlu0
        %v844 = vpop.trf.xlu0
        %v845 = vpop.trf.xlu0
        %v846 = vpop.trf.xlu0
        %v847 = vpop.trf.xlu0
        %v848 = vpop.trf.xlu0
        %v849 = vpop.trf.xlu0
        %v850 = vperm.slane %v802, 0
        %v851 = vlaneseq
        %v852 = vshrl.u32 %v851, 7
        %854 = vset.pattern.permute.xlu0 %v852
        %855 = vperm.xlu0 %854, %v850
        %v856 = vpop.permute.xlu0 %855
        %v857 = vlaneseq
        %v858 = vshrl.u32 %v857, 7
        %v859 = vadd.s32 %v858, 8
        %860 = vset.pattern.permute.xlu0 %v859
        %861 = vperm.xlu0 %860, %v850
        %v862 = vpop.permute.xlu0 %861
        %v863 = vperm.slane %v802, 1
        %v864 = vlaneseq
        %v865 = vshrl.u32 %v864, 7
        %867 = vset.pattern.permute.xlu0 %v865
        %868 = vperm.xlu0 %867, %v863
        %v869 = vpop.permute.xlu0 %868
        %v870 = vlaneseq
        %v871 = vshrl.u32 %v870, 7
        %v872 = vadd.s32 %v871, 8
        %873 = vset.pattern.permute.xlu0 %v872
        %874 = vperm.xlu0 %873, %v863
        %v875 = vpop.permute.xlu0 %874
        %v876 = vperm.slane %v802, 2
        %v877 = vlaneseq
        %v878 = vshrl.u32 %v877, 7
        %880 = vset.pattern.permute.xlu0 %v878
        %881 = vperm.xlu0 %880, %v876
        %v882 = vpop.permute.xlu0 %881
        %v883 = vlaneseq
        %v884 = vshrl.u32 %v883, 7
        %v885 = vadd.s32 %v884, 8
        %886 = vset.pattern.permute.xlu0 %v885
        %887 = vperm.xlu0 %886, %v876
        %v888 = vpop.permute.xlu0 %887
        %v889 = vperm.slane %v802, 3
        %v890 = vlaneseq
        %v891 = vshrl.u32 %v890, 7
        %893 = vset.pattern.permute.xlu0 %v891
        %894 = vperm.xlu0 %893, %v889
        %v895 = vpop.permute.xlu0 %894
        %v896 = vlaneseq
        %v897 = vshrl.u32 %v896, 7
        %v898 = vadd.s32 %v897, 8
        %899 = vset.pattern.permute.xlu0 %v898
        %900 = vperm.xlu0 %899, %v889
        %v901 = vpop.permute.xlu0 %900
        %v902 = vperm.slane %v802, 4
        %v903 = vlaneseq
        %v904 = vshrl.u32 %v903, 7
        %906 = vset.pattern.permute.xlu0 %v904
        %907 = vperm.xlu0 %906, %v902
        %v908 = vpop.permute.xlu0 %907
        %v909 = vlaneseq
        %v910 = vshrl.u32 %v909, 7
        %v911 = vadd.s32 %v910, 8
        %912 = vset.pattern.permute.xlu0 %v911
        %913 = vperm.xlu0 %912, %v902
        %v914 = vpop.permute.xlu0 %913
        %v915 = vperm.slane %v802, 5
        %v916 = vlaneseq
        %v917 = vshrl.u32 %v916, 7
        %919 = vset.pattern.permute.xlu0 %v917
        %920 = vperm.xlu0 %919, %v915
        %v921 = vpop.permute.xlu0 %920
        %v922 = vlaneseq
        %v923 = vshrl.u32 %v922, 7
        %v924 = vadd.s32 %v923, 8
        %925 = vset.pattern.permute.xlu0 %v924
        %926 = vperm.xlu0 %925, %v915
        %v927 = vpop.permute.xlu0 %926
        %v928 = vperm.slane %v802, 6
        %v929 = vlaneseq
        %v930 = vshrl.u32 %v929, 7
        %932 = vset.pattern.permute.xlu0 %v930
        %933 = vperm.xlu0 %932, %v928
        %v934 = vpop.permute.xlu0 %933
        %v935 = vlaneseq
        %v936 = vshrl.u32 %v935, 7
        %v937 = vadd.s32 %v936, 8
        %938 = vset.pattern.permute.xlu0 %v937
        %939 = vperm.xlu0 %938, %v928
        %v940 = vpop.permute.xlu0 %939
        %v941 = vperm.slane %v802, 7
        %v942 = vlaneseq
        %v943 = vshrl.u32 %v942, 7
        %945 = vset.pattern.permute.xlu0 %v943
        %946 = vperm.xlu0 %945, %v941
        %v947 = vpop.permute.xlu0 %946
        %v948 = vlaneseq
        %v949 = vshrl.u32 %v948, 7
        %v950 = vadd.s32 %v949, 8
        %951 = vset.pattern.permute.xlu0 %v950
        %952 = vperm.xlu0 %951, %v941
        %v953 = vpop.permute.xlu0 %952
        %v954 = vperm.slane %v803, 0
        %v955 = vlaneseq
        %v956 = vshrl.u32 %v955, 7
        %958 = vset.pattern.permute.xlu0 %v956
        %959 = vperm.xlu0 %958, %v954
        %v960 = vpop.permute.xlu0 %959
        %v961 = vlaneseq
        %v962 = vshrl.u32 %v961, 7
        %v963 = vadd.s32 %v962, 8
        %964 = vset.pattern.permute.xlu0 %v963
        %965 = vperm.xlu0 %964, %v954
        %v966 = vpop.permute.xlu0 %965
        %v967 = vperm.slane %v803, 1
        %v968 = vlaneseq
        %v969 = vshrl.u32 %v968, 7
        %971 = vset.pattern.permute.xlu0 %v969
        %972 = vperm.xlu0 %971, %v967
        %v973 = vpop.permute.xlu0 %972
        %v974 = vlaneseq
        %v975 = vshrl.u32 %v974, 7
        %v976 = vadd.s32 %v975, 8
        %977 = vset.pattern.permute.xlu0 %v976
        %978 = vperm.xlu0 %977, %v967
        %v979 = vpop.permute.xlu0 %978
        %v980 = vperm.slane %v803, 2
        %v981 = vlaneseq
        %v982 = vshrl.u32 %v981, 7
        %984 = vset.pattern.permute.xlu0 %v982
        %985 = vperm.xlu0 %984, %v980
        %v986 = vpop.permute.xlu0 %985
        %v987 = vlaneseq
        %v988 = vshrl.u32 %v987, 7
        %v989 = vadd.s32 %v988, 8
        %990 = vset.pattern.permute.xlu0 %v989
        %991 = vperm.xlu0 %990, %v980
        %v992 = vpop.permute.xlu0 %991
        %v993 = vperm.slane %v803, 3
        %v994 = vlaneseq
        %v995 = vshrl.u32 %v994, 7
        %997 = vset.pattern.permute.xlu0 %v995
        %998 = vperm.xlu0 %997, %v993
        %v999 = vpop.permute.xlu0 %998
        %v1000 = vlaneseq
        %v1001 = vshrl.u32 %v1000, 7
        %v1002 = vadd.s32 %v1001, 8
        %1003 = vset.pattern.permute.xlu0 %v1002
        %1004 = vperm.xlu0 %1003, %v993
        %v1005 = vpop.permute.xlu0 %1004
        %v1006 = vperm.slane %v803, 4
        %v1007 = vlaneseq
        %v1008 = vshrl.u32 %v1007, 7
        %1010 = vset.pattern.permute.xlu0 %v1008
        %1011 = vperm.xlu0 %1010, %v1006
        %v1012 = vpop.permute.xlu0 %1011
        %v1013 = vlaneseq
        %v1014 = vshrl.u32 %v1013, 7
        %v1015 = vadd.s32 %v1014, 8
        %1016 = vset.pattern.permute.xlu0 %v1015
        %1017 = vperm.xlu0 %1016, %v1006
        %v1018 = vpop.permute.xlu0 %1017
        %v1019 = vperm.slane %v803, 5
        %v1020 = vlaneseq
        %v1021 = vshrl.u32 %v1020, 7
        %1023 = vset.pattern.permute.xlu0 %v1021
        %1024 = vperm.xlu0 %1023, %v1019
        %v1025 = vpop.permute.xlu0 %1024
        %v1026 = vlaneseq
        %v1027 = vshrl.u32 %v1026, 7
        %v1028 = vadd.s32 %v1027, 8
        %1029 = vset.pattern.permute.xlu0 %v1028
        %1030 = vperm.xlu0 %1029, %v1019
        %v1031 = vpop.permute.xlu0 %1030
        %v1032 = vperm.slane %v803, 6
        %v1033 = vlaneseq
        %v1034 = vshrl.u32 %v1033, 7
        %1036 = vset.pattern.permute.xlu0 %v1034
        %1037 = vperm.xlu0 %1036, %v1032
        %v1038 = vpop.permute.xlu0 %1037
        %v1039 = vlaneseq
        %v1040 = vshrl.u32 %v1039, 7
        %v1041 = vadd.s32 %v1040, 8
        %1042 = vset.pattern.permute.xlu0 %v1041
        %1043 = vperm.xlu0 %1042, %v1032
        %v1044 = vpop.permute.xlu0 %1043
        %v1045 = vperm.slane %v803, 7
        %v1046 = vlaneseq
        %v1047 = vshrl.u32 %v1046, 7
        %1049 = vset.pattern.permute.xlu0 %v1047
        %1050 = vperm.xlu0 %1049, %v1045
        %v1051 = vpop.permute.xlu0 %1050
        %v1052 = vlaneseq
        %v1053 = vshrl.u32 %v1052, 7
        %v1054 = vadd.s32 %v1053, 8
        %1055 = vset.pattern.permute.xlu0 %v1054
        %1056 = vperm.xlu0 %1055, %v1045
        %v1057 = vpop.permute.xlu0 %1056
        %v1058 = vperm.slane %v804, 0
        %v1059 = vlaneseq
        %v1060 = vshrl.u32 %v1059, 7
        %1062 = vset.pattern.permute.xlu0 %v1060
        %1063 = vperm.xlu0 %1062, %v1058
        %v1064 = vpop.permute.xlu0 %1063
        %v1065 = vlaneseq
        %v1066 = vshrl.u32 %v1065, 7
        %v1067 = vadd.s32 %v1066, 8
        %1068 = vset.pattern.permute.xlu0 %v1067
        %1069 = vperm.xlu0 %1068, %v1058
        %v1070 = vpop.permute.xlu0 %1069
        %v1071 = vperm.slane %v804, 1
        %v1072 = vlaneseq
        %v1073 = vshrl.u32 %v1072, 7
        %1075 = vset.pattern.permute.xlu0 %v1073
        %1076 = vperm.xlu0 %1075, %v1071
        %v1077 = vpop.permute.xlu0 %1076
        %v1078 = vlaneseq
        %v1079 = vshrl.u32 %v1078, 7
        %v1080 = vadd.s32 %v1079, 8
        %1081 = vset.pattern.permute.xlu0 %v1080
        %1082 = vperm.xlu0 %1081, %v1071
        %v1083 = vpop.permute.xlu0 %1082
        %v1084 = vperm.slane %v804, 2
        %v1085 = vlaneseq
        %v1086 = vshrl.u32 %v1085, 7
        %1088 = vset.pattern.permute.xlu0 %v1086
        %1089 = vperm.xlu0 %1088, %v1084
        %v1090 = vpop.permute.xlu0 %1089
        %v1091 = vlaneseq
        %v1092 = vshrl.u32 %v1091, 7
        %v1093 = vadd.s32 %v1092, 8
        %1094 = vset.pattern.permute.xlu0 %v1093
        %1095 = vperm.xlu0 %1094, %v1084
        %v1096 = vpop.permute.xlu0 %1095
        %v1097 = vperm.slane %v804, 3
        %v1098 = vlaneseq
        %v1099 = vshrl.u32 %v1098, 7
        %1101 = vset.pattern.permute.xlu0 %v1099
        %1102 = vperm.xlu0 %1101, %v1097
        %v1103 = vpop.permute.xlu0 %1102
        %v1104 = vlaneseq
        %v1105 = vshrl.u32 %v1104, 7
        %v1106 = vadd.s32 %v1105, 8
        %1107 = vset.pattern.permute.xlu0 %v1106
        %1108 = vperm.xlu0 %1107, %v1097
        %v1109 = vpop.permute.xlu0 %1108
        %v1110 = vperm.slane %v804, 4
        %v1111 = vlaneseq
        %v1112 = vshrl.u32 %v1111, 7
        %1114 = vset.pattern.permute.xlu0 %v1112
        %1115 = vperm.xlu0 %1114, %v1110
        %v1116 = vpop.permute.xlu0 %1115
        %v1117 = vlaneseq
        %v1118 = vshrl.u32 %v1117, 7
        %v1119 = vadd.s32 %v1118, 8
        %1120 = vset.pattern.permute.xlu0 %v1119
        %1121 = vperm.xlu0 %1120, %v1110
        %v1122 = vpop.permute.xlu0 %1121
        %v1123 = vperm.slane %v804, 5
        %v1124 = vlaneseq
        %v1125 = vshrl.u32 %v1124, 7
        %1127 = vset.pattern.permute.xlu0 %v1125
        %1128 = vperm.xlu0 %1127, %v1123
        %v1129 = vpop.permute.xlu0 %1128
        %v1130 = vlaneseq
        %v1131 = vshrl.u32 %v1130, 7
        %v1132 = vadd.s32 %v1131, 8
        %1133 = vset.pattern.permute.xlu0 %v1132
        %1134 = vperm.xlu0 %1133, %v1123
        %v1135 = vpop.permute.xlu0 %1134
        %v1136 = vperm.slane %v804, 6
        %v1137 = vlaneseq
        %v1138 = vshrl.u32 %v1137, 7
        %1140 = vset.pattern.permute.xlu0 %v1138
        %1141 = vperm.xlu0 %1140, %v1136
        %v1142 = vpop.permute.xlu0 %1141
        %v1143 = vlaneseq
        %v1144 = vshrl.u32 %v1143, 7
        %v1145 = vadd.s32 %v1144, 8
        %1146 = vset.pattern.permute.xlu0 %v1145
        %1147 = vperm.xlu0 %1146, %v1136
        %v1148 = vpop.permute.xlu0 %1147
        %v1149 = vperm.slane %v804, 7
        %v1150 = vlaneseq
        %v1151 = vshrl.u32 %v1150, 7
        %1153 = vset.pattern.permute.xlu0 %v1151
        %1154 = vperm.xlu0 %1153, %v1149
        %v1155 = vpop.permute.xlu0 %1154
        %v1156 = vlaneseq
        %v1157 = vshrl.u32 %v1156, 7
        %v1158 = vadd.s32 %v1157, 8
        %1159 = vset.pattern.permute.xlu0 %v1158
        %1160 = vperm.xlu0 %1159, %v1149
        %v1161 = vpop.permute.xlu0 %1160
        %v1162 = vperm.slane %v805, 0
        %v1163 = vlaneseq
        %v1164 = vshrl.u32 %v1163, 7
        %1166 = vset.pattern.permute.xlu0 %v1164
        %1167 = vperm.xlu0 %1166, %v1162
        %v1168 = vpop.permute.xlu0 %1167
        %v1169 = vlaneseq
        %v1170 = vshrl.u32 %v1169, 7
        %v1171 = vadd.s32 %v1170, 8
        %1172 = vset.pattern.permute.xlu0 %v1171
        %1173 = vperm.xlu0 %1172, %v1162
        %v1174 = vpop.permute.xlu0 %1173
        %v1175 = vperm.slane %v805, 1
        %v1176 = vlaneseq
        %v1177 = vshrl.u32 %v1176, 7
        %1179 = vset.pattern.permute.xlu0 %v1177
        %1180 = vperm.xlu0 %1179, %v1175
        %v1181 = vpop.permute.xlu0 %1180
        %v1182 = vlaneseq
        %v1183 = vshrl.u32 %v1182, 7
        %v1184 = vadd.s32 %v1183, 8
        %1185 = vset.pattern.permute.xlu0 %v1184
        %1186 = vperm.xlu0 %1185, %v1175
        %v1187 = vpop.permute.xlu0 %1186
        %v1188 = vperm.slane %v805, 2
        %v1189 = vlaneseq
        %v1190 = vshrl.u32 %v1189, 7
        %1192 = vset.pattern.permute.xlu0 %v1190
        %1193 = vperm.xlu0 %1192, %v1188
        %v1194 = vpop.permute.xlu0 %1193
        %v1195 = vlaneseq
        %v1196 = vshrl.u32 %v1195, 7
        %v1197 = vadd.s32 %v1196, 8
        %1198 = vset.pattern.permute.xlu0 %v1197
        %1199 = vperm.xlu0 %1198, %v1188
        %v1200 = vpop.permute.xlu0 %1199
        %v1201 = vperm.slane %v805, 3
        %v1202 = vlaneseq
        %v1203 = vshrl.u32 %v1202, 7
        %1205 = vset.pattern.permute.xlu0 %v1203
        %1206 = vperm.xlu0 %1205, %v1201
        %v1207 = vpop.permute.xlu0 %1206
        %v1208 = vlaneseq
        %v1209 = vshrl.u32 %v1208, 7
        %v1210 = vadd.s32 %v1209, 8
        %1211 = vset.pattern.permute.xlu0 %v1210
        %1212 = vperm.xlu0 %1211, %v1201
        %v1213 = vpop.permute.xlu0 %1212
        %v1214 = vperm.slane %v805, 4
        %v1215 = vlaneseq
        %v1216 = vshrl.u32 %v1215, 7
        %1218 = vset.pattern.permute.xlu0 %v1216
        %1219 = vperm.xlu0 %1218, %v1214
        %v1220 = vpop.permute.xlu0 %1219
        %v1221 = vlaneseq
        %v1222 = vshrl.u32 %v1221, 7
        %v1223 = vadd.s32 %v1222, 8
        %1224 = vset.pattern.permute.xlu0 %v1223
        %1225 = vperm.xlu0 %1224, %v1214
        %v1226 = vpop.permute.xlu0 %1225
        %v1227 = vperm.slane %v805, 5
        %v1228 = vlaneseq
        %v1229 = vshrl.u32 %v1228, 7
        %1231 = vset.pattern.permute.xlu0 %v1229
        %1232 = vperm.xlu0 %1231, %v1227
        %v1233 = vpop.permute.xlu0 %1232
        %v1234 = vlaneseq
        %v1235 = vshrl.u32 %v1234, 7
        %v1236 = vadd.s32 %v1235, 8
        %1237 = vset.pattern.permute.xlu0 %v1236
        %1238 = vperm.xlu0 %1237, %v1227
        %v1239 = vpop.permute.xlu0 %1238
        %v1240 = vperm.slane %v805, 6
        %v1241 = vlaneseq
        %v1242 = vshrl.u32 %v1241, 7
        %1244 = vset.pattern.permute.xlu0 %v1242
        %1245 = vperm.xlu0 %1244, %v1240
        %v1246 = vpop.permute.xlu0 %1245
        %v1247 = vlaneseq
        %v1248 = vshrl.u32 %v1247, 7
        %v1249 = vadd.s32 %v1248, 8
        %1250 = vset.pattern.permute.xlu0 %v1249
        %1251 = vperm.xlu0 %1250, %v1240
        %v1252 = vpop.permute.xlu0 %1251
        %v1253 = vperm.slane %v805, 7
        %v1254 = vlaneseq
        %v1255 = vshrl.u32 %v1254, 7
        %1257 = vset.pattern.permute.xlu0 %v1255
        %1258 = vperm.xlu0 %1257, %v1253
        %v1259 = vpop.permute.xlu0 %1258
        %v1260 = vlaneseq
        %v1261 = vshrl.u32 %v1260, 7
        %v1262 = vadd.s32 %v1261, 8
        %1263 = vset.pattern.permute.xlu0 %v1262
        %1264 = vperm.xlu0 %1263, %v1253
        %v1265 = vpop.permute.xlu0 %1264
        %v1266 = vperm.slane %v806, 0
        %v1267 = vlaneseq
        %v1268 = vshrl.u32 %v1267, 7
        %1270 = vset.pattern.permute.xlu0 %v1268
        %1271 = vperm.xlu0 %1270, %v1266
        %v1272 = vpop.permute.xlu0 %1271
        %v1273 = vlaneseq
        %v1274 = vshrl.u32 %v1273, 7
        %v1275 = vadd.s32 %v1274, 8
        %1276 = vset.pattern.permute.xlu0 %v1275
        %1277 = vperm.xlu0 %1276, %v1266
        %v1278 = vpop.permute.xlu0 %1277
        %v1279 = vperm.slane %v806, 1
        %v1280 = vlaneseq
        %v1281 = vshrl.u32 %v1280, 7
        %1283 = vset.pattern.permute.xlu0 %v1281
        %1284 = vperm.xlu0 %1283, %v1279
        %v1285 = vpop.permute.xlu0 %1284
        %v1286 = vlaneseq
        %v1287 = vshrl.u32 %v1286, 7
        %v1288 = vadd.s32 %v1287, 8
        %1289 = vset.pattern.permute.xlu0 %v1288
        %1290 = vperm.xlu0 %1289, %v1279
        %v1291 = vpop.permute.xlu0 %1290
        %v1292 = vperm.slane %v806, 2
        %v1293 = vlaneseq
        %v1294 = vshrl.u32 %v1293, 7
        %1296 = vset.pattern.permute.xlu0 %v1294
        %1297 = vperm.xlu0 %1296, %v1292
        %v1298 = vpop.permute.xlu0 %1297
        %v1299 = vlaneseq
        %v1300 = vshrl.u32 %v1299, 7
        %v1301 = vadd.s32 %v1300, 8
        %1302 = vset.pattern.permute.xlu0 %v1301
        %1303 = vperm.xlu0 %1302, %v1292
        %v1304 = vpop.permute.xlu0 %1303
        %v1305 = vperm.slane %v806, 3
        %v1306 = vlaneseq
        %v1307 = vshrl.u32 %v1306, 7
        %1309 = vset.pattern.permute.xlu0 %v1307
        %1310 = vperm.xlu0 %1309, %v1305
        %v1311 = vpop.permute.xlu0 %1310
        %v1312 = vlaneseq
        %v1313 = vshrl.u32 %v1312, 7
        %v1314 = vadd.s32 %v1313, 8
        %1315 = vset.pattern.permute.xlu0 %v1314
        %1316 = vperm.xlu0 %1315, %v1305
        %v1317 = vpop.permute.xlu0 %1316
        %v1318 = vperm.slane %v806, 4
        %v1319 = vlaneseq
        %v1320 = vshrl.u32 %v1319, 7
        %1322 = vset.pattern.permute.xlu0 %v1320
        %1323 = vperm.xlu0 %1322, %v1318
        %v1324 = vpop.permute.xlu0 %1323
        %v1325 = vlaneseq
        %v1326 = vshrl.u32 %v1325, 7
        %v1327 = vadd.s32 %v1326, 8
        %1328 = vset.pattern.permute.xlu0 %v1327
        %1329 = vperm.xlu0 %1328, %v1318
        %v1330 = vpop.permute.xlu0 %1329
        %v1331 = vperm.slane %v806, 5
        %v1332 = vlaneseq
        %v1333 = vshrl.u32 %v1332, 7
        %1335 = vset.pattern.permute.xlu0 %v1333
        %1336 = vperm.xlu0 %1335, %v1331
        %v1337 = vpop.permute.xlu0 %1336
        %v1338 = vlaneseq
        %v1339 = vshrl.u32 %v1338, 7
        %v1340 = vadd.s32 %v1339, 8
        %1341 = vset.pattern.permute.xlu0 %v1340
        %1342 = vperm.xlu0 %1341, %v1331
        %v1343 = vpop.permute.xlu0 %1342
        %v1344 = vperm.slane %v806, 6
        %v1345 = vlaneseq
        %v1346 = vshrl.u32 %v1345, 7
        %1348 = vset.pattern.permute.xlu0 %v1346
        %1349 = vperm.xlu0 %1348, %v1344
        %v1350 = vpop.permute.xlu0 %1349
        %v1351 = vlaneseq
        %v1352 = vshrl.u32 %v1351, 7
        %v1353 = vadd.s32 %v1352, 8
        %1354 = vset.pattern.permute.xlu0 %v1353
        %1355 = vperm.xlu0 %1354, %v1344
        %v1356 = vpop.permute.xlu0 %1355
        %v1357 = vperm.slane %v806, 7
        %v1358 = vlaneseq
        %v1359 = vshrl.u32 %v1358, 7
        %1361 = vset.pattern.permute.xlu0 %v1359
        %1362 = vperm.xlu0 %1361, %v1357
        %v1363 = vpop.permute.xlu0 %1362
        %v1364 = vlaneseq
        %v1365 = vshrl.u32 %v1364, 7
        %v1366 = vadd.s32 %v1365, 8
        %1367 = vset.pattern.permute.xlu0 %v1366
        %1368 = vperm.xlu0 %1367, %v1357
        %v1369 = vpop.permute.xlu0 %1368
        %v1370 = vperm.slane %v807, 0
        %v1371 = vlaneseq
        %v1372 = vshrl.u32 %v1371, 7
        %1374 = vset.pattern.permute.xlu0 %v1372
        %1375 = vperm.xlu0 %1374, %v1370
        %v1376 = vpop.permute.xlu0 %1375
        %v1377 = vlaneseq
        %v1378 = vshrl.u32 %v1377, 7
        %v1379 = vadd.s32 %v1378, 8
        %1380 = vset.pattern.permute.xlu0 %v1379
        %1381 = vperm.xlu0 %1380, %v1370
        %v1382 = vpop.permute.xlu0 %1381
        %v1383 = vperm.slane %v807, 1
        %v1384 = vlaneseq
        %v1385 = vshrl.u32 %v1384, 7
        %1387 = vset.pattern.permute.xlu0 %v1385
        %1388 = vperm.xlu0 %1387, %v1383
        %v1389 = vpop.permute.xlu0 %1388
        %v1390 = vlaneseq
        %v1391 = vshrl.u32 %v1390, 7
        %v1392 = vadd.s32 %v1391, 8
        %1393 = vset.pattern.permute.xlu0 %v1392
        %1394 = vperm.xlu0 %1393, %v1383
        %v1395 = vpop.permute.xlu0 %1394
        %v1396 = vperm.slane %v807, 2
        %v1397 = vlaneseq
        %v1398 = vshrl.u32 %v1397, 7
        %1400 = vset.pattern.permute.xlu0 %v1398
        %1401 = vperm.xlu0 %1400, %v1396
        %v1402 = vpop.permute.xlu0 %1401
        %v1403 = vlaneseq
        %v1404 = vshrl.u32 %v1403, 7
        %v1405 = vadd.s32 %v1404, 8
        %1406 = vset.pattern.permute.xlu0 %v1405
        %1407 = vperm.xlu0 %1406, %v1396
        %v1408 = vpop.permute.xlu0 %1407
        %v1409 = vperm.slane %v807, 3
        %v1410 = vlaneseq
        %v1411 = vshrl.u32 %v1410, 7
        %1413 = vset.pattern.permute.xlu0 %v1411
        %1414 = vperm.xlu0 %1413, %v1409
        %v1415 = vpop.permute.xlu0 %1414
        %v1416 = vlaneseq
        %v1417 = vshrl.u32 %v1416, 7
        %v1418 = vadd.s32 %v1417, 8
        %1419 = vset.pattern.permute.xlu0 %v1418
        %1420 = vperm.xlu0 %1419, %v1409
        %v1421 = vpop.permute.xlu0 %1420
        %v1422 = vperm.slane %v807, 4
        %v1423 = vlaneseq
        %v1424 = vshrl.u32 %v1423, 7
        %1426 = vset.pattern.permute.xlu0 %v1424
        %1427 = vperm.xlu0 %1426, %v1422
        %v1428 = vpop.permute.xlu0 %1427
        %v1429 = vlaneseq
        %v1430 = vshrl.u32 %v1429, 7
        %v1431 = vadd.s32 %v1430, 8
        %1432 = vset.pattern.permute.xlu0 %v1431
        %1433 = vperm.xlu0 %1432, %v1422
        %v1434 = vpop.permute.xlu0 %1433
        %v1435 = vperm.slane %v807, 5
        %v1436 = vlaneseq
        %v1437 = vshrl.u32 %v1436, 7
        %1439 = vset.pattern.permute.xlu0 %v1437
        %1440 = vperm.xlu0 %1439, %v1435
        %v1441 = vpop.permute.xlu0 %1440
        %v1442 = vlaneseq
        %v1443 = vshrl.u32 %v1442, 7
        %v1444 = vadd.s32 %v1443, 8
        %1445 = vset.pattern.permute.xlu0 %v1444
        %1446 = vperm.xlu0 %1445, %v1435
        %v1447 = vpop.permute.xlu0 %1446
        %v1448 = vperm.slane %v807, 6
        %v1449 = vlaneseq
        %v1450 = vshrl.u32 %v1449, 7
        %1452 = vset.pattern.permute.xlu0 %v1450
        %1453 = vperm.xlu0 %1452, %v1448
        %v1454 = vpop.permute.xlu0 %1453
        %v1455 = vlaneseq
        %v1456 = vshrl.u32 %v1455, 7
        %v1457 = vadd.s32 %v1456, 8
        %1458 = vset.pattern.permute.xlu0 %v1457
        %1459 = vperm.xlu0 %1458, %v1448
        %v1460 = vpop.permute.xlu0 %1459
        %v1461 = vperm.slane %v807, 7
        %v1462 = vlaneseq
        %v1463 = vshrl.u32 %v1462, 7
        %1465 = vset.pattern.permute.xlu0 %v1463
        %1466 = vperm.xlu0 %1465, %v1461
        %v1467 = vpop.permute.xlu0 %1466
        %v1468 = vlaneseq
        %v1469 = vshrl.u32 %v1468, 7
        %v1470 = vadd.s32 %v1469, 8
        %1471 = vset.pattern.permute.xlu0 %v1470
        %1472 = vperm.xlu0 %1471, %v1461
        %v1473 = vpop.permute.xlu0 %1472
        %v1474 = vperm.slane %v808, 0
        %v1475 = vlaneseq
        %v1476 = vshrl.u32 %v1475, 7
        %1478 = vset.pattern.permute.xlu0 %v1476
        %1479 = vperm.xlu0 %1478, %v1474
        %v1480 = vpop.permute.xlu0 %1479
        %v1481 = vlaneseq
        %v1482 = vshrl.u32 %v1481, 7
        %v1483 = vadd.s32 %v1482, 8
        %1484 = vset.pattern.permute.xlu0 %v1483
        %1485 = vperm.xlu0 %1484, %v1474
        %v1486 = vpop.permute.xlu0 %1485
        %v1487 = vperm.slane %v808, 1
        %v1488 = vlaneseq
        %v1489 = vshrl.u32 %v1488, 7
        %1491 = vset.pattern.permute.xlu0 %v1489
        %1492 = vperm.xlu0 %1491, %v1487
        %v1493 = vpop.permute.xlu0 %1492
        %v1494 = vlaneseq
        %v1495 = vshrl.u32 %v1494, 7
        %v1496 = vadd.s32 %v1495, 8
        %1497 = vset.pattern.permute.xlu0 %v1496
        %1498 = vperm.xlu0 %1497, %v1487
        %v1499 = vpop.permute.xlu0 %1498
        %v1500 = vperm.slane %v808, 2
        %v1501 = vlaneseq
        %v1502 = vshrl.u32 %v1501, 7
        %1504 = vset.pattern.permute.xlu0 %v1502
        %1505 = vperm.xlu0 %1504, %v1500
        %v1506 = vpop.permute.xlu0 %1505
        %v1507 = vlaneseq
        %v1508 = vshrl.u32 %v1507, 7
        %v1509 = vadd.s32 %v1508, 8
        %1510 = vset.pattern.permute.xlu0 %v1509
        %1511 = vperm.xlu0 %1510, %v1500
        %v1512 = vpop.permute.xlu0 %1511
        %v1513 = vperm.slane %v808, 3
        %v1514 = vlaneseq
        %v1515 = vshrl.u32 %v1514, 7
        %1517 = vset.pattern.permute.xlu0 %v1515
        %1518 = vperm.xlu0 %1517, %v1513
        %v1519 = vpop.permute.xlu0 %1518
        %v1520 = vlaneseq
        %v1521 = vshrl.u32 %v1520, 7
        %v1522 = vadd.s32 %v1521, 8
        %1523 = vset.pattern.permute.xlu0 %v1522
        %1524 = vperm.xlu0 %1523, %v1513
        %v1525 = vpop.permute.xlu0 %1524
        %v1526 = vperm.slane %v808, 4
        %v1527 = vlaneseq
        %v1528 = vshrl.u32 %v1527, 7
        %1530 = vset.pattern.permute.xlu0 %v1528
        %1531 = vperm.xlu0 %1530, %v1526
        %v1532 = vpop.permute.xlu0 %1531
        %v1533 = vlaneseq
        %v1534 = vshrl.u32 %v1533, 7
        %v1535 = vadd.s32 %v1534, 8
        %1536 = vset.pattern.permute.xlu0 %v1535
        %1537 = vperm.xlu0 %1536, %v1526
        %v1538 = vpop.permute.xlu0 %1537
        %v1539 = vperm.slane %v808, 5
        %v1540 = vlaneseq
        %v1541 = vshrl.u32 %v1540, 7
        %1543 = vset.pattern.permute.xlu0 %v1541
        %1544 = vperm.xlu0 %1543, %v1539
        %v1545 = vpop.permute.xlu0 %1544
        %v1546 = vlaneseq
        %v1547 = vshrl.u32 %v1546, 7
        %v1548 = vadd.s32 %v1547, 8
        %1549 = vset.pattern.permute.xlu0 %v1548
        %1550 = vperm.xlu0 %1549, %v1539
        %v1551 = vpop.permute.xlu0 %1550
        %v1552 = vperm.slane %v808, 6
        %v1553 = vlaneseq
        %v1554 = vshrl.u32 %v1553, 7
        %1556 = vset.pattern.permute.xlu0 %v1554
        %1557 = vperm.xlu0 %1556, %v1552
        %v1558 = vpop.permute.xlu0 %1557
        %v1559 = vlaneseq
        %v1560 = vshrl.u32 %v1559, 7
        %v1561 = vadd.s32 %v1560, 8
        %1562 = vset.pattern.permute.xlu0 %v1561
        %1563 = vperm.xlu0 %1562, %v1552
        %v1564 = vpop.permute.xlu0 %1563
        %v1565 = vperm.slane %v808, 7
        %v1566 = vlaneseq
        %v1567 = vshrl.u32 %v1566, 7
        %1569 = vset.pattern.permute.xlu0 %v1567
        %1570 = vperm.xlu0 %1569, %v1565
        %v1571 = vpop.permute.xlu0 %1570
        %v1572 = vlaneseq
        %v1573 = vshrl.u32 %v1572, 7
        %v1574 = vadd.s32 %v1573, 8
        %1575 = vset.pattern.permute.xlu0 %v1574
        %1576 = vperm.xlu0 %1575, %v1565
        %v1577 = vpop.permute.xlu0 %1576
        %v1578 = vperm.slane %v809, 0
        %v1579 = vlaneseq
        %v1580 = vshrl.u32 %v1579, 7
        %1582 = vset.pattern.permute.xlu0 %v1580
        %1583 = vperm.xlu0 %1582, %v1578
        %v1584 = vpop.permute.xlu0 %1583
        %v1585 = vlaneseq
        %v1586 = vshrl.u32 %v1585, 7
        %v1587 = vadd.s32 %v1586, 8
        %1588 = vset.pattern.permute.xlu0 %v1587
        %1589 = vperm.xlu0 %1588, %v1578
        %v1590 = vpop.permute.xlu0 %1589
        %v1591 = vperm.slane %v809, 1
        %v1592 = vlaneseq
        %v1593 = vshrl.u32 %v1592, 7
        %1595 = vset.pattern.permute.xlu0 %v1593
        %1596 = vperm.xlu0 %1595, %v1591
        %v1597 = vpop.permute.xlu0 %1596
        %v1598 = vlaneseq
        %v1599 = vshrl.u32 %v1598, 7
        %v1600 = vadd.s32 %v1599, 8
        %1601 = vset.pattern.permute.xlu0 %v1600
        %1602 = vperm.xlu0 %1601, %v1591
        %v1603 = vpop.permute.xlu0 %1602
        %v1604 = vperm.slane %v809, 2
        %v1605 = vlaneseq
        %v1606 = vshrl.u32 %v1605, 7
        %1608 = vset.pattern.permute.xlu0 %v1606
        %1609 = vperm.xlu0 %1608, %v1604
        %v1610 = vpop.permute.xlu0 %1609
        %v1611 = vlaneseq
        %v1612 = vshrl.u32 %v1611, 7
        %v1613 = vadd.s32 %v1612, 8
        %1614 = vset.pattern.permute.xlu0 %v1613
        %1615 = vperm.xlu0 %1614, %v1604
        %v1616 = vpop.permute.xlu0 %1615
        %v1617 = vperm.slane %v809, 3
        %v1618 = vlaneseq
        %v1619 = vshrl.u32 %v1618, 7
        %1621 = vset.pattern.permute.xlu0 %v1619
        %1622 = vperm.xlu0 %1621, %v1617
        %v1623 = vpop.permute.xlu0 %1622
        %v1624 = vlaneseq
        %v1625 = vshrl.u32 %v1624, 7
        %v1626 = vadd.s32 %v1625, 8
        %1627 = vset.pattern.permute.xlu0 %v1626
        %1628 = vperm.xlu0 %1627, %v1617
        %v1629 = vpop.permute.xlu0 %1628
        %v1630 = vperm.slane %v809, 4
        %v1631 = vlaneseq
        %v1632 = vshrl.u32 %v1631, 7
        %1634 = vset.pattern.permute.xlu0 %v1632
        %1635 = vperm.xlu0 %1634, %v1630
        %v1636 = vpop.permute.xlu0 %1635
        %v1637 = vlaneseq
        %v1638 = vshrl.u32 %v1637, 7
        %v1639 = vadd.s32 %v1638, 8
        %1640 = vset.pattern.permute.xlu0 %v1639
        %1641 = vperm.xlu0 %1640, %v1630
        %v1642 = vpop.permute.xlu0 %1641
        %v1643 = vperm.slane %v809, 5
        %v1644 = vlaneseq
        %v1645 = vshrl.u32 %v1644, 7
        %1647 = vset.pattern.permute.xlu0 %v1645
        %1648 = vperm.xlu0 %1647, %v1643
        %v1649 = vpop.permute.xlu0 %1648
        %v1650 = vlaneseq
        %v1651 = vshrl.u32 %v1650, 7
        %v1652 = vadd.s32 %v1651, 8
        %1653 = vset.pattern.permute.xlu0 %v1652
        %1654 = vperm.xlu0 %1653, %v1643
        %v1655 = vpop.permute.xlu0 %1654
        %v1656 = vperm.slane %v809, 6
        %v1657 = vlaneseq
        %v1658 = vshrl.u32 %v1657, 7
        %1660 = vset.pattern.permute.xlu0 %v1658
        %1661 = vperm.xlu0 %1660, %v1656
        %v1662 = vpop.permute.xlu0 %1661
        %v1663 = vlaneseq
        %v1664 = vshrl.u32 %v1663, 7
        %v1665 = vadd.s32 %v1664, 8
        %1666 = vset.pattern.permute.xlu0 %v1665
        %1667 = vperm.xlu0 %1666, %v1656
        %v1668 = vpop.permute.xlu0 %1667
        %v1669 = vperm.slane %v809, 7
        %v1670 = vlaneseq
        %v1671 = vshrl.u32 %v1670, 7
        %1673 = vset.pattern.permute.xlu0 %v1671
        %1674 = vperm.xlu0 %1673, %v1669
        %v1675 = vpop.permute.xlu0 %1674
        %v1676 = vlaneseq
        %v1677 = vshrl.u32 %v1676, 7
        %v1678 = vadd.s32 %v1677, 8
        %1679 = vset.pattern.permute.xlu0 %v1678
        %1680 = vperm.xlu0 %1679, %v1669
        %v1681 = vpop.permute.xlu0 %1680
        %v1682 = vperm.slane %v810, 0
        %v1683 = vlaneseq
        %v1684 = vshrl.u32 %v1683, 7
        %1686 = vset.pattern.permute.xlu0 %v1684
        %1687 = vperm.xlu0 %1686, %v1682
        %v1688 = vpop.permute.xlu0 %1687
        %v1689 = vlaneseq
        %v1690 = vshrl.u32 %v1689, 7
        %v1691 = vadd.s32 %v1690, 8
        %1692 = vset.pattern.permute.xlu0 %v1691
        %1693 = vperm.xlu0 %1692, %v1682
        %v1694 = vpop.permute.xlu0 %1693
        %v1695 = vperm.slane %v810, 1
        %v1696 = vlaneseq
        %v1697 = vshrl.u32 %v1696, 7
        %1699 = vset.pattern.permute.xlu0 %v1697
        %1700 = vperm.xlu0 %1699, %v1695
        %v1701 = vpop.permute.xlu0 %1700
        %v1702 = vlaneseq
        %v1703 = vshrl.u32 %v1702, 7
        %v1704 = vadd.s32 %v1703, 8
        %1705 = vset.pattern.permute.xlu0 %v1704
        %1706 = vperm.xlu0 %1705, %v1695
        %v1707 = vpop.permute.xlu0 %1706
        %v1708 = vperm.slane %v810, 2
        %v1709 = vlaneseq
        %v1710 = vshrl.u32 %v1709, 7
        %1712 = vset.pattern.permute.xlu0 %v1710
        %1713 = vperm.xlu0 %1712, %v1708
        %v1714 = vpop.permute.xlu0 %1713
        %v1715 = vlaneseq
        %v1716 = vshrl.u32 %v1715, 7
        %v1717 = vadd.s32 %v1716, 8
        %1718 = vset.pattern.permute.xlu0 %v1717
        %1719 = vperm.xlu0 %1718, %v1708
        %v1720 = vpop.permute.xlu0 %1719
        %v1721 = vperm.slane %v810, 3
        %v1722 = vlaneseq
        %v1723 = vshrl.u32 %v1722, 7
        %1725 = vset.pattern.permute.xlu0 %v1723
        %1726 = vperm.xlu0 %1725, %v1721
        %v1727 = vpop.permute.xlu0 %1726
        %v1728 = vlaneseq
        %v1729 = vshrl.u32 %v1728, 7
        %v1730 = vadd.s32 %v1729, 8
        %1731 = vset.pattern.permute.xlu0 %v1730
        %1732 = vperm.xlu0 %1731, %v1721
        %v1733 = vpop.permute.xlu0 %1732
        %v1734 = vperm.slane %v810, 4
        %v1735 = vlaneseq
        %v1736 = vshrl.u32 %v1735, 7
        %1738 = vset.pattern.permute.xlu0 %v1736
        %1739 = vperm.xlu0 %1738, %v1734
        %v1740 = vpop.permute.xlu0 %1739
        %v1741 = vlaneseq
        %v1742 = vshrl.u32 %v1741, 7
        %v1743 = vadd.s32 %v1742, 8
        %1744 = vset.pattern.permute.xlu0 %v1743
        %1745 = vperm.xlu0 %1744, %v1734
        %v1746 = vpop.permute.xlu0 %1745
        %v1747 = vperm.slane %v810, 5
        %v1748 = vlaneseq
        %v1749 = vshrl.u32 %v1748, 7
        %1751 = vset.pattern.permute.xlu0 %v1749
        %1752 = vperm.xlu0 %1751, %v1747
        %v1753 = vpop.permute.xlu0 %1752
        %v1754 = vlaneseq
        %v1755 = vshrl.u32 %v1754, 7
        %v1756 = vadd.s32 %v1755, 8
        %1757 = vset.pattern.permute.xlu0 %v1756
        %1758 = vperm.xlu0 %1757, %v1747
        %v1759 = vpop.permute.xlu0 %1758
        %v1760 = vperm.slane %v810, 6
        %v1761 = vlaneseq
        %v1762 = vshrl.u32 %v1761, 7
        %1764 = vset.pattern.permute.xlu0 %v1762
        %1765 = vperm.xlu0 %1764, %v1760
        %v1766 = vpop.permute.xlu0 %1765
        %v1767 = vlaneseq
        %v1768 = vshrl.u32 %v1767, 7
        %v1769 = vadd.s32 %v1768, 8
        %1770 = vset.pattern.permute.xlu0 %v1769
        %1771 = vperm.xlu0 %1770, %v1760
        %v1772 = vpop.permute.xlu0 %1771
        %v1773 = vperm.slane %v810, 7
        %v1774 = vlaneseq
        %v1775 = vshrl.u32 %v1774, 7
        %1777 = vset.pattern.permute.xlu0 %v1775
        %1778 = vperm.xlu0 %1777, %v1773
        %v1779 = vpop.permute.xlu0 %1778
        %v1780 = vlaneseq
        %v1781 = vshrl.u32 %v1780, 7
        %v1782 = vadd.s32 %v1781, 8
        %1783 = vset.pattern.permute.xlu0 %v1782
        %1784 = vperm.xlu0 %1783, %v1773
        %v1785 = vpop.permute.xlu0 %1784
        %v1786 = vperm.slane %v811, 0
        %v1787 = vlaneseq
        %v1788 = vshrl.u32 %v1787, 7
        %1790 = vset.pattern.permute.xlu0 %v1788
        %1791 = vperm.xlu0 %1790, %v1786
        %v1792 = vpop.permute.xlu0 %1791
        %v1793 = vlaneseq
        %v1794 = vshrl.u32 %v1793, 7
        %v1795 = vadd.s32 %v1794, 8
        %1796 = vset.pattern.permute.xlu0 %v1795
        %1797 = vperm.xlu0 %1796, %v1786
        %v1798 = vpop.permute.xlu0 %1797
        %v1799 = vperm.slane %v811, 1
        %v1800 = vlaneseq
        %v1801 = vshrl.u32 %v1800, 7
        %1803 = vset.pattern.permute.xlu0 %v1801
        %1804 = vperm.xlu0 %1803, %v1799
        %v1805 = vpop.permute.xlu0 %1804
        %v1806 = vlaneseq
        %v1807 = vshrl.u32 %v1806, 7
        %v1808 = vadd.s32 %v1807, 8
        %1809 = vset.pattern.permute.xlu0 %v1808
        %1810 = vperm.xlu0 %1809, %v1799
        %v1811 = vpop.permute.xlu0 %1810
        %v1812 = vperm.slane %v811, 2
        %v1813 = vlaneseq
        %v1814 = vshrl.u32 %v1813, 7
        %1816 = vset.pattern.permute.xlu0 %v1814
        %1817 = vperm.xlu0 %1816, %v1812
        %v1818 = vpop.permute.xlu0 %1817
        %v1819 = vlaneseq
        %v1820 = vshrl.u32 %v1819, 7
        %v1821 = vadd.s32 %v1820, 8
        %1822 = vset.pattern.permute.xlu0 %v1821
        %1823 = vperm.xlu0 %1822, %v1812
        %v1824 = vpop.permute.xlu0 %1823
        %v1825 = vperm.slane %v811, 3
        %v1826 = vlaneseq
        %v1827 = vshrl.u32 %v1826, 7
        %1829 = vset.pattern.permute.xlu0 %v1827
        %1830 = vperm.xlu0 %1829, %v1825
        %v1831 = vpop.permute.xlu0 %1830
        %v1832 = vlaneseq
        %v1833 = vshrl.u32 %v1832, 7
        %v1834 = vadd.s32 %v1833, 8
        %1835 = vset.pattern.permute.xlu0 %v1834
        %1836 = vperm.xlu0 %1835, %v1825
        %v1837 = vpop.permute.xlu0 %1836
        %v1838 = vperm.slane %v811, 4
        %v1839 = vlaneseq
        %v1840 = vshrl.u32 %v1839, 7
        %1842 = vset.pattern.permute.xlu0 %v1840
        %1843 = vperm.xlu0 %1842, %v1838
        %v1844 = vpop.permute.xlu0 %1843
        %v1845 = vlaneseq
        %v1846 = vshrl.u32 %v1845, 7
        %v1847 = vadd.s32 %v1846, 8
        %1848 = vset.pattern.permute.xlu0 %v1847
        %1849 = vperm.xlu0 %1848, %v1838
        %v1850 = vpop.permute.xlu0 %1849
        %v1851 = vperm.slane %v811, 5
        %v1852 = vlaneseq
        %v1853 = vshrl.u32 %v1852, 7
        %1855 = vset.pattern.permute.xlu0 %v1853
        %1856 = vperm.xlu0 %1855, %v1851
        %v1857 = vpop.permute.xlu0 %1856
        %v1858 = vlaneseq
        %v1859 = vshrl.u32 %v1858, 7
        %v1860 = vadd.s32 %v1859, 8
        %1861 = vset.pattern.permute.xlu0 %v1860
        %1862 = vperm.xlu0 %1861, %v1851
        %v1863 = vpop.permute.xlu0 %1862
        %v1864 = vperm.slane %v811, 6
        %v1865 = vlaneseq
        %v1866 = vshrl.u32 %v1865, 7
        %1868 = vset.pattern.permute.xlu0 %v1866
        %1869 = vperm.xlu0 %1868, %v1864
        %v1870 = vpop.permute.xlu0 %1869
        %v1871 = vlaneseq
        %v1872 = vshrl.u32 %v1871, 7
        %v1873 = vadd.s32 %v1872, 8
        %1874 = vset.pattern.permute.xlu0 %v1873
        %1875 = vperm.xlu0 %1874, %v1864
        %v1876 = vpop.permute.xlu0 %1875
        %v1877 = vperm.slane %v811, 7
        %v1878 = vlaneseq
        %v1879 = vshrl.u32 %v1878, 7
        %1881 = vset.pattern.permute.xlu0 %v1879
        %1882 = vperm.xlu0 %1881, %v1877
        %v1883 = vpop.permute.xlu0 %1882
        %v1884 = vlaneseq
        %v1885 = vshrl.u32 %v1884, 7
        %v1886 = vadd.s32 %v1885, 8
        %1887 = vset.pattern.permute.xlu0 %v1886
        %1888 = vperm.xlu0 %1887, %v1877
        %v1889 = vpop.permute.xlu0 %1888
        %v1890 = vperm.slane %v812, 0
        %v1891 = vlaneseq
        %v1892 = vshrl.u32 %v1891, 7
        %1894 = vset.pattern.permute.xlu0 %v1892
        %1895 = vperm.xlu0 %1894, %v1890
        %v1896 = vpop.permute.xlu0 %1895
        %v1897 = vlaneseq
        %v1898 = vshrl.u32 %v1897, 7
        %v1899 = vadd.s32 %v1898, 8
        %1900 = vset.pattern.permute.xlu0 %v1899
        %1901 = vperm.xlu0 %1900, %v1890
        %v1902 = vpop.permute.xlu0 %1901
        %v1903 = vperm.slane %v812, 1
        %v1904 = vlaneseq
        %v1905 = vshrl.u32 %v1904, 7
        %1907 = vset.pattern.permute.xlu0 %v1905
        %1908 = vperm.xlu0 %1907, %v1903
        %v1909 = vpop.permute.xlu0 %1908
        %v1910 = vlaneseq
        %v1911 = vshrl.u32 %v1910, 7
        %v1912 = vadd.s32 %v1911, 8
        %1913 = vset.pattern.permute.xlu0 %v1912
        %1914 = vperm.xlu0 %1913, %v1903
        %v1915 = vpop.permute.xlu0 %1914
        %v1916 = vperm.slane %v812, 2
        %v1917 = vlaneseq
        %v1918 = vshrl.u32 %v1917, 7
        %1920 = vset.pattern.permute.xlu0 %v1918
        %1921 = vperm.xlu0 %1920, %v1916
        %v1922 = vpop.permute.xlu0 %1921
        %v1923 = vlaneseq
        %v1924 = vshrl.u32 %v1923, 7
        %v1925 = vadd.s32 %v1924, 8
        %1926 = vset.pattern.permute.xlu0 %v1925
        %1927 = vperm.xlu0 %1926, %v1916
        %v1928 = vpop.permute.xlu0 %1927
        %v1929 = vperm.slane %v812, 3
        %v1930 = vlaneseq
        %v1931 = vshrl.u32 %v1930, 7
        %1933 = vset.pattern.permute.xlu0 %v1931
        %1934 = vperm.xlu0 %1933, %v1929
        %v1935 = vpop.permute.xlu0 %1934
        %v1936 = vlaneseq
        %v1937 = vshrl.u32 %v1936, 7
        %v1938 = vadd.s32 %v1937, 8
        %1939 = vset.pattern.permute.xlu0 %v1938
        %1940 = vperm.xlu0 %1939, %v1929
        %v1941 = vpop.permute.xlu0 %1940
        %v1942 = vperm.slane %v812, 4
        %v1943 = vlaneseq
        %v1944 = vshrl.u32 %v1943, 7
        %1946 = vset.pattern.permute.xlu0 %v1944
        %1947 = vperm.xlu0 %1946, %v1942
        %v1948 = vpop.permute.xlu0 %1947
        %v1949 = vlaneseq
        %v1950 = vshrl.u32 %v1949, 7
        %v1951 = vadd.s32 %v1950, 8
        %1952 = vset.pattern.permute.xlu0 %v1951
        %1953 = vperm.xlu0 %1952, %v1942
        %v1954 = vpop.permute.xlu0 %1953
        %v1955 = vperm.slane %v812, 5
        %v1956 = vlaneseq
        %v1957 = vshrl.u32 %v1956, 7
        %1959 = vset.pattern.permute.xlu0 %v1957
        %1960 = vperm.xlu0 %1959, %v1955
        %v1961 = vpop.permute.xlu0 %1960
        %v1962 = vlaneseq
        %v1963 = vshrl.u32 %v1962, 7
        %v1964 = vadd.s32 %v1963, 8
        %1965 = vset.pattern.permute.xlu0 %v1964
        %1966 = vperm.xlu0 %1965, %v1955
        %v1967 = vpop.permute.xlu0 %1966
        %v1968 = vperm.slane %v812, 6
        %v1969 = vlaneseq
        %v1970 = vshrl.u32 %v1969, 7
        %1972 = vset.pattern.permute.xlu0 %v1970
        %1973 = vperm.xlu0 %1972, %v1968
        %v1974 = vpop.permute.xlu0 %1973
        %v1975 = vlaneseq
        %v1976 = vshrl.u32 %v1975, 7
        %v1977 = vadd.s32 %v1976, 8
        %1978 = vset.pattern.permute.xlu0 %v1977
        %1979 = vperm.xlu0 %1978, %v1968
        %v1980 = vpop.permute.xlu0 %1979
        %v1981 = vperm.slane %v812, 7
        %v1982 = vlaneseq
        %v1983 = vshrl.u32 %v1982, 7
        %1985 = vset.pattern.permute.xlu0 %v1983
        %1986 = vperm.xlu0 %1985, %v1981
        %v1987 = vpop.permute.xlu0 %1986
        %v1988 = vlaneseq
        %v1989 = vshrl.u32 %v1988, 7
        %v1990 = vadd.s32 %v1989, 8
        %1991 = vset.pattern.permute.xlu0 %v1990
        %1992 = vperm.xlu0 %1991, %v1981
        %v1993 = vpop.permute.xlu0 %1992
        %v1994 = vperm.slane %v813, 0
        %v1995 = vlaneseq
        %v1996 = vshrl.u32 %v1995, 7
        %1998 = vset.pattern.permute.xlu0 %v1996
        %1999 = vperm.xlu0 %1998, %v1994
        %v2000 = vpop.permute.xlu0 %1999
        %v2001 = vlaneseq
        %v2002 = vshrl.u32 %v2001, 7
        %v2003 = vadd.s32 %v2002, 8
        %2004 = vset.pattern.permute.xlu0 %v2003
        %2005 = vperm.xlu0 %2004, %v1994
        %v2006 = vpop.permute.xlu0 %2005
        %v2007 = vperm.slane %v813, 1
        %v2008 = vlaneseq
        %v2009 = vshrl.u32 %v2008, 7
        %2011 = vset.pattern.permute.xlu0 %v2009
        %2012 = vperm.xlu0 %2011, %v2007
        %v2013 = vpop.permute.xlu0 %2012
        %v2014 = vlaneseq
        %v2015 = vshrl.u32 %v2014, 7
        %v2016 = vadd.s32 %v2015, 8
        %2017 = vset.pattern.permute.xlu0 %v2016
        %2018 = vperm.xlu0 %2017, %v2007
        %v2019 = vpop.permute.xlu0 %2018
        %v2020 = vperm.slane %v813, 2
        %v2021 = vlaneseq
        %v2022 = vshrl.u32 %v2021, 7
        %2024 = vset.pattern.permute.xlu0 %v2022
        %2025 = vperm.xlu0 %2024, %v2020
        %v2026 = vpop.permute.xlu0 %2025
        %v2027 = vlaneseq
        %v2028 = vshrl.u32 %v2027, 7
        %v2029 = vadd.s32 %v2028, 8
        %2030 = vset.pattern.permute.xlu0 %v2029
        %2031 = vperm.xlu0 %2030, %v2020
        %v2032 = vpop.permute.xlu0 %2031
        %v2033 = vperm.slane %v813, 3
        %v2034 = vlaneseq
        %v2035 = vshrl.u32 %v2034, 7
        %2037 = vset.pattern.permute.xlu0 %v2035
        %2038 = vperm.xlu0 %2037, %v2033
        %v2039 = vpop.permute.xlu0 %2038
        %v2040 = vlaneseq
        %v2041 = vshrl.u32 %v2040, 7
        %v2042 = vadd.s32 %v2041, 8
        %2043 = vset.pattern.permute.xlu0 %v2042
        %2044 = vperm.xlu0 %2043, %v2033
        %v2045 = vpop.permute.xlu0 %2044
        %v2046 = vperm.slane %v813, 4
        %v2047 = vlaneseq
        %v2048 = vshrl.u32 %v2047, 7
        %2050 = vset.pattern.permute.xlu0 %v2048
        %2051 = vperm.xlu0 %2050, %v2046
        %v2052 = vpop.permute.xlu0 %2051
        %v2053 = vlaneseq
        %v2054 = vshrl.u32 %v2053, 7
        %v2055 = vadd.s32 %v2054, 8
        %2056 = vset.pattern.permute.xlu0 %v2055
        %2057 = vperm.xlu0 %2056, %v2046
        %v2058 = vpop.permute.xlu0 %2057
        %v2059 = vperm.slane %v813, 5
        %v2060 = vlaneseq
        %v2061 = vshrl.u32 %v2060, 7
        %2063 = vset.pattern.permute.xlu0 %v2061
        %2064 = vperm.xlu0 %2063, %v2059
        %v2065 = vpop.permute.xlu0 %2064
        %v2066 = vlaneseq
        %v2067 = vshrl.u32 %v2066, 7
        %v2068 = vadd.s32 %v2067, 8
        %2069 = vset.pattern.permute.xlu0 %v2068
        %2070 = vperm.xlu0 %2069, %v2059
        %v2071 = vpop.permute.xlu0 %2070
        %v2072 = vperm.slane %v813, 6
        %v2073 = vlaneseq
        %v2074 = vshrl.u32 %v2073, 7
        %2076 = vset.pattern.permute.xlu0 %v2074
        %2077 = vperm.xlu0 %2076, %v2072
        %v2078 = vpop.permute.xlu0 %2077
        %v2079 = vlaneseq
        %v2080 = vshrl.u32 %v2079, 7
        %v2081 = vadd.s32 %v2080, 8
        %2082 = vset.pattern.permute.xlu0 %v2081
        %2083 = vperm.xlu0 %2082, %v2072
        %v2084 = vpop.permute.xlu0 %2083
        %v2085 = vperm.slane %v813, 7
        %v2086 = vlaneseq
        %v2087 = vshrl.u32 %v2086, 7
        %2089 = vset.pattern.permute.xlu0 %v2087
        %2090 = vperm.xlu0 %2089, %v2085
        %v2091 = vpop.permute.xlu0 %2090
        %v2092 = vlaneseq
        %v2093 = vshrl.u32 %v2092, 7
        %v2094 = vadd.s32 %v2093, 8
        %2095 = vset.pattern.permute.xlu0 %v2094
        %2096 = vperm.xlu0 %2095, %v2085
        %v2097 = vpop.permute.xlu0 %2096
        %v2098 = vperm.slane %v814, 0
        %v2099 = vlaneseq
        %v2100 = vshrl.u32 %v2099, 7
        %2102 = vset.pattern.permute.xlu0 %v2100
        %2103 = vperm.xlu0 %2102, %v2098
        %v2104 = vpop.permute.xlu0 %2103
        %v2105 = vlaneseq
        %v2106 = vshrl.u32 %v2105, 7
        %v2107 = vadd.s32 %v2106, 8
        %2108 = vset.pattern.permute.xlu0 %v2107
        %2109 = vperm.xlu0 %2108, %v2098
        %v2110 = vpop.permute.xlu0 %2109
        %v2111 = vperm.slane %v814, 1
        %v2112 = vlaneseq
        %v2113 = vshrl.u32 %v2112, 7
        %2115 = vset.pattern.permute.xlu0 %v2113
        %2116 = vperm.xlu0 %2115, %v2111
        %v2117 = vpop.permute.xlu0 %2116
        %v2118 = vlaneseq
        %v2119 = vshrl.u32 %v2118, 7
        %v2120 = vadd.s32 %v2119, 8
        %2121 = vset.pattern.permute.xlu0 %v2120
        %2122 = vperm.xlu0 %2121, %v2111
        %v2123 = vpop.permute.xlu0 %2122
        %v2124 = vperm.slane %v814, 2
        %v2125 = vlaneseq
        %v2126 = vshrl.u32 %v2125, 7
        %2128 = vset.pattern.permute.xlu0 %v2126
        %2129 = vperm.xlu0 %2128, %v2124
        %v2130 = vpop.permute.xlu0 %2129
        %v2131 = vlaneseq
        %v2132 = vshrl.u32 %v2131, 7
        %v2133 = vadd.s32 %v2132, 8
        %2134 = vset.pattern.permute.xlu0 %v2133
        %2135 = vperm.xlu0 %2134, %v2124
        %v2136 = vpop.permute.xlu0 %2135
        %v2137 = vperm.slane %v814, 3
        %v2138 = vlaneseq
        %v2139 = vshrl.u32 %v2138, 7
        %2141 = vset.pattern.permute.xlu0 %v2139
        %2142 = vperm.xlu0 %2141, %v2137
        %v2143 = vpop.permute.xlu0 %2142
        %v2144 = vlaneseq
        %v2145 = vshrl.u32 %v2144, 7
        %v2146 = vadd.s32 %v2145, 8
        %2147 = vset.pattern.permute.xlu0 %v2146
        %2148 = vperm.xlu0 %2147, %v2137
        %v2149 = vpop.permute.xlu0 %2148
        %v2150 = vperm.slane %v814, 4
        %v2151 = vlaneseq
        %v2152 = vshrl.u32 %v2151, 7
        %2154 = vset.pattern.permute.xlu0 %v2152
        %2155 = vperm.xlu0 %2154, %v2150
        %v2156 = vpop.permute.xlu0 %2155
        %v2157 = vlaneseq
        %v2158 = vshrl.u32 %v2157, 7
        %v2159 = vadd.s32 %v2158, 8
        %2160 = vset.pattern.permute.xlu0 %v2159
        %2161 = vperm.xlu0 %2160, %v2150
        %v2162 = vpop.permute.xlu0 %2161
        %v2163 = vperm.slane %v814, 5
        %v2164 = vlaneseq
        %v2165 = vshrl.u32 %v2164, 7
        %2167 = vset.pattern.permute.xlu0 %v2165
        %2168 = vperm.xlu0 %2167, %v2163
        %v2169 = vpop.permute.xlu0 %2168
        %v2170 = vlaneseq
        %v2171 = vshrl.u32 %v2170, 7
        %v2172 = vadd.s32 %v2171, 8
        %2173 = vset.pattern.permute.xlu0 %v2172
        %2174 = vperm.xlu0 %2173, %v2163
        %v2175 = vpop.permute.xlu0 %2174
        %v2176 = vperm.slane %v814, 6
        %v2177 = vlaneseq
        %v2178 = vshrl.u32 %v2177, 7
        %2180 = vset.pattern.permute.xlu0 %v2178
        %2181 = vperm.xlu0 %2180, %v2176
        %v2182 = vpop.permute.xlu0 %2181
        %v2183 = vlaneseq
        %v2184 = vshrl.u32 %v2183, 7
        %v2185 = vadd.s32 %v2184, 8
        %2186 = vset.pattern.permute.xlu0 %v2185
        %2187 = vperm.xlu0 %2186, %v2176
        %v2188 = vpop.permute.xlu0 %2187
        %v2189 = vperm.slane %v814, 7
        %v2190 = vlaneseq
        %v2191 = vshrl.u32 %v2190, 7
        %2193 = vset.pattern.permute.xlu0 %v2191
        %2194 = vperm.xlu0 %2193, %v2189
        %v2195 = vpop.permute.xlu0 %2194
        %v2196 = vlaneseq
        %v2197 = vshrl.u32 %v2196, 7
        %v2198 = vadd.s32 %v2197, 8
        %2199 = vset.pattern.permute.xlu0 %v2198
        %2200 = vperm.xlu0 %2199, %v2189
        %v2201 = vpop.permute.xlu0 %2200
        %v2202 = vperm.slane %v815, 0
        %v2203 = vlaneseq
        %v2204 = vshrl.u32 %v2203, 7
        %2206 = vset.pattern.permute.xlu0 %v2204
        %2207 = vperm.xlu0 %2206, %v2202
        %v2208 = vpop.permute.xlu0 %2207
        %v2209 = vlaneseq
        %v2210 = vshrl.u32 %v2209, 7
        %v2211 = vadd.s32 %v2210, 8
        %2212 = vset.pattern.permute.xlu0 %v2211
        %2213 = vperm.xlu0 %2212, %v2202
        %v2214 = vpop.permute.xlu0 %2213
        %v2215 = vperm.slane %v815, 1
        %v2216 = vlaneseq
        %v2217 = vshrl.u32 %v2216, 7
        %2219 = vset.pattern.permute.xlu0 %v2217
        %2220 = vperm.xlu0 %2219, %v2215
        %v2221 = vpop.permute.xlu0 %2220
        %v2222 = vlaneseq
        %v2223 = vshrl.u32 %v2222, 7
        %v2224 = vadd.s32 %v2223, 8
        %2225 = vset.pattern.permute.xlu0 %v2224
        %2226 = vperm.xlu0 %2225, %v2215
        %v2227 = vpop.permute.xlu0 %2226
        %v2228 = vperm.slane %v815, 2
        %v2229 = vlaneseq
        %v2230 = vshrl.u32 %v2229, 7
        %2232 = vset.pattern.permute.xlu0 %v2230
        %2233 = vperm.xlu0 %2232, %v2228
        %v2234 = vpop.permute.xlu0 %2233
        %v2235 = vlaneseq
        %v2236 = vshrl.u32 %v2235, 7
        %v2237 = vadd.s32 %v2236, 8
        %2238 = vset.pattern.permute.xlu0 %v2237
        %2239 = vperm.xlu0 %2238, %v2228
        %v2240 = vpop.permute.xlu0 %2239
        %v2241 = vperm.slane %v815, 3
        %v2242 = vlaneseq
        %v2243 = vshrl.u32 %v2242, 7
        %2245 = vset.pattern.permute.xlu0 %v2243
        %2246 = vperm.xlu0 %2245, %v2241
        %v2247 = vpop.permute.xlu0 %2246
        %v2248 = vlaneseq
        %v2249 = vshrl.u32 %v2248, 7
        %v2250 = vadd.s32 %v2249, 8
        %2251 = vset.pattern.permute.xlu0 %v2250
        %2252 = vperm.xlu0 %2251, %v2241
        %v2253 = vpop.permute.xlu0 %2252
        %v2254 = vperm.slane %v815, 4
        %v2255 = vlaneseq
        %v2256 = vshrl.u32 %v2255, 7
        %2258 = vset.pattern.permute.xlu0 %v2256
        %2259 = vperm.xlu0 %2258, %v2254
        %v2260 = vpop.permute.xlu0 %2259
        %v2261 = vlaneseq
        %v2262 = vshrl.u32 %v2261, 7
        %v2263 = vadd.s32 %v2262, 8
        %2264 = vset.pattern.permute.xlu0 %v2263
        %2265 = vperm.xlu0 %2264, %v2254
        %v2266 = vpop.permute.xlu0 %2265
        %v2267 = vperm.slane %v815, 5
        %v2268 = vlaneseq
        %v2269 = vshrl.u32 %v2268, 7
        %2271 = vset.pattern.permute.xlu0 %v2269
        %2272 = vperm.xlu0 %2271, %v2267
        %v2273 = vpop.permute.xlu0 %2272
        %v2274 = vlaneseq
        %v2275 = vshrl.u32 %v2274, 7
        %v2276 = vadd.s32 %v2275, 8
        %2277 = vset.pattern.permute.xlu0 %v2276
        %2278 = vperm.xlu0 %2277, %v2267
        %v2279 = vpop.permute.xlu0 %2278
        %v2280 = vperm.slane %v815, 6
        %v2281 = vlaneseq
        %v2282 = vshrl.u32 %v2281, 7
        %2284 = vset.pattern.permute.xlu0 %v2282
        %2285 = vperm.xlu0 %2284, %v2280
        %v2286 = vpop.permute.xlu0 %2285
        %v2287 = vlaneseq
        %v2288 = vshrl.u32 %v2287, 7
        %v2289 = vadd.s32 %v2288, 8
        %2290 = vset.pattern.permute.xlu0 %v2289
        %2291 = vperm.xlu0 %2290, %v2280
        %v2292 = vpop.permute.xlu0 %2291
        %v2293 = vperm.slane %v815, 7
        %v2294 = vlaneseq
        %v2295 = vshrl.u32 %v2294, 7
        %2297 = vset.pattern.permute.xlu0 %v2295
        %2298 = vperm.xlu0 %2297, %v2293
        %v2299 = vpop.permute.xlu0 %2298
        %v2300 = vlaneseq
        %v2301 = vshrl.u32 %v2300, 7
        %v2302 = vadd.s32 %v2301, 8
        %2303 = vset.pattern.permute.xlu0 %v2302
        %2304 = vperm.xlu0 %2303, %v2293
        %v2305 = vpop.permute.xlu0 %2304
        %v2306 = vperm.slane %v816, 0
        %v2307 = vlaneseq
        %v2308 = vshrl.u32 %v2307, 7
        %2310 = vset.pattern.permute.xlu0 %v2308
        %2311 = vperm.xlu0 %2310, %v2306
        %v2312 = vpop.permute.xlu0 %2311
        %v2313 = vlaneseq
        %v2314 = vshrl.u32 %v2313, 7
        %v2315 = vadd.s32 %v2314, 8
        %2316 = vset.pattern.permute.xlu0 %v2315
        %2317 = vperm.xlu0 %2316, %v2306
        %v2318 = vpop.permute.xlu0 %2317
        %v2319 = vperm.slane %v816, 1
        %v2320 = vlaneseq
        %v2321 = vshrl.u32 %v2320, 7
        %2323 = vset.pattern.permute.xlu0 %v2321
        %2324 = vperm.xlu0 %2323, %v2319
        %v2325 = vpop.permute.xlu0 %2324
        %v2326 = vlaneseq
        %v2327 = vshrl.u32 %v2326, 7
        %v2328 = vadd.s32 %v2327, 8
        %2329 = vset.pattern.permute.xlu0 %v2328
        %2330 = vperm.xlu0 %2329, %v2319
        %v2331 = vpop.permute.xlu0 %2330
        %v2332 = vperm.slane %v816, 2
        %v2333 = vlaneseq
        %v2334 = vshrl.u32 %v2333, 7
        %2336 = vset.pattern.permute.xlu0 %v2334
        %2337 = vperm.xlu0 %2336, %v2332
        %v2338 = vpop.permute.xlu0 %2337
        %v2339 = vlaneseq
        %v2340 = vshrl.u32 %v2339, 7
        %v2341 = vadd.s32 %v2340, 8
        %2342 = vset.pattern.permute.xlu0 %v2341
        %2343 = vperm.xlu0 %2342, %v2332
        %v2344 = vpop.permute.xlu0 %2343
        %v2345 = vperm.slane %v816, 3
        %v2346 = vlaneseq
        %v2347 = vshrl.u32 %v2346, 7
        %2349 = vset.pattern.permute.xlu0 %v2347
        %2350 = vperm.xlu0 %2349, %v2345
        %v2351 = vpop.permute.xlu0 %2350
        %v2352 = vlaneseq
        %v2353 = vshrl.u32 %v2352, 7
        %v2354 = vadd.s32 %v2353, 8
        %2355 = vset.pattern.permute.xlu0 %v2354
        %2356 = vperm.xlu0 %2355, %v2345
        %v2357 = vpop.permute.xlu0 %2356
        %v2358 = vperm.slane %v816, 4
        %v2359 = vlaneseq
        %v2360 = vshrl.u32 %v2359, 7
        %2362 = vset.pattern.permute.xlu0 %v2360
        %2363 = vperm.xlu0 %2362, %v2358
        %v2364 = vpop.permute.xlu0 %2363
        %v2365 = vlaneseq
        %v2366 = vshrl.u32 %v2365, 7
        %v2367 = vadd.s32 %v2366, 8
        %2368 = vset.pattern.permute.xlu0 %v2367
        %2369 = vperm.xlu0 %2368, %v2358
        %v2370 = vpop.permute.xlu0 %2369
        %v2371 = vperm.slane %v816, 5
        %v2372 = vlaneseq
        %v2373 = vshrl.u32 %v2372, 7
        %2375 = vset.pattern.permute.xlu0 %v2373
        %2376 = vperm.xlu0 %2375, %v2371
        %v2377 = vpop.permute.xlu0 %2376
        %v2378 = vlaneseq
        %v2379 = vshrl.u32 %v2378, 7
        %v2380 = vadd.s32 %v2379, 8
        %2381 = vset.pattern.permute.xlu0 %v2380
        %2382 = vperm.xlu0 %2381, %v2371
        %v2383 = vpop.permute.xlu0 %2382
        %v2384 = vperm.slane %v816, 6
        %v2385 = vlaneseq
        %v2386 = vshrl.u32 %v2385, 7
        %2388 = vset.pattern.permute.xlu0 %v2386
        %2389 = vperm.xlu0 %2388, %v2384
        %v2390 = vpop.permute.xlu0 %2389
        %v2391 = vlaneseq
        %v2392 = vshrl.u32 %v2391, 7
        %v2393 = vadd.s32 %v2392, 8
        %2394 = vset.pattern.permute.xlu0 %v2393
        %2395 = vperm.xlu0 %2394, %v2384
        %v2396 = vpop.permute.xlu0 %2395
        %v2397 = vperm.slane %v816, 7
        %v2398 = vlaneseq
        %v2399 = vshrl.u32 %v2398, 7
        %2401 = vset.pattern.permute.xlu0 %v2399
        %2402 = vperm.xlu0 %2401, %v2397
        %v2403 = vpop.permute.xlu0 %2402
        %v2404 = vlaneseq
        %v2405 = vshrl.u32 %v2404, 7
        %v2406 = vadd.s32 %v2405, 8
        %2407 = vset.pattern.permute.xlu0 %v2406
        %2408 = vperm.xlu0 %2407, %v2397
        %v2409 = vpop.permute.xlu0 %2408
        %v2410 = vperm.slane %v817, 0
        %v2411 = vlaneseq
        %v2412 = vshrl.u32 %v2411, 7
        %2414 = vset.pattern.permute.xlu0 %v2412
        %2415 = vperm.xlu0 %2414, %v2410
        %v2416 = vpop.permute.xlu0 %2415
        %v2417 = vlaneseq
        %v2418 = vshrl.u32 %v2417, 7
        %v2419 = vadd.s32 %v2418, 8
        %2420 = vset.pattern.permute.xlu0 %v2419
        %2421 = vperm.xlu0 %2420, %v2410
        %v2422 = vpop.permute.xlu0 %2421
        %v2423 = vperm.slane %v817, 1
        %v2424 = vlaneseq
        %v2425 = vshrl.u32 %v2424, 7
        %2427 = vset.pattern.permute.xlu0 %v2425
        %2428 = vperm.xlu0 %2427, %v2423
        %v2429 = vpop.permute.xlu0 %2428
        %v2430 = vlaneseq
        %v2431 = vshrl.u32 %v2430, 7
        %v2432 = vadd.s32 %v2431, 8
        %2433 = vset.pattern.permute.xlu0 %v2432
        %2434 = vperm.xlu0 %2433, %v2423
        %v2435 = vpop.permute.xlu0 %2434
        %v2436 = vperm.slane %v817, 2
        %v2437 = vlaneseq
        %v2438 = vshrl.u32 %v2437, 7
        %2440 = vset.pattern.permute.xlu0 %v2438
        %2441 = vperm.xlu0 %2440, %v2436
        %v2442 = vpop.permute.xlu0 %2441
        %v2443 = vlaneseq
        %v2444 = vshrl.u32 %v2443, 7
        %v2445 = vadd.s32 %v2444, 8
        %2446 = vset.pattern.permute.xlu0 %v2445
        %2447 = vperm.xlu0 %2446, %v2436
        %v2448 = vpop.permute.xlu0 %2447
        %v2449 = vperm.slane %v817, 3
        %v2450 = vlaneseq
        %v2451 = vshrl.u32 %v2450, 7
        %2453 = vset.pattern.permute.xlu0 %v2451
        %2454 = vperm.xlu0 %2453, %v2449
        %v2455 = vpop.permute.xlu0 %2454
        %v2456 = vlaneseq
        %v2457 = vshrl.u32 %v2456, 7
        %v2458 = vadd.s32 %v2457, 8
        %2459 = vset.pattern.permute.xlu0 %v2458
        %2460 = vperm.xlu0 %2459, %v2449
        %v2461 = vpop.permute.xlu0 %2460
        %v2462 = vperm.slane %v817, 4
        %v2463 = vlaneseq
        %v2464 = vshrl.u32 %v2463, 7
        %2466 = vset.pattern.permute.xlu0 %v2464
        %2467 = vperm.xlu0 %2466, %v2462
        %v2468 = vpop.permute.xlu0 %2467
        %v2469 = vlaneseq
        %v2470 = vshrl.u32 %v2469, 7
        %v2471 = vadd.s32 %v2470, 8
        %2472 = vset.pattern.permute.xlu0 %v2471
        %2473 = vperm.xlu0 %2472, %v2462
        %v2474 = vpop.permute.xlu0 %2473
        %v2475 = vperm.slane %v817, 5
        %v2476 = vlaneseq
        %v2477 = vshrl.u32 %v2476, 7
        %2479 = vset.pattern.permute.xlu0 %v2477
        %2480 = vperm.xlu0 %2479, %v2475
        %v2481 = vpop.permute.xlu0 %2480
        %v2482 = vlaneseq
        %v2483 = vshrl.u32 %v2482, 7
        %v2484 = vadd.s32 %v2483, 8
        %2485 = vset.pattern.permute.xlu0 %v2484
        %2486 = vperm.xlu0 %2485, %v2475
        %v2487 = vpop.permute.xlu0 %2486
        %v2488 = vperm.slane %v817, 6
        %v2489 = vlaneseq
        %v2490 = vshrl.u32 %v2489, 7
        %2492 = vset.pattern.permute.xlu0 %v2490
        %2493 = vperm.xlu0 %2492, %v2488
        %v2494 = vpop.permute.xlu0 %2493
        %v2495 = vlaneseq
        %v2496 = vshrl.u32 %v2495, 7
        %v2497 = vadd.s32 %v2496, 8
        %2498 = vset.pattern.permute.xlu0 %v2497
        %2499 = vperm.xlu0 %2498, %v2488
        %v2500 = vpop.permute.xlu0 %2499
        %v2501 = vperm.slane %v817, 7
        %v2502 = vlaneseq
        %v2503 = vshrl.u32 %v2502, 7
        %2505 = vset.pattern.permute.xlu0 %v2503
        %2506 = vperm.xlu0 %2505, %v2501
        %v2507 = vpop.permute.xlu0 %2506
        %v2508 = vlaneseq
        %v2509 = vshrl.u32 %v2508, 7
        %v2510 = vadd.s32 %v2509, 8
        %2511 = vset.pattern.permute.xlu0 %v2510
        %2512 = vperm.xlu0 %2511, %v2501
        %v2513 = vpop.permute.xlu0 %2512
        %vm2514 = vcmp.gt.f32.partialorder %v856, 0.5
        %vm2515 = vcmp.gt.f32.partialorder %v862, 0.5
        %vm2516 = vcmp.gt.f32.partialorder %v869, 0.5
        %vm2517 = vcmp.gt.f32.partialorder %v875, 0.5
        %vm2518 = vcmp.gt.f32.partialorder %v882, 0.5
        %vm2519 = vcmp.gt.f32.partialorder %v888, 0.5
        %vm2520 = vcmp.gt.f32.partialorder %v895, 0.5
        %vm2521 = vcmp.gt.f32.partialorder %v901, 0.5
        %vm2522 = vcmp.gt.f32.partialorder %v908, 0.5
        %vm2523 = vcmp.gt.f32.partialorder %v914, 0.5
        %vm2524 = vcmp.gt.f32.partialorder %v921, 0.5
        %vm2525 = vcmp.gt.f32.partialorder %v927, 0.5
        %vm2526 = vcmp.gt.f32.partialorder %v934, 0.5
        %vm2527 = vcmp.gt.f32.partialorder %v940, 0.5
        %vm2528 = vcmp.gt.f32.partialorder %v947, 0.5
        %vm2529 = vcmp.gt.f32.partialorder %v953, 0.5
        %vm2530 = vcmp.gt.f32.partialorder %v960, 0.5
        %vm2531 = vcmp.gt.f32.partialorder %v966, 0.5
        %vm2532 = vcmp.gt.f32.partialorder %v973, 0.5
        %vm2533 = vcmp.gt.f32.partialorder %v979, 0.5
        %vm2534 = vcmp.gt.f32.partialorder %v986, 0.5
        %vm2535 = vcmp.gt.f32.partialorder %v992, 0.5
        %vm2536 = vcmp.gt.f32.partialorder %v999, 0.5
        %vm2537 = vcmp.gt.f32.partialorder %v1005, 0.5
        %vm2538 = vcmp.gt.f32.partialorder %v1012, 0.5
        %vm2539 = vcmp.gt.f32.partialorder %v1018, 0.5
        %vm2540 = vcmp.gt.f32.partialorder %v1025, 0.5
        %vm2541 = vcmp.gt.f32.partialorder %v1031, 0.5
        %vm2542 = vcmp.gt.f32.partialorder %v1038, 0.5
        %vm2543 = vcmp.gt.f32.partialorder %v1044, 0.5
        %vm2544 = vcmp.gt.f32.partialorder %v1051, 0.5
        %vm2545 = vcmp.gt.f32.partialorder %v1057, 0.5
        %vm2546 = vcmp.gt.f32.partialorder %v1064, 0.5
        %vm2547 = vcmp.gt.f32.partialorder %v1070, 0.5
        %vm2548 = vcmp.gt.f32.partialorder %v1077, 0.5
        %vm2549 = vcmp.gt.f32.partialorder %v1083, 0.5
        %vm2550 = vcmp.gt.f32.partialorder %v1090, 0.5
        %vm2551 = vcmp.gt.f32.partialorder %v1096, 0.5
        %vm2552 = vcmp.gt.f32.partialorder %v1103, 0.5
        %vm2553 = vcmp.gt.f32.partialorder %v1109, 0.5
        %vm2554 = vcmp.gt.f32.partialorder %v1116, 0.5
        %vm2555 = vcmp.gt.f32.partialorder %v1122, 0.5
        %vm2556 = vcmp.gt.f32.partialorder %v1129, 0.5
        %vm2557 = vcmp.gt.f32.partialorder %v1135, 0.5
        %vm2558 = vcmp.gt.f32.partialorder %v1142, 0.5
        %vm2559 = vcmp.gt.f32.partialorder %v1148, 0.5
        %vm2560 = vcmp.gt.f32.partialorder %v1155, 0.5
        %vm2561 = vcmp.gt.f32.partialorder %v1161, 0.5
        %vm2562 = vcmp.gt.f32.partialorder %v1168, 0.5
        %vm2563 = vcmp.gt.f32.partialorder %v1174, 0.5
        %vm2564 = vcmp.gt.f32.partialorder %v1181, 0.5
        %vm2565 = vcmp.gt.f32.partialorder %v1187, 0.5
        %vm2566 = vcmp.gt.f32.partialorder %v1194, 0.5
        %vm2567 = vcmp.gt.f32.partialorder %v1200, 0.5
        %vm2568 = vcmp.gt.f32.partialorder %v1207, 0.5
        %vm2569 = vcmp.gt.f32.partialorder %v1213, 0.5
        %vm2570 = vcmp.gt.f32.partialorder %v1220, 0.5
        %vm2571 = vcmp.gt.f32.partialorder %v1226, 0.5
        %vm2572 = vcmp.gt.f32.partialorder %v1233, 0.5
        %vm2573 = vcmp.gt.f32.partialorder %v1239, 0.5
        %vm2574 = vcmp.gt.f32.partialorder %v1246, 0.5
        %vm2575 = vcmp.gt.f32.partialorder %v1252, 0.5
        %vm2576 = vcmp.gt.f32.partialorder %v1259, 0.5
        %vm2577 = vcmp.gt.f32.partialorder %v1265, 0.5
        %vm2578 = vcmp.gt.f32.partialorder %v1272, 0.5
        %vm2579 = vcmp.gt.f32.partialorder %v1278, 0.5
        %vm2580 = vcmp.gt.f32.partialorder %v1285, 0.5
        %vm2581 = vcmp.gt.f32.partialorder %v1291, 0.5
        %vm2582 = vcmp.gt.f32.partialorder %v1298, 0.5
        %vm2583 = vcmp.gt.f32.partialorder %v1304, 0.5
        %vm2584 = vcmp.gt.f32.partialorder %v1311, 0.5
        %vm2585 = vcmp.gt.f32.partialorder %v1317, 0.5
        %vm2586 = vcmp.gt.f32.partialorder %v1324, 0.5
        %vm2587 = vcmp.gt.f32.partialorder %v1330, 0.5
        %vm2588 = vcmp.gt.f32.partialorder %v1337, 0.5
        %vm2589 = vcmp.gt.f32.partialorder %v1343, 0.5
        %vm2590 = vcmp.gt.f32.partialorder %v1350, 0.5
        %vm2591 = vcmp.gt.f32.partialorder %v1356, 0.5
        %vm2592 = vcmp.gt.f32.partialorder %v1363, 0.5
        %vm2593 = vcmp.gt.f32.partialorder %v1369, 0.5
        %vm2594 = vcmp.gt.f32.partialorder %v1376, 0.5
        %vm2595 = vcmp.gt.f32.partialorder %v1382, 0.5
        %vm2596 = vcmp.gt.f32.partialorder %v1389, 0.5
        %vm2597 = vcmp.gt.f32.partialorder %v1395, 0.5
        %vm2598 = vcmp.gt.f32.partialorder %v1402, 0.5
        %vm2599 = vcmp.gt.f32.partialorder %v1408, 0.5
        %vm2600 = vcmp.gt.f32.partialorder %v1415, 0.5
        %vm2601 = vcmp.gt.f32.partialorder %v1421, 0.5
        %vm2602 = vcmp.gt.f32.partialorder %v1428, 0.5
        %vm2603 = vcmp.gt.f32.partialorder %v1434, 0.5
        %vm2604 = vcmp.gt.f32.partialorder %v1441, 0.5
        %vm2605 = vcmp.gt.f32.partialorder %v1447, 0.5
        %vm2606 = vcmp.gt.f32.partialorder %v1454, 0.5
        %vm2607 = vcmp.gt.f32.partialorder %v1460, 0.5
        %vm2608 = vcmp.gt.f32.partialorder %v1467, 0.5
        %vm2609 = vcmp.gt.f32.partialorder %v1473, 0.5
        %vm2610 = vcmp.gt.f32.partialorder %v1480, 0.5
        %vm2611 = vcmp.gt.f32.partialorder %v1486, 0.5
        %vm2612 = vcmp.gt.f32.partialorder %v1493, 0.5
        %vm2613 = vcmp.gt.f32.partialorder %v1499, 0.5
        %vm2614 = vcmp.gt.f32.partialorder %v1506, 0.5
        %vm2615 = vcmp.gt.f32.partialorder %v1512, 0.5
        %vm2616 = vcmp.gt.f32.partialorder %v1519, 0.5
        %vm2617 = vcmp.gt.f32.partialorder %v1525, 0.5
        %vm2618 = vcmp.gt.f32.partialorder %v1532, 0.5
        %vm2619 = vcmp.gt.f32.partialorder %v1538, 0.5
        %vm2620 = vcmp.gt.f32.partialorder %v1545, 0.5
        %vm2621 = vcmp.gt.f32.partialorder %v1551, 0.5
        %vm2622 = vcmp.gt.f32.partialorder %v1558, 0.5
        %vm2623 = vcmp.gt.f32.partialorder %v1564, 0.5
        %vm2624 = vcmp.gt.f32.partialorder %v1571, 0.5
        %vm2625 = vcmp.gt.f32.partialorder %v1577, 0.5
        %vm2626 = vcmp.gt.f32.partialorder %v1584, 0.5
        %vm2627 = vcmp.gt.f32.partialorder %v1590, 0.5
        %vm2628 = vcmp.gt.f32.partialorder %v1597, 0.5
        %vm2629 = vcmp.gt.f32.partialorder %v1603, 0.5
        %vm2630 = vcmp.gt.f32.partialorder %v1610, 0.5
        %vm2631 = vcmp.gt.f32.partialorder %v1616, 0.5
        %vm2632 = vcmp.gt.f32.partialorder %v1623, 0.5
        %vm2633 = vcmp.gt.f32.partialorder %v1629, 0.5
        %vm2634 = vcmp.gt.f32.partialorder %v1636, 0.5
        %vm2635 = vcmp.gt.f32.partialorder %v1642, 0.5
        %vm2636 = vcmp.gt.f32.partialorder %v1649, 0.5
        %vm2637 = vcmp.gt.f32.partialorder %v1655, 0.5
        %vm2638 = vcmp.gt.f32.partialorder %v1662, 0.5
        %vm2639 = vcmp.gt.f32.partialorder %v1668, 0.5
        %vm2640 = vcmp.gt.f32.partialorder %v1675, 0.5
        %vm2641 = vcmp.gt.f32.partialorder %v1681, 0.5
        %vm2642 = vcmp.gt.f32.partialorder %v1688, 0.5
        %vm2643 = vcmp.gt.f32.partialorder %v1694, 0.5
        %vm2644 = vcmp.gt.f32.partialorder %v1701, 0.5
        %vm2645 = vcmp.gt.f32.partialorder %v1707, 0.5
        %vm2646 = vcmp.gt.f32.partialorder %v1714, 0.5
        %vm2647 = vcmp.gt.f32.partialorder %v1720, 0.5
        %vm2648 = vcmp.gt.f32.partialorder %v1727, 0.5
        %vm2649 = vcmp.gt.f32.partialorder %v1733, 0.5
        %vm2650 = vcmp.gt.f32.partialorder %v1740, 0.5
        %vm2651 = vcmp.gt.f32.partialorder %v1746, 0.5
        %vm2652 = vcmp.gt.f32.partialorder %v1753, 0.5
        %vm2653 = vcmp.gt.f32.partialorder %v1759, 0.5
        %vm2654 = vcmp.gt.f32.partialorder %v1766, 0.5
        %vm2655 = vcmp.gt.f32.partialorder %v1772, 0.5
        %vm2656 = vcmp.gt.f32.partialorder %v1779, 0.5
        %vm2657 = vcmp.gt.f32.partialorder %v1785, 0.5
        %vm2658 = vcmp.gt.f32.partialorder %v1792, 0.5
        %vm2659 = vcmp.gt.f32.partialorder %v1798, 0.5
        %vm2660 = vcmp.gt.f32.partialorder %v1805, 0.5
        %vm2661 = vcmp.gt.f32.partialorder %v1811, 0.5
        %vm2662 = vcmp.gt.f32.partialorder %v1818, 0.5
        %vm2663 = vcmp.gt.f32.partialorder %v1824, 0.5
        %vm2664 = vcmp.gt.f32.partialorder %v1831, 0.5
        %vm2665 = vcmp.gt.f32.partialorder %v1837, 0.5
        %vm2666 = vcmp.gt.f32.partialorder %v1844, 0.5
        %vm2667 = vcmp.gt.f32.partialorder %v1850, 0.5
        %vm2668 = vcmp.gt.f32.partialorder %v1857, 0.5
        %vm2669 = vcmp.gt.f32.partialorder %v1863, 0.5
        %vm2670 = vcmp.gt.f32.partialorder %v1870, 0.5
        %vm2671 = vcmp.gt.f32.partialorder %v1876, 0.5
        %vm2672 = vcmp.gt.f32.partialorder %v1883, 0.5
        %vm2673 = vcmp.gt.f32.partialorder %v1889, 0.5
        %vm2674 = vcmp.gt.f32.partialorder %v1896, 0.5
        %vm2675 = vcmp.gt.f32.partialorder %v1902, 0.5
        %vm2676 = vcmp.gt.f32.partialorder %v1909, 0.5
        %vm2677 = vcmp.gt.f32.partialorder %v1915, 0.5
        %vm2678 = vcmp.gt.f32.partialorder %v1922, 0.5
        %vm2679 = vcmp.gt.f32.partialorder %v1928, 0.5
        %vm2680 = vcmp.gt.f32.partialorder %v1935, 0.5
        %vm2681 = vcmp.gt.f32.partialorder %v1941, 0.5
        %vm2682 = vcmp.gt.f32.partialorder %v1948, 0.5
        %vm2683 = vcmp.gt.f32.partialorder %v1954, 0.5
        %vm2684 = vcmp.gt.f32.partialorder %v1961, 0.5
        %vm2685 = vcmp.gt.f32.partialorder %v1967, 0.5
        %vm2686 = vcmp.gt.f32.partialorder %v1974, 0.5
        %vm2687 = vcmp.gt.f32.partialorder %v1980, 0.5
        %vm2688 = vcmp.gt.f32.partialorder %v1987, 0.5
        %vm2689 = vcmp.gt.f32.partialorder %v1993, 0.5
        %vm2690 = vcmp.gt.f32.partialorder %v2000, 0.5
        %vm2691 = vcmp.gt.f32.partialorder %v2006, 0.5
        %vm2692 = vcmp.gt.f32.partialorder %v2013, 0.5
        %vm2693 = vcmp.gt.f32.partialorder %v2019, 0.5
        %vm2694 = vcmp.gt.f32.partialorder %v2026, 0.5
        %vm2695 = vcmp.gt.f32.partialorder %v2032, 0.5
        %vm2696 = vcmp.gt.f32.partialorder %v2039, 0.5
        %vm2697 = vcmp.gt.f32.partialorder %v2045, 0.5
        %vm2698 = vcmp.gt.f32.partialorder %v2052, 0.5
        %vm2699 = vcmp.gt.f32.partialorder %v2058, 0.5
        %vm2700 = vcmp.gt.f32.partialorder %v2065, 0.5
        %vm2701 = vcmp.gt.f32.partialorder %v2071, 0.5
        %vm2702 = vcmp.gt.f32.partialorder %v2078, 0.5
        %vm2703 = vcmp.gt.f32.partialorder %v2084, 0.5
        %vm2704 = vcmp.gt.f32.partialorder %v2091, 0.5
        %vm2705 = vcmp.gt.f32.partialorder %v2097, 0.5
        %vm2706 = vcmp.gt.f32.partialorder %v2104, 0.5
        %vm2707 = vcmp.gt.f32.partialorder %v2110, 0.5
        %vm2708 = vcmp.gt.f32.partialorder %v2117, 0.5
        %vm2709 = vcmp.gt.f32.partialorder %v2123, 0.5
        %vm2710 = vcmp.gt.f32.partialorder %v2130, 0.5
        %vm2711 = vcmp.gt.f32.partialorder %v2136, 0.5
        %vm2712 = vcmp.gt.f32.partialorder %v2143, 0.5
        %vm2713 = vcmp.gt.f32.partialorder %v2149, 0.5
        %vm2714 = vcmp.gt.f32.partialorder %v2156, 0.5
        %vm2715 = vcmp.gt.f32.partialorder %v2162, 0.5
        %vm2716 = vcmp.gt.f32.partialorder %v2169, 0.5
        %vm2717 = vcmp.gt.f32.partialorder %v2175, 0.5
        %vm2718 = vcmp.gt.f32.partialorder %v2182, 0.5
        %vm2719 = vcmp.gt.f32.partialorder %v2188, 0.5
        %vm2720 = vcmp.gt.f32.partialorder %v2195, 0.5
        %vm2721 = vcmp.gt.f32.partialorder %v2201, 0.5
        %vm2722 = vcmp.gt.f32.partialorder %v2208, 0.5
        %vm2723 = vcmp.gt.f32.partialorder %v2214, 0.5
        %vm2724 = vcmp.gt.f32.partialorder %v2221, 0.5
        %vm2725 = vcmp.gt.f32.partialorder %v2227, 0.5
        %vm2726 = vcmp.gt.f32.partialorder %v2234, 0.5
        %vm2727 = vcmp.gt.f32.partialorder %v2240, 0.5
        %vm2728 = vcmp.gt.f32.partialorder %v2247, 0.5
        %vm2729 = vcmp.gt.f32.partialorder %v2253, 0.5
        %vm2730 = vcmp.gt.f32.partialorder %v2260, 0.5
        %vm2731 = vcmp.gt.f32.partialorder %v2266, 0.5
        %vm2732 = vcmp.gt.f32.partialorder %v2273, 0.5
        %vm2733 = vcmp.gt.f32.partialorder %v2279, 0.5
        %vm2734 = vcmp.gt.f32.partialorder %v2286, 0.5
        %vm2735 = vcmp.gt.f32.partialorder %v2292, 0.5
        %vm2736 = vcmp.gt.f32.partialorder %v2299, 0.5
        %vm2737 = vcmp.gt.f32.partialorder %v2305, 0.5
        %vm2738 = vcmp.gt.f32.partialorder %v2312, 0.5
        %vm2739 = vcmp.gt.f32.partialorder %v2318, 0.5
        %vm2740 = vcmp.gt.f32.partialorder %v2325, 0.5
        %vm2741 = vcmp.gt.f32.partialorder %v2331, 0.5
        %vm2742 = vcmp.gt.f32.partialorder %v2338, 0.5
        %vm2743 = vcmp.gt.f32.partialorder %v2344, 0.5
        %vm2744 = vcmp.gt.f32.partialorder %v2351, 0.5
        %vm2745 = vcmp.gt.f32.partialorder %v2357, 0.5
        %vm2746 = vcmp.gt.f32.partialorder %v2364, 0.5
        %vm2747 = vcmp.gt.f32.partialorder %v2370, 0.5
        %vm2748 = vcmp.gt.f32.partialorder %v2377, 0.5
        %vm2749 = vcmp.gt.f32.partialorder %v2383, 0.5
        %vm2750 = vcmp.gt.f32.partialorder %v2390, 0.5
        %vm2751 = vcmp.gt.f32.partialorder %v2396, 0.5
        %vm2752 = vcmp.gt.f32.partialorder %v2403, 0.5
        %vm2753 = vcmp.gt.f32.partialorder %v2409, 0.5
        %vm2754 = vcmp.gt.f32.partialorder %v2416, 0.5
        %vm2755 = vcmp.gt.f32.partialorder %v2422, 0.5
        %vm2756 = vcmp.gt.f32.partialorder %v2429, 0.5
        %vm2757 = vcmp.gt.f32.partialorder %v2435, 0.5
        %vm2758 = vcmp.gt.f32.partialorder %v2442, 0.5
        %vm2759 = vcmp.gt.f32.partialorder %v2448, 0.5
        %vm2760 = vcmp.gt.f32.partialorder %v2455, 0.5
        %vm2761 = vcmp.gt.f32.partialorder %v2461, 0.5
        %vm2762 = vcmp.gt.f32.partialorder %v2468, 0.5
        %vm2763 = vcmp.gt.f32.partialorder %v2474, 0.5
        %vm2764 = vcmp.gt.f32.partialorder %v2481, 0.5
        %vm2765 = vcmp.gt.f32.partialorder %v2487, 0.5
        %vm2766 = vcmp.gt.f32.partialorder %v2494, 0.5
        %vm2767 = vcmp.gt.f32.partialorder %v2500, 0.5
        %vm2768 = vcmp.gt.f32.partialorder %v2507, 0.5
        %vm2769 = vcmp.gt.f32.partialorder %v2513, 0.5
        %v2770 = vld [vmem:[%s423] sm:$0xff]
        %v2771 = vld [vmem:[%s423 + $0x8] sm:$0xff]
        %v2772 = vld [vmem:[%s423 + $0x10] sm:$0xff]
        %v2773 = vld [vmem:[%s423 + $0x18] sm:$0xff]
        %v2774 = vld [vmem:[%s423 + $0x20] sm:$0xff]
        %v2775 = vld [vmem:[%s423 + $0x28] sm:$0xff]
        %v2776 = vld [vmem:[%s423 + $0x30] sm:$0xff]
        %v2777 = vld [vmem:[%s423 + $0x38] sm:$0xff]
        %v2778 = vld [vmem:[%s423 + $0x40] sm:$0xff]
        %v2779 = vld [vmem:[%s423 + $0x48] sm:$0xff]
        %v2780 = vld [vmem:[%s423 + $0x50] sm:$0xff]
        %v2781 = vld [vmem:[%s423 + $0x58] sm:$0xff]
        %v2782 = vld [vmem:[%s423 + $0x60] sm:$0xff]
        %v2783 = vld [vmem:[%s423 + $0x68] sm:$0xff]
        %v2784 = vld [vmem:[%s423 + $0x70] sm:$0xff]
        %v2785 = vld [vmem:[%s423 + $0x78] sm:$0xff]
        %v2786 = vld [vmem:[%s423 + $0x80] sm:$0xff]
        %v2787 = vld [vmem:[%s423 + $0x88] sm:$0xff]
        %v2788 = vld [vmem:[%s423 + $0x90] sm:$0xff]
        %v2789 = vld [vmem:[%s423 + $0x98] sm:$0xff]
        %v2790 = vld [vmem:[%s423 + $0xa0] sm:$0xff]
        %v2791 = vld [vmem:[%s423 + $0xa8] sm:$0xff]
        %v2792 = vld [vmem:[%s423 + $0xb0] sm:$0xff]
        %v2793 = vld [vmem:[%s423 + $0xb8] sm:$0xff]
        %v2794 = vld [vmem:[%s423 + $0xc0] sm:$0xff]
        %v2795 = vld [vmem:[%s423 + $0xc8] sm:$0xff]
        %v2796 = vld [vmem:[%s423 + $0xd0] sm:$0xff]
        %v2797 = vld [vmem:[%s423 + $0xd8] sm:$0xff]
        %v2798 = vld [vmem:[%s423 + $0xe0] sm:$0xff]
        %v2799 = vld [vmem:[%s423 + $0xe8] sm:$0xff]
        %v2800 = vld [vmem:[%s423 + $0xf0] sm:$0xff]
        %v2801 = vld [vmem:[%s423 + $0xf8] sm:$0xff]
        %v2802 = vld [vmem:[%s423 + $0x100] sm:$0xff]
        %v2803 = vld [vmem:[%s423 + $0x108] sm:$0xff]
        %v2804 = vld [vmem:[%s423 + $0x110] sm:$0xff]
        %v2805 = vld [vmem:[%s423 + $0x118] sm:$0xff]
        %v2806 = vld [vmem:[%s423 + $0x120] sm:$0xff]
        %v2807 = vld [vmem:[%s423 + $0x128] sm:$0xff]
        %v2808 = vld [vmem:[%s423 + $0x130] sm:$0xff]
        %v2809 = vld [vmem:[%s423 + $0x138] sm:$0xff]
        %v2810 = vld [vmem:[%s423 + $0x140] sm:$0xff]
        %v2811 = vld [vmem:[%s423 + $0x148] sm:$0xff]
        %v2812 = vld [vmem:[%s423 + $0x150] sm:$0xff]
        %v2813 = vld [vmem:[%s423 + $0x158] sm:$0xff]
        %v2814 = vld [vmem:[%s423 + $0x160] sm:$0xff]
        %v2815 = vld [vmem:[%s423 + $0x168] sm:$0xff]
        %v2816 = vld [vmem:[%s423 + $0x170] sm:$0xff]
        %v2817 = vld [vmem:[%s423 + $0x178] sm:$0xff]
        %v2818 = vld [vmem:[%s423 + $0x180] sm:$0xff]
        %v2819 = vld [vmem:[%s423 + $0x188] sm:$0xff]
        %v2820 = vld [vmem:[%s423 + $0x190] sm:$0xff]
        %v2821 = vld [vmem:[%s423 + $0x198] sm:$0xff]
        %v2822 = vld [vmem:[%s423 + $0x1a0] sm:$0xff]
        %v2823 = vld [vmem:[%s423 + $0x1a8] sm:$0xff]
        %v2824 = vld [vmem:[%s423 + $0x1b0] sm:$0xff]
        %v2825 = vld [vmem:[%s423 + $0x1b8] sm:$0xff]
        %v2826 = vld [vmem:[%s423 + $0x1c0] sm:$0xff]
        %v2827 = vld [vmem:[%s423 + $0x1c8] sm:$0xff]
        %v2828 = vld [vmem:[%s423 + $0x1d0] sm:$0xff]
        %v2829 = vld [vmem:[%s423 + $0x1d8] sm:$0xff]
        %v2830 = vld [vmem:[%s423 + $0x1e0] sm:$0xff]
        %v2831 = vld [vmem:[%s423 + $0x1e8] sm:$0xff]
        %v2832 = vld [vmem:[%s423 + $0x1f0] sm:$0xff]
        %v2833 = vld [vmem:[%s423 + $0x1f8] sm:$0xff]
        %v2834 = vld [vmem:[%s423 + $0x200] sm:$0xff]
        %v2835 = vld [vmem:[%s423 + $0x208] sm:$0xff]
        %v2836 = vld [vmem:[%s423 + $0x210] sm:$0xff]
        %v2837 = vld [vmem:[%s423 + $0x218] sm:$0xff]
        %v2838 = vld [vmem:[%s423 + $0x220] sm:$0xff]
        %v2839 = vld [vmem:[%s423 + $0x228] sm:$0xff]
        %v2840 = vld [vmem:[%s423 + $0x230] sm:$0xff]
        %v2841 = vld [vmem:[%s423 + $0x238] sm:$0xff]
        %v2842 = vld [vmem:[%s423 + $0x240] sm:$0xff]
        %v2843 = vld [vmem:[%s423 + $0x248] sm:$0xff]
        %v2844 = vld [vmem:[%s423 + $0x250] sm:$0xff]
        %v2845 = vld [vmem:[%s423 + $0x258] sm:$0xff]
        %v2846 = vld [vmem:[%s423 + $0x260] sm:$0xff]
        %v2847 = vld [vmem:[%s423 + $0x268] sm:$0xff]
        %v2848 = vld [vmem:[%s423 + $0x270] sm:$0xff]
        %v2849 = vld [vmem:[%s423 + $0x278] sm:$0xff]
        %v2850 = vld [vmem:[%s423 + $0x280] sm:$0xff]
        %v2851 = vld [vmem:[%s423 + $0x288] sm:$0xff]
        %v2852 = vld [vmem:[%s423 + $0x290] sm:$0xff]
        %v2853 = vld [vmem:[%s423 + $0x298] sm:$0xff]
        %v2854 = vld [vmem:[%s423 + $0x2a0] sm:$0xff]
        %v2855 = vld [vmem:[%s423 + $0x2a8] sm:$0xff]
        %v2856 = vld [vmem:[%s423 + $0x2b0] sm:$0xff]
        %v2857 = vld [vmem:[%s423 + $0x2b8] sm:$0xff]
        %v2858 = vld [vmem:[%s423 + $0x2c0] sm:$0xff]
        %v2859 = vld [vmem:[%s423 + $0x2c8] sm:$0xff]
        %v2860 = vld [vmem:[%s423 + $0x2d0] sm:$0xff]
        %v2861 = vld [vmem:[%s423 + $0x2d8] sm:$0xff]
        %v2862 = vld [vmem:[%s423 + $0x2e0] sm:$0xff]
        %v2863 = vld [vmem:[%s423 + $0x2e8] sm:$0xff]
        %v2864 = vld [vmem:[%s423 + $0x2f0] sm:$0xff]
        %v2865 = vld [vmem:[%s423 + $0x2f8] sm:$0xff]
        %v2866 = vld [vmem:[%s423 + $0x300] sm:$0xff]
        %v2867 = vld [vmem:[%s423 + $0x308] sm:$0xff]
        %v2868 = vld [vmem:[%s423 + $0x310] sm:$0xff]
        %v2869 = vld [vmem:[%s423 + $0x318] sm:$0xff]
        %v2870 = vld [vmem:[%s423 + $0x320] sm:$0xff]
        %v2871 = vld [vmem:[%s423 + $0x328] sm:$0xff]
        %v2872 = vld [vmem:[%s423 + $0x330] sm:$0xff]
        %v2873 = vld [vmem:[%s423 + $0x338] sm:$0xff]
        %v2874 = vld [vmem:[%s423 + $0x340] sm:$0xff]
        %v2875 = vld [vmem:[%s423 + $0x348] sm:$0xff]
        %v2876 = vld [vmem:[%s423 + $0x350] sm:$0xff]
        %v2877 = vld [vmem:[%s423 + $0x358] sm:$0xff]
        %v2878 = vld [vmem:[%s423 + $0x360] sm:$0xff]
        %v2879 = vld [vmem:[%s423 + $0x368] sm:$0xff]
        %v2880 = vld [vmem:[%s423 + $0x370] sm:$0xff]
        %v2881 = vld [vmem:[%s423 + $0x378] sm:$0xff]
        %v2882 = vld [vmem:[%s423 + $0x380] sm:$0xff]
        %v2883 = vld [vmem:[%s423 + $0x388] sm:$0xff]
        %v2884 = vld [vmem:[%s423 + $0x390] sm:$0xff]
        %v2885 = vld [vmem:[%s423 + $0x398] sm:$0xff]
        %v2886 = vld [vmem:[%s423 + $0x3a0] sm:$0xff]
        %v2887 = vld [vmem:[%s423 + $0x3a8] sm:$0xff]
        %v2888 = vld [vmem:[%s423 + $0x3b0] sm:$0xff]
        %v2889 = vld [vmem:[%s423 + $0x3b8] sm:$0xff]
        %v2890 = vld [vmem:[%s423 + $0x3c0] sm:$0xff]
        %v2891 = vld [vmem:[%s423 + $0x3c8] sm:$0xff]
        %v2892 = vld [vmem:[%s423 + $0x3d0] sm:$0xff]
        %v2893 = vld [vmem:[%s423 + $0x3d8] sm:$0xff]
        %v2894 = vld [vmem:[%s423 + $0x3e0] sm:$0xff]
        %v2895 = vld [vmem:[%s423 + $0x3e8] sm:$0xff]
        %v2896 = vld [vmem:[%s423 + $0x3f0] sm:$0xff]
        %v2897 = vld [vmem:[%s423 + $0x3f8] sm:$0xff]
        %v2898 = vld [vmem:[%s423 + $0x400] sm:$0xff]
        %v2899 = vld [vmem:[%s423 + $0x408] sm:$0xff]
        %v2900 = vld [vmem:[%s423 + $0x410] sm:$0xff]
        %v2901 = vld [vmem:[%s423 + $0x418] sm:$0xff]
        %v2902 = vld [vmem:[%s423 + $0x420] sm:$0xff]
        %v2903 = vld [vmem:[%s423 + $0x428] sm:$0xff]
        %v2904 = vld [vmem:[%s423 + $0x430] sm:$0xff]
        %v2905 = vld [vmem:[%s423 + $0x438] sm:$0xff]
        %v2906 = vld [vmem:[%s423 + $0x440] sm:$0xff]
        %v2907 = vld [vmem:[%s423 + $0x448] sm:$0xff]
        %v2908 = vld [vmem:[%s423 + $0x450] sm:$0xff]
        %v2909 = vld [vmem:[%s423 + $0x458] sm:$0xff]
        %v2910 = vld [vmem:[%s423 + $0x460] sm:$0xff]
        %v2911 = vld [vmem:[%s423 + $0x468] sm:$0xff]
        %v2912 = vld [vmem:[%s423 + $0x470] sm:$0xff]
        %v2913 = vld [vmem:[%s423 + $0x478] sm:$0xff]
        %v2914 = vld [vmem:[%s423 + $0x480] sm:$0xff]
        %v2915 = vld [vmem:[%s423 + $0x488] sm:$0xff]
        %v2916 = vld [vmem:[%s423 + $0x490] sm:$0xff]
        %v2917 = vld [vmem:[%s423 + $0x498] sm:$0xff]
        %v2918 = vld [vmem:[%s423 + $0x4a0] sm:$0xff]
        %v2919 = vld [vmem:[%s423 + $0x4a8] sm:$0xff]
        %v2920 = vld [vmem:[%s423 + $0x4b0] sm:$0xff]
        %v2921 = vld [vmem:[%s423 + $0x4b8] sm:$0xff]
        %v2922 = vld [vmem:[%s423 + $0x4c0] sm:$0xff]
        %v2923 = vld [vmem:[%s423 + $0x4c8] sm:$0xff]
        %v2924 = vld [vmem:[%s423 + $0x4d0] sm:$0xff]
        %v2925 = vld [vmem:[%s423 + $0x4d8] sm:$0xff]
        %v2926 = vld [vmem:[%s423 + $0x4e0] sm:$0xff]
        %v2927 = vld [vmem:[%s423 + $0x4e8] sm:$0xff]
        %v2928 = vld [vmem:[%s423 + $0x4f0] sm:$0xff]
        %v2929 = vld [vmem:[%s423 + $0x4f8] sm:$0xff]
        %v2930 = vld [vmem:[%s423 + $0x500] sm:$0xff]
        %v2931 = vld [vmem:[%s423 + $0x508] sm:$0xff]
        %v2932 = vld [vmem:[%s423 + $0x510] sm:$0xff]
        %v2933 = vld [vmem:[%s423 + $0x518] sm:$0xff]
        %v2934 = vld [vmem:[%s423 + $0x520] sm:$0xff]
        %v2935 = vld [vmem:[%s423 + $0x528] sm:$0xff]
        %v2936 = vld [vmem:[%s423 + $0x530] sm:$0xff]
        %v2937 = vld [vmem:[%s423 + $0x538] sm:$0xff]
        %v2938 = vld [vmem:[%s423 + $0x540] sm:$0xff]
        %v2939 = vld [vmem:[%s423 + $0x548] sm:$0xff]
        %v2940 = vld [vmem:[%s423 + $0x550] sm:$0xff]
        %v2941 = vld [vmem:[%s423 + $0x558] sm:$0xff]
        %v2942 = vld [vmem:[%s423 + $0x560] sm:$0xff]
        %v2943 = vld [vmem:[%s423 + $0x568] sm:$0xff]
        %v2944 = vld [vmem:[%s423 + $0x570] sm:$0xff]
        %v2945 = vld [vmem:[%s423 + $0x578] sm:$0xff]
        %v2946 = vld [vmem:[%s423 + $0x580] sm:$0xff]
        %v2947 = vld [vmem:[%s423 + $0x588] sm:$0xff]
        %v2948 = vld [vmem:[%s423 + $0x590] sm:$0xff]
        %v2949 = vld [vmem:[%s423 + $0x598] sm:$0xff]
        %v2950 = vld [vmem:[%s423 + $0x5a0] sm:$0xff]
        %v2951 = vld [vmem:[%s423 + $0x5a8] sm:$0xff]
        %v2952 = vld [vmem:[%s423 + $0x5b0] sm:$0xff]
        %v2953 = vld [vmem:[%s423 + $0x5b8] sm:$0xff]
        %v2954 = vld [vmem:[%s423 + $0x5c0] sm:$0xff]
        %v2955 = vld [vmem:[%s423 + $0x5c8] sm:$0xff]
        %v2956 = vld [vmem:[%s423 + $0x5d0] sm:$0xff]
        %v2957 = vld [vmem:[%s423 + $0x5d8] sm:$0xff]
        %v2958 = vld [vmem:[%s423 + $0x5e0] sm:$0xff]
        %v2959 = vld [vmem:[%s423 + $0x5e8] sm:$0xff]
        %v2960 = vld [vmem:[%s423 + $0x5f0] sm:$0xff]
        %v2961 = vld [vmem:[%s423 + $0x5f8] sm:$0xff]
        %v2962 = vld [vmem:[%s423 + $0x600] sm:$0xff]
        %v2963 = vld [vmem:[%s423 + $0x608] sm:$0xff]
        %v2964 = vld [vmem:[%s423 + $0x610] sm:$0xff]
        %v2965 = vld [vmem:[%s423 + $0x618] sm:$0xff]
        %v2966 = vld [vmem:[%s423 + $0x620] sm:$0xff]
        %v2967 = vld [vmem:[%s423 + $0x628] sm:$0xff]
        %v2968 = vld [vmem:[%s423 + $0x630] sm:$0xff]
        %v2969 = vld [vmem:[%s423 + $0x638] sm:$0xff]
        %v2970 = vld [vmem:[%s423 + $0x640] sm:$0xff]
        %v2971 = vld [vmem:[%s423 + $0x648] sm:$0xff]
        %v2972 = vld [vmem:[%s423 + $0x650] sm:$0xff]
        %v2973 = vld [vmem:[%s423 + $0x658] sm:$0xff]
        %v2974 = vld [vmem:[%s423 + $0x660] sm:$0xff]
        %v2975 = vld [vmem:[%s423 + $0x668] sm:$0xff]
        %v2976 = vld [vmem:[%s423 + $0x670] sm:$0xff]
        %v2977 = vld [vmem:[%s423 + $0x678] sm:$0xff]
        %v2978 = vld [vmem:[%s423 + $0x680] sm:$0xff]
        %v2979 = vld [vmem:[%s423 + $0x688] sm:$0xff]
        %v2980 = vld [vmem:[%s423 + $0x690] sm:$0xff]
        %v2981 = vld [vmem:[%s423 + $0x698] sm:$0xff]
        %v2982 = vld [vmem:[%s423 + $0x6a0] sm:$0xff]
        %v2983 = vld [vmem:[%s423 + $0x6a8] sm:$0xff]
        %v2984 = vld [vmem:[%s423 + $0x6b0] sm:$0xff]
        %v2985 = vld [vmem:[%s423 + $0x6b8] sm:$0xff]
        %v2986 = vld [vmem:[%s423 + $0x6c0] sm:$0xff]
        %v2987 = vld [vmem:[%s423 + $0x6c8] sm:$0xff]
        %v2988 = vld [vmem:[%s423 + $0x6d0] sm:$0xff]
        %v2989 = vld [vmem:[%s423 + $0x6d8] sm:$0xff]
        %v2990 = vld [vmem:[%s423 + $0x6e0] sm:$0xff]
        %v2991 = vld [vmem:[%s423 + $0x6e8] sm:$0xff]
        %v2992 = vld [vmem:[%s423 + $0x6f0] sm:$0xff]
        %v2993 = vld [vmem:[%s423 + $0x6f8] sm:$0xff]
        %v2994 = vld [vmem:[%s423 + $0x700] sm:$0xff]
        %v2995 = vld [vmem:[%s423 + $0x708] sm:$0xff]
        %v2996 = vld [vmem:[%s423 + $0x710] sm:$0xff]
        %v2997 = vld [vmem:[%s423 + $0x718] sm:$0xff]
        %v2998 = vld [vmem:[%s423 + $0x720] sm:$0xff]
        %v2999 = vld [vmem:[%s423 + $0x728] sm:$0xff]
        %v3000 = vld [vmem:[%s423 + $0x730] sm:$0xff]
        %v3001 = vld [vmem:[%s423 + $0x738] sm:$0xff]
        %v3002 = vld [vmem:[%s423 + $0x740] sm:$0xff]
        %v3003 = vld [vmem:[%s423 + $0x748] sm:$0xff]
        %v3004 = vld [vmem:[%s423 + $0x750] sm:$0xff]
        %v3005 = vld [vmem:[%s423 + $0x758] sm:$0xff]
        %v3006 = vld [vmem:[%s423 + $0x760] sm:$0xff]
        %v3007 = vld [vmem:[%s423 + $0x768] sm:$0xff]
        %v3008 = vld [vmem:[%s423 + $0x770] sm:$0xff]
        %v3009 = vld [vmem:[%s423 + $0x778] sm:$0xff]
        %v3010 = vld [vmem:[%s423 + $0x780] sm:$0xff]
        %v3011 = vld [vmem:[%s423 + $0x788] sm:$0xff]
        %v3012 = vld [vmem:[%s423 + $0x790] sm:$0xff]
        %v3013 = vld [vmem:[%s423 + $0x798] sm:$0xff]
        %v3014 = vld [vmem:[%s423 + $0x7a0] sm:$0xff]
        %v3015 = vld [vmem:[%s423 + $0x7a8] sm:$0xff]
        %v3016 = vld [vmem:[%s423 + $0x7b0] sm:$0xff]
        %v3017 = vld [vmem:[%s423 + $0x7b8] sm:$0xff]
        %v3018 = vld [vmem:[%s423 + $0x7c0] sm:$0xff]
        %v3019 = vld [vmem:[%s423 + $0x7c8] sm:$0xff]
        %v3020 = vld [vmem:[%s423 + $0x7d0] sm:$0xff]
        %v3021 = vld [vmem:[%s423 + $0x7d8] sm:$0xff]
        %v3022 = vld [vmem:[%s423 + $0x7e0] sm:$0xff]
        %v3023 = vld [vmem:[%s423 + $0x7e8] sm:$0xff]
        %v3024 = vld [vmem:[%s423 + $0x7f0] sm:$0xff]
        %v3025 = vld [vmem:[%s423 + $0x7f8] sm:$0xff]
        %v3026 = vsel %vm2514, 1, 0
        %v3027 = vsel %vm2515, 1, 0
        %v3028 = vsel %vm2516, 1, 0
        %v3029 = vsel %vm2517, 1, 0
        %v3030 = vsel %vm2518, 1, 0
        %v3031 = vsel %vm2519, 1, 0
        %v3032 = vsel %vm2520, 1, 0
        %v3033 = vsel %vm2521, 1, 0
        %v3034 = vsel %vm2522, 1, 0
        %v3035 = vsel %vm2523, 1, 0
        %v3036 = vsel %vm2524, 1, 0
        %v3037 = vsel %vm2525, 1, 0
        %v3038 = vsel %vm2526, 1, 0
        %v3039 = vsel %vm2527, 1, 0
        %v3040 = vsel %vm2528, 1, 0
        %v3041 = vsel %vm2529, 1, 0
        %v3042 = vsel %vm2530, 1, 0
        %v3043 = vsel %vm2531, 1, 0
        %v3044 = vsel %vm2532, 1, 0
        %v3045 = vsel %vm2533, 1, 0
        %v3046 = vsel %vm2534, 1, 0
        %v3047 = vsel %vm2535, 1, 0
        %v3048 = vsel %vm2536, 1, 0
        %v3049 = vsel %vm2537, 1, 0
        %v3050 = vsel %vm2538, 1, 0
        %v3051 = vsel %vm2539, 1, 0
        %v3052 = vsel %vm2540, 1, 0
        %v3053 = vsel %vm2541, 1, 0
        %v3054 = vsel %vm2542, 1, 0
        %v3055 = vsel %vm2543, 1, 0
        %v3056 = vsel %vm2544, 1, 0
        %v3057 = vsel %vm2545, 1, 0
        %v3058 = vsel %vm2546, 1, 0
        %v3059 = vsel %vm2547, 1, 0
        %v3060 = vsel %vm2548, 1, 0
        %v3061 = vsel %vm2549, 1, 0
        %v3062 = vsel %vm2550, 1, 0
        %v3063 = vsel %vm2551, 1, 0
        %v3064 = vsel %vm2552, 1, 0
        %v3065 = vsel %vm2553, 1, 0
        %v3066 = vsel %vm2554, 1, 0
        %v3067 = vsel %vm2555, 1, 0
        %v3068 = vsel %vm2556, 1, 0
        %v3069 = vsel %vm2557, 1, 0
        %v3070 = vsel %vm2558, 1, 0
        %v3071 = vsel %vm2559, 1, 0
        %v3072 = vsel %vm2560, 1, 0
        %v3073 = vsel %vm2561, 1, 0
        %v3074 = vsel %vm2562, 1, 0
        %v3075 = vsel %vm2563, 1, 0
        %v3076 = vsel %vm2564, 1, 0
        %v3077 = vsel %vm2565, 1, 0
        %v3078 = vsel %vm2566, 1, 0
        %v3079 = vsel %vm2567, 1, 0
        %v3080 = vsel %vm2568, 1, 0
        %v3081 = vsel %vm2569, 1, 0
        %v3082 = vsel %vm2570, 1, 0
        %v3083 = vsel %vm2571, 1, 0
        %v3084 = vsel %vm2572, 1, 0
        %v3085 = vsel %vm2573, 1, 0
        %v3086 = vsel %vm2574, 1, 0
        %v3087 = vsel %vm2575, 1, 0
        %v3088 = vsel %vm2576, 1, 0
        %v3089 = vsel %vm2577, 1, 0
        %v3090 = vsel %vm2578, 1, 0
        %v3091 = vsel %vm2579, 1, 0
        %v3092 = vsel %vm2580, 1, 0
        %v3093 = vsel %vm2581, 1, 0
        %v3094 = vsel %vm2582, 1, 0
        %v3095 = vsel %vm2583, 1, 0
        %v3096 = vsel %vm2584, 1, 0
        %v3097 = vsel %vm2585, 1, 0
        %v3098 = vsel %vm2586, 1, 0
        %v3099 = vsel %vm2587, 1, 0
        %v3100 = vsel %vm2588, 1, 0
        %v3101 = vsel %vm2589, 1, 0
        %v3102 = vsel %vm2590, 1, 0
        %v3103 = vsel %vm2591, 1, 0
        %v3104 = vsel %vm2592, 1, 0
        %v3105 = vsel %vm2593, 1, 0
        %v3106 = vsel %vm2594, 1, 0
        %v3107 = vsel %vm2595, 1, 0
        %v3108 = vsel %vm2596, 1, 0
        %v3109 = vsel %vm2597, 1, 0
        %v3110 = vsel %vm2598, 1, 0
        %v3111 = vsel %vm2599, 1, 0
        %v3112 = vsel %vm2600, 1, 0
        %v3113 = vsel %vm2601, 1, 0
        %v3114 = vsel %vm2602, 1, 0
        %v3115 = vsel %vm2603, 1, 0
        %v3116 = vsel %vm2604, 1, 0
        %v3117 = vsel %vm2605, 1, 0
        %v3118 = vsel %vm2606, 1, 0
        %v3119 = vsel %vm2607, 1, 0
        %v3120 = vsel %vm2608, 1, 0
        %v3121 = vsel %vm2609, 1, 0
        %v3122 = vsel %vm2610, 1, 0
        %v3123 = vsel %vm2611, 1, 0
        %v3124 = vsel %vm2612, 1, 0
        %v3125 = vsel %vm2613, 1, 0
        %v3126 = vsel %vm2614, 1, 0
        %v3127 = vsel %vm2615, 1, 0
        %v3128 = vsel %vm2616, 1, 0
        %v3129 = vsel %vm2617, 1, 0
        %v3130 = vsel %vm2618, 1, 0
        %v3131 = vsel %vm2619, 1, 0
        %v3132 = vsel %vm2620, 1, 0
        %v3133 = vsel %vm2621, 1, 0
        %v3134 = vsel %vm2622, 1, 0
        %v3135 = vsel %vm2623, 1, 0
        %v3136 = vsel %vm2624, 1, 0
        %v3137 = vsel %vm2625, 1, 0
        %v3138 = vsel %vm2626, 1, 0
        %v3139 = vsel %vm2627, 1, 0
        %v3140 = vsel %vm2628, 1, 0
        %v3141 = vsel %vm2629, 1, 0
        %v3142 = vsel %vm2630, 1, 0
        %v3143 = vsel %vm2631, 1, 0
        %v3144 = vsel %vm2632, 1, 0
        %v3145 = vsel %vm2633, 1, 0
        %v3146 = vsel %vm2634, 1, 0
        %v3147 = vsel %vm2635, 1, 0
        %v3148 = vsel %vm2636, 1, 0
        %v3149 = vsel %vm2637, 1, 0
        %v3150 = vsel %vm2638, 1, 0
        %v3151 = vsel %vm2639, 1, 0
        %v3152 = vsel %vm2640, 1, 0
        %v3153 = vsel %vm2641, 1, 0
        %v3154 = vsel %vm2642, 1, 0
        %v3155 = vsel %vm2643, 1, 0
        %v3156 = vsel %vm2644, 1, 0
        %v3157 = vsel %vm2645, 1, 0
        %v3158 = vsel %vm2646, 1, 0
        %v3159 = vsel %vm2647, 1, 0
        %v3160 = vsel %vm2648, 1, 0
        %v3161 = vsel %vm2649, 1, 0
        %v3162 = vsel %vm2650, 1, 0
        %v3163 = vsel %vm2651, 1, 0
        %v3164 = vsel %vm2652, 1, 0
        %v3165 = vsel %vm2653, 1, 0
        %v3166 = vsel %vm2654, 1, 0
        %v3167 = vsel %vm2655, 1, 0
        %v3168 = vsel %vm2656, 1, 0
        %v3169 = vsel %vm2657, 1, 0
        %v3170 = vsel %vm2658, 1, 0
        %v3171 = vsel %vm2659, 1, 0
        %v3172 = vsel %vm2660, 1, 0
        %v3173 = vsel %vm2661, 1, 0
        %v3174 = vsel %vm2662, 1, 0
        %v3175 = vsel %vm2663, 1, 0
        %v3176 = vsel %vm2664, 1, 0
        %v3177 = vsel %vm2665, 1, 0
        %v3178 = vsel %vm2666, 1, 0
        %v3179 = vsel %vm2667, 1, 0
        %v3180 = vsel %vm2668, 1, 0
        %v3181 = vsel %vm2669, 1, 0
        %v3182 = vsel %vm2670, 1, 0
        %v3183 = vsel %vm2671, 1, 0
        %v3184 = vsel %vm2672, 1, 0
        %v3185 = vsel %vm2673, 1, 0
        %v3186 = vsel %vm2674, 1, 0
        %v3187 = vsel %vm2675, 1, 0
        %v3188 = vsel %vm2676, 1, 0
        %v3189 = vsel %vm2677, 1, 0
        %v3190 = vsel %vm2678, 1, 0
        %v3191 = vsel %vm2679, 1, 0
        %v3192 = vsel %vm2680, 1, 0
        %v3193 = vsel %vm2681, 1, 0
        %v3194 = vsel %vm2682, 1, 0
        %v3195 = vsel %vm2683, 1, 0
        %v3196 = vsel %vm2684, 1, 0
        %v3197 = vsel %vm2685, 1, 0
        %v3198 = vsel %vm2686, 1, 0
        %v3199 = vsel %vm2687, 1, 0
        %v3200 = vsel %vm2688, 1, 0
        %v3201 = vsel %vm2689, 1, 0
        %v3202 = vsel %vm2690, 1, 0
        %v3203 = vsel %vm2691, 1, 0
        %v3204 = vsel %vm2692, 1, 0
        %v3205 = vsel %vm2693, 1, 0
        %v3206 = vsel %vm2694, 1, 0
        %v3207 = vsel %vm2695, 1, 0
        %v3208 = vsel %vm2696, 1, 0
        %v3209 = vsel %vm2697, 1, 0
        %v3210 = vsel %vm2698, 1, 0
        %v3211 = vsel %vm2699, 1, 0
        %v3212 = vsel %vm2700, 1, 0
        %v3213 = vsel %vm2701, 1, 0
        %v3214 = vsel %vm2702, 1, 0
        %v3215 = vsel %vm2703, 1, 0
        %v3216 = vsel %vm2704, 1, 0
        %v3217 = vsel %vm2705, 1, 0
        %v3218 = vsel %vm2706, 1, 0
        %v3219 = vsel %vm2707, 1, 0
        %v3220 = vsel %vm2708, 1, 0
        %v3221 = vsel %vm2709, 1, 0
        %v3222 = vsel %vm2710, 1, 0
        %v3223 = vsel %vm2711, 1, 0
        %v3224 = vsel %vm2712, 1, 0
        %v3225 = vsel %vm2713, 1, 0
        %v3226 = vsel %vm2714, 1, 0
        %v3227 = vsel %vm2715, 1, 0
        %v3228 = vsel %vm2716, 1, 0
        %v3229 = vsel %vm2717, 1, 0
        %v3230 = vsel %vm2718, 1, 0
        %v3231 = vsel %vm2719, 1, 0
        %v3232 = vsel %vm2720, 1, 0
        %v3233 = vsel %vm2721, 1, 0
        %v3234 = vsel %vm2722, 1, 0
        %v3235 = vsel %vm2723, 1, 0
        %v3236 = vsel %vm2724, 1, 0
        %v3237 = vsel %vm2725, 1, 0
        %v3238 = vsel %vm2726, 1, 0
        %v3239 = vsel %vm2727, 1, 0
        %v3240 = vsel %vm2728, 1, 0
        %v3241 = vsel %vm2729, 1, 0
        %v3242 = vsel %vm2730, 1, 0
        %v3243 = vsel %vm2731, 1, 0
        %v3244 = vsel %vm2732, 1, 0
        %v3245 = vsel %vm2733, 1, 0
        %v3246 = vsel %vm2734, 1, 0
        %v3247 = vsel %vm2735, 1, 0
        %v3248 = vsel %vm2736, 1, 0
        %v3249 = vsel %vm2737, 1, 0
        %v3250 = vsel %vm2738, 1, 0
        %v3251 = vsel %vm2739, 1, 0
        %v3252 = vsel %vm2740, 1, 0
        %v3253 = vsel %vm2741, 1, 0
        %v3254 = vsel %vm2742, 1, 0
        %v3255 = vsel %vm2743, 1, 0
        %v3256 = vsel %vm2744, 1, 0
        %v3257 = vsel %vm2745, 1, 0
        %v3258 = vsel %vm2746, 1, 0
        %v3259 = vsel %vm2747, 1, 0
        %v3260 = vsel %vm2748, 1, 0
        %v3261 = vsel %vm2749, 1, 0
        %v3262 = vsel %vm2750, 1, 0
        %v3263 = vsel %vm2751, 1, 0
        %v3264 = vsel %vm2752, 1, 0
        %v3265 = vsel %vm2753, 1, 0
        %v3266 = vsel %vm2754, 1, 0
        %v3267 = vsel %vm2755, 1, 0
        %v3268 = vsel %vm2756, 1, 0
        %v3269 = vsel %vm2757, 1, 0
        %v3270 = vsel %vm2758, 1, 0
        %v3271 = vsel %vm2759, 1, 0
        %v3272 = vsel %vm2760, 1, 0
        %v3273 = vsel %vm2761, 1, 0
        %v3274 = vsel %vm2762, 1, 0
        %v3275 = vsel %vm2763, 1, 0
        %v3276 = vsel %vm2764, 1, 0
        %v3277 = vsel %vm2765, 1, 0
        %v3278 = vsel %vm2766, 1, 0
        %v3279 = vsel %vm2767, 1, 0
        %v3280 = vsel %vm2768, 1, 0
        %v3281 = vsel %vm2769, 1, 0
        %vm3282 = vcmp.eq.s32.totalorder %v3026, 1
        %vm3283 = vcmp.eq.s32.totalorder %v3027, 1
        %vm3284 = vcmp.eq.s32.totalorder %v3028, 1
        %vm3285 = vcmp.eq.s32.totalorder %v3029, 1
        %vm3286 = vcmp.eq.s32.totalorder %v3030, 1
        %vm3287 = vcmp.eq.s32.totalorder %v3031, 1
        %vm3288 = vcmp.eq.s32.totalorder %v3032, 1
        %vm3289 = vcmp.eq.s32.totalorder %v3033, 1
        %vm3290 = vcmp.eq.s32.totalorder %v3034, 1
        %vm3291 = vcmp.eq.s32.totalorder %v3035, 1
        %vm3292 = vcmp.eq.s32.totalorder %v3036, 1
        %vm3293 = vcmp.eq.s32.totalorder %v3037, 1
        %vm3294 = vcmp.eq.s32.totalorder %v3038, 1
        %vm3295 = vcmp.eq.s32.totalorder %v3039, 1
        %vm3296 = vcmp.eq.s32.totalorder %v3040, 1
        %vm3297 = vcmp.eq.s32.totalorder %v3041, 1
        %vm3298 = vcmp.eq.s32.totalorder %v3042, 1
        %vm3299 = vcmp.eq.s32.totalorder %v3043, 1
        %vm3300 = vcmp.eq.s32.totalorder %v3044, 1
        %vm3301 = vcmp.eq.s32.totalorder %v3045, 1
        %vm3302 = vcmp.eq.s32.totalorder %v3046, 1
        %vm3303 = vcmp.eq.s32.totalorder %v3047, 1
        %vm3304 = vcmp.eq.s32.totalorder %v3048, 1
        %vm3305 = vcmp.eq.s32.totalorder %v3049, 1
        %vm3306 = vcmp.eq.s32.totalorder %v3050, 1
        %vm3307 = vcmp.eq.s32.totalorder %v3051, 1
        %vm3308 = vcmp.eq.s32.totalorder %v3052, 1
        %vm3309 = vcmp.eq.s32.totalorder %v3053, 1
        %vm3310 = vcmp.eq.s32.totalorder %v3054, 1
        %vm3311 = vcmp.eq.s32.totalorder %v3055, 1
        %vm3312 = vcmp.eq.s32.totalorder %v3056, 1
        %vm3313 = vcmp.eq.s32.totalorder %v3057, 1
        %vm3314 = vcmp.eq.s32.totalorder %v3058, 1
        %vm3315 = vcmp.eq.s32.totalorder %v3059, 1
        %vm3316 = vcmp.eq.s32.totalorder %v3060, 1
        %vm3317 = vcmp.eq.s32.totalorder %v3061, 1
        %vm3318 = vcmp.eq.s32.totalorder %v3062, 1
        %vm3319 = vcmp.eq.s32.totalorder %v3063, 1
        %vm3320 = vcmp.eq.s32.totalorder %v3064, 1
        %vm3321 = vcmp.eq.s32.totalorder %v3065, 1
        %vm3322 = vcmp.eq.s32.totalorder %v3066, 1
        %vm3323 = vcmp.eq.s32.totalorder %v3067, 1
        %vm3324 = vcmp.eq.s32.totalorder %v3068, 1
        %vm3325 = vcmp.eq.s32.totalorder %v3069, 1
        %vm3326 = vcmp.eq.s32.totalorder %v3070, 1
        %vm3327 = vcmp.eq.s32.totalorder %v3071, 1
        %vm3328 = vcmp.eq.s32.totalorder %v3072, 1
        %vm3329 = vcmp.eq.s32.totalorder %v3073, 1
        %vm3330 = vcmp.eq.s32.totalorder %v3074, 1
        %vm3331 = vcmp.eq.s32.totalorder %v3075, 1
        %vm3332 = vcmp.eq.s32.totalorder %v3076, 1
        %vm3333 = vcmp.eq.s32.totalorder %v3077, 1
        %vm3334 = vcmp.eq.s32.totalorder %v3078, 1
        %vm3335 = vcmp.eq.s32.totalorder %v3079, 1
        %vm3336 = vcmp.eq.s32.totalorder %v3080, 1
        %vm3337 = vcmp.eq.s32.totalorder %v3081, 1
        %vm3338 = vcmp.eq.s32.totalorder %v3082, 1
        %vm3339 = vcmp.eq.s32.totalorder %v3083, 1
        %vm3340 = vcmp.eq.s32.totalorder %v3084, 1
        %vm3341 = vcmp.eq.s32.totalorder %v3085, 1
        %vm3342 = vcmp.eq.s32.totalorder %v3086, 1
        %vm3343 = vcmp.eq.s32.totalorder %v3087, 1
        %vm3344 = vcmp.eq.s32.totalorder %v3088, 1
        %vm3345 = vcmp.eq.s32.totalorder %v3089, 1
        %vm3346 = vcmp.eq.s32.totalorder %v3090, 1
        %vm3347 = vcmp.eq.s32.totalorder %v3091, 1
        %vm3348 = vcmp.eq.s32.totalorder %v3092, 1
        %vm3349 = vcmp.eq.s32.totalorder %v3093, 1
        %vm3350 = vcmp.eq.s32.totalorder %v3094, 1
        %vm3351 = vcmp.eq.s32.totalorder %v3095, 1
        %vm3352 = vcmp.eq.s32.totalorder %v3096, 1
        %vm3353 = vcmp.eq.s32.totalorder %v3097, 1
        %vm3354 = vcmp.eq.s32.totalorder %v3098, 1
        %vm3355 = vcmp.eq.s32.totalorder %v3099, 1
        %vm3356 = vcmp.eq.s32.totalorder %v3100, 1
        %vm3357 = vcmp.eq.s32.totalorder %v3101, 1
        %vm3358 = vcmp.eq.s32.totalorder %v3102, 1
        %vm3359 = vcmp.eq.s32.totalorder %v3103, 1
        %vm3360 = vcmp.eq.s32.totalorder %v3104, 1
        %vm3361 = vcmp.eq.s32.totalorder %v3105, 1
        %vm3362 = vcmp.eq.s32.totalorder %v3106, 1
        %vm3363 = vcmp.eq.s32.totalorder %v3107, 1
        %vm3364 = vcmp.eq.s32.totalorder %v3108, 1
        %vm3365 = vcmp.eq.s32.totalorder %v3109, 1
        %vm3366 = vcmp.eq.s32.totalorder %v3110, 1
        %vm3367 = vcmp.eq.s32.totalorder %v3111, 1
        %vm3368 = vcmp.eq.s32.totalorder %v3112, 1
        %vm3369 = vcmp.eq.s32.totalorder %v3113, 1
        %vm3370 = vcmp.eq.s32.totalorder %v3114, 1
        %vm3371 = vcmp.eq.s32.totalorder %v3115, 1
        %vm3372 = vcmp.eq.s32.totalorder %v3116, 1
        %vm3373 = vcmp.eq.s32.totalorder %v3117, 1
        %vm3374 = vcmp.eq.s32.totalorder %v3118, 1
        %vm3375 = vcmp.eq.s32.totalorder %v3119, 1
        %vm3376 = vcmp.eq.s32.totalorder %v3120, 1
        %vm3377 = vcmp.eq.s32.totalorder %v3121, 1
        %vm3378 = vcmp.eq.s32.totalorder %v3122, 1
        %vm3379 = vcmp.eq.s32.totalorder %v3123, 1
        %vm3380 = vcmp.eq.s32.totalorder %v3124, 1
        %vm3381 = vcmp.eq.s32.totalorder %v3125, 1
        %vm3382 = vcmp.eq.s32.totalorder %v3126, 1
        %vm3383 = vcmp.eq.s32.totalorder %v3127, 1
        %vm3384 = vcmp.eq.s32.totalorder %v3128, 1
        %vm3385 = vcmp.eq.s32.totalorder %v3129, 1
        %vm3386 = vcmp.eq.s32.totalorder %v3130, 1
        %vm3387 = vcmp.eq.s32.totalorder %v3131, 1
        %vm3388 = vcmp.eq.s32.totalorder %v3132, 1
        %vm3389 = vcmp.eq.s32.totalorder %v3133, 1
        %vm3390 = vcmp.eq.s32.totalorder %v3134, 1
        %vm3391 = vcmp.eq.s32.totalorder %v3135, 1
        %vm3392 = vcmp.eq.s32.totalorder %v3136, 1
        %vm3393 = vcmp.eq.s32.totalorder %v3137, 1
        %vm3394 = vcmp.eq.s32.totalorder %v3138, 1
        %vm3395 = vcmp.eq.s32.totalorder %v3139, 1
        %vm3396 = vcmp.eq.s32.totalorder %v3140, 1
        %vm3397 = vcmp.eq.s32.totalorder %v3141, 1
        %vm3398 = vcmp.eq.s32.totalorder %v3142, 1
        %vm3399 = vcmp.eq.s32.totalorder %v3143, 1
        %vm3400 = vcmp.eq.s32.totalorder %v3144, 1
        %vm3401 = vcmp.eq.s32.totalorder %v3145, 1
        %vm3402 = vcmp.eq.s32.totalorder %v3146, 1
        %vm3403 = vcmp.eq.s32.totalorder %v3147, 1
        %vm3404 = vcmp.eq.s32.totalorder %v3148, 1
        %vm3405 = vcmp.eq.s32.totalorder %v3149, 1
        %vm3406 = vcmp.eq.s32.totalorder %v3150, 1
        %vm3407 = vcmp.eq.s32.totalorder %v3151, 1
        %vm3408 = vcmp.eq.s32.totalorder %v3152, 1
        %vm3409 = vcmp.eq.s32.totalorder %v3153, 1
        %vm3410 = vcmp.eq.s32.totalorder %v3154, 1
        %vm3411 = vcmp.eq.s32.totalorder %v3155, 1
        %vm3412 = vcmp.eq.s32.totalorder %v3156, 1
        %vm3413 = vcmp.eq.s32.totalorder %v3157, 1
        %vm3414 = vcmp.eq.s32.totalorder %v3158, 1
        %vm3415 = vcmp.eq.s32.totalorder %v3159, 1
        %vm3416 = vcmp.eq.s32.totalorder %v3160, 1
        %vm3417 = vcmp.eq.s32.totalorder %v3161, 1
        %vm3418 = vcmp.eq.s32.totalorder %v3162, 1
        %vm3419 = vcmp.eq.s32.totalorder %v3163, 1
        %vm3420 = vcmp.eq.s32.totalorder %v3164, 1
        %vm3421 = vcmp.eq.s32.totalorder %v3165, 1
        %vm3422 = vcmp.eq.s32.totalorder %v3166, 1
        %vm3423 = vcmp.eq.s32.totalorder %v3167, 1
        %vm3424 = vcmp.eq.s32.totalorder %v3168, 1
        %vm3425 = vcmp.eq.s32.totalorder %v3169, 1
        %vm3426 = vcmp.eq.s32.totalorder %v3170, 1
        %vm3427 = vcmp.eq.s32.totalorder %v3171, 1
        %vm3428 = vcmp.eq.s32.totalorder %v3172, 1
        %vm3429 = vcmp.eq.s32.totalorder %v3173, 1
        %vm3430 = vcmp.eq.s32.totalorder %v3174, 1
        %vm3431 = vcmp.eq.s32.totalorder %v3175, 1
        %vm3432 = vcmp.eq.s32.totalorder %v3176, 1
        %vm3433 = vcmp.eq.s32.totalorder %v3177, 1
        %vm3434 = vcmp.eq.s32.totalorder %v3178, 1
        %vm3435 = vcmp.eq.s32.totalorder %v3179, 1
        %vm3436 = vcmp.eq.s32.totalorder %v3180, 1
        %vm3437 = vcmp.eq.s32.totalorder %v3181, 1
        %vm3438 = vcmp.eq.s32.totalorder %v3182, 1
        %vm3439 = vcmp.eq.s32.totalorder %v3183, 1
        %vm3440 = vcmp.eq.s32.totalorder %v3184, 1
        %vm3441 = vcmp.eq.s32.totalorder %v3185, 1
        %vm3442 = vcmp.eq.s32.totalorder %v3186, 1
        %vm3443 = vcmp.eq.s32.totalorder %v3187, 1
        %vm3444 = vcmp.eq.s32.totalorder %v3188, 1
        %vm3445 = vcmp.eq.s32.totalorder %v3189, 1
        %vm3446 = vcmp.eq.s32.totalorder %v3190, 1
        %vm3447 = vcmp.eq.s32.totalorder %v3191, 1
        %vm3448 = vcmp.eq.s32.totalorder %v3192, 1
        %vm3449 = vcmp.eq.s32.totalorder %v3193, 1
        %vm3450 = vcmp.eq.s32.totalorder %v3194, 1
        %vm3451 = vcmp.eq.s32.totalorder %v3195, 1
        %vm3452 = vcmp.eq.s32.totalorder %v3196, 1
        %vm3453 = vcmp.eq.s32.totalorder %v3197, 1
        %vm3454 = vcmp.eq.s32.totalorder %v3198, 1
        %vm3455 = vcmp.eq.s32.totalorder %v3199, 1
        %vm3456 = vcmp.eq.s32.totalorder %v3200, 1
        %vm3457 = vcmp.eq.s32.totalorder %v3201, 1
        %vm3458 = vcmp.eq.s32.totalorder %v3202, 1
        %vm3459 = vcmp.eq.s32.totalorder %v3203, 1
        %vm3460 = vcmp.eq.s32.totalorder %v3204, 1
        %vm3461 = vcmp.eq.s32.totalorder %v3205, 1
        %vm3462 = vcmp.eq.s32.totalorder %v3206, 1
        %vm3463 = vcmp.eq.s32.totalorder %v3207, 1
        %vm3464 = vcmp.eq.s32.totalorder %v3208, 1
        %vm3465 = vcmp.eq.s32.totalorder %v3209, 1
        %vm3466 = vcmp.eq.s32.totalorder %v3210, 1
        %vm3467 = vcmp.eq.s32.totalorder %v3211, 1
        %vm3468 = vcmp.eq.s32.totalorder %v3212, 1
        %vm3469 = vcmp.eq.s32.totalorder %v3213, 1
        %vm3470 = vcmp.eq.s32.totalorder %v3214, 1
        %vm3471 = vcmp.eq.s32.totalorder %v3215, 1
        %vm3472 = vcmp.eq.s32.totalorder %v3216, 1
        %vm3473 = vcmp.eq.s32.totalorder %v3217, 1
        %vm3474 = vcmp.eq.s32.totalorder %v3218, 1
        %vm3475 = vcmp.eq.s32.totalorder %v3219, 1
        %vm3476 = vcmp.eq.s32.totalorder %v3220, 1
        %vm3477 = vcmp.eq.s32.totalorder %v3221, 1
        %vm3478 = vcmp.eq.s32.totalorder %v3222, 1
        %vm3479 = vcmp.eq.s32.totalorder %v3223, 1
        %vm3480 = vcmp.eq.s32.totalorder %v3224, 1
        %vm3481 = vcmp.eq.s32.totalorder %v3225, 1
        %vm3482 = vcmp.eq.s32.totalorder %v3226, 1
        %vm3483 = vcmp.eq.s32.totalorder %v3227, 1
        %vm3484 = vcmp.eq.s32.totalorder %v3228, 1
        %vm3485 = vcmp.eq.s32.totalorder %v3229, 1
        %vm3486 = vcmp.eq.s32.totalorder %v3230, 1
        %vm3487 = vcmp.eq.s32.totalorder %v3231, 1
        %vm3488 = vcmp.eq.s32.totalorder %v3232, 1
        %vm3489 = vcmp.eq.s32.totalorder %v3233, 1
        %vm3490 = vcmp.eq.s32.totalorder %v3234, 1
        %vm3491 = vcmp.eq.s32.totalorder %v3235, 1
        %vm3492 = vcmp.eq.s32.totalorder %v3236, 1
        %vm3493 = vcmp.eq.s32.totalorder %v3237, 1
        %vm3494 = vcmp.eq.s32.totalorder %v3238, 1
        %vm3495 = vcmp.eq.s32.totalorder %v3239, 1
        %vm3496 = vcmp.eq.s32.totalorder %v3240, 1
        %vm3497 = vcmp.eq.s32.totalorder %v3241, 1
        %vm3498 = vcmp.eq.s32.totalorder %v3242, 1
        %vm3499 = vcmp.eq.s32.totalorder %v3243, 1
        %vm3500 = vcmp.eq.s32.totalorder %v3244, 1
        %vm3501 = vcmp.eq.s32.totalorder %v3245, 1
        %vm3502 = vcmp.eq.s32.totalorder %v3246, 1
        %vm3503 = vcmp.eq.s32.totalorder %v3247, 1
        %vm3504 = vcmp.eq.s32.totalorder %v3248, 1
        %vm3505 = vcmp.eq.s32.totalorder %v3249, 1
        %vm3506 = vcmp.eq.s32.totalorder %v3250, 1
        %vm3507 = vcmp.eq.s32.totalorder %v3251, 1
        %vm3508 = vcmp.eq.s32.totalorder %v3252, 1
        %vm3509 = vcmp.eq.s32.totalorder %v3253, 1
        %vm3510 = vcmp.eq.s32.totalorder %v3254, 1
        %vm3511 = vcmp.eq.s32.totalorder %v3255, 1
        %vm3512 = vcmp.eq.s32.totalorder %v3256, 1
        %vm3513 = vcmp.eq.s32.totalorder %v3257, 1
        %vm3514 = vcmp.eq.s32.totalorder %v3258, 1
        %vm3515 = vcmp.eq.s32.totalorder %v3259, 1
        %vm3516 = vcmp.eq.s32.totalorder %v3260, 1
        %vm3517 = vcmp.eq.s32.totalorder %v3261, 1
        %vm3518 = vcmp.eq.s32.totalorder %v3262, 1
        %vm3519 = vcmp.eq.s32.totalorder %v3263, 1
        %vm3520 = vcmp.eq.s32.totalorder %v3264, 1
        %vm3521 = vcmp.eq.s32.totalorder %v3265, 1
        %vm3522 = vcmp.eq.s32.totalorder %v3266, 1
        %vm3523 = vcmp.eq.s32.totalorder %v3267, 1
        %vm3524 = vcmp.eq.s32.totalorder %v3268, 1
        %vm3525 = vcmp.eq.s32.totalorder %v3269, 1
        %vm3526 = vcmp.eq.s32.totalorder %v3270, 1
        %vm3527 = vcmp.eq.s32.totalorder %v3271, 1
        %vm3528 = vcmp.eq.s32.totalorder %v3272, 1
        %vm3529 = vcmp.eq.s32.totalorder %v3273, 1
        %vm3530 = vcmp.eq.s32.totalorder %v3274, 1
        %vm3531 = vcmp.eq.s32.totalorder %v3275, 1
        %vm3532 = vcmp.eq.s32.totalorder %v3276, 1
        %vm3533 = vcmp.eq.s32.totalorder %v3277, 1
        %vm3534 = vcmp.eq.s32.totalorder %v3278, 1
        %vm3535 = vcmp.eq.s32.totalorder %v3279, 1
        %vm3536 = vcmp.eq.s32.totalorder %v3280, 1
        %vm3537 = vcmp.eq.s32.totalorder %v3281, 1
        %v3538 = vsel %vm3282, %v2770, 0.0
        %v3539 = vsel %vm3283, %v2771, 0.0
        %v3540 = vsel %vm3284, %v2772, 0.0
        %v3541 = vsel %vm3285, %v2773, 0.0
        %v3542 = vsel %vm3286, %v2774, 0.0
        %v3543 = vsel %vm3287, %v2775, 0.0
        %v3544 = vsel %vm3288, %v2776, 0.0
        %v3545 = vsel %vm3289, %v2777, 0.0
        %v3546 = vsel %vm3290, %v2778, 0.0
        %v3547 = vsel %vm3291, %v2779, 0.0
        %v3548 = vsel %vm3292, %v2780, 0.0
        %v3549 = vsel %vm3293, %v2781, 0.0
        %v3550 = vsel %vm3294, %v2782, 0.0
        %v3551 = vsel %vm3295, %v2783, 0.0
        %v3552 = vsel %vm3296, %v2784, 0.0
        %v3553 = vsel %vm3297, %v2785, 0.0
        %v3554 = vsel %vm3298, %v2786, 0.0
        %v3555 = vsel %vm3299, %v2787, 0.0
        %v3556 = vsel %vm3300, %v2788, 0.0
        %v3557 = vsel %vm3301, %v2789, 0.0
        %v3558 = vsel %vm3302, %v2790, 0.0
        %v3559 = vsel %vm3303, %v2791, 0.0
        %v3560 = vsel %vm3304, %v2792, 0.0
        %v3561 = vsel %vm3305, %v2793, 0.0
        %v3562 = vsel %vm3306, %v2794, 0.0
        %v3563 = vsel %vm3307, %v2795, 0.0
        %v3564 = vsel %vm3308, %v2796, 0.0
        %v3565 = vsel %vm3309, %v2797, 0.0
        %v3566 = vsel %vm3310, %v2798, 0.0
        %v3567 = vsel %vm3311, %v2799, 0.0
        %v3568 = vsel %vm3312, %v2800, 0.0
        %v3569 = vsel %vm3313, %v2801, 0.0
        %v3570 = vsel %vm3314, %v2802, 0.0
        %v3571 = vsel %vm3315, %v2803, 0.0
        %v3572 = vsel %vm3316, %v2804, 0.0
        %v3573 = vsel %vm3317, %v2805, 0.0
        %v3574 = vsel %vm3318, %v2806, 0.0
        %v3575 = vsel %vm3319, %v2807, 0.0
        %v3576 = vsel %vm3320, %v2808, 0.0
        %v3577 = vsel %vm3321, %v2809, 0.0
        %v3578 = vsel %vm3322, %v2810, 0.0
        %v3579 = vsel %vm3323, %v2811, 0.0
        %v3580 = vsel %vm3324, %v2812, 0.0
        %v3581 = vsel %vm3325, %v2813, 0.0
        %v3582 = vsel %vm3326, %v2814, 0.0
        %v3583 = vsel %vm3327, %v2815, 0.0
        %v3584 = vsel %vm3328, %v2816, 0.0
        %v3585 = vsel %vm3329, %v2817, 0.0
        %v3586 = vsel %vm3330, %v2818, 0.0
        %v3587 = vsel %vm3331, %v2819, 0.0
        %v3588 = vsel %vm3332, %v2820, 0.0
        %v3589 = vsel %vm3333, %v2821, 0.0
        %v3590 = vsel %vm3334, %v2822, 0.0
        %v3591 = vsel %vm3335, %v2823, 0.0
        %v3592 = vsel %vm3336, %v2824, 0.0
        %v3593 = vsel %vm3337, %v2825, 0.0
        %v3594 = vsel %vm3338, %v2826, 0.0
        %v3595 = vsel %vm3339, %v2827, 0.0
        %v3596 = vsel %vm3340, %v2828, 0.0
        %v3597 = vsel %vm3341, %v2829, 0.0
        %v3598 = vsel %vm3342, %v2830, 0.0
        %v3599 = vsel %vm3343, %v2831, 0.0
        %v3600 = vsel %vm3344, %v2832, 0.0
        %v3601 = vsel %vm3345, %v2833, 0.0
        %v3602 = vsel %vm3346, %v2834, 0.0
        %v3603 = vsel %vm3347, %v2835, 0.0
        %v3604 = vsel %vm3348, %v2836, 0.0
        %v3605 = vsel %vm3349, %v2837, 0.0
        %v3606 = vsel %vm3350, %v2838, 0.0
        %v3607 = vsel %vm3351, %v2839, 0.0
        %v3608 = vsel %vm3352, %v2840, 0.0
        %v3609 = vsel %vm3353, %v2841, 0.0
        %v3610 = vsel %vm3354, %v2842, 0.0
        %v3611 = vsel %vm3355, %v2843, 0.0
        %v3612 = vsel %vm3356, %v2844, 0.0
        %v3613 = vsel %vm3357, %v2845, 0.0
        %v3614 = vsel %vm3358, %v2846, 0.0
        %v3615 = vsel %vm3359, %v2847, 0.0
        %v3616 = vsel %vm3360, %v2848, 0.0
        %v3617 = vsel %vm3361, %v2849, 0.0
        %v3618 = vsel %vm3362, %v2850, 0.0
        %v3619 = vsel %vm3363, %v2851, 0.0
        %v3620 = vsel %vm3364, %v2852, 0.0
        %v3621 = vsel %vm3365, %v2853, 0.0
        %v3622 = vsel %vm3366, %v2854, 0.0
        %v3623 = vsel %vm3367, %v2855, 0.0
        %v3624 = vsel %vm3368, %v2856, 0.0
        %v3625 = vsel %vm3369, %v2857, 0.0
        %v3626 = vsel %vm3370, %v2858, 0.0
        %v3627 = vsel %vm3371, %v2859, 0.0
        %v3628 = vsel %vm3372, %v2860, 0.0
        %v3629 = vsel %vm3373, %v2861, 0.0
        %v3630 = vsel %vm3374, %v2862, 0.0
        %v3631 = vsel %vm3375, %v2863, 0.0
        %v3632 = vsel %vm3376, %v2864, 0.0
        %v3633 = vsel %vm3377, %v2865, 0.0
        %v3634 = vsel %vm3378, %v2866, 0.0
        %v3635 = vsel %vm3379, %v2867, 0.0
        %v3636 = vsel %vm3380, %v2868, 0.0
        %v3637 = vsel %vm3381, %v2869, 0.0
        %v3638 = vsel %vm3382, %v2870, 0.0
        %v3639 = vsel %vm3383, %v2871, 0.0
        %v3640 = vsel %vm3384, %v2872, 0.0
        %v3641 = vsel %vm3385, %v2873, 0.0
        %v3642 = vsel %vm3386, %v2874, 0.0
        %v3643 = vsel %vm3387, %v2875, 0.0
        %v3644 = vsel %vm3388, %v2876, 0.0
        %v3645 = vsel %vm3389, %v2877, 0.0
        %v3646 = vsel %vm3390, %v2878, 0.0
        %v3647 = vsel %vm3391, %v2879, 0.0
        %v3648 = vsel %vm3392, %v2880, 0.0
        %v3649 = vsel %vm3393, %v2881, 0.0
        %v3650 = vsel %vm3394, %v2882, 0.0
        %v3651 = vsel %vm3395, %v2883, 0.0
        %v3652 = vsel %vm3396, %v2884, 0.0
        %v3653 = vsel %vm3397, %v2885, 0.0
        %v3654 = vsel %vm3398, %v2886, 0.0
        %v3655 = vsel %vm3399, %v2887, 0.0
        %v3656 = vsel %vm3400, %v2888, 0.0
        %v3657 = vsel %vm3401, %v2889, 0.0
        %v3658 = vsel %vm3402, %v2890, 0.0
        %v3659 = vsel %vm3403, %v2891, 0.0
        %v3660 = vsel %vm3404, %v2892, 0.0
        %v3661 = vsel %vm3405, %v2893, 0.0
        %v3662 = vsel %vm3406, %v2894, 0.0
        %v3663 = vsel %vm3407, %v2895, 0.0
        %v3664 = vsel %vm3408, %v2896, 0.0
        %v3665 = vsel %vm3409, %v2897, 0.0
        %v3666 = vsel %vm3410, %v2898, 0.0
        %v3667 = vsel %vm3411, %v2899, 0.0
        %v3668 = vsel %vm3412, %v2900, 0.0
        %v3669 = vsel %vm3413, %v2901, 0.0
        %v3670 = vsel %vm3414, %v2902, 0.0
        %v3671 = vsel %vm3415, %v2903, 0.0
        %v3672 = vsel %vm3416, %v2904, 0.0
        %v3673 = vsel %vm3417, %v2905, 0.0
        %v3674 = vsel %vm3418, %v2906, 0.0
        %v3675 = vsel %vm3419, %v2907, 0.0
        %v3676 = vsel %vm3420, %v2908, 0.0
        %v3677 = vsel %vm3421, %v2909, 0.0
        %v3678 = vsel %vm3422, %v2910, 0.0
        %v3679 = vsel %vm3423, %v2911, 0.0
        %v3680 = vsel %vm3424, %v2912, 0.0
        %v3681 = vsel %vm3425, %v2913, 0.0
        %v3682 = vsel %vm3426, %v2914, 0.0
        %v3683 = vsel %vm3427, %v2915, 0.0
        %v3684 = vsel %vm3428, %v2916, 0.0
        %v3685 = vsel %vm3429, %v2917, 0.0
        %v3686 = vsel %vm3430, %v2918, 0.0
        %v3687 = vsel %vm3431, %v2919, 0.0
        %v3688 = vsel %vm3432, %v2920, 0.0
        %v3689 = vsel %vm3433, %v2921, 0.0
        %v3690 = vsel %vm3434, %v2922, 0.0
        %v3691 = vsel %vm3435, %v2923, 0.0
        %v3692 = vsel %vm3436, %v2924, 0.0
        %v3693 = vsel %vm3437, %v2925, 0.0
        %v3694 = vsel %vm3438, %v2926, 0.0
        %v3695 = vsel %vm3439, %v2927, 0.0
        %v3696 = vsel %vm3440, %v2928, 0.0
        %v3697 = vsel %vm3441, %v2929, 0.0
        %v3698 = vsel %vm3442, %v2930, 0.0
        %v3699 = vsel %vm3443, %v2931, 0.0
        %v3700 = vsel %vm3444, %v2932, 0.0
        %v3701 = vsel %vm3445, %v2933, 0.0
        %v3702 = vsel %vm3446, %v2934, 0.0
        %v3703 = vsel %vm3447, %v2935, 0.0
        %v3704 = vsel %vm3448, %v2936, 0.0
        %v3705 = vsel %vm3449, %v2937, 0.0
        %v3706 = vsel %vm3450, %v2938, 0.0
        %v3707 = vsel %vm3451, %v2939, 0.0
        %v3708 = vsel %vm3452, %v2940, 0.0
        %v3709 = vsel %vm3453, %v2941, 0.0
        %v3710 = vsel %vm3454, %v2942, 0.0
        %v3711 = vsel %vm3455, %v2943, 0.0
        %v3712 = vsel %vm3456, %v2944, 0.0
        %v3713 = vsel %vm3457, %v2945, 0.0
        %v3714 = vsel %vm3458, %v2946, 0.0
        %v3715 = vsel %vm3459, %v2947, 0.0
        %v3716 = vsel %vm3460, %v2948, 0.0
        %v3717 = vsel %vm3461, %v2949, 0.0
        %v3718 = vsel %vm3462, %v2950, 0.0
        %v3719 = vsel %vm3463, %v2951, 0.0
        %v3720 = vsel %vm3464, %v2952, 0.0
        %v3721 = vsel %vm3465, %v2953, 0.0
        %v3722 = vsel %vm3466, %v2954, 0.0
        %v3723 = vsel %vm3467, %v2955, 0.0
        %v3724 = vsel %vm3468, %v2956, 0.0
        %v3725 = vsel %vm3469, %v2957, 0.0
        %v3726 = vsel %vm3470, %v2958, 0.0
        %v3727 = vsel %vm3471, %v2959, 0.0
        %v3728 = vsel %vm3472, %v2960, 0.0
        %v3729 = vsel %vm3473, %v2961, 0.0
        %v3730 = vsel %vm3474, %v2962, 0.0
        %v3731 = vsel %vm3475, %v2963, 0.0
        %v3732 = vsel %vm3476, %v2964, 0.0
        %v3733 = vsel %vm3477, %v2965, 0.0
        %v3734 = vsel %vm3478, %v2966, 0.0
        %v3735 = vsel %vm3479, %v2967, 0.0
        %v3736 = vsel %vm3480, %v2968, 0.0
        %v3737 = vsel %vm3481, %v2969, 0.0
        %v3738 = vsel %vm3482, %v2970, 0.0
        %v3739 = vsel %vm3483, %v2971, 0.0
        %v3740 = vsel %vm3484, %v2972, 0.0
        %v3741 = vsel %vm3485, %v2973, 0.0
        %v3742 = vsel %vm3486, %v2974, 0.0
        %v3743 = vsel %vm3487, %v2975, 0.0
        %v3744 = vsel %vm3488, %v2976, 0.0
        %v3745 = vsel %vm3489, %v2977, 0.0
        %v3746 = vsel %vm3490, %v2978, 0.0
        %v3747 = vsel %vm3491, %v2979, 0.0
        %v3748 = vsel %vm3492, %v2980, 0.0
        %v3749 = vsel %vm3493, %v2981, 0.0
        %v3750 = vsel %vm3494, %v2982, 0.0
        %v3751 = vsel %vm3495, %v2983, 0.0
        %v3752 = vsel %vm3496, %v2984, 0.0
        %v3753 = vsel %vm3497, %v2985, 0.0
        %v3754 = vsel %vm3498, %v2986, 0.0
        %v3755 = vsel %vm3499, %v2987, 0.0
        %v3756 = vsel %vm3500, %v2988, 0.0
        %v3757 = vsel %vm3501, %v2989, 0.0
        %v3758 = vsel %vm3502, %v2990, 0.0
        %v3759 = vsel %vm3503, %v2991, 0.0
        %v3760 = vsel %vm3504, %v2992, 0.0
        %v3761 = vsel %vm3505, %v2993, 0.0
        %v3762 = vsel %vm3506, %v2994, 0.0
        %v3763 = vsel %vm3507, %v2995, 0.0
        %v3764 = vsel %vm3508, %v2996, 0.0
        %v3765 = vsel %vm3509, %v2997, 0.0
        %v3766 = vsel %vm3510, %v2998, 0.0
        %v3767 = vsel %vm3511, %v2999, 0.0
        %v3768 = vsel %vm3512, %v3000, 0.0
        %v3769 = vsel %vm3513, %v3001, 0.0
        %v3770 = vsel %vm3514, %v3002, 0.0
        %v3771 = vsel %vm3515, %v3003, 0.0
        %v3772 = vsel %vm3516, %v3004, 0.0
        %v3773 = vsel %vm3517, %v3005, 0.0
        %v3774 = vsel %vm3518, %v3006, 0.0
        %v3775 = vsel %vm3519, %v3007, 0.0
        %v3776 = vsel %vm3520, %v3008, 0.0
        %v3777 = vsel %vm3521, %v3009, 0.0
        %v3778 = vsel %vm3522, %v3010, 0.0
        %v3779 = vsel %vm3523, %v3011, 0.0
        %v3780 = vsel %vm3524, %v3012, 0.0
        %v3781 = vsel %vm3525, %v3013, 0.0
        %v3782 = vsel %vm3526, %v3014, 0.0
        %v3783 = vsel %vm3527, %v3015, 0.0
        %v3784 = vsel %vm3528, %v3016, 0.0
        %v3785 = vsel %vm3529, %v3017, 0.0
        %v3786 = vsel %vm3530, %v3018, 0.0
        %v3787 = vsel %vm3531, %v3019, 0.0
        %v3788 = vsel %vm3532, %v3020, 0.0
        %v3789 = vsel %vm3533, %v3021, 0.0
        %v3790 = vsel %vm3534, %v3022, 0.0
        %v3791 = vsel %vm3535, %v3023, 0.0
        %v3792 = vsel %vm3536, %v3024, 0.0
        %v3793 = vsel %vm3537, %v3025, 0.0
        %3794 = vst [vmem:[%s477] sm:$0xff] %v3538
        %3795 = vst [vmem:[%s477 + $0x8] sm:$0xff] %v3539
        %3796 = vst [vmem:[%s477 + $0x10] sm:$0xff] %v3540
        %3797 = vst [vmem:[%s477 + $0x18] sm:$0xff] %v3541
        %3798 = vst [vmem:[%s477 + $0x20] sm:$0xff] %v3542
        %3799 = vst [vmem:[%s477 + $0x28] sm:$0xff] %v3543
        %3800 = vst [vmem:[%s477 + $0x30] sm:$0xff] %v3544
        %3801 = vst [vmem:[%s477 + $0x38] sm:$0xff] %v3545
        %3802 = vst [vmem:[%s477 + $0x40] sm:$0xff] %v3546
        %3803 = vst [vmem:[%s477 + $0x48] sm:$0xff] %v3547
        %3804 = vst [vmem:[%s477 + $0x50] sm:$0xff] %v3548
        %3805 = vst [vmem:[%s477 + $0x58] sm:$0xff] %v3549
        %3806 = vst [vmem:[%s477 + $0x60] sm:$0xff] %v3550
        %3807 = vst [vmem:[%s477 + $0x68] sm:$0xff] %v3551
        %3808 = vst [vmem:[%s477 + $0x70] sm:$0xff] %v3552
        %3809 = vst [vmem:[%s477 + $0x78] sm:$0xff] %v3553
        %3810 = vst [vmem:[%s477 + $0x80] sm:$0xff] %v3554
        %3811 = vst [vmem:[%s477 + $0x88] sm:$0xff] %v3555
        %3812 = vst [vmem:[%s477 + $0x90] sm:$0xff] %v3556
        %3813 = vst [vmem:[%s477 + $0x98] sm:$0xff] %v3557
        %3814 = vst [vmem:[%s477 + $0xa0] sm:$0xff] %v3558
        %3815 = vst [vmem:[%s477 + $0xa8] sm:$0xff] %v3559
        %3816 = vst [vmem:[%s477 + $0xb0] sm:$0xff] %v3560
        %3817 = vst [vmem:[%s477 + $0xb8] sm:$0xff] %v3561
        %3818 = vst [vmem:[%s477 + $0xc0] sm:$0xff] %v3562
        %3819 = vst [vmem:[%s477 + $0xc8] sm:$0xff] %v3563
        %3820 = vst [vmem:[%s477 + $0xd0] sm:$0xff] %v3564
        %3821 = vst [vmem:[%s477 + $0xd8] sm:$0xff] %v3565
        %3822 = vst [vmem:[%s477 + $0xe0] sm:$0xff] %v3566
        %3823 = vst [vmem:[%s477 + $0xe8] sm:$0xff] %v3567
        %3824 = vst [vmem:[%s477 + $0xf0] sm:$0xff] %v3568
        %3825 = vst [vmem:[%s477 + $0xf8] sm:$0xff] %v3569
        %3826 = vst [vmem:[%s477 + $0x100] sm:$0xff] %v3570
        %3827 = vst [vmem:[%s477 + $0x108] sm:$0xff] %v3571
        %3828 = vst [vmem:[%s477 + $0x110] sm:$0xff] %v3572
        %3829 = vst [vmem:[%s477 + $0x118] sm:$0xff] %v3573
        %3830 = vst [vmem:[%s477 + $0x120] sm:$0xff] %v3574
        %3831 = vst [vmem:[%s477 + $0x128] sm:$0xff] %v3575
        %3832 = vst [vmem:[%s477 + $0x130] sm:$0xff] %v3576
        %3833 = vst [vmem:[%s477 + $0x138] sm:$0xff] %v3577
        %3834 = vst [vmem:[%s477 + $0x140] sm:$0xff] %v3578
        %3835 = vst [vmem:[%s477 + $0x148] sm:$0xff] %v3579
        %3836 = vst [vmem:[%s477 + $0x150] sm:$0xff] %v3580
        %3837 = vst [vmem:[%s477 + $0x158] sm:$0xff] %v3581
        %3838 = vst [vmem:[%s477 + $0x160] sm:$0xff] %v3582
        %3839 = vst [vmem:[%s477 + $0x168] sm:$0xff] %v3583
        %3840 = vst [vmem:[%s477 + $0x170] sm:$0xff] %v3584
        %3841 = vst [vmem:[%s477 + $0x178] sm:$0xff] %v3585
        %3842 = vst [vmem:[%s477 + $0x180] sm:$0xff] %v3586
        %3843 = vst [vmem:[%s477 + $0x188] sm:$0xff] %v3587
        %3844 = vst [vmem:[%s477 + $0x190] sm:$0xff] %v3588
        %3845 = vst [vmem:[%s477 + $0x198] sm:$0xff] %v3589
        %3846 = vst [vmem:[%s477 + $0x1a0] sm:$0xff] %v3590
        %3847 = vst [vmem:[%s477 + $0x1a8] sm:$0xff] %v3591
        %3848 = vst [vmem:[%s477 + $0x1b0] sm:$0xff] %v3592
        %3849 = vst [vmem:[%s477 + $0x1b8] sm:$0xff] %v3593
        %3850 = vst [vmem:[%s477 + $0x1c0] sm:$0xff] %v3594
        %3851 = vst [vmem:[%s477 + $0x1c8] sm:$0xff] %v3595
        %3852 = vst [vmem:[%s477 + $0x1d0] sm:$0xff] %v3596
        %3853 = vst [vmem:[%s477 + $0x1d8] sm:$0xff] %v3597
        %3854 = vst [vmem:[%s477 + $0x1e0] sm:$0xff] %v3598
        %3855 = vst [vmem:[%s477 + $0x1e8] sm:$0xff] %v3599
        %3856 = vst [vmem:[%s477 + $0x1f0] sm:$0xff] %v3600
        %3857 = vst [vmem:[%s477 + $0x1f8] sm:$0xff] %v3601
        %3858 = vst [vmem:[%s477 + $0x200] sm:$0xff] %v3602
        %3859 = vst [vmem:[%s477 + $0x208] sm:$0xff] %v3603
        %3860 = vst [vmem:[%s477 + $0x210] sm:$0xff] %v3604
        %3861 = vst [vmem:[%s477 + $0x218] sm:$0xff] %v3605
        %3862 = vst [vmem:[%s477 + $0x220] sm:$0xff] %v3606
        %3863 = vst [vmem:[%s477 + $0x228] sm:$0xff] %v3607
        %3864 = vst [vmem:[%s477 + $0x230] sm:$0xff] %v3608
        %3865 = vst [vmem:[%s477 + $0x238] sm:$0xff] %v3609
        %3866 = vst [vmem:[%s477 + $0x240] sm:$0xff] %v3610
        %3867 = vst [vmem:[%s477 + $0x248] sm:$0xff] %v3611
        %3868 = vst [vmem:[%s477 + $0x250] sm:$0xff] %v3612
        %3869 = vst [vmem:[%s477 + $0x258] sm:$0xff] %v3613
        %3870 = vst [vmem:[%s477 + $0x260] sm:$0xff] %v3614
        %3871 = vst [vmem:[%s477 + $0x268] sm:$0xff] %v3615
        %3872 = vst [vmem:[%s477 + $0x270] sm:$0xff] %v3616
        %3873 = vst [vmem:[%s477 + $0x278] sm:$0xff] %v3617
        %3874 = vst [vmem:[%s477 + $0x280] sm:$0xff] %v3618
        %3875 = vst [vmem:[%s477 + $0x288] sm:$0xff] %v3619
        %3876 = vst [vmem:[%s477 + $0x290] sm:$0xff] %v3620
        %3877 = vst [vmem:[%s477 + $0x298] sm:$0xff] %v3621
        %3878 = vst [vmem:[%s477 + $0x2a0] sm:$0xff] %v3622
        %3879 = vst [vmem:[%s477 + $0x2a8] sm:$0xff] %v3623
        %3880 = vst [vmem:[%s477 + $0x2b0] sm:$0xff] %v3624
        %3881 = vst [vmem:[%s477 + $0x2b8] sm:$0xff] %v3625
        %3882 = vst [vmem:[%s477 + $0x2c0] sm:$0xff] %v3626
        %3883 = vst [vmem:[%s477 + $0x2c8] sm:$0xff] %v3627
        %3884 = vst [vmem:[%s477 + $0x2d0] sm:$0xff] %v3628
        %3885 = vst [vmem:[%s477 + $0x2d8] sm:$0xff] %v3629
        %3886 = vst [vmem:[%s477 + $0x2e0] sm:$0xff] %v3630
        %3887 = vst [vmem:[%s477 + $0x2e8] sm:$0xff] %v3631
        %3888 = vst [vmem:[%s477 + $0x2f0] sm:$0xff] %v3632
        %3889 = vst [vmem:[%s477 + $0x2f8] sm:$0xff] %v3633
        %3890 = vst [vmem:[%s477 + $0x300] sm:$0xff] %v3634
        %3891 = vst [vmem:[%s477 + $0x308] sm:$0xff] %v3635
        %3892 = vst [vmem:[%s477 + $0x310] sm:$0xff] %v3636
        %3893 = vst [vmem:[%s477 + $0x318] sm:$0xff] %v3637
        %3894 = vst [vmem:[%s477 + $0x320] sm:$0xff] %v3638
        %3895 = vst [vmem:[%s477 + $0x328] sm:$0xff] %v3639
        %3896 = vst [vmem:[%s477 + $0x330] sm:$0xff] %v3640
        %3897 = vst [vmem:[%s477 + $0x338] sm:$0xff] %v3641
        %3898 = vst [vmem:[%s477 + $0x340] sm:$0xff] %v3642
        %3899 = vst [vmem:[%s477 + $0x348] sm:$0xff] %v3643
        %3900 = vst [vmem:[%s477 + $0x350] sm:$0xff] %v3644
        %3901 = vst [vmem:[%s477 + $0x358] sm:$0xff] %v3645
        %3902 = vst [vmem:[%s477 + $0x360] sm:$0xff] %v3646
        %3903 = vst [vmem:[%s477 + $0x368] sm:$0xff] %v3647
        %3904 = vst [vmem:[%s477 + $0x370] sm:$0xff] %v3648
        %3905 = vst [vmem:[%s477 + $0x378] sm:$0xff] %v3649
        %3906 = vst [vmem:[%s477 + $0x380] sm:$0xff] %v3650
        %3907 = vst [vmem:[%s477 + $0x388] sm:$0xff] %v3651
        %3908 = vst [vmem:[%s477 + $0x390] sm:$0xff] %v3652
        %3909 = vst [vmem:[%s477 + $0x398] sm:$0xff] %v3653
        %3910 = vst [vmem:[%s477 + $0x3a0] sm:$0xff] %v3654
        %3911 = vst [vmem:[%s477 + $0x3a8] sm:$0xff] %v3655
        %3912 = vst [vmem:[%s477 + $0x3b0] sm:$0xff] %v3656
        %3913 = vst [vmem:[%s477 + $0x3b8] sm:$0xff] %v3657
        %3914 = vst [vmem:[%s477 + $0x3c0] sm:$0xff] %v3658
        %3915 = vst [vmem:[%s477 + $0x3c8] sm:$0xff] %v3659
        %3916 = vst [vmem:[%s477 + $0x3d0] sm:$0xff] %v3660
        %3917 = vst [vmem:[%s477 + $0x3d8] sm:$0xff] %v3661
        %3918 = vst [vmem:[%s477 + $0x3e0] sm:$0xff] %v3662
        %3919 = vst [vmem:[%s477 + $0x3e8] sm:$0xff] %v3663
        %3920 = vst [vmem:[%s477 + $0x3f0] sm:$0xff] %v3664
        %3921 = vst [vmem:[%s477 + $0x3f8] sm:$0xff] %v3665
        %3922 = vst [vmem:[%s477 + $0x400] sm:$0xff] %v3666
        %3923 = vst [vmem:[%s477 + $0x408] sm:$0xff] %v3667
        %3924 = vst [vmem:[%s477 + $0x410] sm:$0xff] %v3668
        %3925 = vst [vmem:[%s477 + $0x418] sm:$0xff] %v3669
        %3926 = vst [vmem:[%s477 + $0x420] sm:$0xff] %v3670
        %3927 = vst [vmem:[%s477 + $0x428] sm:$0xff] %v3671
        %3928 = vst [vmem:[%s477 + $0x430] sm:$0xff] %v3672
        %3929 = vst [vmem:[%s477 + $0x438] sm:$0xff] %v3673
        %3930 = vst [vmem:[%s477 + $0x440] sm:$0xff] %v3674
        %3931 = vst [vmem:[%s477 + $0x448] sm:$0xff] %v3675
        %3932 = vst [vmem:[%s477 + $0x450] sm:$0xff] %v3676
        %3933 = vst [vmem:[%s477 + $0x458] sm:$0xff] %v3677
        %3934 = vst [vmem:[%s477 + $0x460] sm:$0xff] %v3678
        %3935 = vst [vmem:[%s477 + $0x468] sm:$0xff] %v3679
        %3936 = vst [vmem:[%s477 + $0x470] sm:$0xff] %v3680
        %3937 = vst [vmem:[%s477 + $0x478] sm:$0xff] %v3681
        %3938 = vst [vmem:[%s477 + $0x480] sm:$0xff] %v3682
        %3939 = vst [vmem:[%s477 + $0x488] sm:$0xff] %v3683
        %3940 = vst [vmem:[%s477 + $0x490] sm:$0xff] %v3684
        %3941 = vst [vmem:[%s477 + $0x498] sm:$0xff] %v3685
        %3942 = vst [vmem:[%s477 + $0x4a0] sm:$0xff] %v3686
        %3943 = vst [vmem:[%s477 + $0x4a8] sm:$0xff] %v3687
        %3944 = vst [vmem:[%s477 + $0x4b0] sm:$0xff] %v3688
        %3945 = vst [vmem:[%s477 + $0x4b8] sm:$0xff] %v3689
        %3946 = vst [vmem:[%s477 + $0x4c0] sm:$0xff] %v3690
        %3947 = vst [vmem:[%s477 + $0x4c8] sm:$0xff] %v3691
        %3948 = vst [vmem:[%s477 + $0x4d0] sm:$0xff] %v3692
        %3949 = vst [vmem:[%s477 + $0x4d8] sm:$0xff] %v3693
        %3950 = vst [vmem:[%s477 + $0x4e0] sm:$0xff] %v3694
        %3951 = vst [vmem:[%s477 + $0x4e8] sm:$0xff] %v3695
        %3952 = vst [vmem:[%s477 + $0x4f0] sm:$0xff] %v3696
        %3953 = vst [vmem:[%s477 + $0x4f8] sm:$0xff] %v3697
        %3954 = vst [vmem:[%s477 + $0x500] sm:$0xff] %v3698
        %3955 = vst [vmem:[%s477 + $0x508] sm:$0xff] %v3699
        %3956 = vst [vmem:[%s477 + $0x510] sm:$0xff] %v3700
        %3957 = vst [vmem:[%s477 + $0x518] sm:$0xff] %v3701
        %3958 = vst [vmem:[%s477 + $0x520] sm:$0xff] %v3702
        %3959 = vst [vmem:[%s477 + $0x528] sm:$0xff] %v3703
        %3960 = vst [vmem:[%s477 + $0x530] sm:$0xff] %v3704
        %3961 = vst [vmem:[%s477 + $0x538] sm:$0xff] %v3705
        %3962 = vst [vmem:[%s477 + $0x540] sm:$0xff] %v3706
        %3963 = vst [vmem:[%s477 + $0x548] sm:$0xff] %v3707
        %3964 = vst [vmem:[%s477 + $0x550] sm:$0xff] %v3708
        %3965 = vst [vmem:[%s477 + $0x558] sm:$0xff] %v3709
        %3966 = vst [vmem:[%s477 + $0x560] sm:$0xff] %v3710
        %3967 = vst [vmem:[%s477 + $0x568] sm:$0xff] %v3711
        %3968 = vst [vmem:[%s477 + $0x570] sm:$0xff] %v3712
        %3969 = vst [vmem:[%s477 + $0x578] sm:$0xff] %v3713
        %3970 = vst [vmem:[%s477 + $0x580] sm:$0xff] %v3714
        %3971 = vst [vmem:[%s477 + $0x588] sm:$0xff] %v3715
        %3972 = vst [vmem:[%s477 + $0x590] sm:$0xff] %v3716
        %3973 = vst [vmem:[%s477 + $0x598] sm:$0xff] %v3717
        %3974 = vst [vmem:[%s477 + $0x5a0] sm:$0xff] %v3718
        %3975 = vst [vmem:[%s477 + $0x5a8] sm:$0xff] %v3719
        %3976 = vst [vmem:[%s477 + $0x5b0] sm:$0xff] %v3720
        %3977 = vst [vmem:[%s477 + $0x5b8] sm:$0xff] %v3721
        %3978 = vst [vmem:[%s477 + $0x5c0] sm:$0xff] %v3722
        %3979 = vst [vmem:[%s477 + $0x5c8] sm:$0xff] %v3723
        %3980 = vst [vmem:[%s477 + $0x5d0] sm:$0xff] %v3724
        %3981 = vst [vmem:[%s477 + $0x5d8] sm:$0xff] %v3725
        %3982 = vst [vmem:[%s477 + $0x5e0] sm:$0xff] %v3726
        %3983 = vst [vmem:[%s477 + $0x5e8] sm:$0xff] %v3727
        %3984 = vst [vmem:[%s477 + $0x5f0] sm:$0xff] %v3728
        %3985 = vst [vmem:[%s477 + $0x5f8] sm:$0xff] %v3729
        %3986 = vst [vmem:[%s477 + $0x600] sm:$0xff] %v3730
        %3987 = vst [vmem:[%s477 + $0x608] sm:$0xff] %v3731
        %3988 = vst [vmem:[%s477 + $0x610] sm:$0xff] %v3732
        %3989 = vst [vmem:[%s477 + $0x618] sm:$0xff] %v3733
        %3990 = vst [vmem:[%s477 + $0x620] sm:$0xff] %v3734
        %3991 = vst [vmem:[%s477 + $0x628] sm:$0xff] %v3735
        %3992 = vst [vmem:[%s477 + $0x630] sm:$0xff] %v3736
        %3993 = vst [vmem:[%s477 + $0x638] sm:$0xff] %v3737
        %3994 = vst [vmem:[%s477 + $0x640] sm:$0xff] %v3738
        %3995 = vst [vmem:[%s477 + $0x648] sm:$0xff] %v3739
        %3996 = vst [vmem:[%s477 + $0x650] sm:$0xff] %v3740
        %3997 = vst [vmem:[%s477 + $0x658] sm:$0xff] %v3741
        %3998 = vst [vmem:[%s477 + $0x660] sm:$0xff] %v3742
        %3999 = vst [vmem:[%s477 + $0x668] sm:$0xff] %v3743
        %4000 = vst [vmem:[%s477 + $0x670] sm:$0xff] %v3744
        %4001 = vst [vmem:[%s477 + $0x678] sm:$0xff] %v3745
        %4002 = vst [vmem:[%s477 + $0x680] sm:$0xff] %v3746
        %4003 = vst [vmem:[%s477 + $0x688] sm:$0xff] %v3747
        %4004 = vst [vmem:[%s477 + $0x690] sm:$0xff] %v3748
        %4005 = vst [vmem:[%s477 + $0x698] sm:$0xff] %v3749
        %4006 = vst [vmem:[%s477 + $0x6a0] sm:$0xff] %v3750
        %4007 = vst [vmem:[%s477 + $0x6a8] sm:$0xff] %v3751
        %4008 = vst [vmem:[%s477 + $0x6b0] sm:$0xff] %v3752
        %4009 = vst [vmem:[%s477 + $0x6b8] sm:$0xff] %v3753
        %4010 = vst [vmem:[%s477 + $0x6c0] sm:$0xff] %v3754
        %4011 = vst [vmem:[%s477 + $0x6c8] sm:$0xff] %v3755
        %4012 = vst [vmem:[%s477 + $0x6d0] sm:$0xff] %v3756
        %4013 = vst [vmem:[%s477 + $0x6d8] sm:$0xff] %v3757
        %4014 = vst [vmem:[%s477 + $0x6e0] sm:$0xff] %v3758
        %4015 = vst [vmem:[%s477 + $0x6e8] sm:$0xff] %v3759
        %4016 = vst [vmem:[%s477 + $0x6f0] sm:$0xff] %v3760
        %4017 = vst [vmem:[%s477 + $0x6f8] sm:$0xff] %v3761
        %4018 = vst [vmem:[%s477 + $0x700] sm:$0xff] %v3762
        %4019 = vst [vmem:[%s477 + $0x708] sm:$0xff] %v3763
        %4020 = vst [vmem:[%s477 + $0x710] sm:$0xff] %v3764
        %4021 = vst [vmem:[%s477 + $0x718] sm:$0xff] %v3765
        %4022 = vst [vmem:[%s477 + $0x720] sm:$0xff] %v3766
        %4023 = vst [vmem:[%s477 + $0x728] sm:$0xff] %v3767
        %4024 = vst [vmem:[%s477 + $0x730] sm:$0xff] %v3768
        %4025 = vst [vmem:[%s477 + $0x738] sm:$0xff] %v3769
        %4026 = vst [vmem:[%s477 + $0x740] sm:$0xff] %v3770
        %4027 = vst [vmem:[%s477 + $0x748] sm:$0xff] %v3771
        %4028 = vst [vmem:[%s477 + $0x750] sm:$0xff] %v3772
        %4029 = vst [vmem:[%s477 + $0x758] sm:$0xff] %v3773
        %4030 = vst [vmem:[%s477 + $0x760] sm:$0xff] %v3774
        %4031 = vst [vmem:[%s477 + $0x768] sm:$0xff] %v3775
        %4032 = vst [vmem:[%s477 + $0x770] sm:$0xff] %v3776
        %4033 = vst [vmem:[%s477 + $0x778] sm:$0xff] %v3777
        %4034 = vst [vmem:[%s477 + $0x780] sm:$0xff] %v3778
        %4035 = vst [vmem:[%s477 + $0x788] sm:$0xff] %v3779
        %4036 = vst [vmem:[%s477 + $0x790] sm:$0xff] %v3780
        %4037 = vst [vmem:[%s477 + $0x798] sm:$0xff] %v3781
        %4038 = vst [vmem:[%s477 + $0x7a0] sm:$0xff] %v3782
        %4039 = vst [vmem:[%s477 + $0x7a8] sm:$0xff] %v3783
        %4040 = vst [vmem:[%s477 + $0x7b0] sm:$0xff] %v3784
        %4041 = vst [vmem:[%s477 + $0x7b8] sm:$0xff] %v3785
        %4042 = vst [vmem:[%s477 + $0x7c0] sm:$0xff] %v3786
        %4043 = vst [vmem:[%s477 + $0x7c8] sm:$0xff] %v3787
        %4044 = vst [vmem:[%s477 + $0x7d0] sm:$0xff] %v3788
        %4045 = vst [vmem:[%s477 + $0x7d8] sm:$0xff] %v3789
        %4046 = vst [vmem:[%s477 + $0x7e0] sm:$0xff] %v3790
        %4047 = vst [vmem:[%s477 + $0x7e8] sm:$0xff] %v3791
        %4048 = vst [vmem:[%s477 + $0x7f0] sm:$0xff] %v3792
        %4049 = vst [vmem:[%s477 + $0x7f8] sm:$0xff] %v3793
        %v4050 = vperm.slane %v834, 0
        %v4051 = vlaneseq
        %v4052 = vshrl.u32 %v4051, 7
        %4054 = vset.pattern.permute.xlu0 %v4052
        %4055 = vperm.xlu0 %4054, %v4050
        %v4056 = vpop.permute.xlu0 %4055
        %v4057 = vlaneseq
        %v4058 = vshrl.u32 %v4057, 7
        %v4059 = vadd.s32 %v4058, 8
        %4060 = vset.pattern.permute.xlu0 %v4059
        %4061 = vperm.xlu0 %4060, %v4050
        %v4062 = vpop.permute.xlu0 %4061
        %v4063 = vperm.slane %v834, 1
        %v4064 = vlaneseq
        %v4065 = vshrl.u32 %v4064, 7
        %4067 = vset.pattern.permute.xlu0 %v4065
        %4068 = vperm.xlu0 %4067, %v4063
        %v4069 = vpop.permute.xlu0 %4068
        %v4070 = vlaneseq
        %v4071 = vshrl.u32 %v4070, 7
        %v4072 = vadd.s32 %v4071, 8
        %4073 = vset.pattern.permute.xlu0 %v4072
        %4074 = vperm.xlu0 %4073, %v4063
        %v4075 = vpop.permute.xlu0 %4074
        %v4076 = vperm.slane %v834, 2
        %v4077 = vlaneseq
        %v4078 = vshrl.u32 %v4077, 7
        %4080 = vset.pattern.permute.xlu0 %v4078
        %4081 = vperm.xlu0 %4080, %v4076
        %v4082 = vpop.permute.xlu0 %4081
        %v4083 = vlaneseq
        %v4084 = vshrl.u32 %v4083, 7
        %v4085 = vadd.s32 %v4084, 8
        %4086 = vset.pattern.permute.xlu0 %v4085
        %4087 = vperm.xlu0 %4086, %v4076
        %v4088 = vpop.permute.xlu0 %4087
        %v4089 = vperm.slane %v834, 3
        %v4090 = vlaneseq
        %v4091 = vshrl.u32 %v4090, 7
        %4093 = vset.pattern.permute.xlu0 %v4091
        %4094 = vperm.xlu0 %4093, %v4089
        %v4095 = vpop.permute.xlu0 %4094
        %v4096 = vlaneseq
        %v4097 = vshrl.u32 %v4096, 7
        %v4098 = vadd.s32 %v4097, 8
        %4099 = vset.pattern.permute.xlu0 %v4098
        %4100 = vperm.xlu0 %4099, %v4089
        %v4101 = vpop.permute.xlu0 %4100
        %v4102 = vperm.slane %v834, 4
        %v4103 = vlaneseq
        %v4104 = vshrl.u32 %v4103, 7
        %4106 = vset.pattern.permute.xlu0 %v4104
        %4107 = vperm.xlu0 %4106, %v4102
        %v4108 = vpop.permute.xlu0 %4107
        %v4109 = vlaneseq
        %v4110 = vshrl.u32 %v4109, 7
        %v4111 = vadd.s32 %v4110, 8
        %4112 = vset.pattern.permute.xlu0 %v4111
        %4113 = vperm.xlu0 %4112, %v4102
        %v4114 = vpop.permute.xlu0 %4113
        %v4115 = vperm.slane %v834, 5
        %v4116 = vlaneseq
        %v4117 = vshrl.u32 %v4116, 7
        %4119 = vset.pattern.permute.xlu0 %v4117
        %4120 = vperm.xlu0 %4119, %v4115
        %v4121 = vpop.permute.xlu0 %4120
        %v4122 = vlaneseq
        %v4123 = vshrl.u32 %v4122, 7
        %v4124 = vadd.s32 %v4123, 8
        %4125 = vset.pattern.permute.xlu0 %v4124
        %4126 = vperm.xlu0 %4125, %v4115
        %v4127 = vpop.permute.xlu0 %4126
        %v4128 = vperm.slane %v834, 6
        %v4129 = vlaneseq
        %v4130 = vshrl.u32 %v4129, 7
        %4132 = vset.pattern.permute.xlu0 %v4130
        %4133 = vperm.xlu0 %4132, %v4128
        %v4134 = vpop.permute.xlu0 %4133
        %v4135 = vlaneseq
        %v4136 = vshrl.u32 %v4135, 7
        %v4137 = vadd.s32 %v4136, 8
        %4138 = vset.pattern.permute.xlu0 %v4137
        %4139 = vperm.xlu0 %4138, %v4128
        %v4140 = vpop.permute.xlu0 %4139
        %v4141 = vperm.slane %v834, 7
        %v4142 = vlaneseq
        %v4143 = vshrl.u32 %v4142, 7
        %4145 = vset.pattern.permute.xlu0 %v4143
        %4146 = vperm.xlu0 %4145, %v4141
        %v4147 = vpop.permute.xlu0 %4146
        %v4148 = vlaneseq
        %v4149 = vshrl.u32 %v4148, 7
        %v4150 = vadd.s32 %v4149, 8
        %4151 = vset.pattern.permute.xlu0 %v4150
        %4152 = vperm.xlu0 %4151, %v4141
        %v4153 = vpop.permute.xlu0 %4152
        %v4154 = vperm.slane %v835, 0
        %v4155 = vlaneseq
        %v4156 = vshrl.u32 %v4155, 7
        %4158 = vset.pattern.permute.xlu0 %v4156
        %4159 = vperm.xlu0 %4158, %v4154
        %v4160 = vpop.permute.xlu0 %4159
        %v4161 = vlaneseq
        %v4162 = vshrl.u32 %v4161, 7
        %v4163 = vadd.s32 %v4162, 8
        %4164 = vset.pattern.permute.xlu0 %v4163
        %4165 = vperm.xlu0 %4164, %v4154
        %v4166 = vpop.permute.xlu0 %4165
        %v4167 = vperm.slane %v835, 1
        %v4168 = vlaneseq
        %v4169 = vshrl.u32 %v4168, 7
        %4171 = vset.pattern.permute.xlu0 %v4169
        %4172 = vperm.xlu0 %4171, %v4167
        %v4173 = vpop.permute.xlu0 %4172
        %v4174 = vlaneseq
        %v4175 = vshrl.u32 %v4174, 7
        %v4176 = vadd.s32 %v4175, 8
        %4177 = vset.pattern.permute.xlu0 %v4176
        %4178 = vperm.xlu0 %4177, %v4167
        %v4179 = vpop.permute.xlu0 %4178
        %v4180 = vperm.slane %v835, 2
        %v4181 = vlaneseq
        %v4182 = vshrl.u32 %v4181, 7
        %4184 = vset.pattern.permute.xlu0 %v4182
        %4185 = vperm.xlu0 %4184, %v4180
        %v4186 = vpop.permute.xlu0 %4185
        %v4187 = vlaneseq
        %v4188 = vshrl.u32 %v4187, 7
        %v4189 = vadd.s32 %v4188, 8
        %4190 = vset.pattern.permute.xlu0 %v4189
        %4191 = vperm.xlu0 %4190, %v4180
        %v4192 = vpop.permute.xlu0 %4191
        %v4193 = vperm.slane %v835, 3
        %v4194 = vlaneseq
        %v4195 = vshrl.u32 %v4194, 7
        %4197 = vset.pattern.permute.xlu0 %v4195
        %4198 = vperm.xlu0 %4197, %v4193
        %v4199 = vpop.permute.xlu0 %4198
        %v4200 = vlaneseq
        %v4201 = vshrl.u32 %v4200, 7
        %v4202 = vadd.s32 %v4201, 8
        %4203 = vset.pattern.permute.xlu0 %v4202
        %4204 = vperm.xlu0 %4203, %v4193
        %v4205 = vpop.permute.xlu0 %4204
        %v4206 = vperm.slane %v835, 4
        %v4207 = vlaneseq
        %v4208 = vshrl.u32 %v4207, 7
        %4210 = vset.pattern.permute.xlu0 %v4208
        %4211 = vperm.xlu0 %4210, %v4206
        %v4212 = vpop.permute.xlu0 %4211
        %v4213 = vlaneseq
        %v4214 = vshrl.u32 %v4213, 7
        %v4215 = vadd.s32 %v4214, 8
        %4216 = vset.pattern.permute.xlu0 %v4215
        %4217 = vperm.xlu0 %4216, %v4206
        %v4218 = vpop.permute.xlu0 %4217
        %v4219 = vperm.slane %v835, 5
        %v4220 = vlaneseq
        %v4221 = vshrl.u32 %v4220, 7
        %4223 = vset.pattern.permute.xlu0 %v4221
        %4224 = vperm.xlu0 %4223, %v4219
        %v4225 = vpop.permute.xlu0 %4224
        %v4226 = vlaneseq
        %v4227 = vshrl.u32 %v4226, 7
        %v4228 = vadd.s32 %v4227, 8
        %4229 = vset.pattern.permute.xlu0 %v4228
        %4230 = vperm.xlu0 %4229, %v4219
        %v4231 = vpop.permute.xlu0 %4230
        %v4232 = vperm.slane %v835, 6
        %v4233 = vlaneseq
        %v4234 = vshrl.u32 %v4233, 7
        %4236 = vset.pattern.permute.xlu0 %v4234
        %4237 = vperm.xlu0 %4236, %v4232
        %v4238 = vpop.permute.xlu0 %4237
        %v4239 = vlaneseq
        %v4240 = vshrl.u32 %v4239, 7
        %v4241 = vadd.s32 %v4240, 8
        %4242 = vset.pattern.permute.xlu0 %v4241
        %4243 = vperm.xlu0 %4242, %v4232
        %v4244 = vpop.permute.xlu0 %4243
        %v4245 = vperm.slane %v835, 7
        %v4246 = vlaneseq
        %v4247 = vshrl.u32 %v4246, 7
        %4249 = vset.pattern.permute.xlu0 %v4247
        %4250 = vperm.xlu0 %4249, %v4245
        %v4251 = vpop.permute.xlu0 %4250
        %v4252 = vlaneseq
        %v4253 = vshrl.u32 %v4252, 7
        %v4254 = vadd.s32 %v4253, 8
        %4255 = vset.pattern.permute.xlu0 %v4254
        %4256 = vperm.xlu0 %4255, %v4245
        %v4257 = vpop.permute.xlu0 %4256
        %v4258 = vperm.slane %v836, 0
        %v4259 = vlaneseq
        %v4260 = vshrl.u32 %v4259, 7
        %4262 = vset.pattern.permute.xlu0 %v4260
        %4263 = vperm.xlu0 %4262, %v4258
        %v4264 = vpop.permute.xlu0 %4263
        %v4265 = vlaneseq
        %v4266 = vshrl.u32 %v4265, 7
        %v4267 = vadd.s32 %v4266, 8
        %4268 = vset.pattern.permute.xlu0 %v4267
        %4269 = vperm.xlu0 %4268, %v4258
        %v4270 = vpop.permute.xlu0 %4269
        %v4271 = vperm.slane %v836, 1
        %v4272 = vlaneseq
        %v4273 = vshrl.u32 %v4272, 7
        %4275 = vset.pattern.permute.xlu0 %v4273
        %4276 = vperm.xlu0 %4275, %v4271
        %v4277 = vpop.permute.xlu0 %4276
        %v4278 = vlaneseq
        %v4279 = vshrl.u32 %v4278, 7
        %v4280 = vadd.s32 %v4279, 8
        %4281 = vset.pattern.permute.xlu0 %v4280
        %4282 = vperm.xlu0 %4281, %v4271
        %v4283 = vpop.permute.xlu0 %4282
        %v4284 = vperm.slane %v836, 2
        %v4285 = vlaneseq
        %v4286 = vshrl.u32 %v4285, 7
        %4288 = vset.pattern.permute.xlu0 %v4286
        %4289 = vperm.xlu0 %4288, %v4284
        %v4290 = vpop.permute.xlu0 %4289
        %v4291 = vlaneseq
        %v4292 = vshrl.u32 %v4291, 7
        %v4293 = vadd.s32 %v4292, 8
        %4294 = vset.pattern.permute.xlu0 %v4293
        %4295 = vperm.xlu0 %4294, %v4284
        %v4296 = vpop.permute.xlu0 %4295
        %v4297 = vperm.slane %v836, 3
        %v4298 = vlaneseq
        %v4299 = vshrl.u32 %v4298, 7
        %4301 = vset.pattern.permute.xlu0 %v4299
        %4302 = vperm.xlu0 %4301, %v4297
        %v4303 = vpop.permute.xlu0 %4302
        %v4304 = vlaneseq
        %v4305 = vshrl.u32 %v4304, 7
        %v4306 = vadd.s32 %v4305, 8
        %4307 = vset.pattern.permute.xlu0 %v4306
        %4308 = vperm.xlu0 %4307, %v4297
        %v4309 = vpop.permute.xlu0 %4308
        %v4310 = vperm.slane %v836, 4
        %v4311 = vlaneseq
        %v4312 = vshrl.u32 %v4311, 7
        %4314 = vset.pattern.permute.xlu0 %v4312
        %4315 = vperm.xlu0 %4314, %v4310
        %v4316 = vpop.permute.xlu0 %4315
        %v4317 = vlaneseq
        %v4318 = vshrl.u32 %v4317, 7
        %v4319 = vadd.s32 %v4318, 8
        %4320 = vset.pattern.permute.xlu0 %v4319
        %4321 = vperm.xlu0 %4320, %v4310
        %v4322 = vpop.permute.xlu0 %4321
        %v4323 = vperm.slane %v836, 5
        %v4324 = vlaneseq
        %v4325 = vshrl.u32 %v4324, 7
        %4327 = vset.pattern.permute.xlu0 %v4325
        %4328 = vperm.xlu0 %4327, %v4323
        %v4329 = vpop.permute.xlu0 %4328
        %v4330 = vlaneseq
        %v4331 = vshrl.u32 %v4330, 7
        %v4332 = vadd.s32 %v4331, 8
        %4333 = vset.pattern.permute.xlu0 %v4332
        %4334 = vperm.xlu0 %4333, %v4323
        %v4335 = vpop.permute.xlu0 %4334
        %v4336 = vperm.slane %v836, 6
        %v4337 = vlaneseq
        %v4338 = vshrl.u32 %v4337, 7
        %4340 = vset.pattern.permute.xlu0 %v4338
        %4341 = vperm.xlu0 %4340, %v4336
        %v4342 = vpop.permute.xlu0 %4341
        %v4343 = vlaneseq
        %v4344 = vshrl.u32 %v4343, 7
        %v4345 = vadd.s32 %v4344, 8
        %4346 = vset.pattern.permute.xlu0 %v4345
        %4347 = vperm.xlu0 %4346, %v4336
        %v4348 = vpop.permute.xlu0 %4347
        %v4349 = vperm.slane %v836, 7
        %v4350 = vlaneseq
        %v4351 = vshrl.u32 %v4350, 7
        %4353 = vset.pattern.permute.xlu0 %v4351
        %4354 = vperm.xlu0 %4353, %v4349
        %v4355 = vpop.permute.xlu0 %4354
        %v4356 = vlaneseq
        %v4357 = vshrl.u32 %v4356, 7
        %v4358 = vadd.s32 %v4357, 8
        %4359 = vset.pattern.permute.xlu0 %v4358
        %4360 = vperm.xlu0 %4359, %v4349
        %v4361 = vpop.permute.xlu0 %4360
        %v4362 = vperm.slane %v837, 0
        %v4363 = vlaneseq
        %v4364 = vshrl.u32 %v4363, 7
        %4366 = vset.pattern.permute.xlu0 %v4364
        %4367 = vperm.xlu0 %4366, %v4362
        %v4368 = vpop.permute.xlu0 %4367
        %v4369 = vlaneseq
        %v4370 = vshrl.u32 %v4369, 7
        %v4371 = vadd.s32 %v4370, 8
        %4372 = vset.pattern.permute.xlu0 %v4371
        %4373 = vperm.xlu0 %4372, %v4362
        %v4374 = vpop.permute.xlu0 %4373
        %v4375 = vperm.slane %v837, 1
        %v4376 = vlaneseq
        %v4377 = vshrl.u32 %v4376, 7
        %4379 = vset.pattern.permute.xlu0 %v4377
        %4380 = vperm.xlu0 %4379, %v4375
        %v4381 = vpop.permute.xlu0 %4380
        %v4382 = vlaneseq
        %v4383 = vshrl.u32 %v4382, 7
        %v4384 = vadd.s32 %v4383, 8
        %4385 = vset.pattern.permute.xlu0 %v4384
        %4386 = vperm.xlu0 %4385, %v4375
        %v4387 = vpop.permute.xlu0 %4386
        %v4388 = vperm.slane %v837, 2
        %v4389 = vlaneseq
        %v4390 = vshrl.u32 %v4389, 7
        %4392 = vset.pattern.permute.xlu0 %v4390
        %4393 = vperm.xlu0 %4392, %v4388
        %v4394 = vpop.permute.xlu0 %4393
        %v4395 = vlaneseq
        %v4396 = vshrl.u32 %v4395, 7
        %v4397 = vadd.s32 %v4396, 8
        %4398 = vset.pattern.permute.xlu0 %v4397
        %4399 = vperm.xlu0 %4398, %v4388
        %v4400 = vpop.permute.xlu0 %4399
        %v4401 = vperm.slane %v837, 3
        %v4402 = vlaneseq
        %v4403 = vshrl.u32 %v4402, 7
        %4405 = vset.pattern.permute.xlu0 %v4403
        %4406 = vperm.xlu0 %4405, %v4401
        %v4407 = vpop.permute.xlu0 %4406
        %v4408 = vlaneseq
        %v4409 = vshrl.u32 %v4408, 7
        %v4410 = vadd.s32 %v4409, 8
        %4411 = vset.pattern.permute.xlu0 %v4410
        %4412 = vperm.xlu0 %4411, %v4401
        %v4413 = vpop.permute.xlu0 %4412
        %v4414 = vperm.slane %v837, 4
        %v4415 = vlaneseq
        %v4416 = vshrl.u32 %v4415, 7
        %4418 = vset.pattern.permute.xlu0 %v4416
        %4419 = vperm.xlu0 %4418, %v4414
        %v4420 = vpop.permute.xlu0 %4419
        %v4421 = vlaneseq
        %v4422 = vshrl.u32 %v4421, 7
        %v4423 = vadd.s32 %v4422, 8
        %4424 = vset.pattern.permute.xlu0 %v4423
        %4425 = vperm.xlu0 %4424, %v4414
        %v4426 = vpop.permute.xlu0 %4425
        %v4427 = vperm.slane %v837, 5
        %v4428 = vlaneseq
        %v4429 = vshrl.u32 %v4428, 7
        %4431 = vset.pattern.permute.xlu0 %v4429
        %4432 = vperm.xlu0 %4431, %v4427
        %v4433 = vpop.permute.xlu0 %4432
        %v4434 = vlaneseq
        %v4435 = vshrl.u32 %v4434, 7
        %v4436 = vadd.s32 %v4435, 8
        %4437 = vset.pattern.permute.xlu0 %v4436
        %4438 = vperm.xlu0 %4437, %v4427
        %v4439 = vpop.permute.xlu0 %4438
        %v4440 = vperm.slane %v837, 6
        %v4441 = vlaneseq
        %v4442 = vshrl.u32 %v4441, 7
        %4444 = vset.pattern.permute.xlu0 %v4442
        %4445 = vperm.xlu0 %4444, %v4440
        %v4446 = vpop.permute.xlu0 %4445
        %v4447 = vlaneseq
        %v4448 = vshrl.u32 %v4447, 7
        %v4449 = vadd.s32 %v4448, 8
        %4450 = vset.pattern.permute.xlu0 %v4449
        %4451 = vperm.xlu0 %4450, %v4440
        %v4452 = vpop.permute.xlu0 %4451
        %v4453 = vperm.slane %v837, 7
        %v4454 = vlaneseq
        %v4455 = vshrl.u32 %v4454, 7
        %4457 = vset.pattern.permute.xlu0 %v4455
        %4458 = vperm.xlu0 %4457, %v4453
        %v4459 = vpop.permute.xlu0 %4458
        %v4460 = vlaneseq
        %v4461 = vshrl.u32 %v4460, 7
        %v4462 = vadd.s32 %v4461, 8
        %4463 = vset.pattern.permute.xlu0 %v4462
        %4464 = vperm.xlu0 %4463, %v4453
        %v4465 = vpop.permute.xlu0 %4464
        %v4466 = vperm.slane %v838, 0
        %v4467 = vlaneseq
        %v4468 = vshrl.u32 %v4467, 7
        %4470 = vset.pattern.permute.xlu0 %v4468
        %4471 = vperm.xlu0 %4470, %v4466
        %v4472 = vpop.permute.xlu0 %4471
        %v4473 = vlaneseq
        %v4474 = vshrl.u32 %v4473, 7
        %v4475 = vadd.s32 %v4474, 8
        %4476 = vset.pattern.permute.xlu0 %v4475
        %4477 = vperm.xlu0 %4476, %v4466
        %v4478 = vpop.permute.xlu0 %4477
        %v4479 = vperm.slane %v838, 1
        %v4480 = vlaneseq
        %v4481 = vshrl.u32 %v4480, 7
        %4483 = vset.pattern.permute.xlu0 %v4481
        %4484 = vperm.xlu0 %4483, %v4479
        %v4485 = vpop.permute.xlu0 %4484
        %v4486 = vlaneseq
        %v4487 = vshrl.u32 %v4486, 7
        %v4488 = vadd.s32 %v4487, 8
        %4489 = vset.pattern.permute.xlu0 %v4488
        %4490 = vperm.xlu0 %4489, %v4479
        %v4491 = vpop.permute.xlu0 %4490
        %v4492 = vperm.slane %v838, 2
        %v4493 = vlaneseq
        %v4494 = vshrl.u32 %v4493, 7
        %4496 = vset.pattern.permute.xlu0 %v4494
        %4497 = vperm.xlu0 %4496, %v4492
        %v4498 = vpop.permute.xlu0 %4497
        %v4499 = vlaneseq
        %v4500 = vshrl.u32 %v4499, 7
        %v4501 = vadd.s32 %v4500, 8
        %4502 = vset.pattern.permute.xlu0 %v4501
        %4503 = vperm.xlu0 %4502, %v4492
        %v4504 = vpop.permute.xlu0 %4503
        %v4505 = vperm.slane %v838, 3
        %v4506 = vlaneseq
        %v4507 = vshrl.u32 %v4506, 7
        %4509 = vset.pattern.permute.xlu0 %v4507
        %4510 = vperm.xlu0 %4509, %v4505
        %v4511 = vpop.permute.xlu0 %4510
        %v4512 = vlaneseq
        %v4513 = vshrl.u32 %v4512, 7
        %v4514 = vadd.s32 %v4513, 8
        %4515 = vset.pattern.permute.xlu0 %v4514
        %4516 = vperm.xlu0 %4515, %v4505
        %v4517 = vpop.permute.xlu0 %4516
        %v4518 = vperm.slane %v838, 4
        %v4519 = vlaneseq
        %v4520 = vshrl.u32 %v4519, 7
        %4522 = vset.pattern.permute.xlu0 %v4520
        %4523 = vperm.xlu0 %4522, %v4518
        %v4524 = vpop.permute.xlu0 %4523
        %v4525 = vlaneseq
        %v4526 = vshrl.u32 %v4525, 7
        %v4527 = vadd.s32 %v4526, 8
        %4528 = vset.pattern.permute.xlu0 %v4527
        %4529 = vperm.xlu0 %4528, %v4518
        %v4530 = vpop.permute.xlu0 %4529
        %v4531 = vperm.slane %v838, 5
        %v4532 = vlaneseq
        %v4533 = vshrl.u32 %v4532, 7
        %4535 = vset.pattern.permute.xlu0 %v4533
        %4536 = vperm.xlu0 %4535, %v4531
        %v4537 = vpop.permute.xlu0 %4536
        %v4538 = vlaneseq
        %v4539 = vshrl.u32 %v4538, 7
        %v4540 = vadd.s32 %v4539, 8
        %4541 = vset.pattern.permute.xlu0 %v4540
        %4542 = vperm.xlu0 %4541, %v4531
        %v4543 = vpop.permute.xlu0 %4542
        %v4544 = vperm.slane %v838, 6
        %v4545 = vlaneseq
        %v4546 = vshrl.u32 %v4545, 7
        %4548 = vset.pattern.permute.xlu0 %v4546
        %4549 = vperm.xlu0 %4548, %v4544
        %v4550 = vpop.permute.xlu0 %4549
        %v4551 = vlaneseq
        %v4552 = vshrl.u32 %v4551, 7
        %v4553 = vadd.s32 %v4552, 8
        %4554 = vset.pattern.permute.xlu0 %v4553
        %4555 = vperm.xlu0 %4554, %v4544
        %v4556 = vpop.permute.xlu0 %4555
        %v4557 = vperm.slane %v838, 7
        %v4558 = vlaneseq
        %v4559 = vshrl.u32 %v4558, 7
        %4561 = vset.pattern.permute.xlu0 %v4559
        %4562 = vperm.xlu0 %4561, %v4557
        %v4563 = vpop.permute.xlu0 %4562
        %v4564 = vlaneseq
        %v4565 = vshrl.u32 %v4564, 7
        %v4566 = vadd.s32 %v4565, 8
        %4567 = vset.pattern.permute.xlu0 %v4566
        %4568 = vperm.xlu0 %4567, %v4557
        %v4569 = vpop.permute.xlu0 %4568
        %v4570 = vperm.slane %v839, 0
        %v4571 = vlaneseq
        %v4572 = vshrl.u32 %v4571, 7
        %4574 = vset.pattern.permute.xlu0 %v4572
        %4575 = vperm.xlu0 %4574, %v4570
        %v4576 = vpop.permute.xlu0 %4575
        %v4577 = vlaneseq
        %v4578 = vshrl.u32 %v4577, 7
        %v4579 = vadd.s32 %v4578, 8
        %4580 = vset.pattern.permute.xlu0 %v4579
        %4581 = vperm.xlu0 %4580, %v4570
        %v4582 = vpop.permute.xlu0 %4581
        %v4583 = vperm.slane %v839, 1
        %v4584 = vlaneseq
        %v4585 = vshrl.u32 %v4584, 7
        %4587 = vset.pattern.permute.xlu0 %v4585
        %4588 = vperm.xlu0 %4587, %v4583
        %v4589 = vpop.permute.xlu0 %4588
        %v4590 = vlaneseq
        %v4591 = vshrl.u32 %v4590, 7
        %v4592 = vadd.s32 %v4591, 8
        %4593 = vset.pattern.permute.xlu0 %v4592
        %4594 = vperm.xlu0 %4593, %v4583
        %v4595 = vpop.permute.xlu0 %4594
        %v4596 = vperm.slane %v839, 2
        %v4597 = vlaneseq
        %v4598 = vshrl.u32 %v4597, 7
        %4600 = vset.pattern.permute.xlu0 %v4598
        %4601 = vperm.xlu0 %4600, %v4596
        %v4602 = vpop.permute.xlu0 %4601
        %v4603 = vlaneseq
        %v4604 = vshrl.u32 %v4603, 7
        %v4605 = vadd.s32 %v4604, 8
        %4606 = vset.pattern.permute.xlu0 %v4605
        %4607 = vperm.xlu0 %4606, %v4596
        %v4608 = vpop.permute.xlu0 %4607
        %v4609 = vperm.slane %v839, 3
        %v4610 = vlaneseq
        %v4611 = vshrl.u32 %v4610, 7
        %4613 = vset.pattern.permute.xlu0 %v4611
        %4614 = vperm.xlu0 %4613, %v4609
        %v4615 = vpop.permute.xlu0 %4614
        %v4616 = vlaneseq
        %v4617 = vshrl.u32 %v4616, 7
        %v4618 = vadd.s32 %v4617, 8
        %4619 = vset.pattern.permute.xlu0 %v4618
        %4620 = vperm.xlu0 %4619, %v4609
        %v4621 = vpop.permute.xlu0 %4620
        %v4622 = vperm.slane %v839, 4
        %v4623 = vlaneseq
        %v4624 = vshrl.u32 %v4623, 7
        %4626 = vset.pattern.permute.xlu0 %v4624
        %4627 = vperm.xlu0 %4626, %v4622
        %v4628 = vpop.permute.xlu0 %4627
        %v4629 = vlaneseq
        %v4630 = vshrl.u32 %v4629, 7
        %v4631 = vadd.s32 %v4630, 8
        %4632 = vset.pattern.permute.xlu0 %v4631
        %4633 = vperm.xlu0 %4632, %v4622
        %v4634 = vpop.permute.xlu0 %4633
        %v4635 = vperm.slane %v839, 5
        %v4636 = vlaneseq
        %v4637 = vshrl.u32 %v4636, 7
        %4639 = vset.pattern.permute.xlu0 %v4637
        %4640 = vperm.xlu0 %4639, %v4635
        %v4641 = vpop.permute.xlu0 %4640
        %v4642 = vlaneseq
        %v4643 = vshrl.u32 %v4642, 7
        %v4644 = vadd.s32 %v4643, 8
        %4645 = vset.pattern.permute.xlu0 %v4644
        %4646 = vperm.xlu0 %4645, %v4635
        %v4647 = vpop.permute.xlu0 %4646
        %v4648 = vperm.slane %v839, 6
        %v4649 = vlaneseq
        %v4650 = vshrl.u32 %v4649, 7
        %4652 = vset.pattern.permute.xlu0 %v4650
        %4653 = vperm.xlu0 %4652, %v4648
        %v4654 = vpop.permute.xlu0 %4653
        %v4655 = vlaneseq
        %v4656 = vshrl.u32 %v4655, 7
        %v4657 = vadd.s32 %v4656, 8
        %4658 = vset.pattern.permute.xlu0 %v4657
        %4659 = vperm.xlu0 %4658, %v4648
        %v4660 = vpop.permute.xlu0 %4659
        %v4661 = vperm.slane %v839, 7
        %v4662 = vlaneseq
        %v4663 = vshrl.u32 %v4662, 7
        %4665 = vset.pattern.permute.xlu0 %v4663
        %4666 = vperm.xlu0 %4665, %v4661
        %v4667 = vpop.permute.xlu0 %4666
        %v4668 = vlaneseq
        %v4669 = vshrl.u32 %v4668, 7
        %v4670 = vadd.s32 %v4669, 8
        %4671 = vset.pattern.permute.xlu0 %v4670
        %4672 = vperm.xlu0 %4671, %v4661
        %v4673 = vpop.permute.xlu0 %4672
        %v4674 = vperm.slane %v840, 0
        %v4675 = vlaneseq
        %v4676 = vshrl.u32 %v4675, 7
        %4678 = vset.pattern.permute.xlu0 %v4676
        %4679 = vperm.xlu0 %4678, %v4674
        %v4680 = vpop.permute.xlu0 %4679
        %v4681 = vlaneseq
        %v4682 = vshrl.u32 %v4681, 7
        %v4683 = vadd.s32 %v4682, 8
        %4684 = vset.pattern.permute.xlu0 %v4683
        %4685 = vperm.xlu0 %4684, %v4674
        %v4686 = vpop.permute.xlu0 %4685
        %v4687 = vperm.slane %v840, 1
        %v4688 = vlaneseq
        %v4689 = vshrl.u32 %v4688, 7
        %4691 = vset.pattern.permute.xlu0 %v4689
        %4692 = vperm.xlu0 %4691, %v4687
        %v4693 = vpop.permute.xlu0 %4692
        %v4694 = vlaneseq
        %v4695 = vshrl.u32 %v4694, 7
        %v4696 = vadd.s32 %v4695, 8
        %4697 = vset.pattern.permute.xlu0 %v4696
        %4698 = vperm.xlu0 %4697, %v4687
        %v4699 = vpop.permute.xlu0 %4698
        %v4700 = vperm.slane %v840, 2
        %v4701 = vlaneseq
        %v4702 = vshrl.u32 %v4701, 7
        %4704 = vset.pattern.permute.xlu0 %v4702
        %4705 = vperm.xlu0 %4704, %v4700
        %v4706 = vpop.permute.xlu0 %4705
        %v4707 = vlaneseq
        %v4708 = vshrl.u32 %v4707, 7
        %v4709 = vadd.s32 %v4708, 8
        %4710 = vset.pattern.permute.xlu0 %v4709
        %4711 = vperm.xlu0 %4710, %v4700
        %v4712 = vpop.permute.xlu0 %4711
        %v4713 = vperm.slane %v840, 3
        %v4714 = vlaneseq
        %v4715 = vshrl.u32 %v4714, 7
        %4717 = vset.pattern.permute.xlu0 %v4715
        %4718 = vperm.xlu0 %4717, %v4713
        %v4719 = vpop.permute.xlu0 %4718
        %v4720 = vlaneseq
        %v4721 = vshrl.u32 %v4720, 7
        %v4722 = vadd.s32 %v4721, 8
        %4723 = vset.pattern.permute.xlu0 %v4722
        %4724 = vperm.xlu0 %4723, %v4713
        %v4725 = vpop.permute.xlu0 %4724
        %v4726 = vperm.slane %v840, 4
        %v4727 = vlaneseq
        %v4728 = vshrl.u32 %v4727, 7
        %4730 = vset.pattern.permute.xlu0 %v4728
        %4731 = vperm.xlu0 %4730, %v4726
        %v4732 = vpop.permute.xlu0 %4731
        %v4733 = vlaneseq
        %v4734 = vshrl.u32 %v4733, 7
        %v4735 = vadd.s32 %v4734, 8
        %4736 = vset.pattern.permute.xlu0 %v4735
        %4737 = vperm.xlu0 %4736, %v4726
        %v4738 = vpop.permute.xlu0 %4737
        %v4739 = vperm.slane %v840, 5
        %v4740 = vlaneseq
        %v4741 = vshrl.u32 %v4740, 7
        %4743 = vset.pattern.permute.xlu0 %v4741
        %4744 = vperm.xlu0 %4743, %v4739
        %v4745 = vpop.permute.xlu0 %4744
        %v4746 = vlaneseq
        %v4747 = vshrl.u32 %v4746, 7
        %v4748 = vadd.s32 %v4747, 8
        %4749 = vset.pattern.permute.xlu0 %v4748
        %4750 = vperm.xlu0 %4749, %v4739
        %v4751 = vpop.permute.xlu0 %4750
        %v4752 = vperm.slane %v840, 6
        %v4753 = vlaneseq
        %v4754 = vshrl.u32 %v4753, 7
        %4756 = vset.pattern.permute.xlu0 %v4754
        %4757 = vperm.xlu0 %4756, %v4752
        %v4758 = vpop.permute.xlu0 %4757
        %v4759 = vlaneseq
        %v4760 = vshrl.u32 %v4759, 7
        %v4761 = vadd.s32 %v4760, 8
        %4762 = vset.pattern.permute.xlu0 %v4761
        %4763 = vperm.xlu0 %4762, %v4752
        %v4764 = vpop.permute.xlu0 %4763
        %v4765 = vperm.slane %v840, 7
        %v4766 = vlaneseq
        %v4767 = vshrl.u32 %v4766, 7
        %4769 = vset.pattern.permute.xlu0 %v4767
        %4770 = vperm.xlu0 %4769, %v4765
        %v4771 = vpop.permute.xlu0 %4770
        %v4772 = vlaneseq
        %v4773 = vshrl.u32 %v4772, 7
        %v4774 = vadd.s32 %v4773, 8
        %4775 = vset.pattern.permute.xlu0 %v4774
        %4776 = vperm.xlu0 %4775, %v4765
        %v4777 = vpop.permute.xlu0 %4776
        %v4778 = vperm.slane %v841, 0
        %v4779 = vlaneseq
        %v4780 = vshrl.u32 %v4779, 7
        %4782 = vset.pattern.permute.xlu0 %v4780
        %4783 = vperm.xlu0 %4782, %v4778
        %v4784 = vpop.permute.xlu0 %4783
        %v4785 = vlaneseq
        %v4786 = vshrl.u32 %v4785, 7
        %v4787 = vadd.s32 %v4786, 8
        %4788 = vset.pattern.permute.xlu0 %v4787
        %4789 = vperm.xlu0 %4788, %v4778
        %v4790 = vpop.permute.xlu0 %4789
        %v4791 = vperm.slane %v841, 1
        %v4792 = vlaneseq
        %v4793 = vshrl.u32 %v4792, 7
        %4795 = vset.pattern.permute.xlu0 %v4793
        %4796 = vperm.xlu0 %4795, %v4791
        %v4797 = vpop.permute.xlu0 %4796
        %v4798 = vlaneseq
        %v4799 = vshrl.u32 %v4798, 7
        %v4800 = vadd.s32 %v4799, 8
        %4801 = vset.pattern.permute.xlu0 %v4800
        %4802 = vperm.xlu0 %4801, %v4791
        %v4803 = vpop.permute.xlu0 %4802
        %v4804 = vperm.slane %v841, 2
        %v4805 = vlaneseq
        %v4806 = vshrl.u32 %v4805, 7
        %4808 = vset.pattern.permute.xlu0 %v4806
        %4809 = vperm.xlu0 %4808, %v4804
        %v4810 = vpop.permute.xlu0 %4809
        %v4811 = vlaneseq
        %v4812 = vshrl.u32 %v4811, 7
        %v4813 = vadd.s32 %v4812, 8
        %4814 = vset.pattern.permute.xlu0 %v4813
        %4815 = vperm.xlu0 %4814, %v4804
        %v4816 = vpop.permute.xlu0 %4815
        %v4817 = vperm.slane %v841, 3
        %v4818 = vlaneseq
        %v4819 = vshrl.u32 %v4818, 7
        %4821 = vset.pattern.permute.xlu0 %v4819
        %4822 = vperm.xlu0 %4821, %v4817
        %v4823 = vpop.permute.xlu0 %4822
        %v4824 = vlaneseq
        %v4825 = vshrl.u32 %v4824, 7
        %v4826 = vadd.s32 %v4825, 8
        %4827 = vset.pattern.permute.xlu0 %v4826
        %4828 = vperm.xlu0 %4827, %v4817
        %v4829 = vpop.permute.xlu0 %4828
        %v4830 = vperm.slane %v841, 4
        %v4831 = vlaneseq
        %v4832 = vshrl.u32 %v4831, 7
        %4834 = vset.pattern.permute.xlu0 %v4832
        %4835 = vperm.xlu0 %4834, %v4830
        %v4836 = vpop.permute.xlu0 %4835
        %v4837 = vlaneseq
        %v4838 = vshrl.u32 %v4837, 7
        %v4839 = vadd.s32 %v4838, 8
        %4840 = vset.pattern.permute.xlu0 %v4839
        %4841 = vperm.xlu0 %4840, %v4830
        %v4842 = vpop.permute.xlu0 %4841
        %v4843 = vperm.slane %v841, 5
        %v4844 = vlaneseq
        %v4845 = vshrl.u32 %v4844, 7
        %4847 = vset.pattern.permute.xlu0 %v4845
        %4848 = vperm.xlu0 %4847, %v4843
        %v4849 = vpop.permute.xlu0 %4848
        %v4850 = vlaneseq
        %v4851 = vshrl.u32 %v4850, 7
        %v4852 = vadd.s32 %v4851, 8
        %4853 = vset.pattern.permute.xlu0 %v4852
        %4854 = vperm.xlu0 %4853, %v4843
        %v4855 = vpop.permute.xlu0 %4854
        %v4856 = vperm.slane %v841, 6
        %v4857 = vlaneseq
        %v4858 = vshrl.u32 %v4857, 7
        %4860 = vset.pattern.permute.xlu0 %v4858
        %4861 = vperm.xlu0 %4860, %v4856
        %v4862 = vpop.permute.xlu0 %4861
        %v4863 = vlaneseq
        %v4864 = vshrl.u32 %v4863, 7
        %v4865 = vadd.s32 %v4864, 8
        %4866 = vset.pattern.permute.xlu0 %v4865
        %4867 = vperm.xlu0 %4866, %v4856
        %v4868 = vpop.permute.xlu0 %4867
        %v4869 = vperm.slane %v841, 7
        %v4870 = vlaneseq
        %v4871 = vshrl.u32 %v4870, 7
        %4873 = vset.pattern.permute.xlu0 %v4871
        %4874 = vperm.xlu0 %4873, %v4869
        %v4875 = vpop.permute.xlu0 %4874
        %v4876 = vlaneseq
        %v4877 = vshrl.u32 %v4876, 7
        %v4878 = vadd.s32 %v4877, 8
        %4879 = vset.pattern.permute.xlu0 %v4878
        %4880 = vperm.xlu0 %4879, %v4869
        %v4881 = vpop.permute.xlu0 %4880
        %v4882 = vperm.slane %v842, 0
        %v4883 = vlaneseq
        %v4884 = vshrl.u32 %v4883, 7
        %4886 = vset.pattern.permute.xlu0 %v4884
        %4887 = vperm.xlu0 %4886, %v4882
        %v4888 = vpop.permute.xlu0 %4887
        %v4889 = vlaneseq
        %v4890 = vshrl.u32 %v4889, 7
        %v4891 = vadd.s32 %v4890, 8
        %4892 = vset.pattern.permute.xlu0 %v4891
        %4893 = vperm.xlu0 %4892, %v4882
        %v4894 = vpop.permute.xlu0 %4893
        %v4895 = vperm.slane %v842, 1
        %v4896 = vlaneseq
        %v4897 = vshrl.u32 %v4896, 7
        %4899 = vset.pattern.permute.xlu0 %v4897
        %4900 = vperm.xlu0 %4899, %v4895
        %v4901 = vpop.permute.xlu0 %4900
        %v4902 = vlaneseq
        %v4903 = vshrl.u32 %v4902, 7
        %v4904 = vadd.s32 %v4903, 8
        %4905 = vset.pattern.permute.xlu0 %v4904
        %4906 = vperm.xlu0 %4905, %v4895
        %v4907 = vpop.permute.xlu0 %4906
        %v4908 = vperm.slane %v842, 2
        %v4909 = vlaneseq
        %v4910 = vshrl.u32 %v4909, 7
        %4912 = vset.pattern.permute.xlu0 %v4910
        %4913 = vperm.xlu0 %4912, %v4908
        %v4914 = vpop.permute.xlu0 %4913
        %v4915 = vlaneseq
        %v4916 = vshrl.u32 %v4915, 7
        %v4917 = vadd.s32 %v4916, 8
        %4918 = vset.pattern.permute.xlu0 %v4917
        %4919 = vperm.xlu0 %4918, %v4908
        %v4920 = vpop.permute.xlu0 %4919
        %v4921 = vperm.slane %v842, 3
        %v4922 = vlaneseq
        %v4923 = vshrl.u32 %v4922, 7
        %4925 = vset.pattern.permute.xlu0 %v4923
        %4926 = vperm.xlu0 %4925, %v4921
        %v4927 = vpop.permute.xlu0 %4926
        %v4928 = vlaneseq
        %v4929 = vshrl.u32 %v4928, 7
        %v4930 = vadd.s32 %v4929, 8
        %4931 = vset.pattern.permute.xlu0 %v4930
        %4932 = vperm.xlu0 %4931, %v4921
        %v4933 = vpop.permute.xlu0 %4932
        %v4934 = vperm.slane %v842, 4
        %v4935 = vlaneseq
        %v4936 = vshrl.u32 %v4935, 7
        %4938 = vset.pattern.permute.xlu0 %v4936
        %4939 = vperm.xlu0 %4938, %v4934
        %v4940 = vpop.permute.xlu0 %4939
        %v4941 = vlaneseq
        %v4942 = vshrl.u32 %v4941, 7
        %v4943 = vadd.s32 %v4942, 8
        %4944 = vset.pattern.permute.xlu0 %v4943
        %4945 = vperm.xlu0 %4944, %v4934
        %v4946 = vpop.permute.xlu0 %4945
        %v4947 = vperm.slane %v842, 5
        %v4948 = vlaneseq
        %v4949 = vshrl.u32 %v4948, 7
        %4951 = vset.pattern.permute.xlu0 %v4949
        %4952 = vperm.xlu0 %4951, %v4947
        %v4953 = vpop.permute.xlu0 %4952
        %v4954 = vlaneseq
        %v4955 = vshrl.u32 %v4954, 7
        %v4956 = vadd.s32 %v4955, 8
        %4957 = vset.pattern.permute.xlu0 %v4956
        %4958 = vperm.xlu0 %4957, %v4947
        %v4959 = vpop.permute.xlu0 %4958
        %v4960 = vperm.slane %v842, 6
        %v4961 = vlaneseq
        %v4962 = vshrl.u32 %v4961, 7
        %4964 = vset.pattern.permute.xlu0 %v4962
        %4965 = vperm.xlu0 %4964, %v4960
        %v4966 = vpop.permute.xlu0 %4965
        %v4967 = vlaneseq
        %v4968 = vshrl.u32 %v4967, 7
        %v4969 = vadd.s32 %v4968, 8
        %4970 = vset.pattern.permute.xlu0 %v4969
        %4971 = vperm.xlu0 %4970, %v4960
        %v4972 = vpop.permute.xlu0 %4971
        %v4973 = vperm.slane %v842, 7
        %v4974 = vlaneseq
        %v4975 = vshrl.u32 %v4974, 7
        %4977 = vset.pattern.permute.xlu0 %v4975
        %4978 = vperm.xlu0 %4977, %v4973
        %v4979 = vpop.permute.xlu0 %4978
        %v4980 = vlaneseq
        %v4981 = vshrl.u32 %v4980, 7
        %v4982 = vadd.s32 %v4981, 8
        %4983 = vset.pattern.permute.xlu0 %v4982
        %4984 = vperm.xlu0 %4983, %v4973
        %v4985 = vpop.permute.xlu0 %4984
        %v4986 = vperm.slane %v843, 0
        %v4987 = vlaneseq
        %v4988 = vshrl.u32 %v4987, 7
        %4990 = vset.pattern.permute.xlu0 %v4988
        %4991 = vperm.xlu0 %4990, %v4986
        %v4992 = vpop.permute.xlu0 %4991
        %v4993 = vlaneseq
        %v4994 = vshrl.u32 %v4993, 7
        %v4995 = vadd.s32 %v4994, 8
        %4996 = vset.pattern.permute.xlu0 %v4995
        %4997 = vperm.xlu0 %4996, %v4986
        %v4998 = vpop.permute.xlu0 %4997
        %v4999 = vperm.slane %v843, 1
        %v5000 = vlaneseq
        %v5001 = vshrl.u32 %v5000, 7
        %5003 = vset.pattern.permute.xlu0 %v5001
        %5004 = vperm.xlu0 %5003, %v4999
        %v5005 = vpop.permute.xlu0 %5004
        %v5006 = vlaneseq
        %v5007 = vshrl.u32 %v5006, 7
        %v5008 = vadd.s32 %v5007, 8
        %5009 = vset.pattern.permute.xlu0 %v5008
        %5010 = vperm.xlu0 %5009, %v4999
        %v5011 = vpop.permute.xlu0 %5010
        %v5012 = vperm.slane %v843, 2
        %v5013 = vlaneseq
        %v5014 = vshrl.u32 %v5013, 7
        %5016 = vset.pattern.permute.xlu0 %v5014
        %5017 = vperm.xlu0 %5016, %v5012
        %v5018 = vpop.permute.xlu0 %5017
        %v5019 = vlaneseq
        %v5020 = vshrl.u32 %v5019, 7
        %v5021 = vadd.s32 %v5020, 8
        %5022 = vset.pattern.permute.xlu0 %v5021
        %5023 = vperm.xlu0 %5022, %v5012
        %v5024 = vpop.permute.xlu0 %5023
        %v5025 = vperm.slane %v843, 3
        %v5026 = vlaneseq
        %v5027 = vshrl.u32 %v5026, 7
        %5029 = vset.pattern.permute.xlu0 %v5027
        %5030 = vperm.xlu0 %5029, %v5025
        %v5031 = vpop.permute.xlu0 %5030
        %v5032 = vlaneseq
        %v5033 = vshrl.u32 %v5032, 7
        %v5034 = vadd.s32 %v5033, 8
        %5035 = vset.pattern.permute.xlu0 %v5034
        %5036 = vperm.xlu0 %5035, %v5025
        %v5037 = vpop.permute.xlu0 %5036
        %v5038 = vperm.slane %v843, 4
        %v5039 = vlaneseq
        %v5040 = vshrl.u32 %v5039, 7
        %5042 = vset.pattern.permute.xlu0 %v5040
        %5043 = vperm.xlu0 %5042, %v5038
        %v5044 = vpop.permute.xlu0 %5043
        %v5045 = vlaneseq
        %v5046 = vshrl.u32 %v5045, 7
        %v5047 = vadd.s32 %v5046, 8
        %5048 = vset.pattern.permute.xlu0 %v5047
        %5049 = vperm.xlu0 %5048, %v5038
        %v5050 = vpop.permute.xlu0 %5049
        %v5051 = vperm.slane %v843, 5
        %v5052 = vlaneseq
        %v5053 = vshrl.u32 %v5052, 7
        %5055 = vset.pattern.permute.xlu0 %v5053
        %5056 = vperm.xlu0 %5055, %v5051
        %v5057 = vpop.permute.xlu0 %5056
        %v5058 = vlaneseq
        %v5059 = vshrl.u32 %v5058, 7
        %v5060 = vadd.s32 %v5059, 8
        %5061 = vset.pattern.permute.xlu0 %v5060
        %5062 = vperm.xlu0 %5061, %v5051
        %v5063 = vpop.permute.xlu0 %5062
        %v5064 = vperm.slane %v843, 6
        %v5065 = vlaneseq
        %v5066 = vshrl.u32 %v5065, 7
        %5068 = vset.pattern.permute.xlu0 %v5066
        %5069 = vperm.xlu0 %5068, %v5064
        %v5070 = vpop.permute.xlu0 %5069
        %v5071 = vlaneseq
        %v5072 = vshrl.u32 %v5071, 7
        %v5073 = vadd.s32 %v5072, 8
        %5074 = vset.pattern.permute.xlu0 %v5073
        %5075 = vperm.xlu0 %5074, %v5064
        %v5076 = vpop.permute.xlu0 %5075
        %v5077 = vperm.slane %v843, 7
        %v5078 = vlaneseq
        %v5079 = vshrl.u32 %v5078, 7
        %5081 = vset.pattern.permute.xlu0 %v5079
        %5082 = vperm.xlu0 %5081, %v5077
        %v5083 = vpop.permute.xlu0 %5082
        %v5084 = vlaneseq
        %v5085 = vshrl.u32 %v5084, 7
        %v5086 = vadd.s32 %v5085, 8
        %5087 = vset.pattern.permute.xlu0 %v5086
        %5088 = vperm.xlu0 %5087, %v5077
        %v5089 = vpop.permute.xlu0 %5088
        %v5090 = vperm.slane %v844, 0
        %v5091 = vlaneseq
        %v5092 = vshrl.u32 %v5091, 7
        %5094 = vset.pattern.permute.xlu0 %v5092
        %5095 = vperm.xlu0 %5094, %v5090
        %v5096 = vpop.permute.xlu0 %5095
        %v5097 = vlaneseq
        %v5098 = vshrl.u32 %v5097, 7
        %v5099 = vadd.s32 %v5098, 8
        %5100 = vset.pattern.permute.xlu0 %v5099
        %5101 = vperm.xlu0 %5100, %v5090
        %v5102 = vpop.permute.xlu0 %5101
        %v5103 = vperm.slane %v844, 1
        %v5104 = vlaneseq
        %v5105 = vshrl.u32 %v5104, 7
        %5107 = vset.pattern.permute.xlu0 %v5105
        %5108 = vperm.xlu0 %5107, %v5103
        %v5109 = vpop.permute.xlu0 %5108
        %v5110 = vlaneseq
        %v5111 = vshrl.u32 %v5110, 7
        %v5112 = vadd.s32 %v5111, 8
        %5113 = vset.pattern.permute.xlu0 %v5112
        %5114 = vperm.xlu0 %5113, %v5103
        %v5115 = vpop.permute.xlu0 %5114
        %v5116 = vperm.slane %v844, 2
        %v5117 = vlaneseq
        %v5118 = vshrl.u32 %v5117, 7
        %5120 = vset.pattern.permute.xlu0 %v5118
        %5121 = vperm.xlu0 %5120, %v5116
        %v5122 = vpop.permute.xlu0 %5121
        %v5123 = vlaneseq
        %v5124 = vshrl.u32 %v5123, 7
        %v5125 = vadd.s32 %v5124, 8
        %5126 = vset.pattern.permute.xlu0 %v5125
        %5127 = vperm.xlu0 %5126, %v5116
        %v5128 = vpop.permute.xlu0 %5127
        %v5129 = vperm.slane %v844, 3
        %v5130 = vlaneseq
        %v5131 = vshrl.u32 %v5130, 7
        %5133 = vset.pattern.permute.xlu0 %v5131
        %5134 = vperm.xlu0 %5133, %v5129
        %v5135 = vpop.permute.xlu0 %5134
        %v5136 = vlaneseq
        %v5137 = vshrl.u32 %v5136, 7
        %v5138 = vadd.s32 %v5137, 8
        %5139 = vset.pattern.permute.xlu0 %v5138
        %5140 = vperm.xlu0 %5139, %v5129
        %v5141 = vpop.permute.xlu0 %5140
        %v5142 = vperm.slane %v844, 4
        %v5143 = vlaneseq
        %v5144 = vshrl.u32 %v5143, 7
        %5146 = vset.pattern.permute.xlu0 %v5144
        %5147 = vperm.xlu0 %5146, %v5142
        %v5148 = vpop.permute.xlu0 %5147
        %v5149 = vlaneseq
        %v5150 = vshrl.u32 %v5149, 7
        %v5151 = vadd.s32 %v5150, 8
        %5152 = vset.pattern.permute.xlu0 %v5151
        %5153 = vperm.xlu0 %5152, %v5142
        %v5154 = vpop.permute.xlu0 %5153
        %v5155 = vperm.slane %v844, 5
        %v5156 = vlaneseq
        %v5157 = vshrl.u32 %v5156, 7
        %5159 = vset.pattern.permute.xlu0 %v5157
        %5160 = vperm.xlu0 %5159, %v5155
        %v5161 = vpop.permute.xlu0 %5160
        %v5162 = vlaneseq
        %v5163 = vshrl.u32 %v5162, 7
        %v5164 = vadd.s32 %v5163, 8
        %5165 = vset.pattern.permute.xlu0 %v5164
        %5166 = vperm.xlu0 %5165, %v5155
        %v5167 = vpop.permute.xlu0 %5166
        %v5168 = vperm.slane %v844, 6
        %v5169 = vlaneseq
        %v5170 = vshrl.u32 %v5169, 7
        %5172 = vset.pattern.permute.xlu0 %v5170
        %5173 = vperm.xlu0 %5172, %v5168
        %v5174 = vpop.permute.xlu0 %5173
        %v5175 = vlaneseq
        %v5176 = vshrl.u32 %v5175, 7
        %v5177 = vadd.s32 %v5176, 8
        %5178 = vset.pattern.permute.xlu0 %v5177
        %5179 = vperm.xlu0 %5178, %v5168
        %v5180 = vpop.permute.xlu0 %5179
        %v5181 = vperm.slane %v844, 7
        %v5182 = vlaneseq
        %v5183 = vshrl.u32 %v5182, 7
        %5185 = vset.pattern.permute.xlu0 %v5183
        %5186 = vperm.xlu0 %5185, %v5181
        %v5187 = vpop.permute.xlu0 %5186
        %v5188 = vlaneseq
        %v5189 = vshrl.u32 %v5188, 7
        %v5190 = vadd.s32 %v5189, 8
        %5191 = vset.pattern.permute.xlu0 %v5190
        %5192 = vperm.xlu0 %5191, %v5181
        %v5193 = vpop.permute.xlu0 %5192
        %v5194 = vperm.slane %v845, 0
        %v5195 = vlaneseq
        %v5196 = vshrl.u32 %v5195, 7
        %5198 = vset.pattern.permute.xlu0 %v5196
        %5199 = vperm.xlu0 %5198, %v5194
        %v5200 = vpop.permute.xlu0 %5199
        %v5201 = vlaneseq
        %v5202 = vshrl.u32 %v5201, 7
        %v5203 = vadd.s32 %v5202, 8
        %5204 = vset.pattern.permute.xlu0 %v5203
        %5205 = vperm.xlu0 %5204, %v5194
        %v5206 = vpop.permute.xlu0 %5205
        %v5207 = vperm.slane %v845, 1
        %v5208 = vlaneseq
        %v5209 = vshrl.u32 %v5208, 7
        %5211 = vset.pattern.permute.xlu0 %v5209
        %5212 = vperm.xlu0 %5211, %v5207
        %v5213 = vpop.permute.xlu0 %5212
        %v5214 = vlaneseq
        %v5215 = vshrl.u32 %v5214, 7
        %v5216 = vadd.s32 %v5215, 8
        %5217 = vset.pattern.permute.xlu0 %v5216
        %5218 = vperm.xlu0 %5217, %v5207
        %v5219 = vpop.permute.xlu0 %5218
        %v5220 = vperm.slane %v845, 2
        %v5221 = vlaneseq
        %v5222 = vshrl.u32 %v5221, 7
        %5224 = vset.pattern.permute.xlu0 %v5222
        %5225 = vperm.xlu0 %5224, %v5220
        %v5226 = vpop.permute.xlu0 %5225
        %v5227 = vlaneseq
        %v5228 = vshrl.u32 %v5227, 7
        %v5229 = vadd.s32 %v5228, 8
        %5230 = vset.pattern.permute.xlu0 %v5229
        %5231 = vperm.xlu0 %5230, %v5220
        %v5232 = vpop.permute.xlu0 %5231
        %v5233 = vperm.slane %v845, 3
        %v5234 = vlaneseq
        %v5235 = vshrl.u32 %v5234, 7
        %5237 = vset.pattern.permute.xlu0 %v5235
        %5238 = vperm.xlu0 %5237, %v5233
        %v5239 = vpop.permute.xlu0 %5238
        %v5240 = vlaneseq
        %v5241 = vshrl.u32 %v5240, 7
        %v5242 = vadd.s32 %v5241, 8
        %5243 = vset.pattern.permute.xlu0 %v5242
        %5244 = vperm.xlu0 %5243, %v5233
        %v5245 = vpop.permute.xlu0 %5244
        %v5246 = vperm.slane %v845, 4
        %v5247 = vlaneseq
        %v5248 = vshrl.u32 %v5247, 7
        %5250 = vset.pattern.permute.xlu0 %v5248
        %5251 = vperm.xlu0 %5250, %v5246
        %v5252 = vpop.permute.xlu0 %5251
        %v5253 = vlaneseq
        %v5254 = vshrl.u32 %v5253, 7
        %v5255 = vadd.s32 %v5254, 8
        %5256 = vset.pattern.permute.xlu0 %v5255
        %5257 = vperm.xlu0 %5256, %v5246
        %v5258 = vpop.permute.xlu0 %5257
        %v5259 = vperm.slane %v845, 5
        %v5260 = vlaneseq
        %v5261 = vshrl.u32 %v5260, 7
        %5263 = vset.pattern.permute.xlu0 %v5261
        %5264 = vperm.xlu0 %5263, %v5259
        %v5265 = vpop.permute.xlu0 %5264
        %v5266 = vlaneseq
        %v5267 = vshrl.u32 %v5266, 7
        %v5268 = vadd.s32 %v5267, 8
        %5269 = vset.pattern.permute.xlu0 %v5268
        %5270 = vperm.xlu0 %5269, %v5259
        %v5271 = vpop.permute.xlu0 %5270
        %v5272 = vperm.slane %v845, 6
        %v5273 = vlaneseq
        %v5274 = vshrl.u32 %v5273, 7
        %5276 = vset.pattern.permute.xlu0 %v5274
        %5277 = vperm.xlu0 %5276, %v5272
        %v5278 = vpop.permute.xlu0 %5277
        %v5279 = vlaneseq
        %v5280 = vshrl.u32 %v5279, 7
        %v5281 = vadd.s32 %v5280, 8
        %5282 = vset.pattern.permute.xlu0 %v5281
        %5283 = vperm.xlu0 %5282, %v5272
        %v5284 = vpop.permute.xlu0 %5283
        %v5285 = vperm.slane %v845, 7
        %v5286 = vlaneseq
        %v5287 = vshrl.u32 %v5286, 7
        %5289 = vset.pattern.permute.xlu0 %v5287
        %5290 = vperm.xlu0 %5289, %v5285
        %v5291 = vpop.permute.xlu0 %5290
        %v5292 = vlaneseq
        %v5293 = vshrl.u32 %v5292, 7
        %v5294 = vadd.s32 %v5293, 8
        %5295 = vset.pattern.permute.xlu0 %v5294
        %5296 = vperm.xlu0 %5295, %v5285
        %v5297 = vpop.permute.xlu0 %5296
        %v5298 = vperm.slane %v846, 0
        %v5299 = vlaneseq
        %v5300 = vshrl.u32 %v5299, 7
        %5302 = vset.pattern.permute.xlu0 %v5300
        %5303 = vperm.xlu0 %5302, %v5298
        %v5304 = vpop.permute.xlu0 %5303
        %v5305 = vlaneseq
        %v5306 = vshrl.u32 %v5305, 7
        %v5307 = vadd.s32 %v5306, 8
        %5308 = vset.pattern.permute.xlu0 %v5307
        %5309 = vperm.xlu0 %5308, %v5298
        %v5310 = vpop.permute.xlu0 %5309
        %v5311 = vperm.slane %v846, 1
        %v5312 = vlaneseq
        %v5313 = vshrl.u32 %v5312, 7
        %5315 = vset.pattern.permute.xlu0 %v5313
        %5316 = vperm.xlu0 %5315, %v5311
        %v5317 = vpop.permute.xlu0 %5316
        %v5318 = vlaneseq
        %v5319 = vshrl.u32 %v5318, 7
        %v5320 = vadd.s32 %v5319, 8
        %5321 = vset.pattern.permute.xlu0 %v5320
        %5322 = vperm.xlu0 %5321, %v5311
        %v5323 = vpop.permute.xlu0 %5322
        %v5324 = vperm.slane %v846, 2
        %v5325 = vlaneseq
        %v5326 = vshrl.u32 %v5325, 7
        %5328 = vset.pattern.permute.xlu0 %v5326
        %5329 = vperm.xlu0 %5328, %v5324
        %v5330 = vpop.permute.xlu0 %5329
        %v5331 = vlaneseq
        %v5332 = vshrl.u32 %v5331, 7
        %v5333 = vadd.s32 %v5332, 8
        %5334 = vset.pattern.permute.xlu0 %v5333
        %5335 = vperm.xlu0 %5334, %v5324
        %v5336 = vpop.permute.xlu0 %5335
        %v5337 = vperm.slane %v846, 3
        %v5338 = vlaneseq
        %v5339 = vshrl.u32 %v5338, 7
        %5341 = vset.pattern.permute.xlu0 %v5339
        %5342 = vperm.xlu0 %5341, %v5337
        %v5343 = vpop.permute.xlu0 %5342
        %v5344 = vlaneseq
        %v5345 = vshrl.u32 %v5344, 7
        %v5346 = vadd.s32 %v5345, 8
        %5347 = vset.pattern.permute.xlu0 %v5346
        %5348 = vperm.xlu0 %5347, %v5337
        %v5349 = vpop.permute.xlu0 %5348
        %v5350 = vperm.slane %v846, 4
        %v5351 = vlaneseq
        %v5352 = vshrl.u32 %v5351, 7
        %5354 = vset.pattern.permute.xlu0 %v5352
        %5355 = vperm.xlu0 %5354, %v5350
        %v5356 = vpop.permute.xlu0 %5355
        %v5357 = vlaneseq
        %v5358 = vshrl.u32 %v5357, 7
        %v5359 = vadd.s32 %v5358, 8
        %5360 = vset.pattern.permute.xlu0 %v5359
        %5361 = vperm.xlu0 %5360, %v5350
        %v5362 = vpop.permute.xlu0 %5361
        %v5363 = vperm.slane %v846, 5
        %v5364 = vlaneseq
        %v5365 = vshrl.u32 %v5364, 7
        %5367 = vset.pattern.permute.xlu0 %v5365
        %5368 = vperm.xlu0 %5367, %v5363
        %v5369 = vpop.permute.xlu0 %5368
        %v5370 = vlaneseq
        %v5371 = vshrl.u32 %v5370, 7
        %v5372 = vadd.s32 %v5371, 8
        %5373 = vset.pattern.permute.xlu0 %v5372
        %5374 = vperm.xlu0 %5373, %v5363
        %v5375 = vpop.permute.xlu0 %5374
        %v5376 = vperm.slane %v846, 6
        %v5377 = vlaneseq
        %v5378 = vshrl.u32 %v5377, 7
        %5380 = vset.pattern.permute.xlu0 %v5378
        %5381 = vperm.xlu0 %5380, %v5376
        %v5382 = vpop.permute.xlu0 %5381
        %v5383 = vlaneseq
        %v5384 = vshrl.u32 %v5383, 7
        %v5385 = vadd.s32 %v5384, 8
        %5386 = vset.pattern.permute.xlu0 %v5385
        %5387 = vperm.xlu0 %5386, %v5376
        %v5388 = vpop.permute.xlu0 %5387
        %v5389 = vperm.slane %v846, 7
        %v5390 = vlaneseq
        %v5391 = vshrl.u32 %v5390, 7
        %5393 = vset.pattern.permute.xlu0 %v5391
        %5394 = vperm.xlu0 %5393, %v5389
        %v5395 = vpop.permute.xlu0 %5394
        %v5396 = vlaneseq
        %v5397 = vshrl.u32 %v5396, 7
        %v5398 = vadd.s32 %v5397, 8
        %5399 = vset.pattern.permute.xlu0 %v5398
        %5400 = vperm.xlu0 %5399, %v5389
        %v5401 = vpop.permute.xlu0 %5400
        %v5402 = vperm.slane %v847, 0
        %v5403 = vlaneseq
        %v5404 = vshrl.u32 %v5403, 7
        %5406 = vset.pattern.permute.xlu0 %v5404
        %5407 = vperm.xlu0 %5406, %v5402
        %v5408 = vpop.permute.xlu0 %5407
        %v5409 = vlaneseq
        %v5410 = vshrl.u32 %v5409, 7
        %v5411 = vadd.s32 %v5410, 8
        %5412 = vset.pattern.permute.xlu0 %v5411
        %5413 = vperm.xlu0 %5412, %v5402
        %v5414 = vpop.permute.xlu0 %5413
        %v5415 = vperm.slane %v847, 1
        %v5416 = vlaneseq
        %v5417 = vshrl.u32 %v5416, 7
        %5419 = vset.pattern.permute.xlu0 %v5417
        %5420 = vperm.xlu0 %5419, %v5415
        %v5421 = vpop.permute.xlu0 %5420
        %v5422 = vlaneseq
        %v5423 = vshrl.u32 %v5422, 7
        %v5424 = vadd.s32 %v5423, 8
        %5425 = vset.pattern.permute.xlu0 %v5424
        %5426 = vperm.xlu0 %5425, %v5415
        %v5427 = vpop.permute.xlu0 %5426
        %v5428 = vperm.slane %v847, 2
        %v5429 = vlaneseq
        %v5430 = vshrl.u32 %v5429, 7
        %5432 = vset.pattern.permute.xlu0 %v5430
        %5433 = vperm.xlu0 %5432, %v5428
        %v5434 = vpop.permute.xlu0 %5433
        %v5435 = vlaneseq
        %v5436 = vshrl.u32 %v5435, 7
        %v5437 = vadd.s32 %v5436, 8
        %5438 = vset.pattern.permute.xlu0 %v5437
        %5439 = vperm.xlu0 %5438, %v5428
        %v5440 = vpop.permute.xlu0 %5439
        %v5441 = vperm.slane %v847, 3
        %v5442 = vlaneseq
        %v5443 = vshrl.u32 %v5442, 7
        %5445 = vset.pattern.permute.xlu0 %v5443
        %5446 = vperm.xlu0 %5445, %v5441
        %v5447 = vpop.permute.xlu0 %5446
        %v5448 = vlaneseq
        %v5449 = vshrl.u32 %v5448, 7
        %v5450 = vadd.s32 %v5449, 8
        %5451 = vset.pattern.permute.xlu0 %v5450
        %5452 = vperm.xlu0 %5451, %v5441
        %v5453 = vpop.permute.xlu0 %5452
        %v5454 = vperm.slane %v847, 4
        %v5455 = vlaneseq
        %v5456 = vshrl.u32 %v5455, 7
        %5458 = vset.pattern.permute.xlu0 %v5456
        %5459 = vperm.xlu0 %5458, %v5454
        %v5460 = vpop.permute.xlu0 %5459
        %v5461 = vlaneseq
        %v5462 = vshrl.u32 %v5461, 7
        %v5463 = vadd.s32 %v5462, 8
        %5464 = vset.pattern.permute.xlu0 %v5463
        %5465 = vperm.xlu0 %5464, %v5454
        %v5466 = vpop.permute.xlu0 %5465
        %v5467 = vperm.slane %v847, 5
        %v5468 = vlaneseq
        %v5469 = vshrl.u32 %v5468, 7
        %5471 = vset.pattern.permute.xlu0 %v5469
        %5472 = vperm.xlu0 %5471, %v5467
        %v5473 = vpop.permute.xlu0 %5472
        %v5474 = vlaneseq
        %v5475 = vshrl.u32 %v5474, 7
        %v5476 = vadd.s32 %v5475, 8
        %5477 = vset.pattern.permute.xlu0 %v5476
        %5478 = vperm.xlu0 %5477, %v5467
        %v5479 = vpop.permute.xlu0 %5478
        %v5480 = vperm.slane %v847, 6
        %v5481 = vlaneseq
        %v5482 = vshrl.u32 %v5481, 7
        %5484 = vset.pattern.permute.xlu0 %v5482
        %5485 = vperm.xlu0 %5484, %v5480
        %v5486 = vpop.permute.xlu0 %5485
        %v5487 = vlaneseq
        %v5488 = vshrl.u32 %v5487, 7
        %v5489 = vadd.s32 %v5488, 8
        %5490 = vset.pattern.permute.xlu0 %v5489
        %5491 = vperm.xlu0 %5490, %v5480
        %v5492 = vpop.permute.xlu0 %5491
        %v5493 = vperm.slane %v847, 7
        %v5494 = vlaneseq
        %v5495 = vshrl.u32 %v5494, 7
        %5497 = vset.pattern.permute.xlu0 %v5495
        %5498 = vperm.xlu0 %5497, %v5493
        %v5499 = vpop.permute.xlu0 %5498
        %v5500 = vlaneseq
        %v5501 = vshrl.u32 %v5500, 7
        %v5502 = vadd.s32 %v5501, 8
        %5503 = vset.pattern.permute.xlu0 %v5502
        %5504 = vperm.xlu0 %5503, %v5493
        %v5505 = vpop.permute.xlu0 %5504
        %v5506 = vperm.slane %v848, 0
        %v5507 = vlaneseq
        %v5508 = vshrl.u32 %v5507, 7
        %5510 = vset.pattern.permute.xlu0 %v5508
        %5511 = vperm.xlu0 %5510, %v5506
        %v5512 = vpop.permute.xlu0 %5511
        %v5513 = vlaneseq
        %v5514 = vshrl.u32 %v5513, 7
        %v5515 = vadd.s32 %v5514, 8
        %5516 = vset.pattern.permute.xlu0 %v5515
        %5517 = vperm.xlu0 %5516, %v5506
        %v5518 = vpop.permute.xlu0 %5517
        %v5519 = vperm.slane %v848, 1
        %v5520 = vlaneseq
        %v5521 = vshrl.u32 %v5520, 7
        %5523 = vset.pattern.permute.xlu0 %v5521
        %5524 = vperm.xlu0 %5523, %v5519
        %v5525 = vpop.permute.xlu0 %5524
        %v5526 = vlaneseq
        %v5527 = vshrl.u32 %v5526, 7
        %v5528 = vadd.s32 %v5527, 8
        %5529 = vset.pattern.permute.xlu0 %v5528
        %5530 = vperm.xlu0 %5529, %v5519
        %v5531 = vpop.permute.xlu0 %5530
        %v5532 = vperm.slane %v848, 2
        %v5533 = vlaneseq
        %v5534 = vshrl.u32 %v5533, 7
        %5536 = vset.pattern.permute.xlu0 %v5534
        %5537 = vperm.xlu0 %5536, %v5532
        %v5538 = vpop.permute.xlu0 %5537
        %v5539 = vlaneseq
        %v5540 = vshrl.u32 %v5539, 7
        %v5541 = vadd.s32 %v5540, 8
        %5542 = vset.pattern.permute.xlu0 %v5541
        %5543 = vperm.xlu0 %5542, %v5532
        %v5544 = vpop.permute.xlu0 %5543
        %v5545 = vperm.slane %v848, 3
        %v5546 = vlaneseq
        %v5547 = vshrl.u32 %v5546, 7
        %5549 = vset.pattern.permute.xlu0 %v5547
        %5550 = vperm.xlu0 %5549, %v5545
        %v5551 = vpop.permute.xlu0 %5550
        %v5552 = vlaneseq
        %v5553 = vshrl.u32 %v5552, 7
        %v5554 = vadd.s32 %v5553, 8
        %5555 = vset.pattern.permute.xlu0 %v5554
        %5556 = vperm.xlu0 %5555, %v5545
        %v5557 = vpop.permute.xlu0 %5556
        %v5558 = vperm.slane %v848, 4
        %v5559 = vlaneseq
        %v5560 = vshrl.u32 %v5559, 7
        %5562 = vset.pattern.permute.xlu0 %v5560
        %5563 = vperm.xlu0 %5562, %v5558
        %v5564 = vpop.permute.xlu0 %5563
        %v5565 = vlaneseq
        %v5566 = vshrl.u32 %v5565, 7
        %v5567 = vadd.s32 %v5566, 8
        %5568 = vset.pattern.permute.xlu0 %v5567
        %5569 = vperm.xlu0 %5568, %v5558
        %v5570 = vpop.permute.xlu0 %5569
        %v5571 = vperm.slane %v848, 5
        %v5572 = vlaneseq
        %v5573 = vshrl.u32 %v5572, 7
        %5575 = vset.pattern.permute.xlu0 %v5573
        %5576 = vperm.xlu0 %5575, %v5571
        %v5577 = vpop.permute.xlu0 %5576
        %v5578 = vlaneseq
        %v5579 = vshrl.u32 %v5578, 7
        %v5580 = vadd.s32 %v5579, 8
        %5581 = vset.pattern.permute.xlu0 %v5580
        %5582 = vperm.xlu0 %5581, %v5571
        %v5583 = vpop.permute.xlu0 %5582
        %v5584 = vperm.slane %v848, 6
        %v5585 = vlaneseq
        %v5586 = vshrl.u32 %v5585, 7
        %5588 = vset.pattern.permute.xlu0 %v5586
        %5589 = vperm.xlu0 %5588, %v5584
        %v5590 = vpop.permute.xlu0 %5589
        %v5591 = vlaneseq
        %v5592 = vshrl.u32 %v5591, 7
        %v5593 = vadd.s32 %v5592, 8
        %5594 = vset.pattern.permute.xlu0 %v5593
        %5595 = vperm.xlu0 %5594, %v5584
        %v5596 = vpop.permute.xlu0 %5595
        %v5597 = vperm.slane %v848, 7
        %v5598 = vlaneseq
        %v5599 = vshrl.u32 %v5598, 7
        %5601 = vset.pattern.permute.xlu0 %v5599
        %5602 = vperm.xlu0 %5601, %v5597
        %v5603 = vpop.permute.xlu0 %5602
        %v5604 = vlaneseq
        %v5605 = vshrl.u32 %v5604, 7
        %v5606 = vadd.s32 %v5605, 8
        %5607 = vset.pattern.permute.xlu0 %v5606
        %5608 = vperm.xlu0 %5607, %v5597
        %v5609 = vpop.permute.xlu0 %5608
        %v5610 = vperm.slane %v849, 0
        %v5611 = vlaneseq
        %v5612 = vshrl.u32 %v5611, 7
        %5614 = vset.pattern.permute.xlu0 %v5612
        %5615 = vperm.xlu0 %5614, %v5610
        %v5616 = vpop.permute.xlu0 %5615
        %v5617 = vlaneseq
        %v5618 = vshrl.u32 %v5617, 7
        %v5619 = vadd.s32 %v5618, 8
        %5620 = vset.pattern.permute.xlu0 %v5619
        %5621 = vperm.xlu0 %5620, %v5610
        %v5622 = vpop.permute.xlu0 %5621
        %v5623 = vperm.slane %v849, 1
        %v5624 = vlaneseq
        %v5625 = vshrl.u32 %v5624, 7
        %5627 = vset.pattern.permute.xlu0 %v5625
        %5628 = vperm.xlu0 %5627, %v5623
        %v5629 = vpop.permute.xlu0 %5628
        %v5630 = vlaneseq
        %v5631 = vshrl.u32 %v5630, 7
        %v5632 = vadd.s32 %v5631, 8
        %5633 = vset.pattern.permute.xlu0 %v5632
        %5634 = vperm.xlu0 %5633, %v5623
        %v5635 = vpop.permute.xlu0 %5634
        %v5636 = vperm.slane %v849, 2
        %v5637 = vlaneseq
        %v5638 = vshrl.u32 %v5637, 7
        %5640 = vset.pattern.permute.xlu0 %v5638
        %5641 = vperm.xlu0 %5640, %v5636
        %v5642 = vpop.permute.xlu0 %5641
        %v5643 = vlaneseq
        %v5644 = vshrl.u32 %v5643, 7
        %v5645 = vadd.s32 %v5644, 8
        %5646 = vset.pattern.permute.xlu0 %v5645
        %5647 = vperm.xlu0 %5646, %v5636
        %v5648 = vpop.permute.xlu0 %5647
        %v5649 = vperm.slane %v849, 3
        %v5650 = vlaneseq
        %v5651 = vshrl.u32 %v5650, 7
        %5653 = vset.pattern.permute.xlu0 %v5651
        %5654 = vperm.xlu0 %5653, %v5649
        %v5655 = vpop.permute.xlu0 %5654
        %v5656 = vlaneseq
        %v5657 = vshrl.u32 %v5656, 7
        %v5658 = vadd.s32 %v5657, 8
        %5659 = vset.pattern.permute.xlu0 %v5658
        %5660 = vperm.xlu0 %5659, %v5649
        %v5661 = vpop.permute.xlu0 %5660
        %v5662 = vperm.slane %v849, 4
        %v5663 = vlaneseq
        %v5664 = vshrl.u32 %v5663, 7
        %5666 = vset.pattern.permute.xlu0 %v5664
        %5667 = vperm.xlu0 %5666, %v5662
        %v5668 = vpop.permute.xlu0 %5667
        %v5669 = vlaneseq
        %v5670 = vshrl.u32 %v5669, 7
        %v5671 = vadd.s32 %v5670, 8
        %5672 = vset.pattern.permute.xlu0 %v5671
        %5673 = vperm.xlu0 %5672, %v5662
        %v5674 = vpop.permute.xlu0 %5673
        %v5675 = vperm.slane %v849, 5
        %v5676 = vlaneseq
        %v5677 = vshrl.u32 %v5676, 7
        %5679 = vset.pattern.permute.xlu0 %v5677
        %5680 = vperm.xlu0 %5679, %v5675
        %v5681 = vpop.permute.xlu0 %5680
        %v5682 = vlaneseq
        %v5683 = vshrl.u32 %v5682, 7
        %v5684 = vadd.s32 %v5683, 8
        %5685 = vset.pattern.permute.xlu0 %v5684
        %5686 = vperm.xlu0 %5685, %v5675
        %v5687 = vpop.permute.xlu0 %5686
        %v5688 = vperm.slane %v849, 6
        %v5689 = vlaneseq
        %v5690 = vshrl.u32 %v5689, 7
        %5692 = vset.pattern.permute.xlu0 %v5690
        %5693 = vperm.xlu0 %5692, %v5688
        %v5694 = vpop.permute.xlu0 %5693
        %v5695 = vlaneseq
        %v5696 = vshrl.u32 %v5695, 7
        %v5697 = vadd.s32 %v5696, 8
        %5698 = vset.pattern.permute.xlu0 %v5697
        %5699 = vperm.xlu0 %5698, %v5688
        %v5700 = vpop.permute.xlu0 %5699
        %v5701 = vperm.slane %v849, 7
        %v5702 = vlaneseq
        %v5703 = vshrl.u32 %v5702, 7
        %5705 = vset.pattern.permute.xlu0 %v5703
        %5706 = vperm.xlu0 %5705, %v5701
        %v5707 = vpop.permute.xlu0 %5706
        %v5708 = vlaneseq
        %v5709 = vshrl.u32 %v5708, 7
        %v5710 = vadd.s32 %v5709, 8
        %5711 = vset.pattern.permute.xlu0 %v5710
        %5712 = vperm.xlu0 %5711, %v5701
        %v5713 = vpop.permute.xlu0 %5712
        %vm5714 = vcmp.gt.f32.partialorder %v4056, 0.5
        %vm5715 = vcmp.gt.f32.partialorder %v4062, 0.5
        %vm5716 = vcmp.gt.f32.partialorder %v4069, 0.5
        %vm5717 = vcmp.gt.f32.partialorder %v4075, 0.5
        %vm5718 = vcmp.gt.f32.partialorder %v4082, 0.5
        %vm5719 = vcmp.gt.f32.partialorder %v4088, 0.5
        %vm5720 = vcmp.gt.f32.partialorder %v4095, 0.5
        %vm5721 = vcmp.gt.f32.partialorder %v4101, 0.5
        %vm5722 = vcmp.gt.f32.partialorder %v4108, 0.5
        %vm5723 = vcmp.gt.f32.partialorder %v4114, 0.5
        %vm5724 = vcmp.gt.f32.partialorder %v4121, 0.5
        %vm5725 = vcmp.gt.f32.partialorder %v4127, 0.5
        %vm5726 = vcmp.gt.f32.partialorder %v4134, 0.5
        %vm5727 = vcmp.gt.f32.partialorder %v4140, 0.5
        %vm5728 = vcmp.gt.f32.partialorder %v4147, 0.5
        %vm5729 = vcmp.gt.f32.partialorder %v4153, 0.5
        %vm5730 = vcmp.gt.f32.partialorder %v4160, 0.5
        %vm5731 = vcmp.gt.f32.partialorder %v4166, 0.5
        %vm5732 = vcmp.gt.f32.partialorder %v4173, 0.5
        %vm5733 = vcmp.gt.f32.partialorder %v4179, 0.5
        %vm5734 = vcmp.gt.f32.partialorder %v4186, 0.5
        %vm5735 = vcmp.gt.f32.partialorder %v4192, 0.5
        %vm5736 = vcmp.gt.f32.partialorder %v4199, 0.5
        %vm5737 = vcmp.gt.f32.partialorder %v4205, 0.5
        %vm5738 = vcmp.gt.f32.partialorder %v4212, 0.5
        %vm5739 = vcmp.gt.f32.partialorder %v4218, 0.5
        %vm5740 = vcmp.gt.f32.partialorder %v4225, 0.5
        %vm5741 = vcmp.gt.f32.partialorder %v4231, 0.5
        %vm5742 = vcmp.gt.f32.partialorder %v4238, 0.5
        %vm5743 = vcmp.gt.f32.partialorder %v4244, 0.5
        %vm5744 = vcmp.gt.f32.partialorder %v4251, 0.5
        %vm5745 = vcmp.gt.f32.partialorder %v4257, 0.5
        %vm5746 = vcmp.gt.f32.partialorder %v4264, 0.5
        %vm5747 = vcmp.gt.f32.partialorder %v4270, 0.5
        %vm5748 = vcmp.gt.f32.partialorder %v4277, 0.5
        %vm5749 = vcmp.gt.f32.partialorder %v4283, 0.5
        %vm5750 = vcmp.gt.f32.partialorder %v4290, 0.5
        %vm5751 = vcmp.gt.f32.partialorder %v4296, 0.5
        %vm5752 = vcmp.gt.f32.partialorder %v4303, 0.5
        %vm5753 = vcmp.gt.f32.partialorder %v4309, 0.5
        %vm5754 = vcmp.gt.f32.partialorder %v4316, 0.5
        %vm5755 = vcmp.gt.f32.partialorder %v4322, 0.5
        %vm5756 = vcmp.gt.f32.partialorder %v4329, 0.5
        %vm5757 = vcmp.gt.f32.partialorder %v4335, 0.5
        %vm5758 = vcmp.gt.f32.partialorder %v4342, 0.5
        %vm5759 = vcmp.gt.f32.partialorder %v4348, 0.5
        %vm5760 = vcmp.gt.f32.partialorder %v4355, 0.5
        %vm5761 = vcmp.gt.f32.partialorder %v4361, 0.5
        %vm5762 = vcmp.gt.f32.partialorder %v4368, 0.5
        %vm5763 = vcmp.gt.f32.partialorder %v4374, 0.5
        %vm5764 = vcmp.gt.f32.partialorder %v4381, 0.5
        %vm5765 = vcmp.gt.f32.partialorder %v4387, 0.5
        %vm5766 = vcmp.gt.f32.partialorder %v4394, 0.5
        %vm5767 = vcmp.gt.f32.partialorder %v4400, 0.5
        %vm5768 = vcmp.gt.f32.partialorder %v4407, 0.5
        %vm5769 = vcmp.gt.f32.partialorder %v4413, 0.5
        %vm5770 = vcmp.gt.f32.partialorder %v4420, 0.5
        %vm5771 = vcmp.gt.f32.partialorder %v4426, 0.5
        %vm5772 = vcmp.gt.f32.partialorder %v4433, 0.5
        %vm5773 = vcmp.gt.f32.partialorder %v4439, 0.5
        %vm5774 = vcmp.gt.f32.partialorder %v4446, 0.5
        %vm5775 = vcmp.gt.f32.partialorder %v4452, 0.5
        %vm5776 = vcmp.gt.f32.partialorder %v4459, 0.5
        %vm5777 = vcmp.gt.f32.partialorder %v4465, 0.5
        %vm5778 = vcmp.gt.f32.partialorder %v4472, 0.5
        %vm5779 = vcmp.gt.f32.partialorder %v4478, 0.5
        %vm5780 = vcmp.gt.f32.partialorder %v4485, 0.5
        %vm5781 = vcmp.gt.f32.partialorder %v4491, 0.5
        %vm5782 = vcmp.gt.f32.partialorder %v4498, 0.5
        %vm5783 = vcmp.gt.f32.partialorder %v4504, 0.5
        %vm5784 = vcmp.gt.f32.partialorder %v4511, 0.5
        %vm5785 = vcmp.gt.f32.partialorder %v4517, 0.5
        %vm5786 = vcmp.gt.f32.partialorder %v4524, 0.5
        %vm5787 = vcmp.gt.f32.partialorder %v4530, 0.5
        %vm5788 = vcmp.gt.f32.partialorder %v4537, 0.5
        %vm5789 = vcmp.gt.f32.partialorder %v4543, 0.5
        %vm5790 = vcmp.gt.f32.partialorder %v4550, 0.5
        %vm5791 = vcmp.gt.f32.partialorder %v4556, 0.5
        %vm5792 = vcmp.gt.f32.partialorder %v4563, 0.5
        %vm5793 = vcmp.gt.f32.partialorder %v4569, 0.5
        %vm5794 = vcmp.gt.f32.partialorder %v4576, 0.5
        %vm5795 = vcmp.gt.f32.partialorder %v4582, 0.5
        %vm5796 = vcmp.gt.f32.partialorder %v4589, 0.5
        %vm5797 = vcmp.gt.f32.partialorder %v4595, 0.5
        %vm5798 = vcmp.gt.f32.partialorder %v4602, 0.5
        %vm5799 = vcmp.gt.f32.partialorder %v4608, 0.5
        %vm5800 = vcmp.gt.f32.partialorder %v4615, 0.5
        %vm5801 = vcmp.gt.f32.partialorder %v4621, 0.5
        %vm5802 = vcmp.gt.f32.partialorder %v4628, 0.5
        %vm5803 = vcmp.gt.f32.partialorder %v4634, 0.5
        %vm5804 = vcmp.gt.f32.partialorder %v4641, 0.5
        %vm5805 = vcmp.gt.f32.partialorder %v4647, 0.5
        %vm5806 = vcmp.gt.f32.partialorder %v4654, 0.5
        %vm5807 = vcmp.gt.f32.partialorder %v4660, 0.5
        %vm5808 = vcmp.gt.f32.partialorder %v4667, 0.5
        %vm5809 = vcmp.gt.f32.partialorder %v4673, 0.5
        %vm5810 = vcmp.gt.f32.partialorder %v4680, 0.5
        %vm5811 = vcmp.gt.f32.partialorder %v4686, 0.5
        %vm5812 = vcmp.gt.f32.partialorder %v4693, 0.5
        %vm5813 = vcmp.gt.f32.partialorder %v4699, 0.5
        %vm5814 = vcmp.gt.f32.partialorder %v4706, 0.5
        %vm5815 = vcmp.gt.f32.partialorder %v4712, 0.5
        %vm5816 = vcmp.gt.f32.partialorder %v4719, 0.5
        %vm5817 = vcmp.gt.f32.partialorder %v4725, 0.5
        %vm5818 = vcmp.gt.f32.partialorder %v4732, 0.5
        %vm5819 = vcmp.gt.f32.partialorder %v4738, 0.5
        %vm5820 = vcmp.gt.f32.partialorder %v4745, 0.5
        %vm5821 = vcmp.gt.f32.partialorder %v4751, 0.5
        %vm5822 = vcmp.gt.f32.partialorder %v4758, 0.5
        %vm5823 = vcmp.gt.f32.partialorder %v4764, 0.5
        %vm5824 = vcmp.gt.f32.partialorder %v4771, 0.5
        %vm5825 = vcmp.gt.f32.partialorder %v4777, 0.5
        %vm5826 = vcmp.gt.f32.partialorder %v4784, 0.5
        %vm5827 = vcmp.gt.f32.partialorder %v4790, 0.5
        %vm5828 = vcmp.gt.f32.partialorder %v4797, 0.5
        %vm5829 = vcmp.gt.f32.partialorder %v4803, 0.5
        %vm5830 = vcmp.gt.f32.partialorder %v4810, 0.5
        %vm5831 = vcmp.gt.f32.partialorder %v4816, 0.5
        %vm5832 = vcmp.gt.f32.partialorder %v4823, 0.5
        %vm5833 = vcmp.gt.f32.partialorder %v4829, 0.5
        %vm5834 = vcmp.gt.f32.partialorder %v4836, 0.5
        %vm5835 = vcmp.gt.f32.partialorder %v4842, 0.5
        %vm5836 = vcmp.gt.f32.partialorder %v4849, 0.5
        %vm5837 = vcmp.gt.f32.partialorder %v4855, 0.5
        %vm5838 = vcmp.gt.f32.partialorder %v4862, 0.5
        %vm5839 = vcmp.gt.f32.partialorder %v4868, 0.5
        %vm5840 = vcmp.gt.f32.partialorder %v4875, 0.5
        %vm5841 = vcmp.gt.f32.partialorder %v4881, 0.5
        %vm5842 = vcmp.gt.f32.partialorder %v4888, 0.5
        %vm5843 = vcmp.gt.f32.partialorder %v4894, 0.5
        %vm5844 = vcmp.gt.f32.partialorder %v4901, 0.5
        %vm5845 = vcmp.gt.f32.partialorder %v4907, 0.5
        %vm5846 = vcmp.gt.f32.partialorder %v4914, 0.5
        %vm5847 = vcmp.gt.f32.partialorder %v4920, 0.5
        %vm5848 = vcmp.gt.f32.partialorder %v4927, 0.5
        %vm5849 = vcmp.gt.f32.partialorder %v4933, 0.5
        %vm5850 = vcmp.gt.f32.partialorder %v4940, 0.5
        %vm5851 = vcmp.gt.f32.partialorder %v4946, 0.5
        %vm5852 = vcmp.gt.f32.partialorder %v4953, 0.5
        %vm5853 = vcmp.gt.f32.partialorder %v4959, 0.5
        %vm5854 = vcmp.gt.f32.partialorder %v4966, 0.5
        %vm5855 = vcmp.gt.f32.partialorder %v4972, 0.5
        %vm5856 = vcmp.gt.f32.partialorder %v4979, 0.5
        %vm5857 = vcmp.gt.f32.partialorder %v4985, 0.5
        %vm5858 = vcmp.gt.f32.partialorder %v4992, 0.5
        %vm5859 = vcmp.gt.f32.partialorder %v4998, 0.5
        %vm5860 = vcmp.gt.f32.partialorder %v5005, 0.5
        %vm5861 = vcmp.gt.f32.partialorder %v5011, 0.5
        %vm5862 = vcmp.gt.f32.partialorder %v5018, 0.5
        %vm5863 = vcmp.gt.f32.partialorder %v5024, 0.5
        %vm5864 = vcmp.gt.f32.partialorder %v5031, 0.5
        %vm5865 = vcmp.gt.f32.partialorder %v5037, 0.5
        %vm5866 = vcmp.gt.f32.partialorder %v5044, 0.5
        %vm5867 = vcmp.gt.f32.partialorder %v5050, 0.5
        %vm5868 = vcmp.gt.f32.partialorder %v5057, 0.5
        %vm5869 = vcmp.gt.f32.partialorder %v5063, 0.5
        %vm5870 = vcmp.gt.f32.partialorder %v5070, 0.5
        %vm5871 = vcmp.gt.f32.partialorder %v5076, 0.5
        %vm5872 = vcmp.gt.f32.partialorder %v5083, 0.5
        %vm5873 = vcmp.gt.f32.partialorder %v5089, 0.5
        %vm5874 = vcmp.gt.f32.partialorder %v5096, 0.5
        %vm5875 = vcmp.gt.f32.partialorder %v5102, 0.5
        %vm5876 = vcmp.gt.f32.partialorder %v5109, 0.5
        %vm5877 = vcmp.gt.f32.partialorder %v5115, 0.5
        %vm5878 = vcmp.gt.f32.partialorder %v5122, 0.5
        %vm5879 = vcmp.gt.f32.partialorder %v5128, 0.5
        %vm5880 = vcmp.gt.f32.partialorder %v5135, 0.5
        %vm5881 = vcmp.gt.f32.partialorder %v5141, 0.5
        %vm5882 = vcmp.gt.f32.partialorder %v5148, 0.5
        %vm5883 = vcmp.gt.f32.partialorder %v5154, 0.5
        %vm5884 = vcmp.gt.f32.partialorder %v5161, 0.5
        %vm5885 = vcmp.gt.f32.partialorder %v5167, 0.5
        %vm5886 = vcmp.gt.f32.partialorder %v5174, 0.5
        %vm5887 = vcmp.gt.f32.partialorder %v5180, 0.5
        %vm5888 = vcmp.gt.f32.partialorder %v5187, 0.5
        %vm5889 = vcmp.gt.f32.partialorder %v5193, 0.5
        %vm5890 = vcmp.gt.f32.partialorder %v5200, 0.5
        %vm5891 = vcmp.gt.f32.partialorder %v5206, 0.5
        %vm5892 = vcmp.gt.f32.partialorder %v5213, 0.5
        %vm5893 = vcmp.gt.f32.partialorder %v5219, 0.5
        %vm5894 = vcmp.gt.f32.partialorder %v5226, 0.5
        %vm5895 = vcmp.gt.f32.partialorder %v5232, 0.5
        %vm5896 = vcmp.gt.f32.partialorder %v5239, 0.5
        %vm5897 = vcmp.gt.f32.partialorder %v5245, 0.5
        %vm5898 = vcmp.gt.f32.partialorder %v5252, 0.5
        %vm5899 = vcmp.gt.f32.partialorder %v5258, 0.5
        %vm5900 = vcmp.gt.f32.partialorder %v5265, 0.5
        %vm5901 = vcmp.gt.f32.partialorder %v5271, 0.5
        %vm5902 = vcmp.gt.f32.partialorder %v5278, 0.5
        %vm5903 = vcmp.gt.f32.partialorder %v5284, 0.5
        %vm5904 = vcmp.gt.f32.partialorder %v5291, 0.5
        %vm5905 = vcmp.gt.f32.partialorder %v5297, 0.5
        %vm5906 = vcmp.gt.f32.partialorder %v5304, 0.5
        %vm5907 = vcmp.gt.f32.partialorder %v5310, 0.5
        %vm5908 = vcmp.gt.f32.partialorder %v5317, 0.5
        %vm5909 = vcmp.gt.f32.partialorder %v5323, 0.5
        %vm5910 = vcmp.gt.f32.partialorder %v5330, 0.5
        %vm5911 = vcmp.gt.f32.partialorder %v5336, 0.5
        %vm5912 = vcmp.gt.f32.partialorder %v5343, 0.5
        %vm5913 = vcmp.gt.f32.partialorder %v5349, 0.5
        %vm5914 = vcmp.gt.f32.partialorder %v5356, 0.5
        %vm5915 = vcmp.gt.f32.partialorder %v5362, 0.5
        %vm5916 = vcmp.gt.f32.partialorder %v5369, 0.5
        %vm5917 = vcmp.gt.f32.partialorder %v5375, 0.5
        %vm5918 = vcmp.gt.f32.partialorder %v5382, 0.5
        %vm5919 = vcmp.gt.f32.partialorder %v5388, 0.5
        %vm5920 = vcmp.gt.f32.partialorder %v5395, 0.5
        %vm5921 = vcmp.gt.f32.partialorder %v5401, 0.5
        %vm5922 = vcmp.gt.f32.partialorder %v5408, 0.5
        %vm5923 = vcmp.gt.f32.partialorder %v5414, 0.5
        %vm5924 = vcmp.gt.f32.partialorder %v5421, 0.5
        %vm5925 = vcmp.gt.f32.partialorder %v5427, 0.5
        %vm5926 = vcmp.gt.f32.partialorder %v5434, 0.5
        %vm5927 = vcmp.gt.f32.partialorder %v5440, 0.5
        %vm5928 = vcmp.gt.f32.partialorder %v5447, 0.5
        %vm5929 = vcmp.gt.f32.partialorder %v5453, 0.5
        %vm5930 = vcmp.gt.f32.partialorder %v5460, 0.5
        %vm5931 = vcmp.gt.f32.partialorder %v5466, 0.5
        %vm5932 = vcmp.gt.f32.partialorder %v5473, 0.5
        %vm5933 = vcmp.gt.f32.partialorder %v5479, 0.5
        %vm5934 = vcmp.gt.f32.partialorder %v5486, 0.5
        %vm5935 = vcmp.gt.f32.partialorder %v5492, 0.5
        %vm5936 = vcmp.gt.f32.partialorder %v5499, 0.5
        %vm5937 = vcmp.gt.f32.partialorder %v5505, 0.5
        %vm5938 = vcmp.gt.f32.partialorder %v5512, 0.5
        %vm5939 = vcmp.gt.f32.partialorder %v5518, 0.5
        %vm5940 = vcmp.gt.f32.partialorder %v5525, 0.5
        %vm5941 = vcmp.gt.f32.partialorder %v5531, 0.5
        %vm5942 = vcmp.gt.f32.partialorder %v5538, 0.5
        %vm5943 = vcmp.gt.f32.partialorder %v5544, 0.5
        %vm5944 = vcmp.gt.f32.partialorder %v5551, 0.5
        %vm5945 = vcmp.gt.f32.partialorder %v5557, 0.5
        %vm5946 = vcmp.gt.f32.partialorder %v5564, 0.5
        %vm5947 = vcmp.gt.f32.partialorder %v5570, 0.5
        %vm5948 = vcmp.gt.f32.partialorder %v5577, 0.5
        %vm5949 = vcmp.gt.f32.partialorder %v5583, 0.5
        %vm5950 = vcmp.gt.f32.partialorder %v5590, 0.5
        %vm5951 = vcmp.gt.f32.partialorder %v5596, 0.5
        %vm5952 = vcmp.gt.f32.partialorder %v5603, 0.5
        %vm5953 = vcmp.gt.f32.partialorder %v5609, 0.5
        %vm5954 = vcmp.gt.f32.partialorder %v5616, 0.5
        %vm5955 = vcmp.gt.f32.partialorder %v5622, 0.5
        %vm5956 = vcmp.gt.f32.partialorder %v5629, 0.5
        %vm5957 = vcmp.gt.f32.partialorder %v5635, 0.5
        %vm5958 = vcmp.gt.f32.partialorder %v5642, 0.5
        %vm5959 = vcmp.gt.f32.partialorder %v5648, 0.5
        %vm5960 = vcmp.gt.f32.partialorder %v5655, 0.5
        %vm5961 = vcmp.gt.f32.partialorder %v5661, 0.5
        %vm5962 = vcmp.gt.f32.partialorder %v5668, 0.5
        %vm5963 = vcmp.gt.f32.partialorder %v5674, 0.5
        %vm5964 = vcmp.gt.f32.partialorder %v5681, 0.5
        %vm5965 = vcmp.gt.f32.partialorder %v5687, 0.5
        %vm5966 = vcmp.gt.f32.partialorder %v5694, 0.5
        %vm5967 = vcmp.gt.f32.partialorder %v5700, 0.5
        %vm5968 = vcmp.gt.f32.partialorder %v5707, 0.5
        %vm5969 = vcmp.gt.f32.partialorder %v5713, 0.5
        %v5970 = vld [vmem:[%s433] sm:$0xff]
        %v5971 = vld [vmem:[%s433 + $0x8] sm:$0xff]
        %v5972 = vld [vmem:[%s433 + $0x10] sm:$0xff]
        %v5973 = vld [vmem:[%s433 + $0x18] sm:$0xff]
        %v5974 = vld [vmem:[%s433 + $0x20] sm:$0xff]
        %v5975 = vld [vmem:[%s433 + $0x28] sm:$0xff]
        %v5976 = vld [vmem:[%s433 + $0x30] sm:$0xff]
        %v5977 = vld [vmem:[%s433 + $0x38] sm:$0xff]
        %v5978 = vld [vmem:[%s433 + $0x40] sm:$0xff]
        %v5979 = vld [vmem:[%s433 + $0x48] sm:$0xff]
        %v5980 = vld [vmem:[%s433 + $0x50] sm:$0xff]
        %v5981 = vld [vmem:[%s433 + $0x58] sm:$0xff]
        %v5982 = vld [vmem:[%s433 + $0x60] sm:$0xff]
        %v5983 = vld [vmem:[%s433 + $0x68] sm:$0xff]
        %v5984 = vld [vmem:[%s433 + $0x70] sm:$0xff]
        %v5985 = vld [vmem:[%s433 + $0x78] sm:$0xff]
        %v5986 = vld [vmem:[%s433 + $0x80] sm:$0xff]
        %v5987 = vld [vmem:[%s433 + $0x88] sm:$0xff]
        %v5988 = vld [vmem:[%s433 + $0x90] sm:$0xff]
        %v5989 = vld [vmem:[%s433 + $0x98] sm:$0xff]
        %v5990 = vld [vmem:[%s433 + $0xa0] sm:$0xff]
        %v5991 = vld [vmem:[%s433 + $0xa8] sm:$0xff]
        %v5992 = vld [vmem:[%s433 + $0xb0] sm:$0xff]
        %v5993 = vld [vmem:[%s433 + $0xb8] sm:$0xff]
        %v5994 = vld [vmem:[%s433 + $0xc0] sm:$0xff]
        %v5995 = vld [vmem:[%s433 + $0xc8] sm:$0xff]
        %v5996 = vld [vmem:[%s433 + $0xd0] sm:$0xff]
        %v5997 = vld [vmem:[%s433 + $0xd8] sm:$0xff]
        %v5998 = vld [vmem:[%s433 + $0xe0] sm:$0xff]
        %v5999 = vld [vmem:[%s433 + $0xe8] sm:$0xff]
        %v6000 = vld [vmem:[%s433 + $0xf0] sm:$0xff]
        %v6001 = vld [vmem:[%s433 + $0xf8] sm:$0xff]
        %v6002 = vld [vmem:[%s433 + $0x100] sm:$0xff]
        %v6003 = vld [vmem:[%s433 + $0x108] sm:$0xff]
        %v6004 = vld [vmem:[%s433 + $0x110] sm:$0xff]
        %v6005 = vld [vmem:[%s433 + $0x118] sm:$0xff]
        %v6006 = vld [vmem:[%s433 + $0x120] sm:$0xff]
        %v6007 = vld [vmem:[%s433 + $0x128] sm:$0xff]
        %v6008 = vld [vmem:[%s433 + $0x130] sm:$0xff]
        %v6009 = vld [vmem:[%s433 + $0x138] sm:$0xff]
        %v6010 = vld [vmem:[%s433 + $0x140] sm:$0xff]
        %v6011 = vld [vmem:[%s433 + $0x148] sm:$0xff]
        %v6012 = vld [vmem:[%s433 + $0x150] sm:$0xff]
        %v6013 = vld [vmem:[%s433 + $0x158] sm:$0xff]
        %v6014 = vld [vmem:[%s433 + $0x160] sm:$0xff]
        %v6015 = vld [vmem:[%s433 + $0x168] sm:$0xff]
        %v6016 = vld [vmem:[%s433 + $0x170] sm:$0xff]
        %v6017 = vld [vmem:[%s433 + $0x178] sm:$0xff]
        %v6018 = vld [vmem:[%s433 + $0x180] sm:$0xff]
        %v6019 = vld [vmem:[%s433 + $0x188] sm:$0xff]
        %v6020 = vld [vmem:[%s433 + $0x190] sm:$0xff]
        %v6021 = vld [vmem:[%s433 + $0x198] sm:$0xff]
        %v6022 = vld [vmem:[%s433 + $0x1a0] sm:$0xff]
        %v6023 = vld [vmem:[%s433 + $0x1a8] sm:$0xff]
        %v6024 = vld [vmem:[%s433 + $0x1b0] sm:$0xff]
        %v6025 = vld [vmem:[%s433 + $0x1b8] sm:$0xff]
        %v6026 = vld [vmem:[%s433 + $0x1c0] sm:$0xff]
        %v6027 = vld [vmem:[%s433 + $0x1c8] sm:$0xff]
        %v6028 = vld [vmem:[%s433 + $0x1d0] sm:$0xff]
        %v6029 = vld [vmem:[%s433 + $0x1d8] sm:$0xff]
        %v6030 = vld [vmem:[%s433 + $0x1e0] sm:$0xff]
        %v6031 = vld [vmem:[%s433 + $0x1e8] sm:$0xff]
        %v6032 = vld [vmem:[%s433 + $0x1f0] sm:$0xff]
        %v6033 = vld [vmem:[%s433 + $0x1f8] sm:$0xff]
        %v6034 = vld [vmem:[%s433 + $0x200] sm:$0xff]
        %v6035 = vld [vmem:[%s433 + $0x208] sm:$0xff]
        %v6036 = vld [vmem:[%s433 + $0x210] sm:$0xff]
        %v6037 = vld [vmem:[%s433 + $0x218] sm:$0xff]
        %v6038 = vld [vmem:[%s433 + $0x220] sm:$0xff]
        %v6039 = vld [vmem:[%s433 + $0x228] sm:$0xff]
        %v6040 = vld [vmem:[%s433 + $0x230] sm:$0xff]
        %v6041 = vld [vmem:[%s433 + $0x238] sm:$0xff]
        %v6042 = vld [vmem:[%s433 + $0x240] sm:$0xff]
        %v6043 = vld [vmem:[%s433 + $0x248] sm:$0xff]
        %v6044 = vld [vmem:[%s433 + $0x250] sm:$0xff]
        %v6045 = vld [vmem:[%s433 + $0x258] sm:$0xff]
        %v6046 = vld [vmem:[%s433 + $0x260] sm:$0xff]
        %v6047 = vld [vmem:[%s433 + $0x268] sm:$0xff]
        %v6048 = vld [vmem:[%s433 + $0x270] sm:$0xff]
        %v6049 = vld [vmem:[%s433 + $0x278] sm:$0xff]
        %v6050 = vld [vmem:[%s433 + $0x280] sm:$0xff]
        %v6051 = vld [vmem:[%s433 + $0x288] sm:$0xff]
        %v6052 = vld [vmem:[%s433 + $0x290] sm:$0xff]
        %v6053 = vld [vmem:[%s433 + $0x298] sm:$0xff]
        %v6054 = vld [vmem:[%s433 + $0x2a0] sm:$0xff]
        %v6055 = vld [vmem:[%s433 + $0x2a8] sm:$0xff]
        %v6056 = vld [vmem:[%s433 + $0x2b0] sm:$0xff]
        %v6057 = vld [vmem:[%s433 + $0x2b8] sm:$0xff]
        %v6058 = vld [vmem:[%s433 + $0x2c0] sm:$0xff]
        %v6059 = vld [vmem:[%s433 + $0x2c8] sm:$0xff]
        %v6060 = vld [vmem:[%s433 + $0x2d0] sm:$0xff]
        %v6061 = vld [vmem:[%s433 + $0x2d8] sm:$0xff]
        %v6062 = vld [vmem:[%s433 + $0x2e0] sm:$0xff]
        %v6063 = vld [vmem:[%s433 + $0x2e8] sm:$0xff]
        %v6064 = vld [vmem:[%s433 + $0x2f0] sm:$0xff]
        %v6065 = vld [vmem:[%s433 + $0x2f8] sm:$0xff]
        %v6066 = vld [vmem:[%s433 + $0x300] sm:$0xff]
        %v6067 = vld [vmem:[%s433 + $0x308] sm:$0xff]
        %v6068 = vld [vmem:[%s433 + $0x310] sm:$0xff]
        %v6069 = vld [vmem:[%s433 + $0x318] sm:$0xff]
        %v6070 = vld [vmem:[%s433 + $0x320] sm:$0xff]
        %v6071 = vld [vmem:[%s433 + $0x328] sm:$0xff]
        %v6072 = vld [vmem:[%s433 + $0x330] sm:$0xff]
        %v6073 = vld [vmem:[%s433 + $0x338] sm:$0xff]
        %v6074 = vld [vmem:[%s433 + $0x340] sm:$0xff]
        %v6075 = vld [vmem:[%s433 + $0x348] sm:$0xff]
        %v6076 = vld [vmem:[%s433 + $0x350] sm:$0xff]
        %v6077 = vld [vmem:[%s433 + $0x358] sm:$0xff]
        %v6078 = vld [vmem:[%s433 + $0x360] sm:$0xff]
        %v6079 = vld [vmem:[%s433 + $0x368] sm:$0xff]
        %v6080 = vld [vmem:[%s433 + $0x370] sm:$0xff]
        %v6081 = vld [vmem:[%s433 + $0x378] sm:$0xff]
        %v6082 = vld [vmem:[%s433 + $0x380] sm:$0xff]
        %v6083 = vld [vmem:[%s433 + $0x388] sm:$0xff]
        %v6084 = vld [vmem:[%s433 + $0x390] sm:$0xff]
        %v6085 = vld [vmem:[%s433 + $0x398] sm:$0xff]
        %v6086 = vld [vmem:[%s433 + $0x3a0] sm:$0xff]
        %v6087 = vld [vmem:[%s433 + $0x3a8] sm:$0xff]
        %v6088 = vld [vmem:[%s433 + $0x3b0] sm:$0xff]
        %v6089 = vld [vmem:[%s433 + $0x3b8] sm:$0xff]
        %v6090 = vld [vmem:[%s433 + $0x3c0] sm:$0xff]
        %v6091 = vld [vmem:[%s433 + $0x3c8] sm:$0xff]
        %v6092 = vld [vmem:[%s433 + $0x3d0] sm:$0xff]
        %v6093 = vld [vmem:[%s433 + $0x3d8] sm:$0xff]
        %v6094 = vld [vmem:[%s433 + $0x3e0] sm:$0xff]
        %v6095 = vld [vmem:[%s433 + $0x3e8] sm:$0xff]
        %v6096 = vld [vmem:[%s433 + $0x3f0] sm:$0xff]
        %v6097 = vld [vmem:[%s433 + $0x3f8] sm:$0xff]
        %v6098 = vld [vmem:[%s433 + $0x400] sm:$0xff]
        %v6099 = vld [vmem:[%s433 + $0x408] sm:$0xff]
        %v6100 = vld [vmem:[%s433 + $0x410] sm:$0xff]
        %v6101 = vld [vmem:[%s433 + $0x418] sm:$0xff]
        %v6102 = vld [vmem:[%s433 + $0x420] sm:$0xff]
        %v6103 = vld [vmem:[%s433 + $0x428] sm:$0xff]
        %v6104 = vld [vmem:[%s433 + $0x430] sm:$0xff]
        %v6105 = vld [vmem:[%s433 + $0x438] sm:$0xff]
        %v6106 = vld [vmem:[%s433 + $0x440] sm:$0xff]
        %v6107 = vld [vmem:[%s433 + $0x448] sm:$0xff]
        %v6108 = vld [vmem:[%s433 + $0x450] sm:$0xff]
        %v6109 = vld [vmem:[%s433 + $0x458] sm:$0xff]
        %v6110 = vld [vmem:[%s433 + $0x460] sm:$0xff]
        %v6111 = vld [vmem:[%s433 + $0x468] sm:$0xff]
        %v6112 = vld [vmem:[%s433 + $0x470] sm:$0xff]
        %v6113 = vld [vmem:[%s433 + $0x478] sm:$0xff]
        %v6114 = vld [vmem:[%s433 + $0x480] sm:$0xff]
        %v6115 = vld [vmem:[%s433 + $0x488] sm:$0xff]
        %v6116 = vld [vmem:[%s433 + $0x490] sm:$0xff]
        %v6117 = vld [vmem:[%s433 + $0x498] sm:$0xff]
        %v6118 = vld [vmem:[%s433 + $0x4a0] sm:$0xff]
        %v6119 = vld [vmem:[%s433 + $0x4a8] sm:$0xff]
        %v6120 = vld [vmem:[%s433 + $0x4b0] sm:$0xff]
        %v6121 = vld [vmem:[%s433 + $0x4b8] sm:$0xff]
        %v6122 = vld [vmem:[%s433 + $0x4c0] sm:$0xff]
        %v6123 = vld [vmem:[%s433 + $0x4c8] sm:$0xff]
        %v6124 = vld [vmem:[%s433 + $0x4d0] sm:$0xff]
        %v6125 = vld [vmem:[%s433 + $0x4d8] sm:$0xff]
        %v6126 = vld [vmem:[%s433 + $0x4e0] sm:$0xff]
        %v6127 = vld [vmem:[%s433 + $0x4e8] sm:$0xff]
        %v6128 = vld [vmem:[%s433 + $0x4f0] sm:$0xff]
        %v6129 = vld [vmem:[%s433 + $0x4f8] sm:$0xff]
        %v6130 = vld [vmem:[%s433 + $0x500] sm:$0xff]
        %v6131 = vld [vmem:[%s433 + $0x508] sm:$0xff]
        %v6132 = vld [vmem:[%s433 + $0x510] sm:$0xff]
        %v6133 = vld [vmem:[%s433 + $0x518] sm:$0xff]
        %v6134 = vld [vmem:[%s433 + $0x520] sm:$0xff]
        %v6135 = vld [vmem:[%s433 + $0x528] sm:$0xff]
        %v6136 = vld [vmem:[%s433 + $0x530] sm:$0xff]
        %v6137 = vld [vmem:[%s433 + $0x538] sm:$0xff]
        %v6138 = vld [vmem:[%s433 + $0x540] sm:$0xff]
        %v6139 = vld [vmem:[%s433 + $0x548] sm:$0xff]
        %v6140 = vld [vmem:[%s433 + $0x550] sm:$0xff]
        %v6141 = vld [vmem:[%s433 + $0x558] sm:$0xff]
        %v6142 = vld [vmem:[%s433 + $0x560] sm:$0xff]
        %v6143 = vld [vmem:[%s433 + $0x568] sm:$0xff]
        %v6144 = vld [vmem:[%s433 + $0x570] sm:$0xff]
        %v6145 = vld [vmem:[%s433 + $0x578] sm:$0xff]
        %v6146 = vld [vmem:[%s433 + $0x580] sm:$0xff]
        %v6147 = vld [vmem:[%s433 + $0x588] sm:$0xff]
        %v6148 = vld [vmem:[%s433 + $0x590] sm:$0xff]
        %v6149 = vld [vmem:[%s433 + $0x598] sm:$0xff]
        %v6150 = vld [vmem:[%s433 + $0x5a0] sm:$0xff]
        %v6151 = vld [vmem:[%s433 + $0x5a8] sm:$0xff]
        %v6152 = vld [vmem:[%s433 + $0x5b0] sm:$0xff]
        %v6153 = vld [vmem:[%s433 + $0x5b8] sm:$0xff]
        %v6154 = vld [vmem:[%s433 + $0x5c0] sm:$0xff]
        %v6155 = vld [vmem:[%s433 + $0x5c8] sm:$0xff]
        %v6156 = vld [vmem:[%s433 + $0x5d0] sm:$0xff]
        %v6157 = vld [vmem:[%s433 + $0x5d8] sm:$0xff]
        %v6158 = vld [vmem:[%s433 + $0x5e0] sm:$0xff]
        %v6159 = vld [vmem:[%s433 + $0x5e8] sm:$0xff]
        %v6160 = vld [vmem:[%s433 + $0x5f0] sm:$0xff]
        %v6161 = vld [vmem:[%s433 + $0x5f8] sm:$0xff]
        %v6162 = vld [vmem:[%s433 + $0x600] sm:$0xff]
        %v6163 = vld [vmem:[%s433 + $0x608] sm:$0xff]
        %v6164 = vld [vmem:[%s433 + $0x610] sm:$0xff]
        %v6165 = vld [vmem:[%s433 + $0x618] sm:$0xff]
        %v6166 = vld [vmem:[%s433 + $0x620] sm:$0xff]
        %v6167 = vld [vmem:[%s433 + $0x628] sm:$0xff]
        %v6168 = vld [vmem:[%s433 + $0x630] sm:$0xff]
        %v6169 = vld [vmem:[%s433 + $0x638] sm:$0xff]
        %v6170 = vld [vmem:[%s433 + $0x640] sm:$0xff]
        %v6171 = vld [vmem:[%s433 + $0x648] sm:$0xff]
        %v6172 = vld [vmem:[%s433 + $0x650] sm:$0xff]
        %v6173 = vld [vmem:[%s433 + $0x658] sm:$0xff]
        %v6174 = vld [vmem:[%s433 + $0x660] sm:$0xff]
        %v6175 = vld [vmem:[%s433 + $0x668] sm:$0xff]
        %v6176 = vld [vmem:[%s433 + $0x670] sm:$0xff]
        %v6177 = vld [vmem:[%s433 + $0x678] sm:$0xff]
        %v6178 = vld [vmem:[%s433 + $0x680] sm:$0xff]
        %v6179 = vld [vmem:[%s433 + $0x688] sm:$0xff]
        %v6180 = vld [vmem:[%s433 + $0x690] sm:$0xff]
        %v6181 = vld [vmem:[%s433 + $0x698] sm:$0xff]
        %v6182 = vld [vmem:[%s433 + $0x6a0] sm:$0xff]
        %v6183 = vld [vmem:[%s433 + $0x6a8] sm:$0xff]
        %v6184 = vld [vmem:[%s433 + $0x6b0] sm:$0xff]
        %v6185 = vld [vmem:[%s433 + $0x6b8] sm:$0xff]
        %v6186 = vld [vmem:[%s433 + $0x6c0] sm:$0xff]
        %v6187 = vld [vmem:[%s433 + $0x6c8] sm:$0xff]
        %v6188 = vld [vmem:[%s433 + $0x6d0] sm:$0xff]
        %v6189 = vld [vmem:[%s433 + $0x6d8] sm:$0xff]
        %v6190 = vld [vmem:[%s433 + $0x6e0] sm:$0xff]
        %v6191 = vld [vmem:[%s433 + $0x6e8] sm:$0xff]
        %v6192 = vld [vmem:[%s433 + $0x6f0] sm:$0xff]
        %v6193 = vld [vmem:[%s433 + $0x6f8] sm:$0xff]
        %v6194 = vld [vmem:[%s433 + $0x700] sm:$0xff]
        %v6195 = vld [vmem:[%s433 + $0x708] sm:$0xff]
        %v6196 = vld [vmem:[%s433 + $0x710] sm:$0xff]
        %v6197 = vld [vmem:[%s433 + $0x718] sm:$0xff]
        %v6198 = vld [vmem:[%s433 + $0x720] sm:$0xff]
        %v6199 = vld [vmem:[%s433 + $0x728] sm:$0xff]
        %v6200 = vld [vmem:[%s433 + $0x730] sm:$0xff]
        %v6201 = vld [vmem:[%s433 + $0x738] sm:$0xff]
        %v6202 = vld [vmem:[%s433 + $0x740] sm:$0xff]
        %v6203 = vld [vmem:[%s433 + $0x748] sm:$0xff]
        %v6204 = vld [vmem:[%s433 + $0x750] sm:$0xff]
        %v6205 = vld [vmem:[%s433 + $0x758] sm:$0xff]
        %v6206 = vld [vmem:[%s433 + $0x760] sm:$0xff]
        %v6207 = vld [vmem:[%s433 + $0x768] sm:$0xff]
        %v6208 = vld [vmem:[%s433 + $0x770] sm:$0xff]
        %v6209 = vld [vmem:[%s433 + $0x778] sm:$0xff]
        %v6210 = vld [vmem:[%s433 + $0x780] sm:$0xff]
        %v6211 = vld [vmem:[%s433 + $0x788] sm:$0xff]
        %v6212 = vld [vmem:[%s433 + $0x790] sm:$0xff]
        %v6213 = vld [vmem:[%s433 + $0x798] sm:$0xff]
        %v6214 = vld [vmem:[%s433 + $0x7a0] sm:$0xff]
        %v6215 = vld [vmem:[%s433 + $0x7a8] sm:$0xff]
        %v6216 = vld [vmem:[%s433 + $0x7b0] sm:$0xff]
        %v6217 = vld [vmem:[%s433 + $0x7b8] sm:$0xff]
        %v6218 = vld [vmem:[%s433 + $0x7c0] sm:$0xff]
        %v6219 = vld [vmem:[%s433 + $0x7c8] sm:$0xff]
        %v6220 = vld [vmem:[%s433 + $0x7d0] sm:$0xff]
        %v6221 = vld [vmem:[%s433 + $0x7d8] sm:$0xff]
        %v6222 = vld [vmem:[%s433 + $0x7e0] sm:$0xff]
        %v6223 = vld [vmem:[%s433 + $0x7e8] sm:$0xff]
        %v6224 = vld [vmem:[%s433 + $0x7f0] sm:$0xff]
        %v6225 = vld [vmem:[%s433 + $0x7f8] sm:$0xff]
        %v6226 = vsel %vm5714, 1, 0
        %v6227 = vsel %vm5715, 1, 0
        %v6228 = vsel %vm5716, 1, 0
        %v6229 = vsel %vm5717, 1, 0
        %v6230 = vsel %vm5718, 1, 0
        %v6231 = vsel %vm5719, 1, 0
        %v6232 = vsel %vm5720, 1, 0
        %v6233 = vsel %vm5721, 1, 0
        %v6234 = vsel %vm5722, 1, 0
        %v6235 = vsel %vm5723, 1, 0
        %v6236 = vsel %vm5724, 1, 0
        %v6237 = vsel %vm5725, 1, 0
        %v6238 = vsel %vm5726, 1, 0
        %v6239 = vsel %vm5727, 1, 0
        %v6240 = vsel %vm5728, 1, 0
        %v6241 = vsel %vm5729, 1, 0
        %v6242 = vsel %vm5730, 1, 0
        %v6243 = vsel %vm5731, 1, 0
        %v6244 = vsel %vm5732, 1, 0
        %v6245 = vsel %vm5733, 1, 0
        %v6246 = vsel %vm5734, 1, 0
        %v6247 = vsel %vm5735, 1, 0
        %v6248 = vsel %vm5736, 1, 0
        %v6249 = vsel %vm5737, 1, 0
        %v6250 = vsel %vm5738, 1, 0
        %v6251 = vsel %vm5739, 1, 0
        %v6252 = vsel %vm5740, 1, 0
        %v6253 = vsel %vm5741, 1, 0
        %v6254 = vsel %vm5742, 1, 0
        %v6255 = vsel %vm5743, 1, 0
        %v6256 = vsel %vm5744, 1, 0
        %v6257 = vsel %vm5745, 1, 0
        %v6258 = vsel %vm5746, 1, 0
        %v6259 = vsel %vm5747, 1, 0
        %v6260 = vsel %vm5748, 1, 0
        %v6261 = vsel %vm5749, 1, 0
        %v6262 = vsel %vm5750, 1, 0
        %v6263 = vsel %vm5751, 1, 0
        %v6264 = vsel %vm5752, 1, 0
        %v6265 = vsel %vm5753, 1, 0
        %v6266 = vsel %vm5754, 1, 0
        %v6267 = vsel %vm5755, 1, 0
        %v6268 = vsel %vm5756, 1, 0
        %v6269 = vsel %vm5757, 1, 0
        %v6270 = vsel %vm5758, 1, 0
        %v6271 = vsel %vm5759, 1, 0
        %v6272 = vsel %vm5760, 1, 0
        %v6273 = vsel %vm5761, 1, 0
        %v6274 = vsel %vm5762, 1, 0
        %v6275 = vsel %vm5763, 1, 0
        %v6276 = vsel %vm5764, 1, 0
        %v6277 = vsel %vm5765, 1, 0
        %v6278 = vsel %vm5766, 1, 0
        %v6279 = vsel %vm5767, 1, 0
        %v6280 = vsel %vm5768, 1, 0
        %v6281 = vsel %vm5769, 1, 0
        %v6282 = vsel %vm5770, 1, 0
        %v6283 = vsel %vm5771, 1, 0
        %v6284 = vsel %vm5772, 1, 0
        %v6285 = vsel %vm5773, 1, 0
        %v6286 = vsel %vm5774, 1, 0
        %v6287 = vsel %vm5775, 1, 0
        %v6288 = vsel %vm5776, 1, 0
        %v6289 = vsel %vm5777, 1, 0
        %v6290 = vsel %vm5778, 1, 0
        %v6291 = vsel %vm5779, 1, 0
        %v6292 = vsel %vm5780, 1, 0
        %v6293 = vsel %vm5781, 1, 0
        %v6294 = vsel %vm5782, 1, 0
        %v6295 = vsel %vm5783, 1, 0
        %v6296 = vsel %vm5784, 1, 0
        %v6297 = vsel %vm5785, 1, 0
        %v6298 = vsel %vm5786, 1, 0
        %v6299 = vsel %vm5787, 1, 0
        %v6300 = vsel %vm5788, 1, 0
        %v6301 = vsel %vm5789, 1, 0
        %v6302 = vsel %vm5790, 1, 0
        %v6303 = vsel %vm5791, 1, 0
        %v6304 = vsel %vm5792, 1, 0
        %v6305 = vsel %vm5793, 1, 0
        %v6306 = vsel %vm5794, 1, 0
        %v6307 = vsel %vm5795, 1, 0
        %v6308 = vsel %vm5796, 1, 0
        %v6309 = vsel %vm5797, 1, 0
        %v6310 = vsel %vm5798, 1, 0
        %v6311 = vsel %vm5799, 1, 0
        %v6312 = vsel %vm5800, 1, 0
        %v6313 = vsel %vm5801, 1, 0
        %v6314 = vsel %vm5802, 1, 0
        %v6315 = vsel %vm5803, 1, 0
        %v6316 = vsel %vm5804, 1, 0
        %v6317 = vsel %vm5805, 1, 0
        %v6318 = vsel %vm5806, 1, 0
        %v6319 = vsel %vm5807, 1, 0
        %v6320 = vsel %vm5808, 1, 0
        %v6321 = vsel %vm5809, 1, 0
        %v6322 = vsel %vm5810, 1, 0
        %v6323 = vsel %vm5811, 1, 0
        %v6324 = vsel %vm5812, 1, 0
        %v6325 = vsel %vm5813, 1, 0
        %v6326 = vsel %vm5814, 1, 0
        %v6327 = vsel %vm5815, 1, 0
        %v6328 = vsel %vm5816, 1, 0
        %v6329 = vsel %vm5817, 1, 0
        %v6330 = vsel %vm5818, 1, 0
        %v6331 = vsel %vm5819, 1, 0
        %v6332 = vsel %vm5820, 1, 0
        %v6333 = vsel %vm5821, 1, 0
        %v6334 = vsel %vm5822, 1, 0
        %v6335 = vsel %vm5823, 1, 0
        %v6336 = vsel %vm5824, 1, 0
        %v6337 = vsel %vm5825, 1, 0
        %v6338 = vsel %vm5826, 1, 0
        %v6339 = vsel %vm5827, 1, 0
        %v6340 = vsel %vm5828, 1, 0
        %v6341 = vsel %vm5829, 1, 0
        %v6342 = vsel %vm5830, 1, 0
        %v6343 = vsel %vm5831, 1, 0
        %v6344 = vsel %vm5832, 1, 0
        %v6345 = vsel %vm5833, 1, 0
        %v6346 = vsel %vm5834, 1, 0
        %v6347 = vsel %vm5835, 1, 0
        %v6348 = vsel %vm5836, 1, 0
        %v6349 = vsel %vm5837, 1, 0
        %v6350 = vsel %vm5838, 1, 0
        %v6351 = vsel %vm5839, 1, 0
        %v6352 = vsel %vm5840, 1, 0
        %v6353 = vsel %vm5841, 1, 0
        %v6354 = vsel %vm5842, 1, 0
        %v6355 = vsel %vm5843, 1, 0
        %v6356 = vsel %vm5844, 1, 0
        %v6357 = vsel %vm5845, 1, 0
        %v6358 = vsel %vm5846, 1, 0
        %v6359 = vsel %vm5847, 1, 0
        %v6360 = vsel %vm5848, 1, 0
        %v6361 = vsel %vm5849, 1, 0
        %v6362 = vsel %vm5850, 1, 0
        %v6363 = vsel %vm5851, 1, 0
        %v6364 = vsel %vm5852, 1, 0
        %v6365 = vsel %vm5853, 1, 0
        %v6366 = vsel %vm5854, 1, 0
        %v6367 = vsel %vm5855, 1, 0
        %v6368 = vsel %vm5856, 1, 0
        %v6369 = vsel %vm5857, 1, 0
        %v6370 = vsel %vm5858, 1, 0
        %v6371 = vsel %vm5859, 1, 0
        %v6372 = vsel %vm5860, 1, 0
        %v6373 = vsel %vm5861, 1, 0
        %v6374 = vsel %vm5862, 1, 0
        %v6375 = vsel %vm5863, 1, 0
        %v6376 = vsel %vm5864, 1, 0
        %v6377 = vsel %vm5865, 1, 0
        %v6378 = vsel %vm5866, 1, 0
        %v6379 = vsel %vm5867, 1, 0
        %v6380 = vsel %vm5868, 1, 0
        %v6381 = vsel %vm5869, 1, 0
        %v6382 = vsel %vm5870, 1, 0
        %v6383 = vsel %vm5871, 1, 0
        %v6384 = vsel %vm5872, 1, 0
        %v6385 = vsel %vm5873, 1, 0
        %v6386 = vsel %vm5874, 1, 0
        %v6387 = vsel %vm5875, 1, 0
        %v6388 = vsel %vm5876, 1, 0
        %v6389 = vsel %vm5877, 1, 0
        %v6390 = vsel %vm5878, 1, 0
        %v6391 = vsel %vm5879, 1, 0
        %v6392 = vsel %vm5880, 1, 0
        %v6393 = vsel %vm5881, 1, 0
        %v6394 = vsel %vm5882, 1, 0
        %v6395 = vsel %vm5883, 1, 0
        %v6396 = vsel %vm5884, 1, 0
        %v6397 = vsel %vm5885, 1, 0
        %v6398 = vsel %vm5886, 1, 0
        %v6399 = vsel %vm5887, 1, 0
        %v6400 = vsel %vm5888, 1, 0
        %v6401 = vsel %vm5889, 1, 0
        %v6402 = vsel %vm5890, 1, 0
        %v6403 = vsel %vm5891, 1, 0
        %v6404 = vsel %vm5892, 1, 0
        %v6405 = vsel %vm5893, 1, 0
        %v6406 = vsel %vm5894, 1, 0
        %v6407 = vsel %vm5895, 1, 0
        %v6408 = vsel %vm5896, 1, 0
        %v6409 = vsel %vm5897, 1, 0
        %v6410 = vsel %vm5898, 1, 0
        %v6411 = vsel %vm5899, 1, 0
        %v6412 = vsel %vm5900, 1, 0
        %v6413 = vsel %vm5901, 1, 0
        %v6414 = vsel %vm5902, 1, 0
        %v6415 = vsel %vm5903, 1, 0
        %v6416 = vsel %vm5904, 1, 0
        %v6417 = vsel %vm5905, 1, 0
        %v6418 = vsel %vm5906, 1, 0
        %v6419 = vsel %vm5907, 1, 0
        %v6420 = vsel %vm5908, 1, 0
        %v6421 = vsel %vm5909, 1, 0
        %v6422 = vsel %vm5910, 1, 0
        %v6423 = vsel %vm5911, 1, 0
        %v6424 = vsel %vm5912, 1, 0
        %v6425 = vsel %vm5913, 1, 0
        %v6426 = vsel %vm5914, 1, 0
        %v6427 = vsel %vm5915, 1, 0
        %v6428 = vsel %vm5916, 1, 0
        %v6429 = vsel %vm5917, 1, 0
        %v6430 = vsel %vm5918, 1, 0
        %v6431 = vsel %vm5919, 1, 0
        %v6432 = vsel %vm5920, 1, 0
        %v6433 = vsel %vm5921, 1, 0
        %v6434 = vsel %vm5922, 1, 0
        %v6435 = vsel %vm5923, 1, 0
        %v6436 = vsel %vm5924, 1, 0
        %v6437 = vsel %vm5925, 1, 0
        %v6438 = vsel %vm5926, 1, 0
        %v6439 = vsel %vm5927, 1, 0
        %v6440 = vsel %vm5928, 1, 0
        %v6441 = vsel %vm5929, 1, 0
        %v6442 = vsel %vm5930, 1, 0
        %v6443 = vsel %vm5931, 1, 0
        %v6444 = vsel %vm5932, 1, 0
        %v6445 = vsel %vm5933, 1, 0
        %v6446 = vsel %vm5934, 1, 0
        %v6447 = vsel %vm5935, 1, 0
        %v6448 = vsel %vm5936, 1, 0
        %v6449 = vsel %vm5937, 1, 0
        %v6450 = vsel %vm5938, 1, 0
        %v6451 = vsel %vm5939, 1, 0
        %v6452 = vsel %vm5940, 1, 0
        %v6453 = vsel %vm5941, 1, 0
        %v6454 = vsel %vm5942, 1, 0
        %v6455 = vsel %vm5943, 1, 0
        %v6456 = vsel %vm5944, 1, 0
        %v6457 = vsel %vm5945, 1, 0
        %v6458 = vsel %vm5946, 1, 0
        %v6459 = vsel %vm5947, 1, 0
        %v6460 = vsel %vm5948, 1, 0
        %v6461 = vsel %vm5949, 1, 0
        %v6462 = vsel %vm5950, 1, 0
        %v6463 = vsel %vm5951, 1, 0
        %v6464 = vsel %vm5952, 1, 0
        %v6465 = vsel %vm5953, 1, 0
        %v6466 = vsel %vm5954, 1, 0
        %v6467 = vsel %vm5955, 1, 0
        %v6468 = vsel %vm5956, 1, 0
        %v6469 = vsel %vm5957, 1, 0
        %v6470 = vsel %vm5958, 1, 0
        %v6471 = vsel %vm5959, 1, 0
        %v6472 = vsel %vm5960, 1, 0
        %v6473 = vsel %vm5961, 1, 0
        %v6474 = vsel %vm5962, 1, 0
        %v6475 = vsel %vm5963, 1, 0
        %v6476 = vsel %vm5964, 1, 0
        %v6477 = vsel %vm5965, 1, 0
        %v6478 = vsel %vm5966, 1, 0
        %v6479 = vsel %vm5967, 1, 0
        %v6480 = vsel %vm5968, 1, 0
        %v6481 = vsel %vm5969, 1, 0
        %vm6482 = vcmp.eq.s32.totalorder %v6226, 1
        %vm6483 = vcmp.eq.s32.totalorder %v6227, 1
        %vm6484 = vcmp.eq.s32.totalorder %v6228, 1
        %vm6485 = vcmp.eq.s32.totalorder %v6229, 1
        %vm6486 = vcmp.eq.s32.totalorder %v6230, 1
        %vm6487 = vcmp.eq.s32.totalorder %v6231, 1
        %vm6488 = vcmp.eq.s32.totalorder %v6232, 1
        %vm6489 = vcmp.eq.s32.totalorder %v6233, 1
        %vm6490 = vcmp.eq.s32.totalorder %v6234, 1
        %vm6491 = vcmp.eq.s32.totalorder %v6235, 1
        %vm6492 = vcmp.eq.s32.totalorder %v6236, 1
        %vm6493 = vcmp.eq.s32.totalorder %v6237, 1
        %vm6494 = vcmp.eq.s32.totalorder %v6238, 1
        %vm6495 = vcmp.eq.s32.totalorder %v6239, 1
        %vm6496 = vcmp.eq.s32.totalorder %v6240, 1
        %vm6497 = vcmp.eq.s32.totalorder %v6241, 1
        %vm6498 = vcmp.eq.s32.totalorder %v6242, 1
        %vm6499 = vcmp.eq.s32.totalorder %v6243, 1
        %vm6500 = vcmp.eq.s32.totalorder %v6244, 1
        %vm6501 = vcmp.eq.s32.totalorder %v6245, 1
        %vm6502 = vcmp.eq.s32.totalorder %v6246, 1
        %vm6503 = vcmp.eq.s32.totalorder %v6247, 1
        %vm6504 = vcmp.eq.s32.totalorder %v6248, 1
        %vm6505 = vcmp.eq.s32.totalorder %v6249, 1
        %vm6506 = vcmp.eq.s32.totalorder %v6250, 1
        %vm6507 = vcmp.eq.s32.totalorder %v6251, 1
        %vm6508 = vcmp.eq.s32.totalorder %v6252, 1
        %vm6509 = vcmp.eq.s32.totalorder %v6253, 1
        %vm6510 = vcmp.eq.s32.totalorder %v6254, 1
        %vm6511 = vcmp.eq.s32.totalorder %v6255, 1
        %vm6512 = vcmp.eq.s32.totalorder %v6256, 1
        %vm6513 = vcmp.eq.s32.totalorder %v6257, 1
        %vm6514 = vcmp.eq.s32.totalorder %v6258, 1
        %vm6515 = vcmp.eq.s32.totalorder %v6259, 1
        %vm6516 = vcmp.eq.s32.totalorder %v6260, 1
        %vm6517 = vcmp.eq.s32.totalorder %v6261, 1
        %vm6518 = vcmp.eq.s32.totalorder %v6262, 1
        %vm6519 = vcmp.eq.s32.totalorder %v6263, 1
        %vm6520 = vcmp.eq.s32.totalorder %v6264, 1
        %vm6521 = vcmp.eq.s32.totalorder %v6265, 1
        %vm6522 = vcmp.eq.s32.totalorder %v6266, 1
        %vm6523 = vcmp.eq.s32.totalorder %v6267, 1
        %vm6524 = vcmp.eq.s32.totalorder %v6268, 1
        %vm6525 = vcmp.eq.s32.totalorder %v6269, 1
        %vm6526 = vcmp.eq.s32.totalorder %v6270, 1
        %vm6527 = vcmp.eq.s32.totalorder %v6271, 1
        %vm6528 = vcmp.eq.s32.totalorder %v6272, 1
        %vm6529 = vcmp.eq.s32.totalorder %v6273, 1
        %vm6530 = vcmp.eq.s32.totalorder %v6274, 1
        %vm6531 = vcmp.eq.s32.totalorder %v6275, 1
        %vm6532 = vcmp.eq.s32.totalorder %v6276, 1
        %vm6533 = vcmp.eq.s32.totalorder %v6277, 1
        %vm6534 = vcmp.eq.s32.totalorder %v6278, 1
        %vm6535 = vcmp.eq.s32.totalorder %v6279, 1
        %vm6536 = vcmp.eq.s32.totalorder %v6280, 1
        %vm6537 = vcmp.eq.s32.totalorder %v6281, 1
        %vm6538 = vcmp.eq.s32.totalorder %v6282, 1
        %vm6539 = vcmp.eq.s32.totalorder %v6283, 1
        %vm6540 = vcmp.eq.s32.totalorder %v6284, 1
        %vm6541 = vcmp.eq.s32.totalorder %v6285, 1
        %vm6542 = vcmp.eq.s32.totalorder %v6286, 1
        %vm6543 = vcmp.eq.s32.totalorder %v6287, 1
        %vm6544 = vcmp.eq.s32.totalorder %v6288, 1
        %vm6545 = vcmp.eq.s32.totalorder %v6289, 1
        %vm6546 = vcmp.eq.s32.totalorder %v6290, 1
        %vm6547 = vcmp.eq.s32.totalorder %v6291, 1
        %vm6548 = vcmp.eq.s32.totalorder %v6292, 1
        %vm6549 = vcmp.eq.s32.totalorder %v6293, 1
        %vm6550 = vcmp.eq.s32.totalorder %v6294, 1
        %vm6551 = vcmp.eq.s32.totalorder %v6295, 1
        %vm6552 = vcmp.eq.s32.totalorder %v6296, 1
        %vm6553 = vcmp.eq.s32.totalorder %v6297, 1
        %vm6554 = vcmp.eq.s32.totalorder %v6298, 1
        %vm6555 = vcmp.eq.s32.totalorder %v6299, 1
        %vm6556 = vcmp.eq.s32.totalorder %v6300, 1
        %vm6557 = vcmp.eq.s32.totalorder %v6301, 1
        %vm6558 = vcmp.eq.s32.totalorder %v6302, 1
        %vm6559 = vcmp.eq.s32.totalorder %v6303, 1
        %vm6560 = vcmp.eq.s32.totalorder %v6304, 1
        %vm6561 = vcmp.eq.s32.totalorder %v6305, 1
        %vm6562 = vcmp.eq.s32.totalorder %v6306, 1
        %vm6563 = vcmp.eq.s32.totalorder %v6307, 1
        %vm6564 = vcmp.eq.s32.totalorder %v6308, 1
        %vm6565 = vcmp.eq.s32.totalorder %v6309, 1
        %vm6566 = vcmp.eq.s32.totalorder %v6310, 1
        %vm6567 = vcmp.eq.s32.totalorder %v6311, 1
        %vm6568 = vcmp.eq.s32.totalorder %v6312, 1
        %vm6569 = vcmp.eq.s32.totalorder %v6313, 1
        %vm6570 = vcmp.eq.s32.totalorder %v6314, 1
        %vm6571 = vcmp.eq.s32.totalorder %v6315, 1
        %vm6572 = vcmp.eq.s32.totalorder %v6316, 1
        %vm6573 = vcmp.eq.s32.totalorder %v6317, 1
        %vm6574 = vcmp.eq.s32.totalorder %v6318, 1
        %vm6575 = vcmp.eq.s32.totalorder %v6319, 1
        %vm6576 = vcmp.eq.s32.totalorder %v6320, 1
        %vm6577 = vcmp.eq.s32.totalorder %v6321, 1
        %vm6578 = vcmp.eq.s32.totalorder %v6322, 1
        %vm6579 = vcmp.eq.s32.totalorder %v6323, 1
        %vm6580 = vcmp.eq.s32.totalorder %v6324, 1
        %vm6581 = vcmp.eq.s32.totalorder %v6325, 1
        %vm6582 = vcmp.eq.s32.totalorder %v6326, 1
        %vm6583 = vcmp.eq.s32.totalorder %v6327, 1
        %vm6584 = vcmp.eq.s32.totalorder %v6328, 1
        %vm6585 = vcmp.eq.s32.totalorder %v6329, 1
        %vm6586 = vcmp.eq.s32.totalorder %v6330, 1
        %vm6587 = vcmp.eq.s32.totalorder %v6331, 1
        %vm6588 = vcmp.eq.s32.totalorder %v6332, 1
        %vm6589 = vcmp.eq.s32.totalorder %v6333, 1
        %vm6590 = vcmp.eq.s32.totalorder %v6334, 1
        %vm6591 = vcmp.eq.s32.totalorder %v6335, 1
        %vm6592 = vcmp.eq.s32.totalorder %v6336, 1
        %vm6593 = vcmp.eq.s32.totalorder %v6337, 1
        %vm6594 = vcmp.eq.s32.totalorder %v6338, 1
        %vm6595 = vcmp.eq.s32.totalorder %v6339, 1
        %vm6596 = vcmp.eq.s32.totalorder %v6340, 1
        %vm6597 = vcmp.eq.s32.totalorder %v6341, 1
        %vm6598 = vcmp.eq.s32.totalorder %v6342, 1
        %vm6599 = vcmp.eq.s32.totalorder %v6343, 1
        %vm6600 = vcmp.eq.s32.totalorder %v6344, 1
        %vm6601 = vcmp.eq.s32.totalorder %v6345, 1
        %vm6602 = vcmp.eq.s32.totalorder %v6346, 1
        %vm6603 = vcmp.eq.s32.totalorder %v6347, 1
        %vm6604 = vcmp.eq.s32.totalorder %v6348, 1
        %vm6605 = vcmp.eq.s32.totalorder %v6349, 1
        %vm6606 = vcmp.eq.s32.totalorder %v6350, 1
        %vm6607 = vcmp.eq.s32.totalorder %v6351, 1
        %vm6608 = vcmp.eq.s32.totalorder %v6352, 1
        %vm6609 = vcmp.eq.s32.totalorder %v6353, 1
        %vm6610 = vcmp.eq.s32.totalorder %v6354, 1
        %vm6611 = vcmp.eq.s32.totalorder %v6355, 1
        %vm6612 = vcmp.eq.s32.totalorder %v6356, 1
        %vm6613 = vcmp.eq.s32.totalorder %v6357, 1
        %vm6614 = vcmp.eq.s32.totalorder %v6358, 1
        %vm6615 = vcmp.eq.s32.totalorder %v6359, 1
        %vm6616 = vcmp.eq.s32.totalorder %v6360, 1
        %vm6617 = vcmp.eq.s32.totalorder %v6361, 1
        %vm6618 = vcmp.eq.s32.totalorder %v6362, 1
        %vm6619 = vcmp.eq.s32.totalorder %v6363, 1
        %vm6620 = vcmp.eq.s32.totalorder %v6364, 1
        %vm6621 = vcmp.eq.s32.totalorder %v6365, 1
        %vm6622 = vcmp.eq.s32.totalorder %v6366, 1
        %vm6623 = vcmp.eq.s32.totalorder %v6367, 1
        %vm6624 = vcmp.eq.s32.totalorder %v6368, 1
        %vm6625 = vcmp.eq.s32.totalorder %v6369, 1
        %vm6626 = vcmp.eq.s32.totalorder %v6370, 1
        %vm6627 = vcmp.eq.s32.totalorder %v6371, 1
        %vm6628 = vcmp.eq.s32.totalorder %v6372, 1
        %vm6629 = vcmp.eq.s32.totalorder %v6373, 1
        %vm6630 = vcmp.eq.s32.totalorder %v6374, 1
        %vm6631 = vcmp.eq.s32.totalorder %v6375, 1
        %vm6632 = vcmp.eq.s32.totalorder %v6376, 1
        %vm6633 = vcmp.eq.s32.totalorder %v6377, 1
        %vm6634 = vcmp.eq.s32.totalorder %v6378, 1
        %vm6635 = vcmp.eq.s32.totalorder %v6379, 1
        %vm6636 = vcmp.eq.s32.totalorder %v6380, 1
        %vm6637 = vcmp.eq.s32.totalorder %v6381, 1
        %vm6638 = vcmp.eq.s32.totalorder %v6382, 1
        %vm6639 = vcmp.eq.s32.totalorder %v6383, 1
        %vm6640 = vcmp.eq.s32.totalorder %v6384, 1
        %vm6641 = vcmp.eq.s32.totalorder %v6385, 1
        %vm6642 = vcmp.eq.s32.totalorder %v6386, 1
        %vm6643 = vcmp.eq.s32.totalorder %v6387, 1
        %vm6644 = vcmp.eq.s32.totalorder %v6388, 1
        %vm6645 = vcmp.eq.s32.totalorder %v6389, 1
        %vm6646 = vcmp.eq.s32.totalorder %v6390, 1
        %vm6647 = vcmp.eq.s32.totalorder %v6391, 1
        %vm6648 = vcmp.eq.s32.totalorder %v6392, 1
        %vm6649 = vcmp.eq.s32.totalorder %v6393, 1
        %vm6650 = vcmp.eq.s32.totalorder %v6394, 1
        %vm6651 = vcmp.eq.s32.totalorder %v6395, 1
        %vm6652 = vcmp.eq.s32.totalorder %v6396, 1
        %vm6653 = vcmp.eq.s32.totalorder %v6397, 1
        %vm6654 = vcmp.eq.s32.totalorder %v6398, 1
        %vm6655 = vcmp.eq.s32.totalorder %v6399, 1
        %vm6656 = vcmp.eq.s32.totalorder %v6400, 1
        %vm6657 = vcmp.eq.s32.totalorder %v6401, 1
        %vm6658 = vcmp.eq.s32.totalorder %v6402, 1
        %vm6659 = vcmp.eq.s32.totalorder %v6403, 1
        %vm6660 = vcmp.eq.s32.totalorder %v6404, 1
        %vm6661 = vcmp.eq.s32.totalorder %v6405, 1
        %vm6662 = vcmp.eq.s32.totalorder %v6406, 1
        %vm6663 = vcmp.eq.s32.totalorder %v6407, 1
        %vm6664 = vcmp.eq.s32.totalorder %v6408, 1
        %vm6665 = vcmp.eq.s32.totalorder %v6409, 1
        %vm6666 = vcmp.eq.s32.totalorder %v6410, 1
        %vm6667 = vcmp.eq.s32.totalorder %v6411, 1
        %vm6668 = vcmp.eq.s32.totalorder %v6412, 1
        %vm6669 = vcmp.eq.s32.totalorder %v6413, 1
        %vm6670 = vcmp.eq.s32.totalorder %v6414, 1
        %vm6671 = vcmp.eq.s32.totalorder %v6415, 1
        %vm6672 = vcmp.eq.s32.totalorder %v6416, 1
        %vm6673 = vcmp.eq.s32.totalorder %v6417, 1
        %vm6674 = vcmp.eq.s32.totalorder %v6418, 1
        %vm6675 = vcmp.eq.s32.totalorder %v6419, 1
        %vm6676 = vcmp.eq.s32.totalorder %v6420, 1
        %vm6677 = vcmp.eq.s32.totalorder %v6421, 1
        %vm6678 = vcmp.eq.s32.totalorder %v6422, 1
        %vm6679 = vcmp.eq.s32.totalorder %v6423, 1
        %vm6680 = vcmp.eq.s32.totalorder %v6424, 1
        %vm6681 = vcmp.eq.s32.totalorder %v6425, 1
        %vm6682 = vcmp.eq.s32.totalorder %v6426, 1
        %vm6683 = vcmp.eq.s32.totalorder %v6427, 1
        %vm6684 = vcmp.eq.s32.totalorder %v6428, 1
        %vm6685 = vcmp.eq.s32.totalorder %v6429, 1
        %vm6686 = vcmp.eq.s32.totalorder %v6430, 1
        %vm6687 = vcmp.eq.s32.totalorder %v6431, 1
        %vm6688 = vcmp.eq.s32.totalorder %v6432, 1
        %vm6689 = vcmp.eq.s32.totalorder %v6433, 1
        %vm6690 = vcmp.eq.s32.totalorder %v6434, 1
        %vm6691 = vcmp.eq.s32.totalorder %v6435, 1
        %vm6692 = vcmp.eq.s32.totalorder %v6436, 1
        %vm6693 = vcmp.eq.s32.totalorder %v6437, 1
        %vm6694 = vcmp.eq.s32.totalorder %v6438, 1
        %vm6695 = vcmp.eq.s32.totalorder %v6439, 1
        %vm6696 = vcmp.eq.s32.totalorder %v6440, 1
        %vm6697 = vcmp.eq.s32.totalorder %v6441, 1
        %vm6698 = vcmp.eq.s32.totalorder %v6442, 1
        %vm6699 = vcmp.eq.s32.totalorder %v6443, 1
        %vm6700 = vcmp.eq.s32.totalorder %v6444, 1
        %vm6701 = vcmp.eq.s32.totalorder %v6445, 1
        %vm6702 = vcmp.eq.s32.totalorder %v6446, 1
        %vm6703 = vcmp.eq.s32.totalorder %v6447, 1
        %vm6704 = vcmp.eq.s32.totalorder %v6448, 1
        %vm6705 = vcmp.eq.s32.totalorder %v6449, 1
        %vm6706 = vcmp.eq.s32.totalorder %v6450, 1
        %vm6707 = vcmp.eq.s32.totalorder %v6451, 1
        %vm6708 = vcmp.eq.s32.totalorder %v6452, 1
        %vm6709 = vcmp.eq.s32.totalorder %v6453, 1
        %vm6710 = vcmp.eq.s32.totalorder %v6454, 1
        %vm6711 = vcmp.eq.s32.totalorder %v6455, 1
        %vm6712 = vcmp.eq.s32.totalorder %v6456, 1
        %vm6713 = vcmp.eq.s32.totalorder %v6457, 1
        %vm6714 = vcmp.eq.s32.totalorder %v6458, 1
        %vm6715 = vcmp.eq.s32.totalorder %v6459, 1
        %vm6716 = vcmp.eq.s32.totalorder %v6460, 1
        %vm6717 = vcmp.eq.s32.totalorder %v6461, 1
        %vm6718 = vcmp.eq.s32.totalorder %v6462, 1
        %vm6719 = vcmp.eq.s32.totalorder %v6463, 1
        %vm6720 = vcmp.eq.s32.totalorder %v6464, 1
        %vm6721 = vcmp.eq.s32.totalorder %v6465, 1
        %vm6722 = vcmp.eq.s32.totalorder %v6466, 1
        %vm6723 = vcmp.eq.s32.totalorder %v6467, 1
        %vm6724 = vcmp.eq.s32.totalorder %v6468, 1
        %vm6725 = vcmp.eq.s32.totalorder %v6469, 1
        %vm6726 = vcmp.eq.s32.totalorder %v6470, 1
        %vm6727 = vcmp.eq.s32.totalorder %v6471, 1
        %vm6728 = vcmp.eq.s32.totalorder %v6472, 1
        %vm6729 = vcmp.eq.s32.totalorder %v6473, 1
        %vm6730 = vcmp.eq.s32.totalorder %v6474, 1
        %vm6731 = vcmp.eq.s32.totalorder %v6475, 1
        %vm6732 = vcmp.eq.s32.totalorder %v6476, 1
        %vm6733 = vcmp.eq.s32.totalorder %v6477, 1
        %vm6734 = vcmp.eq.s32.totalorder %v6478, 1
        %vm6735 = vcmp.eq.s32.totalorder %v6479, 1
        %vm6736 = vcmp.eq.s32.totalorder %v6480, 1
        %vm6737 = vcmp.eq.s32.totalorder %v6481, 1
        %v6738 = vsel %vm6482, %v5970, 0.0
        %v6739 = vsel %vm6483, %v5971, 0.0
        %v6740 = vsel %vm6484, %v5972, 0.0
        %v6741 = vsel %vm6485, %v5973, 0.0
        %v6742 = vsel %vm6486, %v5974, 0.0
        %v6743 = vsel %vm6487, %v5975, 0.0
        %v6744 = vsel %vm6488, %v5976, 0.0
        %v6745 = vsel %vm6489, %v5977, 0.0
        %v6746 = vsel %vm6490, %v5978, 0.0
        %v6747 = vsel %vm6491, %v5979, 0.0
        %v6748 = vsel %vm6492, %v5980, 0.0
        %v6749 = vsel %vm6493, %v5981, 0.0
        %v6750 = vsel %vm6494, %v5982, 0.0
        %v6751 = vsel %vm6495, %v5983, 0.0
        %v6752 = vsel %vm6496, %v5984, 0.0
        %v6753 = vsel %vm6497, %v5985, 0.0
        %v6754 = vsel %vm6498, %v5986, 0.0
        %v6755 = vsel %vm6499, %v5987, 0.0
        %v6756 = vsel %vm6500, %v5988, 0.0
        %v6757 = vsel %vm6501, %v5989, 0.0
        %v6758 = vsel %vm6502, %v5990, 0.0
        %v6759 = vsel %vm6503, %v5991, 0.0
        %v6760 = vsel %vm6504, %v5992, 0.0
        %v6761 = vsel %vm6505, %v5993, 0.0
        %v6762 = vsel %vm6506, %v5994, 0.0
        %v6763 = vsel %vm6507, %v5995, 0.0
        %v6764 = vsel %vm6508, %v5996, 0.0
        %v6765 = vsel %vm6509, %v5997, 0.0
        %v6766 = vsel %vm6510, %v5998, 0.0
        %v6767 = vsel %vm6511, %v5999, 0.0
        %v6768 = vsel %vm6512, %v6000, 0.0
        %v6769 = vsel %vm6513, %v6001, 0.0
        %v6770 = vsel %vm6514, %v6002, 0.0
        %v6771 = vsel %vm6515, %v6003, 0.0
        %v6772 = vsel %vm6516, %v6004, 0.0
        %v6773 = vsel %vm6517, %v6005, 0.0
        %v6774 = vsel %vm6518, %v6006, 0.0
        %v6775 = vsel %vm6519, %v6007, 0.0
        %v6776 = vsel %vm6520, %v6008, 0.0
        %v6777 = vsel %vm6521, %v6009, 0.0
        %v6778 = vsel %vm6522, %v6010, 0.0
        %v6779 = vsel %vm6523, %v6011, 0.0
        %v6780 = vsel %vm6524, %v6012, 0.0
        %v6781 = vsel %vm6525, %v6013, 0.0
        %v6782 = vsel %vm6526, %v6014, 0.0
        %v6783 = vsel %vm6527, %v6015, 0.0
        %v6784 = vsel %vm6528, %v6016, 0.0
        %v6785 = vsel %vm6529, %v6017, 0.0
        %v6786 = vsel %vm6530, %v6018, 0.0
        %v6787 = vsel %vm6531, %v6019, 0.0
        %v6788 = vsel %vm6532, %v6020, 0.0
        %v6789 = vsel %vm6533, %v6021, 0.0
        %v6790 = vsel %vm6534, %v6022, 0.0
        %v6791 = vsel %vm6535, %v6023, 0.0
        %v6792 = vsel %vm6536, %v6024, 0.0
        %v6793 = vsel %vm6537, %v6025, 0.0
        %v6794 = vsel %vm6538, %v6026, 0.0
        %v6795 = vsel %vm6539, %v6027, 0.0
        %v6796 = vsel %vm6540, %v6028, 0.0
        %v6797 = vsel %vm6541, %v6029, 0.0
        %v6798 = vsel %vm6542, %v6030, 0.0
        %v6799 = vsel %vm6543, %v6031, 0.0
        %v6800 = vsel %vm6544, %v6032, 0.0
        %v6801 = vsel %vm6545, %v6033, 0.0
        %v6802 = vsel %vm6546, %v6034, 0.0
        %v6803 = vsel %vm6547, %v6035, 0.0
        %v6804 = vsel %vm6548, %v6036, 0.0
        %v6805 = vsel %vm6549, %v6037, 0.0
        %v6806 = vsel %vm6550, %v6038, 0.0
        %v6807 = vsel %vm6551, %v6039, 0.0
        %v6808 = vsel %vm6552, %v6040, 0.0
        %v6809 = vsel %vm6553, %v6041, 0.0
        %v6810 = vsel %vm6554, %v6042, 0.0
        %v6811 = vsel %vm6555, %v6043, 0.0
        %v6812 = vsel %vm6556, %v6044, 0.0
        %v6813 = vsel %vm6557, %v6045, 0.0
        %v6814 = vsel %vm6558, %v6046, 0.0
        %v6815 = vsel %vm6559, %v6047, 0.0
        %v6816 = vsel %vm6560, %v6048, 0.0
        %v6817 = vsel %vm6561, %v6049, 0.0
        %v6818 = vsel %vm6562, %v6050, 0.0
        %v6819 = vsel %vm6563, %v6051, 0.0
        %v6820 = vsel %vm6564, %v6052, 0.0
        %v6821 = vsel %vm6565, %v6053, 0.0
        %v6822 = vsel %vm6566, %v6054, 0.0
        %v6823 = vsel %vm6567, %v6055, 0.0
        %v6824 = vsel %vm6568, %v6056, 0.0
        %v6825 = vsel %vm6569, %v6057, 0.0
        %v6826 = vsel %vm6570, %v6058, 0.0
        %v6827 = vsel %vm6571, %v6059, 0.0
        %v6828 = vsel %vm6572, %v6060, 0.0
        %v6829 = vsel %vm6573, %v6061, 0.0
        %v6830 = vsel %vm6574, %v6062, 0.0
        %v6831 = vsel %vm6575, %v6063, 0.0
        %v6832 = vsel %vm6576, %v6064, 0.0
        %v6833 = vsel %vm6577, %v6065, 0.0
        %v6834 = vsel %vm6578, %v6066, 0.0
        %v6835 = vsel %vm6579, %v6067, 0.0
        %v6836 = vsel %vm6580, %v6068, 0.0
        %v6837 = vsel %vm6581, %v6069, 0.0
        %v6838 = vsel %vm6582, %v6070, 0.0
        %v6839 = vsel %vm6583, %v6071, 0.0
        %v6840 = vsel %vm6584, %v6072, 0.0
        %v6841 = vsel %vm6585, %v6073, 0.0
        %v6842 = vsel %vm6586, %v6074, 0.0
        %v6843 = vsel %vm6587, %v6075, 0.0
        %v6844 = vsel %vm6588, %v6076, 0.0
        %v6845 = vsel %vm6589, %v6077, 0.0
        %v6846 = vsel %vm6590, %v6078, 0.0
        %v6847 = vsel %vm6591, %v6079, 0.0
        %v6848 = vsel %vm6592, %v6080, 0.0
        %v6849 = vsel %vm6593, %v6081, 0.0
        %v6850 = vsel %vm6594, %v6082, 0.0
        %v6851 = vsel %vm6595, %v6083, 0.0
        %v6852 = vsel %vm6596, %v6084, 0.0
        %v6853 = vsel %vm6597, %v6085, 0.0
        %v6854 = vsel %vm6598, %v6086, 0.0
        %v6855 = vsel %vm6599, %v6087, 0.0
        %v6856 = vsel %vm6600, %v6088, 0.0
        %v6857 = vsel %vm6601, %v6089, 0.0
        %v6858 = vsel %vm6602, %v6090, 0.0
        %v6859 = vsel %vm6603, %v6091, 0.0
        %v6860 = vsel %vm6604, %v6092, 0.0
        %v6861 = vsel %vm6605, %v6093, 0.0
        %v6862 = vsel %vm6606, %v6094, 0.0
        %v6863 = vsel %vm6607, %v6095, 0.0
        %v6864 = vsel %vm6608, %v6096, 0.0
        %v6865 = vsel %vm6609, %v6097, 0.0
        %v6866 = vsel %vm6610, %v6098, 0.0
        %v6867 = vsel %vm6611, %v6099, 0.0
        %v6868 = vsel %vm6612, %v6100, 0.0
        %v6869 = vsel %vm6613, %v6101, 0.0
        %v6870 = vsel %vm6614, %v6102, 0.0
        %v6871 = vsel %vm6615, %v6103, 0.0
        %v6872 = vsel %vm6616, %v6104, 0.0
        %v6873 = vsel %vm6617, %v6105, 0.0
        %v6874 = vsel %vm6618, %v6106, 0.0
        %v6875 = vsel %vm6619, %v6107, 0.0
        %v6876 = vsel %vm6620, %v6108, 0.0
        %v6877 = vsel %vm6621, %v6109, 0.0
        %v6878 = vsel %vm6622, %v6110, 0.0
        %v6879 = vsel %vm6623, %v6111, 0.0
        %v6880 = vsel %vm6624, %v6112, 0.0
        %v6881 = vsel %vm6625, %v6113, 0.0
        %v6882 = vsel %vm6626, %v6114, 0.0
        %v6883 = vsel %vm6627, %v6115, 0.0
        %v6884 = vsel %vm6628, %v6116, 0.0
        %v6885 = vsel %vm6629, %v6117, 0.0
        %v6886 = vsel %vm6630, %v6118, 0.0
        %v6887 = vsel %vm6631, %v6119, 0.0
        %v6888 = vsel %vm6632, %v6120, 0.0
        %v6889 = vsel %vm6633, %v6121, 0.0
        %v6890 = vsel %vm6634, %v6122, 0.0
        %v6891 = vsel %vm6635, %v6123, 0.0
        %v6892 = vsel %vm6636, %v6124, 0.0
        %v6893 = vsel %vm6637, %v6125, 0.0
        %v6894 = vsel %vm6638, %v6126, 0.0
        %v6895 = vsel %vm6639, %v6127, 0.0
        %v6896 = vsel %vm6640, %v6128, 0.0
        %v6897 = vsel %vm6641, %v6129, 0.0
        %v6898 = vsel %vm6642, %v6130, 0.0
        %v6899 = vsel %vm6643, %v6131, 0.0
        %v6900 = vsel %vm6644, %v6132, 0.0
        %v6901 = vsel %vm6645, %v6133, 0.0
        %v6902 = vsel %vm6646, %v6134, 0.0
        %v6903 = vsel %vm6647, %v6135, 0.0
        %v6904 = vsel %vm6648, %v6136, 0.0
        %v6905 = vsel %vm6649, %v6137, 0.0
        %v6906 = vsel %vm6650, %v6138, 0.0
        %v6907 = vsel %vm6651, %v6139, 0.0
        %v6908 = vsel %vm6652, %v6140, 0.0
        %v6909 = vsel %vm6653, %v6141, 0.0
        %v6910 = vsel %vm6654, %v6142, 0.0
        %v6911 = vsel %vm6655, %v6143, 0.0
        %v6912 = vsel %vm6656, %v6144, 0.0
        %v6913 = vsel %vm6657, %v6145, 0.0
        %v6914 = vsel %vm6658, %v6146, 0.0
        %v6915 = vsel %vm6659, %v6147, 0.0
        %v6916 = vsel %vm6660, %v6148, 0.0
        %v6917 = vsel %vm6661, %v6149, 0.0
        %v6918 = vsel %vm6662, %v6150, 0.0
        %v6919 = vsel %vm6663, %v6151, 0.0
        %v6920 = vsel %vm6664, %v6152, 0.0
        %v6921 = vsel %vm6665, %v6153, 0.0
        %v6922 = vsel %vm6666, %v6154, 0.0
        %v6923 = vsel %vm6667, %v6155, 0.0
        %v6924 = vsel %vm6668, %v6156, 0.0
        %v6925 = vsel %vm6669, %v6157, 0.0
        %v6926 = vsel %vm6670, %v6158, 0.0
        %v6927 = vsel %vm6671, %v6159, 0.0
        %v6928 = vsel %vm6672, %v6160, 0.0
        %v6929 = vsel %vm6673, %v6161, 0.0
        %v6930 = vsel %vm6674, %v6162, 0.0
        %v6931 = vsel %vm6675, %v6163, 0.0
        %v6932 = vsel %vm6676, %v6164, 0.0
        %v6933 = vsel %vm6677, %v6165, 0.0
        %v6934 = vsel %vm6678, %v6166, 0.0
        %v6935 = vsel %vm6679, %v6167, 0.0
        %v6936 = vsel %vm6680, %v6168, 0.0
        %v6937 = vsel %vm6681, %v6169, 0.0
        %v6938 = vsel %vm6682, %v6170, 0.0
        %v6939 = vsel %vm6683, %v6171, 0.0
        %v6940 = vsel %vm6684, %v6172, 0.0
        %v6941 = vsel %vm6685, %v6173, 0.0
        %v6942 = vsel %vm6686, %v6174, 0.0
        %v6943 = vsel %vm6687, %v6175, 0.0
        %v6944 = vsel %vm6688, %v6176, 0.0
        %v6945 = vsel %vm6689, %v6177, 0.0
        %v6946 = vsel %vm6690, %v6178, 0.0
        %v6947 = vsel %vm6691, %v6179, 0.0
        %v6948 = vsel %vm6692, %v6180, 0.0
        %v6949 = vsel %vm6693, %v6181, 0.0
        %v6950 = vsel %vm6694, %v6182, 0.0
        %v6951 = vsel %vm6695, %v6183, 0.0
        %v6952 = vsel %vm6696, %v6184, 0.0
        %v6953 = vsel %vm6697, %v6185, 0.0
        %v6954 = vsel %vm6698, %v6186, 0.0
        %v6955 = vsel %vm6699, %v6187, 0.0
        %v6956 = vsel %vm6700, %v6188, 0.0
        %v6957 = vsel %vm6701, %v6189, 0.0
        %v6958 = vsel %vm6702, %v6190, 0.0
        %v6959 = vsel %vm6703, %v6191, 0.0
        %v6960 = vsel %vm6704, %v6192, 0.0
        %v6961 = vsel %vm6705, %v6193, 0.0
        %v6962 = vsel %vm6706, %v6194, 0.0
        %v6963 = vsel %vm6707, %v6195, 0.0
        %v6964 = vsel %vm6708, %v6196, 0.0
        %v6965 = vsel %vm6709, %v6197, 0.0
        %v6966 = vsel %vm6710, %v6198, 0.0
        %v6967 = vsel %vm6711, %v6199, 0.0
        %v6968 = vsel %vm6712, %v6200, 0.0
        %v6969 = vsel %vm6713, %v6201, 0.0
        %v6970 = vsel %vm6714, %v6202, 0.0
        %v6971 = vsel %vm6715, %v6203, 0.0
        %v6972 = vsel %vm6716, %v6204, 0.0
        %v6973 = vsel %vm6717, %v6205, 0.0
        %v6974 = vsel %vm6718, %v6206, 0.0
        %v6975 = vsel %vm6719, %v6207, 0.0
        %v6976 = vsel %vm6720, %v6208, 0.0
        %v6977 = vsel %vm6721, %v6209, 0.0
        %v6978 = vsel %vm6722, %v6210, 0.0
        %v6979 = vsel %vm6723, %v6211, 0.0
        %v6980 = vsel %vm6724, %v6212, 0.0
        %v6981 = vsel %vm6725, %v6213, 0.0
        %v6982 = vsel %vm6726, %v6214, 0.0
        %v6983 = vsel %vm6727, %v6215, 0.0
        %v6984 = vsel %vm6728, %v6216, 0.0
        %v6985 = vsel %vm6729, %v6217, 0.0
        %v6986 = vsel %vm6730, %v6218, 0.0
        %v6987 = vsel %vm6731, %v6219, 0.0
        %v6988 = vsel %vm6732, %v6220, 0.0
        %v6989 = vsel %vm6733, %v6221, 0.0
        %v6990 = vsel %vm6734, %v6222, 0.0
        %v6991 = vsel %vm6735, %v6223, 0.0
        %v6992 = vsel %vm6736, %v6224, 0.0
        %v6993 = vsel %vm6737, %v6225, 0.0
        %6994 = vst [vmem:[%s484] sm:$0xff] %v6738
        %6995 = vst [vmem:[%s484 + $0x8] sm:$0xff] %v6739
        %6996 = vst [vmem:[%s484 + $0x10] sm:$0xff] %v6740
        %6997 = vst [vmem:[%s484 + $0x18] sm:$0xff] %v6741
        %6998 = vst [vmem:[%s484 + $0x20] sm:$0xff] %v6742
        %6999 = vst [vmem:[%s484 + $0x28] sm:$0xff] %v6743
        %7000 = vst [vmem:[%s484 + $0x30] sm:$0xff] %v6744
        %7001 = vst [vmem:[%s484 + $0x38] sm:$0xff] %v6745
        %7002 = vst [vmem:[%s484 + $0x40] sm:$0xff] %v6746
        %7003 = vst [vmem:[%s484 + $0x48] sm:$0xff] %v6747
        %7004 = vst [vmem:[%s484 + $0x50] sm:$0xff] %v6748
        %7005 = vst [vmem:[%s484 + $0x58] sm:$0xff] %v6749
        %7006 = vst [vmem:[%s484 + $0x60] sm:$0xff] %v6750
        %7007 = vst [vmem:[%s484 + $0x68] sm:$0xff] %v6751
        %7008 = vst [vmem:[%s484 + $0x70] sm:$0xff] %v6752
        %7009 = vst [vmem:[%s484 + $0x78] sm:$0xff] %v6753
        %7010 = vst [vmem:[%s484 + $0x80] sm:$0xff] %v6754
        %7011 = vst [vmem:[%s484 + $0x88] sm:$0xff] %v6755
        %7012 = vst [vmem:[%s484 + $0x90] sm:$0xff] %v6756
        %7013 = vst [vmem:[%s484 + $0x98] sm:$0xff] %v6757
        %7014 = vst [vmem:[%s484 + $0xa0] sm:$0xff] %v6758
        %7015 = vst [vmem:[%s484 + $0xa8] sm:$0xff] %v6759
        %7016 = vst [vmem:[%s484 + $0xb0] sm:$0xff] %v6760
        %7017 = vst [vmem:[%s484 + $0xb8] sm:$0xff] %v6761
        %7018 = vst [vmem:[%s484 + $0xc0] sm:$0xff] %v6762
        %7019 = vst [vmem:[%s484 + $0xc8] sm:$0xff] %v6763
        %7020 = vst [vmem:[%s484 + $0xd0] sm:$0xff] %v6764
        %7021 = vst [vmem:[%s484 + $0xd8] sm:$0xff] %v6765
        %7022 = vst [vmem:[%s484 + $0xe0] sm:$0xff] %v6766
        %7023 = vst [vmem:[%s484 + $0xe8] sm:$0xff] %v6767
        %7024 = vst [vmem:[%s484 + $0xf0] sm:$0xff] %v6768
        %7025 = vst [vmem:[%s484 + $0xf8] sm:$0xff] %v6769
        %7026 = vst [vmem:[%s484 + $0x100] sm:$0xff] %v6770
        %7027 = vst [vmem:[%s484 + $0x108] sm:$0xff] %v6771
        %7028 = vst [vmem:[%s484 + $0x110] sm:$0xff] %v6772
        %7029 = vst [vmem:[%s484 + $0x118] sm:$0xff] %v6773
        %7030 = vst [vmem:[%s484 + $0x120] sm:$0xff] %v6774
        %7031 = vst [vmem:[%s484 + $0x128] sm:$0xff] %v6775
        %7032 = vst [vmem:[%s484 + $0x130] sm:$0xff] %v6776
        %7033 = vst [vmem:[%s484 + $0x138] sm:$0xff] %v6777
        %7034 = vst [vmem:[%s484 + $0x140] sm:$0xff] %v6778
        %7035 = vst [vmem:[%s484 + $0x148] sm:$0xff] %v6779
        %7036 = vst [vmem:[%s484 + $0x150] sm:$0xff] %v6780
        %7037 = vst [vmem:[%s484 + $0x158] sm:$0xff] %v6781
        %7038 = vst [vmem:[%s484 + $0x160] sm:$0xff] %v6782
        %7039 = vst [vmem:[%s484 + $0x168] sm:$0xff] %v6783
        %7040 = vst [vmem:[%s484 + $0x170] sm:$0xff] %v6784
        %7041 = vst [vmem:[%s484 + $0x178] sm:$0xff] %v6785
        %7042 = vst [vmem:[%s484 + $0x180] sm:$0xff] %v6786
        %7043 = vst [vmem:[%s484 + $0x188] sm:$0xff] %v6787
        %7044 = vst [vmem:[%s484 + $0x190] sm:$0xff] %v6788
        %7045 = vst [vmem:[%s484 + $0x198] sm:$0xff] %v6789
        %7046 = vst [vmem:[%s484 + $0x1a0] sm:$0xff] %v6790
        %7047 = vst [vmem:[%s484 + $0x1a8] sm:$0xff] %v6791
        %7048 = vst [vmem:[%s484 + $0x1b0] sm:$0xff] %v6792
        %7049 = vst [vmem:[%s484 + $0x1b8] sm:$0xff] %v6793
        %7050 = vst [vmem:[%s484 + $0x1c0] sm:$0xff] %v6794
        %7051 = vst [vmem:[%s484 + $0x1c8] sm:$0xff] %v6795
        %7052 = vst [vmem:[%s484 + $0x1d0] sm:$0xff] %v6796
        %7053 = vst [vmem:[%s484 + $0x1d8] sm:$0xff] %v6797
        %7054 = vst [vmem:[%s484 + $0x1e0] sm:$0xff] %v6798
        %7055 = vst [vmem:[%s484 + $0x1e8] sm:$0xff] %v6799
        %7056 = vst [vmem:[%s484 + $0x1f0] sm:$0xff] %v6800
        %7057 = vst [vmem:[%s484 + $0x1f8] sm:$0xff] %v6801
        %7058 = vst [vmem:[%s484 + $0x200] sm:$0xff] %v6802
        %7059 = vst [vmem:[%s484 + $0x208] sm:$0xff] %v6803
        %7060 = vst [vmem:[%s484 + $0x210] sm:$0xff] %v6804
        %7061 = vst [vmem:[%s484 + $0x218] sm:$0xff] %v6805
        %7062 = vst [vmem:[%s484 + $0x220] sm:$0xff] %v6806
        %7063 = vst [vmem:[%s484 + $0x228] sm:$0xff] %v6807
        %7064 = vst [vmem:[%s484 + $0x230] sm:$0xff] %v6808
        %7065 = vst [vmem:[%s484 + $0x238] sm:$0xff] %v6809
        %7066 = vst [vmem:[%s484 + $0x240] sm:$0xff] %v6810
        %7067 = vst [vmem:[%s484 + $0x248] sm:$0xff] %v6811
        %7068 = vst [vmem:[%s484 + $0x250] sm:$0xff] %v6812
        %7069 = vst [vmem:[%s484 + $0x258] sm:$0xff] %v6813
        %7070 = vst [vmem:[%s484 + $0x260] sm:$0xff] %v6814
        %7071 = vst [vmem:[%s484 + $0x268] sm:$0xff] %v6815
        %7072 = vst [vmem:[%s484 + $0x270] sm:$0xff] %v6816
        %7073 = vst [vmem:[%s484 + $0x278] sm:$0xff] %v6817
        %7074 = vst [vmem:[%s484 + $0x280] sm:$0xff] %v6818
        %7075 = vst [vmem:[%s484 + $0x288] sm:$0xff] %v6819
        %7076 = vst [vmem:[%s484 + $0x290] sm:$0xff] %v6820
        %7077 = vst [vmem:[%s484 + $0x298] sm:$0xff] %v6821
        %7078 = vst [vmem:[%s484 + $0x2a0] sm:$0xff] %v6822
        %7079 = vst [vmem:[%s484 + $0x2a8] sm:$0xff] %v6823
        %7080 = vst [vmem:[%s484 + $0x2b0] sm:$0xff] %v6824
        %7081 = vst [vmem:[%s484 + $0x2b8] sm:$0xff] %v6825
        %7082 = vst [vmem:[%s484 + $0x2c0] sm:$0xff] %v6826
        %7083 = vst [vmem:[%s484 + $0x2c8] sm:$0xff] %v6827
        %7084 = vst [vmem:[%s484 + $0x2d0] sm:$0xff] %v6828
        %7085 = vst [vmem:[%s484 + $0x2d8] sm:$0xff] %v6829
        %7086 = vst [vmem:[%s484 + $0x2e0] sm:$0xff] %v6830
        %7087 = vst [vmem:[%s484 + $0x2e8] sm:$0xff] %v6831
        %7088 = vst [vmem:[%s484 + $0x2f0] sm:$0xff] %v6832
        %7089 = vst [vmem:[%s484 + $0x2f8] sm:$0xff] %v6833
        %7090 = vst [vmem:[%s484 + $0x300] sm:$0xff] %v6834
        %7091 = vst [vmem:[%s484 + $0x308] sm:$0xff] %v6835
        %7092 = vst [vmem:[%s484 + $0x310] sm:$0xff] %v6836
        %7093 = vst [vmem:[%s484 + $0x318] sm:$0xff] %v6837
        %7094 = vst [vmem:[%s484 + $0x320] sm:$0xff] %v6838
        %7095 = vst [vmem:[%s484 + $0x328] sm:$0xff] %v6839
        %7096 = vst [vmem:[%s484 + $0x330] sm:$0xff] %v6840
        %7097 = vst [vmem:[%s484 + $0x338] sm:$0xff] %v6841
        %7098 = vst [vmem:[%s484 + $0x340] sm:$0xff] %v6842
        %7099 = vst [vmem:[%s484 + $0x348] sm:$0xff] %v6843
        %7100 = vst [vmem:[%s484 + $0x350] sm:$0xff] %v6844
        %7101 = vst [vmem:[%s484 + $0x358] sm:$0xff] %v6845
        %7102 = vst [vmem:[%s484 + $0x360] sm:$0xff] %v6846
        %7103 = vst [vmem:[%s484 + $0x368] sm:$0xff] %v6847
        %7104 = vst [vmem:[%s484 + $0x370] sm:$0xff] %v6848
        %7105 = vst [vmem:[%s484 + $0x378] sm:$0xff] %v6849
        %7106 = vst [vmem:[%s484 + $0x380] sm:$0xff] %v6850
        %7107 = vst [vmem:[%s484 + $0x388] sm:$0xff] %v6851
        %7108 = vst [vmem:[%s484 + $0x390] sm:$0xff] %v6852
        %7109 = vst [vmem:[%s484 + $0x398] sm:$0xff] %v6853
        %7110 = vst [vmem:[%s484 + $0x3a0] sm:$0xff] %v6854
        %7111 = vst [vmem:[%s484 + $0x3a8] sm:$0xff] %v6855
        %7112 = vst [vmem:[%s484 + $0x3b0] sm:$0xff] %v6856
        %7113 = vst [vmem:[%s484 + $0x3b8] sm:$0xff] %v6857
        %7114 = vst [vmem:[%s484 + $0x3c0] sm:$0xff] %v6858
        %7115 = vst [vmem:[%s484 + $0x3c8] sm:$0xff] %v6859
        %7116 = vst [vmem:[%s484 + $0x3d0] sm:$0xff] %v6860
        %7117 = vst [vmem:[%s484 + $0x3d8] sm:$0xff] %v6861
        %7118 = vst [vmem:[%s484 + $0x3e0] sm:$0xff] %v6862
        %7119 = vst [vmem:[%s484 + $0x3e8] sm:$0xff] %v6863
        %7120 = vst [vmem:[%s484 + $0x3f0] sm:$0xff] %v6864
        %7121 = vst [vmem:[%s484 + $0x3f8] sm:$0xff] %v6865
        %7122 = vst [vmem:[%s484 + $0x400] sm:$0xff] %v6866
        %7123 = vst [vmem:[%s484 + $0x408] sm:$0xff] %v6867
        %7124 = vst [vmem:[%s484 + $0x410] sm:$0xff] %v6868
        %7125 = vst [vmem:[%s484 + $0x418] sm:$0xff] %v6869
        %7126 = vst [vmem:[%s484 + $0x420] sm:$0xff] %v6870
        %7127 = vst [vmem:[%s484 + $0x428] sm:$0xff] %v6871
        %7128 = vst [vmem:[%s484 + $0x430] sm:$0xff] %v6872
        %7129 = vst [vmem:[%s484 + $0x438] sm:$0xff] %v6873
        %7130 = vst [vmem:[%s484 + $0x440] sm:$0xff] %v6874
        %7131 = vst [vmem:[%s484 + $0x448] sm:$0xff] %v6875
        %7132 = vst [vmem:[%s484 + $0x450] sm:$0xff] %v6876
        %7133 = vst [vmem:[%s484 + $0x458] sm:$0xff] %v6877
        %7134 = vst [vmem:[%s484 + $0x460] sm:$0xff] %v6878
        %7135 = vst [vmem:[%s484 + $0x468] sm:$0xff] %v6879
        %7136 = vst [vmem:[%s484 + $0x470] sm:$0xff] %v6880
        %7137 = vst [vmem:[%s484 + $0x478] sm:$0xff] %v6881
        %7138 = vst [vmem:[%s484 + $0x480] sm:$0xff] %v6882
        %7139 = vst [vmem:[%s484 + $0x488] sm:$0xff] %v6883
        %7140 = vst [vmem:[%s484 + $0x490] sm:$0xff] %v6884
        %7141 = vst [vmem:[%s484 + $0x498] sm:$0xff] %v6885
        %7142 = vst [vmem:[%s484 + $0x4a0] sm:$0xff] %v6886
        %7143 = vst [vmem:[%s484 + $0x4a8] sm:$0xff] %v6887
        %7144 = vst [vmem:[%s484 + $0x4b0] sm:$0xff] %v6888
        %7145 = vst [vmem:[%s484 + $0x4b8] sm:$0xff] %v6889
        %7146 = vst [vmem:[%s484 + $0x4c0] sm:$0xff] %v6890
        %7147 = vst [vmem:[%s484 + $0x4c8] sm:$0xff] %v6891
        %7148 = vst [vmem:[%s484 + $0x4d0] sm:$0xff] %v6892
        %7149 = vst [vmem:[%s484 + $0x4d8] sm:$0xff] %v6893
        %7150 = vst [vmem:[%s484 + $0x4e0] sm:$0xff] %v6894
        %7151 = vst [vmem:[%s484 + $0x4e8] sm:$0xff] %v6895
        %7152 = vst [vmem:[%s484 + $0x4f0] sm:$0xff] %v6896
        %7153 = vst [vmem:[%s484 + $0x4f8] sm:$0xff] %v6897
        %7154 = vst [vmem:[%s484 + $0x500] sm:$0xff] %v6898
        %7155 = vst [vmem:[%s484 + $0x508] sm:$0xff] %v6899
        %7156 = vst [vmem:[%s484 + $0x510] sm:$0xff] %v6900
        %7157 = vst [vmem:[%s484 + $0x518] sm:$0xff] %v6901
        %7158 = vst [vmem:[%s484 + $0x520] sm:$0xff] %v6902
        %7159 = vst [vmem:[%s484 + $0x528] sm:$0xff] %v6903
        %7160 = vst [vmem:[%s484 + $0x530] sm:$0xff] %v6904
        %7161 = vst [vmem:[%s484 + $0x538] sm:$0xff] %v6905
        %7162 = vst [vmem:[%s484 + $0x540] sm:$0xff] %v6906
        %7163 = vst [vmem:[%s484 + $0x548] sm:$0xff] %v6907
        %7164 = vst [vmem:[%s484 + $0x550] sm:$0xff] %v6908
        %7165 = vst [vmem:[%s484 + $0x558] sm:$0xff] %v6909
        %7166 = vst [vmem:[%s484 + $0x560] sm:$0xff] %v6910
        %7167 = vst [vmem:[%s484 + $0x568] sm:$0xff] %v6911
        %7168 = vst [vmem:[%s484 + $0x570] sm:$0xff] %v6912
        %7169 = vst [vmem:[%s484 + $0x578] sm:$0xff] %v6913
        %7170 = vst [vmem:[%s484 + $0x580] sm:$0xff] %v6914
        %7171 = vst [vmem:[%s484 + $0x588] sm:$0xff] %v6915
        %7172 = vst [vmem:[%s484 + $0x590] sm:$0xff] %v6916
        %7173 = vst [vmem:[%s484 + $0x598] sm:$0xff] %v6917
        %7174 = vst [vmem:[%s484 + $0x5a0] sm:$0xff] %v6918
        %7175 = vst [vmem:[%s484 + $0x5a8] sm:$0xff] %v6919
        %7176 = vst [vmem:[%s484 + $0x5b0] sm:$0xff] %v6920
        %7177 = vst [vmem:[%s484 + $0x5b8] sm:$0xff] %v6921
        %7178 = vst [vmem:[%s484 + $0x5c0] sm:$0xff] %v6922
        %7179 = vst [vmem:[%s484 + $0x5c8] sm:$0xff] %v6923
        %7180 = vst [vmem:[%s484 + $0x5d0] sm:$0xff] %v6924
        %7181 = vst [vmem:[%s484 + $0x5d8] sm:$0xff] %v6925
        %7182 = vst [vmem:[%s484 + $0x5e0] sm:$0xff] %v6926
        %7183 = vst [vmem:[%s484 + $0x5e8] sm:$0xff] %v6927
        %7184 = vst [vmem:[%s484 + $0x5f0] sm:$0xff] %v6928
        %7185 = vst [vmem:[%s484 + $0x5f8] sm:$0xff] %v6929
        %7186 = vst [vmem:[%s484 + $0x600] sm:$0xff] %v6930
        %7187 = vst [vmem:[%s484 + $0x608] sm:$0xff] %v6931
        %7188 = vst [vmem:[%s484 + $0x610] sm:$0xff] %v6932
        %7189 = vst [vmem:[%s484 + $0x618] sm:$0xff] %v6933
        %7190 = vst [vmem:[%s484 + $0x620] sm:$0xff] %v6934
        %7191 = vst [vmem:[%s484 + $0x628] sm:$0xff] %v6935
        %7192 = vst [vmem:[%s484 + $0x630] sm:$0xff] %v6936
        %7193 = vst [vmem:[%s484 + $0x638] sm:$0xff] %v6937
        %7194 = vst [vmem:[%s484 + $0x640] sm:$0xff] %v6938
        %7195 = vst [vmem:[%s484 + $0x648] sm:$0xff] %v6939
        %7196 = vst [vmem:[%s484 + $0x650] sm:$0xff] %v6940
        %7197 = vst [vmem:[%s484 + $0x658] sm:$0xff] %v6941
        %7198 = vst [vmem:[%s484 + $0x660] sm:$0xff] %v6942
        %7199 = vst [vmem:[%s484 + $0x668] sm:$0xff] %v6943
        %7200 = vst [vmem:[%s484 + $0x670] sm:$0xff] %v6944
        %7201 = vst [vmem:[%s484 + $0x678] sm:$0xff] %v6945
        %7202 = vst [vmem:[%s484 + $0x680] sm:$0xff] %v6946
        %7203 = vst [vmem:[%s484 + $0x688] sm:$0xff] %v6947
        %7204 = vst [vmem:[%s484 + $0x690] sm:$0xff] %v6948
        %7205 = vst [vmem:[%s484 + $0x698] sm:$0xff] %v6949
        %7206 = vst [vmem:[%s484 + $0x6a0] sm:$0xff] %v6950
        %7207 = vst [vmem:[%s484 + $0x6a8] sm:$0xff] %v6951
        %7208 = vst [vmem:[%s484 + $0x6b0] sm:$0xff] %v6952
        %7209 = vst [vmem:[%s484 + $0x6b8] sm:$0xff] %v6953
        %7210 = vst [vmem:[%s484 + $0x6c0] sm:$0xff] %v6954
        %7211 = vst [vmem:[%s484 + $0x6c8] sm:$0xff] %v6955
        %7212 = vst [vmem:[%s484 + $0x6d0] sm:$0xff] %v6956
        %7213 = vst [vmem:[%s484 + $0x6d8] sm:$0xff] %v6957
        %7214 = vst [vmem:[%s484 + $0x6e0] sm:$0xff] %v6958
        %7215 = vst [vmem:[%s484 + $0x6e8] sm:$0xff] %v6959
        %7216 = vst [vmem:[%s484 + $0x6f0] sm:$0xff] %v6960
        %7217 = vst [vmem:[%s484 + $0x6f8] sm:$0xff] %v6961
        %7218 = vst [vmem:[%s484 + $0x700] sm:$0xff] %v6962
        %7219 = vst [vmem:[%s484 + $0x708] sm:$0xff] %v6963
        %7220 = vst [vmem:[%s484 + $0x710] sm:$0xff] %v6964
        %7221 = vst [vmem:[%s484 + $0x718] sm:$0xff] %v6965
        %7222 = vst [vmem:[%s484 + $0x720] sm:$0xff] %v6966
        %7223 = vst [vmem:[%s484 + $0x728] sm:$0xff] %v6967
        %7224 = vst [vmem:[%s484 + $0x730] sm:$0xff] %v6968
        %7225 = vst [vmem:[%s484 + $0x738] sm:$0xff] %v6969
        %7226 = vst [vmem:[%s484 + $0x740] sm:$0xff] %v6970
        %7227 = vst [vmem:[%s484 + $0x748] sm:$0xff] %v6971
        %7228 = vst [vmem:[%s484 + $0x750] sm:$0xff] %v6972
        %7229 = vst [vmem:[%s484 + $0x758] sm:$0xff] %v6973
        %7230 = vst [vmem:[%s484 + $0x760] sm:$0xff] %v6974
        %7231 = vst [vmem:[%s484 + $0x768] sm:$0xff] %v6975
        %7232 = vst [vmem:[%s484 + $0x770] sm:$0xff] %v6976
        %7233 = vst [vmem:[%s484 + $0x778] sm:$0xff] %v6977
        %7234 = vst [vmem:[%s484 + $0x780] sm:$0xff] %v6978
        %7235 = vst [vmem:[%s484 + $0x788] sm:$0xff] %v6979
        %7236 = vst [vmem:[%s484 + $0x790] sm:$0xff] %v6980
        %7237 = vst [vmem:[%s484 + $0x798] sm:$0xff] %v6981
        %7238 = vst [vmem:[%s484 + $0x7a0] sm:$0xff] %v6982
        %7239 = vst [vmem:[%s484 + $0x7a8] sm:$0xff] %v6983
        %7240 = vst [vmem:[%s484 + $0x7b0] sm:$0xff] %v6984
        %7241 = vst [vmem:[%s484 + $0x7b8] sm:$0xff] %v6985
        %7242 = vst [vmem:[%s484 + $0x7c0] sm:$0xff] %v6986
        %7243 = vst [vmem:[%s484 + $0x7c8] sm:$0xff] %v6987
        %7244 = vst [vmem:[%s484 + $0x7d0] sm:$0xff] %v6988
        %7245 = vst [vmem:[%s484 + $0x7d8] sm:$0xff] %v6989
        %7246 = vst [vmem:[%s484 + $0x7e0] sm:$0xff] %v6990
        %7247 = vst [vmem:[%s484 + $0x7e8] sm:$0xff] %v6991
        %7248 = vst [vmem:[%s484 + $0x7f0] sm:$0xff] %v6992
        %7249 = vst [vmem:[%s484 + $0x7f8] sm:$0xff] %v6993
        %s7250 = sand.u32 %s169, 1
        %s7251 = scalar_lea.sflag [#allocation6], %s7250
        %s7252 = sand.u32 %s169, 1
        %s7253 = smul.addr %s7252, 2048
        %s7254 = scalar_lea.vmem [#allocation9], %s7253
        %s7255 = sand.u32 %s31, 1
        %s7256 = scalar_lea.sflag [#allocation11], %s7255
        %s7257 = sand.u32 %s195, 1
        %s7258 = smul.addr %s7257, 2048
        %s7259 = scalar_lea.vmem [#allocation10], %s7258
        %s7260 = sand.u32 %s31, 1
        %s7261 = scalar_lea.sflag [#allocation11], %s7260
        %s7262 = sand.u32 %s221, 1
        %s7263 = smul.addr %s7262, 32
        %s7264 = scalar_lea.vmem [#allocation12], %s7263
        // Predicated region
        $region125: #{tpu_custom_call.1} parent=107 // pred_check
          %p7265 = pneg %p179
        $region126: #{tpu_custom_call.1} parent=107 // pred_check_branch
          %7267 = sbr.rel (%p7265) target = $region128
        $region127: #{tpu_custom_call.1} parent=107 // pred_region
          %s7268 = smul.u32 128, %s31
          %7270 = vsyncadd %s7251, 0
          %s7271 = smul.addr %s7268, 2
          %s7272 = smul.addr %s7271, 8
          %s7273 = scalar_lea.hbm %s5, %s7272
          %s7274 = sshll.u32 %s7254, 4
          %s7275 = int_to_ptr.vmem [resolvable:$true] %s7274
          %s7276 = sshll.u32 %s7273, 4
          %s7277 = int_to_ptr.hbm [resolvable:$true] %s7276
          %7282 = dma.vmem_to_hbm [thread:$0]  %s7275, 32768, %s7277, %s7251, 128, 128, 8
        $region128: #{tpu_custom_call.1} parent=107 // pred_fallthru
          _
        // Predicated region
        $region129: #{tpu_custom_call.1} parent=107 // pred_check
          %p7283 = pneg %p205
        $region130: #{tpu_custom_call.1} parent=107 // pred_check_branch
          %7285 = sbr.rel (%p7283) target = $region132
        $region131: #{tpu_custom_call.1} parent=107 // pred_region
          %s7286 = smul.u32 128, %s31
          %7288 = vsyncadd %s7256, 0
          %s7289 = smul.addr %s7286, 2
          %s7290 = smul.addr %s7289, 8
          %s7291 = scalar_lea.hbm %s6, %s7290
          %s7292 = sshll.u32 %s7259, 4
          %s7293 = int_to_ptr.vmem [resolvable:$true] %s7292
          %s7294 = sshll.u32 %s7291, 4
          %s7295 = int_to_ptr.hbm [resolvable:$true] %s7294
          %7300 = dma.vmem_to_hbm [thread:$0]  %s7293, 32768, %s7295, %s7256, 128, 128, 8
        $region132: #{tpu_custom_call.1} parent=107 // pred_fallthru
          _
        // Predicated region
        $region133: #{tpu_custom_call.1} parent=107 // pred_check
          %p7301 = pneg %p231
        $region134: #{tpu_custom_call.1} parent=107 // pred_check_branch
          %7303 = sbr.rel (%p7301) target = $region136
        $region135: #{tpu_custom_call.1} parent=107 // pred_region
          %7305 = vsyncadd %s7261, 0
          %s7306 = smul.addr %s31, 8
          %s7307 = scalar_lea.hbm %s7, %s7306
          %s7308 = sshll.u32 %s7264, 4
          %s7309 = int_to_ptr.vmem [resolvable:$true] %s7308
          %s7310 = sshll.u32 %s7307, 4
          %s7311 = int_to_ptr.hbm [resolvable:$true] %s7310
          %7316 = dma.vmem_to_hbm [thread:$0]  %s7309, 512, %s7311, %s7261, 128, 256, 8
        $region136: #{tpu_custom_call.1} parent=107 // pred_fallthru
          _
      $region108: #{tpu_custom_call.1} parent=5 // pred_fallthru
        _
      %p7317 = scmp.le.s32.totalorder 2, %s26
      // Predicated region
      $region137: #{tpu_custom_call.1} parent=5 // pred_check
        %p7318 = pneg %p7317
      $region138: #{tpu_custom_call.1} parent=5 // pred_check_branch
        %7320 = sbr.rel (%p7318) target = $region140
      $region139: #{tpu_custom_call.1} parent=5 // pred_region
        %s7321 = ssub.s32 %s26, 2
        // Predicated region
        $region141: #{tpu_custom_call.1} parent=139 // pred_check
          %p7322 = pneg %p185
        $region142: #{tpu_custom_call.1} parent=139 // pred_check_branch
          %7324 = sbr.rel (%p7322) target = $region144
        $region143: #{tpu_custom_call.1} parent=139 // pred_region
          %s7325 = sand.u32 %s170, 1
          %s7326 = scalar_lea.sflag [#allocation6], %s7325
          %s7327 = sand.u32 %s170, 1
          %s7328 = smul.addr %s7327, 2048
          %s7329 = scalar_lea.vmem [#allocation9], %s7328
          %7331 = dma.done %s7326, 32768
        $region144: #{tpu_custom_call.1} parent=139 // pred_fallthru
          _
        // Predicated region
        $region145: #{tpu_custom_call.1} parent=139 // pred_check
          %p7332 = pneg %p211
        $region146: #{tpu_custom_call.1} parent=139 // pred_check_branch
          %7334 = sbr.rel (%p7332) target = $region148
        $region147: #{tpu_custom_call.1} parent=139 // pred_region
          %s7335 = sand.u32 %s32, 1
          %s7336 = scalar_lea.sflag [#allocation11], %s7335
          %s7337 = sand.u32 %s196, 1
          %s7338 = smul.addr %s7337, 2048
          %s7339 = scalar_lea.vmem [#allocation10], %s7338
          %7341 = dma.done %s7336, 32768
        $region148: #{tpu_custom_call.1} parent=139 // pred_fallthru
          _
        // Predicated region
        $region149: #{tpu_custom_call.1} parent=139 // pred_check
          %p7342 = pneg %p237
        $region150: #{tpu_custom_call.1} parent=139 // pred_check_branch
          %7344 = sbr.rel (%p7342) target = $region152
        $region151: #{tpu_custom_call.1} parent=139 // pred_region
          %s7345 = sand.u32 %s32, 1
          %s7346 = scalar_lea.sflag [#allocation11], %s7345
          %s7347 = sand.u32 %s222, 1
          %s7348 = smul.addr %s7347, 32
          %s7349 = scalar_lea.vmem [#allocation12], %s7348
          %7351 = dma.done %s7346, 512
        $region152: #{tpu_custom_call.1} parent=139 // pred_fallthru
          _
      $region140: #{tpu_custom_call.1} parent=5 // pred_fallthru
        _
    $region6: #{tpu_custom_call.1} parent=1 // loop_footer
      %s30 = sadd.s32 1, %s26
    $region7: #{tpu_custom_call.1} parent=1 // loop_footer_branch
      %25 = sbr.rel target = $region3
    $region8: #{tpu_custom_call.1} parent=1 // loop_exit
      _
    %7352 = vsyncpa [#allocation5], 1
    %s7353 = scalar_lea.sflag [#allocation5], 1
    %7354 = vsyncpa %s7353, 1
    %7355 = vsyncpa [#allocation8], 1
    %s7356 = scalar_lea.sflag [#allocation8], 1
    %7357 = vsyncpa %s7356, 1
    %7358 = vsyncpa [#allocation6], 1
    %s7359 = scalar_lea.sflag [#allocation6], 1
    %7360 = vsyncpa %s7359, 1
    %7361 = vsyncpa [#allocation11], 1
    %s7362 = scalar_lea.sflag [#allocation11], 1
    %7363 = vsyncpa %s7362, 1

</llo_original>
